<compile_context>
chip_gen: v6e
topology: v6e:2x2x1
jax: 0.10.0
libtpu: 0.0.40
codegen_flags: <defaults>
</compile_context>

<pallas_src>
import numpy as np
import jax
import jax.numpy as jnp
from jax import lax
from jax.experimental import pallas as pl
from jax.experimental.pallas import tpu as pltpu


# ---------------------------------------------------------------------------
# helpers
# ---------------------------------------------------------------------------
def _round_up(x, m):
    return ((x + m - 1) // m) * m


def make_mlp_params(key, sizes):
    """Deterministic params for G.MLP([a, h, b]) -> (w1, b1, w2, b2)."""
    a, h, b = sizes
    k1, k2, k3, k4 = jax.random.split(key, 4)
    w1 = jax.random.normal(k1, (a, h), jnp.float32) * (1.0 / np.sqrt(a))
    b1 = jax.random.normal(k2, (1, h), jnp.float32) * 0.01
    w2 = jax.random.normal(k3, (h, b), jnp.float32) * (1.0 / np.sqrt(h))
    b2 = jax.random.normal(k4, (1, b), jnp.float32) * 0.01
    return (w1, b1, w2, b2)


def _pick_vmem_limit():
    """48 MiB on v7x / unknown (64 MiB physical), 96 MiB on v5e / v6e (128 MiB)."""
    try:
        kind = jax.devices()[0].device_kind.lower()
    except Exception:
        return 48 * 1024 * 1024
    if ("v5" in kind) or ("v6" in kind):
        return 96 * 1024 * 1024
    return 48 * 1024 * 1024


# ---------------------------------------------------------------------------
# LPGCN model (parameter container + fused Pallas forward)
# ---------------------------------------------------------------------------
class LPGCNPallas:
    LANE = 128   # lane width
    HID = 128    # padded hidden width of every MLP (real hidden is 32 or 1)

    def __init__(self, num_constraints, num_variables, num_layers=5, seed=0, tile_batch=8):
        self.num_constraints = num_constraints
        self.num_variables = num_variables
        self.num_layers = num_layers
        self.tile_batch = max(1, int(tile_batch))

        np.random.seed(seed)
        ints = np.random.randint(1, 10, size=num_layers)
        self.dims = [2 ** int(i) for i in ints]

        self.m_pad = _round_up(num_constraints, 8)
        self.n_pad = _round_up(num_variables, 8)
        self.D_pads = [_round_up(d, self.LANE) for d in self.dims]  # per-layer padded widths
        self.F_RAW = self.LANE                                      # raw-feature lane width
        self._vmem_limit = _pick_vmem_limit()

        # ----- raw (unpadded) parameters, deterministic -----
        L = num_layers
        dims = self.dims
        key = jax.random.PRNGKey(42)
        n_mlps = 2 + 4 * (L - 1) + 2
        keys = iter(jax.random.split(key, n_mlps))
        self.fv_in = make_mlp_params(next(keys), [2, 32, dims[0]])
        self.fw_in = make_mlp_params(next(keys), [3, 32, dims[0]])
        self.fv = [make_mlp_params(next(keys), [dims[l - 1], 32, dims[l]]) for l in range(1, L)]
        self.gv = [make_mlp_params(next(keys), [dims[l - 1] + dims[l], 32, dims[l]]) for l in range(1, L)]
        self.fw = [make_mlp_params(next(keys), [dims[l - 1], 32, dims[l]]) for l in range(1, L)]
        self.gw = [make_mlp_params(next(keys), [dims[l - 1] + dims[l], 32, dims[l]]) for l in range(1, L)]
        self.f_out = make_mlp_params(next(keys), [2 * dims[L - 1], 1, 1])
        self.fw_out = make_mlp_params(next(keys), [3 * dims[L - 1], 32, 1])

        self._pack_params()
        self._kernel = self._build_kernel()

    # ---------------- true-size weight packing into flat, lane-dense tables ----------------
    def _pack_params(self):
        H, LANE = self.HID, self.LANE
        dims, D_pads, L = self.dims, self.D_pads, self.num_layers
        D_last = D_pads[L - 1]
        self.Dmax = max(D_pads + [LANE])

        w1_chunks, w2_chunks, b1_rows, b2_rows = [], [], [], []
        self.w1_off = {}     # name -> list of (row_offset_in_WA, padded_rows)
        self.w2_off = {}     # name -> (row_offset_in_WB, out_pad)
        self.bias_idx = {}   # name -> row index in B1 / B2
        ra, rb = [0], [0]

        def add(name, params, raw_splits, pad_splits):
            w1, b1, w2, b2 = [np.asarray(p, np.float32) for p in params]
            hid, out = w1.shape[1], w2.shape[1]
            out_pad = _round_up(out, LANE)
            # first-layer weights: one (pad_rows, 128) slab per input part
            offs, roff = [], 0
            for raw_sz, pad_sz in zip(raw_splits, pad_splits):
                slab = np.zeros((pad_sz, H), np.float32)
                slab[:raw_sz, :hid] = w1[roff:roff + raw_sz, :]
                offs.append((ra[0], pad_sz))
                w1_chunks.append(slab)
                ra[0] += pad_sz
                roff += raw_sz
            self.w1_off[name] = offs
            # second-layer weights stored TRANSPOSED: (out_pad, 128)
            w2t = np.zeros((out_pad, H), np.float32)
            w2t[:out, :hid] = w2.T
            self.w2_off[name] = (rb[0], out_pad)
            w2_chunks.append(w2t)
            rb[0] += out_pad
            # biases
            j = len(b1_rows)
            self.bias_idx[name] = j
            row1 = np.zeros((H,), np.float32); row1[:hid] = b1[0]
            row2 = np.zeros((self.Dmax,), np.float32); row2[:out] = b2[0]
            b1_rows.append(row1); b2_rows.append(row2)

        add("fv_in", self.fv_in, [2], [self.F_RAW])
        add("fw_in", self.fw_in, [3], [self.F_RAW])
        for k in range(L - 1):
            add(f"fv{k}", self.fv[k], [dims[k]], [D_pads[k]])
            add(f"gv{k}", self.gv[k], [dims[k], dims[k + 1]], [D_pads[k], D_pads[k + 1]])
            add(f"fw{k}", self.fw[k], [dims[k]], [D_pads[k]])
            add(f"gw{k}", self.gw[k], [dims[k], dims[k + 1]], [D_pads[k], D_pads[k + 1]])
        add("f_out", self.f_out, [dims[L - 1]] * 2, [D_last] * 2)
        add("fw_out", self.fw_out, [dims[L - 1]] * 3, [D_last] * 3)

        self.WA = jnp.asarray(np.concatenate(w1_chunks, axis=0))   # (RA, 128)
        self.WB = jnp.asarray(np.concatenate(w2_chunks, axis=0))   # (RB, 128), transposed W2
        self.B1 = jnp.asarray(np.stack(b1_rows))                   # (NM, 128)
        self.B2 = jnp.asarray(np.stack(b2_rows))                   # (NM, Dmax)

    # ---------------- fused kernel (TB batch samples per grid step) ----------------
    def _build_kernel(self):
        L = self.num_layers
        m, n = self.num_constraints, self.num_variables
        D_pads = list(self.D_pads)
        w1_off = dict(self.w1_off)
        w2_off = dict(self.w2_off)
        bias_idx = dict(self.bias_idx)

        def kernel(hv_ref, hw_ref, E_ref, ET_ref, WA_ref, WB_ref, B1_ref, B2_ref,
                   y_ref, sol_ref):
            TB, m_pad, _ = hv_ref.shape
            _, n_pad, _ = hw_ref.shape

            def mlp(parts, name):
                # relu(sum_i x_i @ W1_i + b1) @ W2 + b2, all slices static & 128-aligned
                j = bias_idx[name]
                pre = B1_ref[j:j + 1, :]                               # (1, 128)
                for x, (off, rows) in zip(parts, w1_off[name]):
                    pre = pre + jnp.dot(x, WA_ref[off:off + rows, :],
                                        preferred_element_type=jnp.float32)
                h = jnp.maximum(pre, 0.0)                              # (rows, 128)
                woff, out_pad = w2_off[name]
                out = lax.dot_general(h, WB_ref[woff:woff + out_pad, :],
                                      (((1,), (1,)), ((), ())),        # h @ W2t^T
                                      preferred_element_type=jnp.float32)
                return out + B2_ref[j:j + 1, :out_pad]

            # node features of TB samples flattened for shared-weight MLP matmuls
            hv = hv_ref[...].reshape(TB * m_pad, -1)   # (TB*m_pad, 128) raw [b, constraints]
            hw = hw_ref[...].reshape(TB * n_pad, -1)   # (TB*n_pad, 128) raw [c, l, u]
            E = E_ref[...]                             # (TB, m_pad, n_pad)
            ET = ET_ref[...]                           # (TB, n_pad, m_pad)

            # layer 0: feature initialisation
            hv = mlp([hv], "fv_in")                    # (TB*m_pad, D_pads[0])
            hw = mlp([hw], "fw_in")                    # (TB*n_pad, D_pads[0])

            # message-passing layers (both updates use the OLD hv / hw, as in the reference)
            for k in range(L - 1):
                Dk = D_pads[k + 1]
                fw_hw = mlp([hw], f"fw{k}").reshape(TB, n_pad, Dk)
                s_v = jnp.einsum("bmn,bnd->bmd", E, fw_hw,
                                 preferred_element_type=jnp.float32).reshape(TB * m_pad, Dk)
                fv_hv = mlp([hv], f"fv{k}").reshape(TB, m_pad, Dk)
                s_w = jnp.einsum("bnm,bmd->bnd", ET, fv_hv,
                                 preferred_element_type=jnp.float32).reshape(TB * n_pad, Dk)
                hv_new = mlp([hv, s_v], f"gv{k}")
                hw_new = mlp([hw, s_w], f"gw{k}")
                hv, hw = hv_new, hw_new

            # readout sums over real (unpadded) node rows only
            D_last = D_pads[L - 1]
            hv3 = hv.reshape(TB, m_pad, D_last)
            hw3 = hw.reshape(TB, n_pad, D_last)
            if m_pad != m:
                ridx = lax.broadcasted_iota(jnp.int32, hv3.shape, 1)
                hv3 = jnp.where(ridx < m, hv3, 0.0)
            if n_pad != n:
                ridx = lax.broadcasted_iota(jnp.int32, hw3.shape, 1)
                hw3 = jnp.where(ridx < n, hw3, 0.0)
            sum_hv = jnp.sum(hv3, axis=1)              # (TB, D_last)
            sum_hw = jnp.sum(hw3, axis=1)              # (TB, D_last)

            # single readout (feas / obj): real value lives in lane 0
            y = mlp([sum_hv, sum_hw], "f_out")         # (TB, 128)
            y_ref[...] = y.reshape(TB, 1, -1)

            # solution readout: shared "sum" part computed once per sample, then per-variable
            j = bias_idx["fw_out"]
            (o0, r0), (o1, r1), (o2, r2) = w1_off["fw_out"]
            pre_sum = (B1_ref[j:j + 1, :]
                       + jnp.dot(sum_hv, WA_ref[o0:o0 + r0, :], preferred_element_type=jnp.float32)
                       + jnp.dot(sum_hw, WA_ref[o1:o1 + r1, :], preferred_element_type=jnp.float32))
            pre_var = jnp.dot(hw, WA_ref[o2:o2 + r2, :], preferred_element_type=jnp.float32)
            pre = pre_var.reshape(TB, n_pad, -1) + pre_sum[:, None, :]
            h = jnp.maximum(pre, 0.0).reshape(TB * n_pad, -1)
            woff, out_pad = w2_off["fw_out"]
            sol = lax.dot_general(h, WB_ref[woff:woff + out_pad, :],
                                  (((1,), (1,)), ((), ())),
                                  preferred_element_type=jnp.float32) + B2_ref[j:j + 1, :out_pad]
            sol_ref[...] = sol.reshape(TB, n_pad, -1)  # real value per variable in lane 0

        return kernel

    # ---------------- pallas_call wrapper ----------------
    def _fused_forward(self, hv_raw, hw_raw, E_p, ET_p, TB):
        B_pad = hv_raw.shape[0]
        m_pad, n_pad, F = self.m_pad, self.n_pad, self.F_RAW
        RA, RB = self.WA.shape[0], self.WB.shape[0]
        NM, Dmax = self.B1.shape[0], self.B2.shape[1]
        const2 = lambda i: (0, 0)
        in_specs = [
            pl.BlockSpec((TB, m_pad, F), lambda i: (i, 0, 0)),
            pl.BlockSpec((TB, n_pad, F), lambda i: (i, 0, 0)),
            pl.BlockSpec((TB, m_pad, n_pad), lambda i: (i, 0, 0)),
            pl.BlockSpec((TB, n_pad, m_pad), lambda i: (i, 0, 0)),
            pl.BlockSpec((RA, self.HID), const2),      # constant across grid -> DMA'd once
            pl.BlockSpec((RB, self.HID), const2),
            pl.BlockSpec((NM, self.HID), const2),
            pl.BlockSpec((NM, Dmax), const2),
        ]
        out_specs = (
            pl.BlockSpec((TB, 1, self.LANE), lambda i: (i, 0, 0)),
            pl.BlockSpec((TB, n_pad, self.LANE), lambda i: (i, 0, 0)),
        )
        out_shape = (
            jax.ShapeDtypeStruct((B_pad, 1, self.LANE), jnp.float32),
            jax.ShapeDtypeStruct((B_pad, n_pad, self.LANE), jnp.float32),
        )
        return pl.pallas_call(
            self._kernel,
            grid=(B_pad // TB,),
            in_specs=in_specs,
            out_specs=out_specs,
            out_shape=out_shape,
            compiler_params=pltpu.CompilerParams(
                dimension_semantics=("parallel",),     # batch tiles shard across TCs (v7x)
                vmem_limit_bytes=self._vmem_limit,     # 48 MiB v7x / 96 MiB v5e-v6e
            ),
        )(hv_raw, hw_raw, E_p, ET_p, self.WA, self.WB, self.B1, self.B2)

    # ---------------- forward ----------------
    def __call__(self, c, A, b, constraints, l, u, phi='feas'):
        B = c.shape[0]
        m, n = self.num_constraints, self.num_variables
        m_pad, n_pad, F = self.m_pad, self.n_pad, self.F_RAW
        TB = max(1, min(self.tile_batch, B))
        B_pad = _round_up(B, TB)

        # construct_graph + zero-padding to lane/sublane-friendly shapes (plain JAX glue)
        hv_raw = jnp.zeros((B_pad, m_pad, F), jnp.float32)
        hv_raw = hv_raw.at[:B, :m, 0].set(b).at[:B, :m, 1].set(constraints)
        hw_raw = jnp.zeros((B_pad, n_pad, F), jnp.float32)
        hw_raw = hw_raw.at[:B, :n, 0].set(c).at[:B, :n, 1].set(l).at[:B, :n, 2].set(u)
        E_p = jnp.zeros((B_pad, m_pad, n_pad), jnp.float32).at[:B, :m, :n].set(A)
        ET_p = jnp.transpose(E_p, (0, 2, 1))   # E^T computed once, reused by all layers

        y_full, sol_full = self._fused_forward(hv_raw, hw_raw, E_p, ET_p, TB)
        y = y_full[:B, 0, :1]        # (B, 1)
        sol = sol_full[:B, :n, 0]    # (B, n)

        if phi == 'feas':
            # reference thresholds the raw readout at 0.5 (no sigmoid)
            return (y[:, 0] >= 0.5).astype(jnp.float32)      # (B,)
        elif phi == 'obj':
            return y                                          # (B, 1)
        elif phi == 'sol':
            return sol                                        # (B, n)
        else:
            return 'Please, choose one type of function: feas, obj or sol'


# ---------------------------------------------------------------------------
# demo
# ---------------------------------------------------------------------------
if __name__ == "__main__":
    B, m, n = 2, 8, 12   # batch, num_constraints, num_variables

    model = LPGCNPallas(num_constraints=m, num_variables=n, num_layers=5, seed=0, tile_batch=8)

    key = jax.random.PRNGKey(0)
    kc, kA, kb, kcons = jax.random.split(key, 4)
    c = jax.random.normal(kc, (B, n), jnp.float32)
    A = jax.random.normal(kA, (B, m, n), jnp.float32)
    b = jax.random.normal(kb, (B, m), jnp.float32)
    constraints = (jax.random.uniform(kcons, (B, m)) > 0.5).astype(jnp.float32)
    l = -jnp.ones((B, n), jnp.float32)
    u = jnp.ones((B, n), jnp.float32)

    feas = model(c, A, b, constraints, l, u, phi='feas')   # (B,)
    obj = model(c, A, b, constraints, l, u, phi='obj')     # (B, 1)
    sol = model(c, A, b, constraints, l, u, phi='sol')     # (B, n)

    jax.block_until_ready((feas, obj, sol))
    assert feas.shape == (B,) and obj.shape == (B, 1) and sol.shape == (B, n)
    assert bool(jnp.all(jnp.isfinite(obj))) and bool(jnp.all(jnp.isfinite(sol)))
    print("KERNEL_OK")
</pallas_src>

<mosaic_0001>
module attributes {stable_mosaic.version = 11 : i64} {
  func.func @kernel(%arg0: i32, %arg1: memref<2x8x128xf32, #tpu.memory_space<vmem>>, %arg2: memref<2x16x128xf32, #tpu.memory_space<vmem>>, %arg3: memref<2x8x16xf32, #tpu.memory_space<vmem>>, %arg4: memref<2x16x8xf32, #tpu.memory_space<vmem>>, %arg5: memref<4864x128xf32, #tpu.memory_space<vmem>>, %arg6: memref<3072x128xf32, #tpu.memory_space<vmem>>, %arg7: memref<20x128xf32, #tpu.memory_space<vmem>>, %arg8: memref<20x256xf32, #tpu.memory_space<vmem>>, %arg9: memref<2x1x128xf32, #tpu.memory_space<vmem>>, %arg10: memref<2x16x128xf32, #tpu.memory_space<vmem>>) attributes {dimension_semantics = [#tpu.dimension_semantics<parallel>], iteration_bounds = array<i64: 1>, scalar_prefetch = 0 : i64, scratch_operands = 0 : i64, tpu.core_type = #tpu.core_type<tc>, window_params = [{transform_indices = @transform_0, window_bounds = array<i64: 2, 8, 128>}, {transform_indices = @transform_1, window_bounds = array<i64: 2, 16, 128>}, {transform_indices = @transform_2, window_bounds = array<i64: 2, 8, 16>}, {transform_indices = @transform_3, window_bounds = array<i64: 2, 16, 8>}, {pipeline_mode = #tpu.pipeline_mode<synchronous>, transform_indices = @transform_4, window_bounds = array<i64: 4864, 128>}, {pipeline_mode = #tpu.pipeline_mode<synchronous>, transform_indices = @transform_5, window_bounds = array<i64: 3072, 128>}, {pipeline_mode = #tpu.pipeline_mode<synchronous>, transform_indices = @transform_6, window_bounds = array<i64: 20, 128>}, {pipeline_mode = #tpu.pipeline_mode<synchronous>, transform_indices = @transform_7, window_bounds = array<i64: 20, 256>}, {transform_indices = @transform_8, window_bounds = array<i64: 2, 1, 128>}, {transform_indices = @transform_9, window_bounds = array<i64: 2, 16, 128>}]} {
    %c0 = arith.constant 0 : index
    %c0_0 = arith.constant 0 : index
    %c0_1 = arith.constant 0 : index
    %0 = vector.load %arg1[%c0, %c0_0, %c0_1] : memref<2x8x128xf32, #tpu.memory_space<vmem>>, vector<2x8x128xf32>
    %1 = vector.shape_cast %0 : vector<2x8x128xf32> to vector<16x128xf32>
    %c0_2 = arith.constant 0 : index
    %c0_3 = arith.constant 0 : index
    %c0_4 = arith.constant 0 : index
    %2 = vector.load %arg2[%c0_2, %c0_3, %c0_4] : memref<2x16x128xf32, #tpu.memory_space<vmem>>, vector<2x16x128xf32>
    %3 = vector.shape_cast %2 : vector<2x16x128xf32> to vector<32x128xf32>
    %c0_5 = arith.constant 0 : index
    %c0_6 = arith.constant 0 : index
    %c0_7 = arith.constant 0 : index
    %4 = vector.load %arg3[%c0_5, %c0_6, %c0_7] : memref<2x8x16xf32, #tpu.memory_space<vmem>>, vector<2x8x16xf32>
    %c0_8 = arith.constant 0 : index
    %c0_9 = arith.constant 0 : index
    %c0_10 = arith.constant 0 : index
    %5 = vector.load %arg4[%c0_8, %c0_9, %c0_10] : memref<2x16x8xf32, #tpu.memory_space<vmem>>, vector<2x16x8xf32>
    %c0_11 = arith.constant 0 : index
    %c0_12 = arith.constant 0 : index
    %6 = vector.load %arg7[%c0_11, %c0_12] : memref<20x128xf32, #tpu.memory_space<vmem>>, vector<1x128xf32>
    %c0_13 = arith.constant 0 : index
    %c0_14 = arith.constant 0 : index
    %7 = vector.load %arg5[%c0_13, %c0_14] : memref<4864x128xf32, #tpu.memory_space<vmem>>, vector<128x128xf32>
    %cst = arith.constant dense<0.000000e+00> : vector<16x128xf32>
    %8 = tpu.matmul %1, %7, %cst {dimension_numbers = #tpu.dot_dimension_numbers<[1], [0], [0], [1], [0, 0, 1, 1], [], []>} : vector<16x128xf32>, vector<128x128xf32>, vector<16x128xf32> -> vector<16x128xf32>
    %9 = vector.broadcast %6 : vector<1x128xf32> to vector<16x128xf32>
    %10 = arith.addf %9, %8 : vector<16x128xf32>
    %cst_15 = arith.constant 0.000000e+00 : f32
    %11 = vector.broadcast %cst_15 : f32 to vector<16x128xf32>
    %12 = arith.maximumf %10, %11 : vector<16x128xf32>
    %c0_16 = arith.constant 0 : index
    %c0_17 = arith.constant 0 : index
    %13 = vector.load %arg6[%c0_16, %c0_17] : memref<3072x128xf32, #tpu.memory_space<vmem>>, vector<128x128xf32>
    %cst_18 = arith.constant dense<0.000000e+00> : vector<16x128xf32>
    %14 = tpu.matmul %12, %13, %cst_18 {dimension_numbers = #tpu.dot_dimension_numbers<[1], [1], [0], [0], [0, 0, 1, 0], [], []>} : vector<16x128xf32>, vector<128x128xf32>, vector<16x128xf32> -> vector<16x128xf32>
    %c0_19 = arith.constant 0 : index
    %c0_20 = arith.constant 0 : index
    %15 = vector.load %arg8[%c0_19, %c0_20] : memref<20x256xf32, #tpu.memory_space<vmem>>, vector<1x128xf32>
    %16 = vector.broadcast %15 : vector<1x128xf32> to vector<16x128xf32>
    %17 = arith.addf %14, %16 : vector<16x128xf32>
    %c1 = arith.constant 1 : index
    %c0_21 = arith.constant 0 : index
    %18 = vector.load %arg7[%c1, %c0_21] : memref<20x128xf32, #tpu.memory_space<vmem>>, vector<1x128xf32>
    %c128 = arith.constant 128 : index
    %c0_22 = arith.constant 0 : index
    %19 = vector.load %arg5[%c128, %c0_22] : memref<4864x128xf32, #tpu.memory_space<vmem>>, vector<128x128xf32>
    %cst_23 = arith.constant dense<0.000000e+00> : vector<32x128xf32>
    %20 = tpu.matmul %3, %19, %cst_23 {dimension_numbers = #tpu.dot_dimension_numbers<[1], [0], [0], [1], [0, 0, 1, 1], [], []>} : vector<32x128xf32>, vector<128x128xf32>, vector<32x128xf32> -> vector<32x128xf32>
    %21 = vector.broadcast %18 : vector<1x128xf32> to vector<32x128xf32>
    %22 = arith.addf %21, %20 : vector<32x128xf32>
    %cst_24 = arith.constant 0.000000e+00 : f32
    %23 = vector.broadcast %cst_24 : f32 to vector<32x128xf32>
    %24 = arith.maximumf %22, %23 : vector<32x128xf32>
    %c128_25 = arith.constant 128 : index
    %c0_26 = arith.constant 0 : index
    %25 = vector.load %arg6[%c128_25, %c0_26] : memref<3072x128xf32, #tpu.memory_space<vmem>>, vector<128x128xf32>
    %cst_27 = arith.constant dense<0.000000e+00> : vector<32x128xf32>
    %26 = tpu.matmul %24, %25, %cst_27 {dimension_numbers = #tpu.dot_dimension_numbers<[1], [1], [0], [0], [0, 0, 1, 0], [], []>} : vector<32x128xf32>, vector<128x128xf32>, vector<32x128xf32> -> vector<32x128xf32>
    %c1_28 = arith.constant 1 : index
    %c0_29 = arith.constant 0 : index
    %27 = vector.load %arg8[%c1_28, %c0_29] : memref<20x256xf32, #tpu.memory_space<vmem>>, vector<1x128xf32>
    %28 = vector.broadcast %27 : vector<1x128xf32> to vector<32x128xf32>
    %29 = arith.addf %26, %28 : vector<32x128xf32>
    %c4 = arith.constant 4 : index
    %c0_30 = arith.constant 0 : index
    %30 = vector.load %arg7[%c4, %c0_30] : memref<20x128xf32, #tpu.memory_space<vmem>>, vector<1x128xf32>
    %c640 = arith.constant 640 : index
    %c0_31 = arith.constant 0 : index
    %31 = vector.load %arg5[%c640, %c0_31] : memref<4864x128xf32, #tpu.memory_space<vmem>>, vector<128x128xf32>
    %cst_32 = arith.constant dense<0.000000e+00> : vector<32x128xf32>
    %32 = tpu.matmul %29, %31, %cst_32 {dimension_numbers = #tpu.dot_dimension_numbers<[1], [0], [0], [1], [0, 0, 1, 1], [], []>} : vector<32x128xf32>, vector<128x128xf32>, vector<32x128xf32> -> vector<32x128xf32>
    %33 = vector.broadcast %30 : vector<1x128xf32> to vector<32x128xf32>
    %34 = arith.addf %33, %32 : vector<32x128xf32>
    %cst_33 = arith.constant 0.000000e+00 : f32
    %35 = vector.broadcast %cst_33 : f32 to vector<32x128xf32>
    %36 = arith.maximumf %34, %35 : vector<32x128xf32>
    %c512 = arith.constant 512 : index
    %c0_34 = arith.constant 0 : index
    %37 = vector.load %arg6[%c512, %c0_34] : memref<3072x128xf32, #tpu.memory_space<vmem>>, vector<128x128xf32>
    %cst_35 = arith.constant dense<0.000000e+00> : vector<32x128xf32>
    %38 = tpu.matmul %36, %37, %cst_35 {dimension_numbers = #tpu.dot_dimension_numbers<[1], [1], [0], [0], [0, 0, 1, 0], [], []>} : vector<32x128xf32>, vector<128x128xf32>, vector<32x128xf32> -> vector<32x128xf32>
    %c4_36 = arith.constant 4 : index
    %c0_37 = arith.constant 0 : index
    %39 = vector.load %arg8[%c4_36, %c0_37] : memref<20x256xf32, #tpu.memory_space<vmem>>, vector<1x128xf32>
    %40 = vector.broadcast %39 : vector<1x128xf32> to vector<32x128xf32>
    %41 = arith.addf %38, %40 : vector<32x128xf32>
    %42 = vector.shape_cast %41 : vector<32x128xf32> to vector<2x16x128xf32>
    "tpu.trace_start"() <{level = 10 : i32, message = "bmn,bnd->bmd"}> : () -> ()
    %cst_38 = arith.constant dense<0.000000e+00> : vector<2x8x128xf32>
    %43 = tpu.matmul %4, %42, %cst_38 {dimension_numbers = #tpu.dot_dimension_numbers<[2], [1], [1], [2], [0, 0, 0, 1, 1, 2], [0], [0]>} : vector<2x8x16xf32>, vector<2x16x128xf32>, vector<2x8x128xf32> -> vector<2x8x128xf32>
    "tpu.trace_stop"() : () -> ()
    %44 = vector.shape_cast %43 : vector<2x8x128xf32> to vector<16x128xf32>
    %c2 = arith.constant 2 : index
    %c0_39 = arith.constant 0 : index
    %45 = vector.load %arg7[%c2, %c0_39] : memref<20x128xf32, #tpu.memory_space<vmem>>, vector<1x128xf32>
    %c256 = arith.constant 256 : index
    %c0_40 = arith.constant 0 : index
    %46 = vector.load %arg5[%c256, %c0_40] : memref<4864x128xf32, #tpu.memory_space<vmem>>, vector<128x128xf32>
    %cst_41 = arith.constant dense<0.000000e+00> : vector<16x128xf32>
    %47 = tpu.matmul %17, %46, %cst_41 {dimension_numbers = #tpu.dot_dimension_numbers<[1], [0], [0], [1], [0, 0, 1, 1], [], []>} : vector<16x128xf32>, vector<128x128xf32>, vector<16x128xf32> -> vector<16x128xf32>
    %48 = vector.broadcast %45 : vector<1x128xf32> to vector<16x128xf32>
    %49 = arith.addf %48, %47 : vector<16x128xf32>
    %cst_42 = arith.constant 0.000000e+00 : f32
    %50 = vector.broadcast %cst_42 : f32 to vector<16x128xf32>
    %51 = arith.maximumf %49, %50 : vector<16x128xf32>
    %c256_43 = arith.constant 256 : index
    %c0_44 = arith.constant 0 : index
    %52 = vector.load %arg6[%c256_43, %c0_44] : memref<3072x128xf32, #tpu.memory_space<vmem>>, vector<128x128xf32>
    %cst_45 = arith.constant dense<0.000000e+00> : vector<16x128xf32>
    %53 = tpu.matmul %51, %52, %cst_45 {dimension_numbers = #tpu.dot_dimension_numbers<[1], [1], [0], [0], [0, 0, 1, 0], [], []>} : vector<16x128xf32>, vector<128x128xf32>, vector<16x128xf32> -> vector<16x128xf32>
    %c2_46 = arith.constant 2 : index
    %c0_47 = arith.constant 0 : index
    %54 = vector.load %arg8[%c2_46, %c0_47] : memref<20x256xf32, #tpu.memory_space<vmem>>, vector<1x128xf32>
    %55 = vector.broadcast %54 : vector<1x128xf32> to vector<16x128xf32>
    %56 = arith.addf %53, %55 : vector<16x128xf32>
    %57 = vector.shape_cast %56 : vector<16x128xf32> to vector<2x8x128xf32>
    "tpu.trace_start"() <{level = 10 : i32, message = "bnm,bmd->bnd"}> : () -> ()
    %cst_48 = arith.constant dense<0.000000e+00> : vector<2x16x128xf32>
    %58 = tpu.matmul %5, %57, %cst_48 {dimension_numbers = #tpu.dot_dimension_numbers<[2], [1], [1], [2], [0, 0, 0, 1, 1, 2], [0], [0]>} : vector<2x16x8xf32>, vector<2x8x128xf32>, vector<2x16x128xf32> -> vector<2x16x128xf32>
    "tpu.trace_stop"() : () -> ()
    %59 = vector.shape_cast %58 : vector<2x16x128xf32> to vector<32x128xf32>
    %c3 = arith.constant 3 : index
    %c0_49 = arith.constant 0 : index
    %60 = vector.load %arg7[%c3, %c0_49] : memref<20x128xf32, #tpu.memory_space<vmem>>, vector<1x128xf32>
    %c384 = arith.constant 384 : index
    %c0_50 = arith.constant 0 : index
    %61 = vector.load %arg5[%c384, %c0_50] : memref<4864x128xf32, #tpu.memory_space<vmem>>, vector<128x128xf32>
    %cst_51 = arith.constant dense<0.000000e+00> : vector<16x128xf32>
    %62 = tpu.matmul %17, %61, %cst_51 {dimension_numbers = #tpu.dot_dimension_numbers<[1], [0], [0], [1], [0, 0, 1, 1], [], []>} : vector<16x128xf32>, vector<128x128xf32>, vector<16x128xf32> -> vector<16x128xf32>
    %63 = vector.broadcast %60 : vector<1x128xf32> to vector<16x128xf32>
    %64 = arith.addf %63, %62 : vector<16x128xf32>
    %c512_52 = arith.constant 512 : index
    %c0_53 = arith.constant 0 : index
    %65 = vector.load %arg5[%c512_52, %c0_53] : memref<4864x128xf32, #tpu.memory_space<vmem>>, vector<128x128xf32>
    %cst_54 = arith.constant dense<0.000000e+00> : vector<16x128xf32>
    %66 = tpu.matmul %44, %65, %cst_54 {dimension_numbers = #tpu.dot_dimension_numbers<[1], [0], [0], [1], [0, 0, 1, 1], [], []>} : vector<16x128xf32>, vector<128x128xf32>, vector<16x128xf32> -> vector<16x128xf32>
    %67 = arith.addf %64, %66 : vector<16x128xf32>
    %cst_55 = arith.constant 0.000000e+00 : f32
    %68 = vector.broadcast %cst_55 : f32 to vector<16x128xf32>
    %69 = arith.maximumf %67, %68 : vector<16x128xf32>
    %c384_56 = arith.constant 384 : index
    %c0_57 = arith.constant 0 : index
    %70 = vector.load %arg6[%c384_56, %c0_57] : memref<3072x128xf32, #tpu.memory_space<vmem>>, vector<128x128xf32>
    %cst_58 = arith.constant dense<0.000000e+00> : vector<16x128xf32>
    %71 = tpu.matmul %69, %70, %cst_58 {dimension_numbers = #tpu.dot_dimension_numbers<[1], [1], [0], [0], [0, 0, 1, 0], [], []>} : vector<16x128xf32>, vector<128x128xf32>, vector<16x128xf32> -> vector<16x128xf32>
    %c3_59 = arith.constant 3 : index
    %c0_60 = arith.constant 0 : index
    %72 = vector.load %arg8[%c3_59, %c0_60] : memref<20x256xf32, #tpu.memory_space<vmem>>, vector<1x128xf32>
    %73 = vector.broadcast %72 : vector<1x128xf32> to vector<16x128xf32>
    %74 = arith.addf %71, %73 : vector<16x128xf32>
    %c5 = arith.constant 5 : index
    %c0_61 = arith.constant 0 : index
    %75 = vector.load %arg7[%c5, %c0_61] : memref<20x128xf32, #tpu.memory_space<vmem>>, vector<1x128xf32>
    %c768 = arith.constant 768 : index
    %c0_62 = arith.constant 0 : index
    %76 = vector.load %arg5[%c768, %c0_62] : memref<4864x128xf32, #tpu.memory_space<vmem>>, vector<128x128xf32>
    %cst_63 = arith.constant dense<0.000000e+00> : vector<32x128xf32>
    %77 = tpu.matmul %29, %76, %cst_63 {dimension_numbers = #tpu.dot_dimension_numbers<[1], [0], [0], [1], [0, 0, 1, 1], [], []>} : vector<32x128xf32>, vector<128x128xf32>, vector<32x128xf32> -> vector<32x128xf32>
    %78 = vector.broadcast %75 : vector<1x128xf32> to vector<32x128xf32>
    %79 = arith.addf %78, %77 : vector<32x128xf32>
    %c896 = arith.constant 896 : index
    %c0_64 = arith.constant 0 : index
    %80 = vector.load %arg5[%c896, %c0_64] : memref<4864x128xf32, #tpu.memory_space<vmem>>, vector<128x128xf32>
    %cst_65 = arith.constant dense<0.000000e+00> : vector<32x128xf32>
    %81 = tpu.matmul %59, %80, %cst_65 {dimension_numbers = #tpu.dot_dimension_numbers<[1], [0], [0], [1], [0, 0, 1, 1], [], []>} : vector<32x128xf32>, vector<128x128xf32>, vector<32x128xf32> -> vector<32x128xf32>
    %82 = arith.addf %79, %81 : vector<32x128xf32>
    %cst_66 = arith.constant 0.000000e+00 : f32
    %83 = vector.broadcast %cst_66 : f32 to vector<32x128xf32>
    %84 = arith.maximumf %82, %83 : vector<32x128xf32>
    %c640_67 = arith.constant 640 : index
    %c0_68 = arith.constant 0 : index
    %85 = vector.load %arg6[%c640_67, %c0_68] : memref<3072x128xf32, #tpu.memory_space<vmem>>, vector<128x128xf32>
    %cst_69 = arith.constant dense<0.000000e+00> : vector<32x128xf32>
    %86 = tpu.matmul %84, %85, %cst_69 {dimension_numbers = #tpu.dot_dimension_numbers<[1], [1], [0], [0], [0, 0, 1, 0], [], []>} : vector<32x128xf32>, vector<128x128xf32>, vector<32x128xf32> -> vector<32x128xf32>
    %c5_70 = arith.constant 5 : index
    %c0_71 = arith.constant 0 : index
    %87 = vector.load %arg8[%c5_70, %c0_71] : memref<20x256xf32, #tpu.memory_space<vmem>>, vector<1x128xf32>
    %88 = vector.broadcast %87 : vector<1x128xf32> to vector<32x128xf32>
    %89 = arith.addf %86, %88 : vector<32x128xf32>
    %c8 = arith.constant 8 : index
    %c0_72 = arith.constant 0 : index
    %90 = vector.load %arg7[%c8, %c0_72] : memref<20x128xf32, #tpu.memory_space<vmem>>, vector<1x128xf32>
    %c1408 = arith.constant 1408 : index
    %c0_73 = arith.constant 0 : index
    %91 = vector.load %arg5[%c1408, %c0_73] : memref<4864x128xf32, #tpu.memory_space<vmem>>, vector<128x128xf32>
    %cst_74 = arith.constant dense<0.000000e+00> : vector<32x128xf32>
    %92 = tpu.matmul %89, %91, %cst_74 {dimension_numbers = #tpu.dot_dimension_numbers<[1], [0], [0], [1], [0, 0, 1, 1], [], []>} : vector<32x128xf32>, vector<128x128xf32>, vector<32x128xf32> -> vector<32x128xf32>
    %93 = vector.broadcast %90 : vector<1x128xf32> to vector<32x128xf32>
    %94 = arith.addf %93, %92 : vector<32x128xf32>
    %cst_75 = arith.constant 0.000000e+00 : f32
    %95 = vector.broadcast %cst_75 : f32 to vector<32x128xf32>
    %96 = arith.maximumf %94, %95 : vector<32x128xf32>
    %c1024 = arith.constant 1024 : index
    %c0_76 = arith.constant 0 : index
    %97 = vector.load %arg6[%c1024, %c0_76] : memref<3072x128xf32, #tpu.memory_space<vmem>>, vector<128x128xf32>
    %cst_77 = arith.constant dense<0.000000e+00> : vector<32x128xf32>
    %98 = tpu.matmul %96, %97, %cst_77 {dimension_numbers = #tpu.dot_dimension_numbers<[1], [1], [0], [0], [0, 0, 1, 0], [], []>} : vector<32x128xf32>, vector<128x128xf32>, vector<32x128xf32> -> vector<32x128xf32>
    %c8_78 = arith.constant 8 : index
    %c0_79 = arith.constant 0 : index
    %99 = vector.load %arg8[%c8_78, %c0_79] : memref<20x256xf32, #tpu.memory_space<vmem>>, vector<1x128xf32>
    %100 = vector.broadcast %99 : vector<1x128xf32> to vector<32x128xf32>
    %101 = arith.addf %98, %100 : vector<32x128xf32>
    %102 = vector.shape_cast %101 : vector<32x128xf32> to vector<2x16x128xf32>
    "tpu.trace_start"() <{level = 10 : i32, message = "bmn,bnd->bmd"}> : () -> ()
    %cst_80 = arith.constant dense<0.000000e+00> : vector<2x8x128xf32>
    %103 = tpu.matmul %4, %102, %cst_80 {dimension_numbers = #tpu.dot_dimension_numbers<[2], [1], [1], [2], [0, 0, 0, 1, 1, 2], [0], [0]>} : vector<2x8x16xf32>, vector<2x16x128xf32>, vector<2x8x128xf32> -> vector<2x8x128xf32>
    "tpu.trace_stop"() : () -> ()
    %104 = vector.shape_cast %103 : vector<2x8x128xf32> to vector<16x128xf32>
    %c6 = arith.constant 6 : index
    %c0_81 = arith.constant 0 : index
    %105 = vector.load %arg7[%c6, %c0_81] : memref<20x128xf32, #tpu.memory_space<vmem>>, vector<1x128xf32>
    %c1024_82 = arith.constant 1024 : index
    %c0_83 = arith.constant 0 : index
    %106 = vector.load %arg5[%c1024_82, %c0_83] : memref<4864x128xf32, #tpu.memory_space<vmem>>, vector<128x128xf32>
    %cst_84 = arith.constant dense<0.000000e+00> : vector<16x128xf32>
    %107 = tpu.matmul %74, %106, %cst_84 {dimension_numbers = #tpu.dot_dimension_numbers<[1], [0], [0], [1], [0, 0, 1, 1], [], []>} : vector<16x128xf32>, vector<128x128xf32>, vector<16x128xf32> -> vector<16x128xf32>
    %108 = vector.broadcast %105 : vector<1x128xf32> to vector<16x128xf32>
    %109 = arith.addf %108, %107 : vector<16x128xf32>
    %cst_85 = arith.constant 0.000000e+00 : f32
    %110 = vector.broadcast %cst_85 : f32 to vector<16x128xf32>
    %111 = arith.maximumf %109, %110 : vector<16x128xf32>
    %c768_86 = arith.constant 768 : index
    %c0_87 = arith.constant 0 : index
    %112 = vector.load %arg6[%c768_86, %c0_87] : memref<3072x128xf32, #tpu.memory_space<vmem>>, vector<128x128xf32>
    %cst_88 = arith.constant dense<0.000000e+00> : vector<16x128xf32>
    %113 = tpu.matmul %111, %112, %cst_88 {dimension_numbers = #tpu.dot_dimension_numbers<[1], [1], [0], [0], [0, 0, 1, 0], [], []>} : vector<16x128xf32>, vector<128x128xf32>, vector<16x128xf32> -> vector<16x128xf32>
    %c6_89 = arith.constant 6 : index
    %c0_90 = arith.constant 0 : index
    %114 = vector.load %arg8[%c6_89, %c0_90] : memref<20x256xf32, #tpu.memory_space<vmem>>, vector<1x128xf32>
    %115 = vector.broadcast %114 : vector<1x128xf32> to vector<16x128xf32>
    %116 = arith.addf %113, %115 : vector<16x128xf32>
    %117 = vector.shape_cast %116 : vector<16x128xf32> to vector<2x8x128xf32>
    "tpu.trace_start"() <{level = 10 : i32, message = "bnm,bmd->bnd"}> : () -> ()
    %cst_91 = arith.constant dense<0.000000e+00> : vector<2x16x128xf32>
    %118 = tpu.matmul %5, %117, %cst_91 {dimension_numbers = #tpu.dot_dimension_numbers<[2], [1], [1], [2], [0, 0, 0, 1, 1, 2], [0], [0]>} : vector<2x16x8xf32>, vector<2x8x128xf32>, vector<2x16x128xf32> -> vector<2x16x128xf32>
    "tpu.trace_stop"() : () -> ()
    %119 = vector.shape_cast %118 : vector<2x16x128xf32> to vector<32x128xf32>
    %c7 = arith.constant 7 : index
    %c0_92 = arith.constant 0 : index
    %120 = vector.load %arg7[%c7, %c0_92] : memref<20x128xf32, #tpu.memory_space<vmem>>, vector<1x128xf32>
    %c1152 = arith.constant 1152 : index
    %c0_93 = arith.constant 0 : index
    %121 = vector.load %arg5[%c1152, %c0_93] : memref<4864x128xf32, #tpu.memory_space<vmem>>, vector<128x128xf32>
    %cst_94 = arith.constant dense<0.000000e+00> : vector<16x128xf32>
    %122 = tpu.matmul %74, %121, %cst_94 {dimension_numbers = #tpu.dot_dimension_numbers<[1], [0], [0], [1], [0, 0, 1, 1], [], []>} : vector<16x128xf32>, vector<128x128xf32>, vector<16x128xf32> -> vector<16x128xf32>
    %123 = vector.broadcast %120 : vector<1x128xf32> to vector<16x128xf32>
    %124 = arith.addf %123, %122 : vector<16x128xf32>
    %c1280 = arith.constant 1280 : index
    %c0_95 = arith.constant 0 : index
    %125 = vector.load %arg5[%c1280, %c0_95] : memref<4864x128xf32, #tpu.memory_space<vmem>>, vector<128x128xf32>
    %cst_96 = arith.constant dense<0.000000e+00> : vector<16x128xf32>
    %126 = tpu.matmul %104, %125, %cst_96 {dimension_numbers = #tpu.dot_dimension_numbers<[1], [0], [0], [1], [0, 0, 1, 1], [], []>} : vector<16x128xf32>, vector<128x128xf32>, vector<16x128xf32> -> vector<16x128xf32>
    %127 = arith.addf %124, %126 : vector<16x128xf32>
    %cst_97 = arith.constant 0.000000e+00 : f32
    %128 = vector.broadcast %cst_97 : f32 to vector<16x128xf32>
    %129 = arith.maximumf %127, %128 : vector<16x128xf32>
    %c896_98 = arith.constant 896 : index
    %c0_99 = arith.constant 0 : index
    %130 = vector.load %arg6[%c896_98, %c0_99] : memref<3072x128xf32, #tpu.memory_space<vmem>>, vector<128x128xf32>
    %cst_100 = arith.constant dense<0.000000e+00> : vector<16x128xf32>
    %131 = tpu.matmul %129, %130, %cst_100 {dimension_numbers = #tpu.dot_dimension_numbers<[1], [1], [0], [0], [0, 0, 1, 0], [], []>} : vector<16x128xf32>, vector<128x128xf32>, vector<16x128xf32> -> vector<16x128xf32>
    %c7_101 = arith.constant 7 : index
    %c0_102 = arith.constant 0 : index
    %132 = vector.load %arg8[%c7_101, %c0_102] : memref<20x256xf32, #tpu.memory_space<vmem>>, vector<1x128xf32>
    %133 = vector.broadcast %132 : vector<1x128xf32> to vector<16x128xf32>
    %134 = arith.addf %131, %133 : vector<16x128xf32>
    %c9 = arith.constant 9 : index
    %c0_103 = arith.constant 0 : index
    %135 = vector.load %arg7[%c9, %c0_103] : memref<20x128xf32, #tpu.memory_space<vmem>>, vector<1x128xf32>
    %c1536 = arith.constant 1536 : index
    %c0_104 = arith.constant 0 : index
    %136 = vector.load %arg5[%c1536, %c0_104] : memref<4864x128xf32, #tpu.memory_space<vmem>>, vector<128x128xf32>
    %cst_105 = arith.constant dense<0.000000e+00> : vector<32x128xf32>
    %137 = tpu.matmul %89, %136, %cst_105 {dimension_numbers = #tpu.dot_dimension_numbers<[1], [0], [0], [1], [0, 0, 1, 1], [], []>} : vector<32x128xf32>, vector<128x128xf32>, vector<32x128xf32> -> vector<32x128xf32>
    %138 = vector.broadcast %135 : vector<1x128xf32> to vector<32x128xf32>
    %139 = arith.addf %138, %137 : vector<32x128xf32>
    %c1664 = arith.constant 1664 : index
    %c0_106 = arith.constant 0 : index
    %140 = vector.load %arg5[%c1664, %c0_106] : memref<4864x128xf32, #tpu.memory_space<vmem>>, vector<128x128xf32>
    %cst_107 = arith.constant dense<0.000000e+00> : vector<32x128xf32>
    %141 = tpu.matmul %119, %140, %cst_107 {dimension_numbers = #tpu.dot_dimension_numbers<[1], [0], [0], [1], [0, 0, 1, 1], [], []>} : vector<32x128xf32>, vector<128x128xf32>, vector<32x128xf32> -> vector<32x128xf32>
    %142 = arith.addf %139, %141 : vector<32x128xf32>
    %cst_108 = arith.constant 0.000000e+00 : f32
    %143 = vector.broadcast %cst_108 : f32 to vector<32x128xf32>
    %144 = arith.maximumf %142, %143 : vector<32x128xf32>
    %c1152_109 = arith.constant 1152 : index
    %c0_110 = arith.constant 0 : index
    %145 = vector.load %arg6[%c1152_109, %c0_110] : memref<3072x128xf32, #tpu.memory_space<vmem>>, vector<128x128xf32>
    %cst_111 = arith.constant dense<0.000000e+00> : vector<32x128xf32>
    %146 = tpu.matmul %144, %145, %cst_111 {dimension_numbers = #tpu.dot_dimension_numbers<[1], [1], [0], [0], [0, 0, 1, 0], [], []>} : vector<32x128xf32>, vector<128x128xf32>, vector<32x128xf32> -> vector<32x128xf32>
    %c9_112 = arith.constant 9 : index
    %c0_113 = arith.constant 0 : index
    %147 = vector.load %arg8[%c9_112, %c0_113] : memref<20x256xf32, #tpu.memory_space<vmem>>, vector<1x128xf32>
    %148 = vector.broadcast %147 : vector<1x128xf32> to vector<32x128xf32>
    %149 = arith.addf %146, %148 : vector<32x128xf32>
    %c12 = arith.constant 12 : index
    %c0_114 = arith.constant 0 : index
    %150 = vector.load %arg7[%c12, %c0_114] : memref<20x128xf32, #tpu.memory_space<vmem>>, vector<1x128xf32>
    %c2176 = arith.constant 2176 : index
    %c0_115 = arith.constant 0 : index
    %151 = vector.load %arg5[%c2176, %c0_115] : memref<4864x128xf32, #tpu.memory_space<vmem>>, vector<128x128xf32>
    %cst_116 = arith.constant dense<0.000000e+00> : vector<32x128xf32>
    %152 = tpu.matmul %149, %151, %cst_116 {dimension_numbers = #tpu.dot_dimension_numbers<[1], [0], [0], [1], [0, 0, 1, 1], [], []>} : vector<32x128xf32>, vector<128x128xf32>, vector<32x128xf32> -> vector<32x128xf32>
    %153 = vector.broadcast %150 : vector<1x128xf32> to vector<32x128xf32>
    %154 = arith.addf %153, %152 : vector<32x128xf32>
    %cst_117 = arith.constant 0.000000e+00 : f32
    %155 = vector.broadcast %cst_117 : f32 to vector<32x128xf32>
    %156 = arith.maximumf %154, %155 : vector<32x128xf32>
    %c1536_118 = arith.constant 1536 : index
    %c0_119 = arith.constant 0 : index
    %157 = vector.load %arg6[%c1536_118, %c0_119] : memref<3072x128xf32, #tpu.memory_space<vmem>>, vector<128x128xf32>
    %cst_120 = arith.constant dense<0.000000e+00> : vector<32x128xf32>
    %158 = tpu.matmul %156, %157, %cst_120 {dimension_numbers = #tpu.dot_dimension_numbers<[1], [1], [0], [0], [0, 0, 1, 0], [], []>} : vector<32x128xf32>, vector<128x128xf32>, vector<32x128xf32> -> vector<32x128xf32>
    %c12_121 = arith.constant 12 : index
    %c0_122 = arith.constant 0 : index
    %159 = vector.load %arg8[%c12_121, %c0_122] : memref<20x256xf32, #tpu.memory_space<vmem>>, vector<1x128xf32>
    %160 = vector.broadcast %159 : vector<1x128xf32> to vector<32x128xf32>
    %161 = arith.addf %158, %160 : vector<32x128xf32>
    %162 = vector.shape_cast %161 : vector<32x128xf32> to vector<2x16x128xf32>
    "tpu.trace_start"() <{level = 10 : i32, message = "bmn,bnd->bmd"}> : () -> ()
    %cst_123 = arith.constant dense<0.000000e+00> : vector<2x8x128xf32>
    %163 = tpu.matmul %4, %162, %cst_123 {dimension_numbers = #tpu.dot_dimension_numbers<[2], [1], [1], [2], [0, 0, 0, 1, 1, 2], [0], [0]>} : vector<2x8x16xf32>, vector<2x16x128xf32>, vector<2x8x128xf32> -> vector<2x8x128xf32>
    "tpu.trace_stop"() : () -> ()
    %164 = vector.shape_cast %163 : vector<2x8x128xf32> to vector<16x128xf32>
    %c10 = arith.constant 10 : index
    %c0_124 = arith.constant 0 : index
    %165 = vector.load %arg7[%c10, %c0_124] : memref<20x128xf32, #tpu.memory_space<vmem>>, vector<1x128xf32>
    %c1792 = arith.constant 1792 : index
    %c0_125 = arith.constant 0 : index
    %166 = vector.load %arg5[%c1792, %c0_125] : memref<4864x128xf32, #tpu.memory_space<vmem>>, vector<128x128xf32>
    %cst_126 = arith.constant dense<0.000000e+00> : vector<16x128xf32>
    %167 = tpu.matmul %134, %166, %cst_126 {dimension_numbers = #tpu.dot_dimension_numbers<[1], [0], [0], [1], [0, 0, 1, 1], [], []>} : vector<16x128xf32>, vector<128x128xf32>, vector<16x128xf32> -> vector<16x128xf32>
    %168 = vector.broadcast %165 : vector<1x128xf32> to vector<16x128xf32>
    %169 = arith.addf %168, %167 : vector<16x128xf32>
    %cst_127 = arith.constant 0.000000e+00 : f32
    %170 = vector.broadcast %cst_127 : f32 to vector<16x128xf32>
    %171 = arith.maximumf %169, %170 : vector<16x128xf32>
    %c1280_128 = arith.constant 1280 : index
    %c0_129 = arith.constant 0 : index
    %172 = vector.load %arg6[%c1280_128, %c0_129] : memref<3072x128xf32, #tpu.memory_space<vmem>>, vector<128x128xf32>
    %cst_130 = arith.constant dense<0.000000e+00> : vector<16x128xf32>
    %173 = tpu.matmul %171, %172, %cst_130 {dimension_numbers = #tpu.dot_dimension_numbers<[1], [1], [0], [0], [0, 0, 1, 0], [], []>} : vector<16x128xf32>, vector<128x128xf32>, vector<16x128xf32> -> vector<16x128xf32>
    %c10_131 = arith.constant 10 : index
    %c0_132 = arith.constant 0 : index
    %174 = vector.load %arg8[%c10_131, %c0_132] : memref<20x256xf32, #tpu.memory_space<vmem>>, vector<1x128xf32>
    %175 = vector.broadcast %174 : vector<1x128xf32> to vector<16x128xf32>
    %176 = arith.addf %173, %175 : vector<16x128xf32>
    %177 = vector.shape_cast %176 : vector<16x128xf32> to vector<2x8x128xf32>
    "tpu.trace_start"() <{level = 10 : i32, message = "bnm,bmd->bnd"}> : () -> ()
    %cst_133 = arith.constant dense<0.000000e+00> : vector<2x16x128xf32>
    %178 = tpu.matmul %5, %177, %cst_133 {dimension_numbers = #tpu.dot_dimension_numbers<[2], [1], [1], [2], [0, 0, 0, 1, 1, 2], [0], [0]>} : vector<2x16x8xf32>, vector<2x8x128xf32>, vector<2x16x128xf32> -> vector<2x16x128xf32>
    "tpu.trace_stop"() : () -> ()
    %179 = vector.shape_cast %178 : vector<2x16x128xf32> to vector<32x128xf32>
    %c11 = arith.constant 11 : index
    %c0_134 = arith.constant 0 : index
    %180 = vector.load %arg7[%c11, %c0_134] : memref<20x128xf32, #tpu.memory_space<vmem>>, vector<1x128xf32>
    %c1920 = arith.constant 1920 : index
    %c0_135 = arith.constant 0 : index
    %181 = vector.load %arg5[%c1920, %c0_135] : memref<4864x128xf32, #tpu.memory_space<vmem>>, vector<128x128xf32>
    %cst_136 = arith.constant dense<0.000000e+00> : vector<16x128xf32>
    %182 = tpu.matmul %134, %181, %cst_136 {dimension_numbers = #tpu.dot_dimension_numbers<[1], [0], [0], [1], [0, 0, 1, 1], [], []>} : vector<16x128xf32>, vector<128x128xf32>, vector<16x128xf32> -> vector<16x128xf32>
    %183 = vector.broadcast %180 : vector<1x128xf32> to vector<16x128xf32>
    %184 = arith.addf %183, %182 : vector<16x128xf32>
    %c2048 = arith.constant 2048 : index
    %c0_137 = arith.constant 0 : index
    %185 = vector.load %arg5[%c2048, %c0_137] : memref<4864x128xf32, #tpu.memory_space<vmem>>, vector<128x128xf32>
    %cst_138 = arith.constant dense<0.000000e+00> : vector<16x128xf32>
    %186 = tpu.matmul %164, %185, %cst_138 {dimension_numbers = #tpu.dot_dimension_numbers<[1], [0], [0], [1], [0, 0, 1, 1], [], []>} : vector<16x128xf32>, vector<128x128xf32>, vector<16x128xf32> -> vector<16x128xf32>
    %187 = arith.addf %184, %186 : vector<16x128xf32>
    %cst_139 = arith.constant 0.000000e+00 : f32
    %188 = vector.broadcast %cst_139 : f32 to vector<16x128xf32>
    %189 = arith.maximumf %187, %188 : vector<16x128xf32>
    %c1408_140 = arith.constant 1408 : index
    %c0_141 = arith.constant 0 : index
    %190 = vector.load %arg6[%c1408_140, %c0_141] : memref<3072x128xf32, #tpu.memory_space<vmem>>, vector<128x128xf32>
    %cst_142 = arith.constant dense<0.000000e+00> : vector<16x128xf32>
    %191 = tpu.matmul %189, %190, %cst_142 {dimension_numbers = #tpu.dot_dimension_numbers<[1], [1], [0], [0], [0, 0, 1, 0], [], []>} : vector<16x128xf32>, vector<128x128xf32>, vector<16x128xf32> -> vector<16x128xf32>
    %c11_143 = arith.constant 11 : index
    %c0_144 = arith.constant 0 : index
    %192 = vector.load %arg8[%c11_143, %c0_144] : memref<20x256xf32, #tpu.memory_space<vmem>>, vector<1x128xf32>
    %193 = vector.broadcast %192 : vector<1x128xf32> to vector<16x128xf32>
    %194 = arith.addf %191, %193 : vector<16x128xf32>
    %c13 = arith.constant 13 : index
    %c0_145 = arith.constant 0 : index
    %195 = vector.load %arg7[%c13, %c0_145] : memref<20x128xf32, #tpu.memory_space<vmem>>, vector<1x128xf32>
    %c2304 = arith.constant 2304 : index
    %c0_146 = arith.constant 0 : index
    %196 = vector.load %arg5[%c2304, %c0_146] : memref<4864x128xf32, #tpu.memory_space<vmem>>, vector<128x128xf32>
    %cst_147 = arith.constant dense<0.000000e+00> : vector<32x128xf32>
    %197 = tpu.matmul %149, %196, %cst_147 {dimension_numbers = #tpu.dot_dimension_numbers<[1], [0], [0], [1], [0, 0, 1, 1], [], []>} : vector<32x128xf32>, vector<128x128xf32>, vector<32x128xf32> -> vector<32x128xf32>
    %198 = vector.broadcast %195 : vector<1x128xf32> to vector<32x128xf32>
    %199 = arith.addf %198, %197 : vector<32x128xf32>
    %c2432 = arith.constant 2432 : index
    %c0_148 = arith.constant 0 : index
    %200 = vector.load %arg5[%c2432, %c0_148] : memref<4864x128xf32, #tpu.memory_space<vmem>>, vector<128x128xf32>
    %cst_149 = arith.constant dense<0.000000e+00> : vector<32x128xf32>
    %201 = tpu.matmul %179, %200, %cst_149 {dimension_numbers = #tpu.dot_dimension_numbers<[1], [0], [0], [1], [0, 0, 1, 1], [], []>} : vector<32x128xf32>, vector<128x128xf32>, vector<32x128xf32> -> vector<32x128xf32>
    %202 = arith.addf %199, %201 : vector<32x128xf32>
    %cst_150 = arith.constant 0.000000e+00 : f32
    %203 = vector.broadcast %cst_150 : f32 to vector<32x128xf32>
    %204 = arith.maximumf %202, %203 : vector<32x128xf32>
    %c1664_151 = arith.constant 1664 : index
    %c0_152 = arith.constant 0 : index
    %205 = vector.load %arg6[%c1664_151, %c0_152] : memref<3072x128xf32, #tpu.memory_space<vmem>>, vector<128x128xf32>
    %cst_153 = arith.constant dense<0.000000e+00> : vector<32x128xf32>
    %206 = tpu.matmul %204, %205, %cst_153 {dimension_numbers = #tpu.dot_dimension_numbers<[1], [1], [0], [0], [0, 0, 1, 0], [], []>} : vector<32x128xf32>, vector<128x128xf32>, vector<32x128xf32> -> vector<32x128xf32>
    %c13_154 = arith.constant 13 : index
    %c0_155 = arith.constant 0 : index
    %207 = vector.load %arg8[%c13_154, %c0_155] : memref<20x256xf32, #tpu.memory_space<vmem>>, vector<1x128xf32>
    %208 = vector.broadcast %207 : vector<1x128xf32> to vector<32x128xf32>
    %209 = arith.addf %206, %208 : vector<32x128xf32>
    %c16 = arith.constant 16 : index
    %c0_156 = arith.constant 0 : index
    %210 = vector.load %arg7[%c16, %c0_156] : memref<20x128xf32, #tpu.memory_space<vmem>>, vector<1x128xf32>
    %c3072 = arith.constant 3072 : index
    %c0_157 = arith.constant 0 : index
    %211 = vector.load %arg5[%c3072, %c0_157] : memref<4864x128xf32, #tpu.memory_space<vmem>>, vector<128x128xf32>
    %cst_158 = arith.constant dense<0.000000e+00> : vector<32x128xf32>
    %212 = tpu.matmul %209, %211, %cst_158 {dimension_numbers = #tpu.dot_dimension_numbers<[1], [0], [0], [1], [0, 0, 1, 1], [], []>} : vector<32x128xf32>, vector<128x128xf32>, vector<32x128xf32> -> vector<32x128xf32>
    %213 = vector.broadcast %210 : vector<1x128xf32> to vector<32x128xf32>
    %214 = arith.addf %213, %212 : vector<32x128xf32>
    %cst_159 = arith.constant 0.000000e+00 : f32
    %215 = vector.broadcast %cst_159 : f32 to vector<32x128xf32>
    %216 = arith.maximumf %214, %215 : vector<32x128xf32>
    %c2304_160 = arith.constant 2304 : index
    %c0_161 = arith.constant 0 : index
    %217 = vector.load %arg6[%c2304_160, %c0_161] : memref<3072x128xf32, #tpu.memory_space<vmem>>, vector<256x128xf32>
    %cst_162 = arith.constant dense<0.000000e+00> : vector<32x256xf32>
    %218 = tpu.matmul %216, %217, %cst_162 {dimension_numbers = #tpu.dot_dimension_numbers<[1], [1], [0], [0], [0, 0, 1, 0], [], []>} : vector<32x128xf32>, vector<256x128xf32>, vector<32x256xf32> -> vector<32x256xf32>
    %c16_163 = arith.constant 16 : index
    %c0_164 = arith.constant 0 : index
    %219 = vector.load %arg8[%c16_163, %c0_164] : memref<20x256xf32, #tpu.memory_space<vmem>>, vector<1x256xf32>
    %220 = vector.broadcast %219 : vector<1x256xf32> to vector<32x256xf32>
    %221 = arith.addf %218, %220 : vector<32x256xf32>
    %222 = vector.shape_cast %221 : vector<32x256xf32> to vector<2x16x256xf32>
    "tpu.trace_start"() <{level = 10 : i32, message = "bmn,bnd->bmd"}> : () -> ()
    %cst_165 = arith.constant dense<0.000000e+00> : vector<2x8x256xf32>
    %223 = tpu.matmul %4, %222, %cst_165 {dimension_numbers = #tpu.dot_dimension_numbers<[2], [1], [1], [2], [0, 0, 0, 1, 1, 2], [0], [0]>} : vector<2x8x16xf32>, vector<2x16x256xf32>, vector<2x8x256xf32> -> vector<2x8x256xf32>
    "tpu.trace_stop"() : () -> ()
    %224 = vector.shape_cast %223 : vector<2x8x256xf32> to vector<16x256xf32>
    %c14 = arith.constant 14 : index
    %c0_166 = arith.constant 0 : index
    %225 = vector.load %arg7[%c14, %c0_166] : memref<20x128xf32, #tpu.memory_space<vmem>>, vector<1x128xf32>
    %c2560 = arith.constant 2560 : index
    %c0_167 = arith.constant 0 : index
    %226 = vector.load %arg5[%c2560, %c0_167] : memref<4864x128xf32, #tpu.memory_space<vmem>>, vector<128x128xf32>
    %cst_168 = arith.constant dense<0.000000e+00> : vector<16x128xf32>
    %227 = tpu.matmul %194, %226, %cst_168 {dimension_numbers = #tpu.dot_dimension_numbers<[1], [0], [0], [1], [0, 0, 1, 1], [], []>} : vector<16x128xf32>, vector<128x128xf32>, vector<16x128xf32> -> vector<16x128xf32>
    %228 = vector.broadcast %225 : vector<1x128xf32> to vector<16x128xf32>
    %229 = arith.addf %228, %227 : vector<16x128xf32>
    %cst_169 = arith.constant 0.000000e+00 : f32
    %230 = vector.broadcast %cst_169 : f32 to vector<16x128xf32>
    %231 = arith.maximumf %229, %230 : vector<16x128xf32>
    %c1792_170 = arith.constant 1792 : index
    %c0_171 = arith.constant 0 : index
    %232 = vector.load %arg6[%c1792_170, %c0_171] : memref<3072x128xf32, #tpu.memory_space<vmem>>, vector<256x128xf32>
    %cst_172 = arith.constant dense<0.000000e+00> : vector<16x256xf32>
    %233 = tpu.matmul %231, %232, %cst_172 {dimension_numbers = #tpu.dot_dimension_numbers<[1], [1], [0], [0], [0, 0, 1, 0], [], []>} : vector<16x128xf32>, vector<256x128xf32>, vector<16x256xf32> -> vector<16x256xf32>
    %c14_173 = arith.constant 14 : index
    %c0_174 = arith.constant 0 : index
    %234 = vector.load %arg8[%c14_173, %c0_174] : memref<20x256xf32, #tpu.memory_space<vmem>>, vector<1x256xf32>
    %235 = vector.broadcast %234 : vector<1x256xf32> to vector<16x256xf32>
    %236 = arith.addf %233, %235 : vector<16x256xf32>
    %237 = vector.shape_cast %236 : vector<16x256xf32> to vector<2x8x256xf32>
    "tpu.trace_start"() <{level = 10 : i32, message = "bnm,bmd->bnd"}> : () -> ()
    %cst_175 = arith.constant dense<0.000000e+00> : vector<2x16x256xf32>
    %238 = tpu.matmul %5, %237, %cst_175 {dimension_numbers = #tpu.dot_dimension_numbers<[2], [1], [1], [2], [0, 0, 0, 1, 1, 2], [0], [0]>} : vector<2x16x8xf32>, vector<2x8x256xf32>, vector<2x16x256xf32> -> vector<2x16x256xf32>
    "tpu.trace_stop"() : () -> ()
    %239 = vector.shape_cast %238 : vector<2x16x256xf32> to vector<32x256xf32>
    %c15 = arith.constant 15 : index
    %c0_176 = arith.constant 0 : index
    %240 = vector.load %arg7[%c15, %c0_176] : memref<20x128xf32, #tpu.memory_space<vmem>>, vector<1x128xf32>
    %c2688 = arith.constant 2688 : index
    %c0_177 = arith.constant 0 : index
    %241 = vector.load %arg5[%c2688, %c0_177] : memref<4864x128xf32, #tpu.memory_space<vmem>>, vector<128x128xf32>
    %cst_178 = arith.constant dense<0.000000e+00> : vector<16x128xf32>
    %242 = tpu.matmul %194, %241, %cst_178 {dimension_numbers = #tpu.dot_dimension_numbers<[1], [0], [0], [1], [0, 0, 1, 1], [], []>} : vector<16x128xf32>, vector<128x128xf32>, vector<16x128xf32> -> vector<16x128xf32>
    %243 = vector.broadcast %240 : vector<1x128xf32> to vector<16x128xf32>
    %244 = arith.addf %243, %242 : vector<16x128xf32>
    %c2816 = arith.constant 2816 : index
    %c0_179 = arith.constant 0 : index
    %245 = vector.load %arg5[%c2816, %c0_179] : memref<4864x128xf32, #tpu.memory_space<vmem>>, vector<256x128xf32>
    %cst_180 = arith.constant dense<0.000000e+00> : vector<16x128xf32>
    %246 = tpu.matmul %224, %245, %cst_180 {dimension_numbers = #tpu.dot_dimension_numbers<[1], [0], [0], [1], [0, 0, 1, 1], [], []>} : vector<16x256xf32>, vector<256x128xf32>, vector<16x128xf32> -> vector<16x128xf32>
    %247 = arith.addf %244, %246 : vector<16x128xf32>
    %cst_181 = arith.constant 0.000000e+00 : f32
    %248 = vector.broadcast %cst_181 : f32 to vector<16x128xf32>
    %249 = arith.maximumf %247, %248 : vector<16x128xf32>
    %c2048_182 = arith.constant 2048 : index
    %c0_183 = arith.constant 0 : index
    %250 = vector.load %arg6[%c2048_182, %c0_183] : memref<3072x128xf32, #tpu.memory_space<vmem>>, vector<256x128xf32>
    %cst_184 = arith.constant dense<0.000000e+00> : vector<16x256xf32>
    %251 = tpu.matmul %249, %250, %cst_184 {dimension_numbers = #tpu.dot_dimension_numbers<[1], [1], [0], [0], [0, 0, 1, 0], [], []>} : vector<16x128xf32>, vector<256x128xf32>, vector<16x256xf32> -> vector<16x256xf32>
    %c15_185 = arith.constant 15 : index
    %c0_186 = arith.constant 0 : index
    %252 = vector.load %arg8[%c15_185, %c0_186] : memref<20x256xf32, #tpu.memory_space<vmem>>, vector<1x256xf32>
    %253 = vector.broadcast %252 : vector<1x256xf32> to vector<16x256xf32>
    %254 = arith.addf %251, %253 : vector<16x256xf32>
    %c17 = arith.constant 17 : index
    %c0_187 = arith.constant 0 : index
    %255 = vector.load %arg7[%c17, %c0_187] : memref<20x128xf32, #tpu.memory_space<vmem>>, vector<1x128xf32>
    %c3200 = arith.constant 3200 : index
    %c0_188 = arith.constant 0 : index
    %256 = vector.load %arg5[%c3200, %c0_188] : memref<4864x128xf32, #tpu.memory_space<vmem>>, vector<128x128xf32>
    %cst_189 = arith.constant dense<0.000000e+00> : vector<32x128xf32>
    %257 = tpu.matmul %209, %256, %cst_189 {dimension_numbers = #tpu.dot_dimension_numbers<[1], [0], [0], [1], [0, 0, 1, 1], [], []>} : vector<32x128xf32>, vector<128x128xf32>, vector<32x128xf32> -> vector<32x128xf32>
    %258 = vector.broadcast %255 : vector<1x128xf32> to vector<32x128xf32>
    %259 = arith.addf %258, %257 : vector<32x128xf32>
    %c3328 = arith.constant 3328 : index
    %c0_190 = arith.constant 0 : index
    %260 = vector.load %arg5[%c3328, %c0_190] : memref<4864x128xf32, #tpu.memory_space<vmem>>, vector<256x128xf32>
    %cst_191 = arith.constant dense<0.000000e+00> : vector<32x128xf32>
    %261 = tpu.matmul %239, %260, %cst_191 {dimension_numbers = #tpu.dot_dimension_numbers<[1], [0], [0], [1], [0, 0, 1, 1], [], []>} : vector<32x256xf32>, vector<256x128xf32>, vector<32x128xf32> -> vector<32x128xf32>
    %262 = arith.addf %259, %261 : vector<32x128xf32>
    %cst_192 = arith.constant 0.000000e+00 : f32
    %263 = vector.broadcast %cst_192 : f32 to vector<32x128xf32>
    %264 = arith.maximumf %262, %263 : vector<32x128xf32>
    %c2560_193 = arith.constant 2560 : index
    %c0_194 = arith.constant 0 : index
    %265 = vector.load %arg6[%c2560_193, %c0_194] : memref<3072x128xf32, #tpu.memory_space<vmem>>, vector<256x128xf32>
    %cst_195 = arith.constant dense<0.000000e+00> : vector<32x256xf32>
    %266 = tpu.matmul %264, %265, %cst_195 {dimension_numbers = #tpu.dot_dimension_numbers<[1], [1], [0], [0], [0, 0, 1, 0], [], []>} : vector<32x128xf32>, vector<256x128xf32>, vector<32x256xf32> -> vector<32x256xf32>
    %c17_196 = arith.constant 17 : index
    %c0_197 = arith.constant 0 : index
    %267 = vector.load %arg8[%c17_196, %c0_197] : memref<20x256xf32, #tpu.memory_space<vmem>>, vector<1x256xf32>
    %268 = vector.broadcast %267 : vector<1x256xf32> to vector<32x256xf32>
    %269 = arith.addf %266, %268 : vector<32x256xf32>
    %270 = vector.shape_cast %254 : vector<16x256xf32> to vector<2x8x256xf32>
    %271 = vector.shape_cast %269 : vector<32x256xf32> to vector<2x16x256xf32>
    %272 = tpu.iota {dimensions = array<i32: 1>} : vector<2x16x256xi32>
    %c12_i32 = arith.constant 12 : i32
    %273 = vector.broadcast %c12_i32 : i32 to vector<2x16x256xi32>
    %274 = arith.cmpi slt, %272, %273 : vector<2x16x256xi32>
    %cst_198 = arith.constant 0.000000e+00 : f32
    %275 = vector.broadcast %cst_198 : f32 to vector<2x16x256xf32>
    %276 = arith.select %274, %271, %275 : vector<2x16x256xi1>, vector<2x16x256xf32>
    %cst_199 = arith.constant dense<0.000000e+00> : vector<2x256xf32>
    %277 = vector.multi_reduction <add>, %270, %cst_199 [1] : vector<2x8x256xf32> to vector<2x256xf32>
    %cst_200 = arith.constant dense<0.000000e+00> : vector<2x256xf32>
    %278 = vector.multi_reduction <add>, %276, %cst_200 [1] : vector<2x16x256xf32> to vector<2x256xf32>
    %c18 = arith.constant 18 : index
    %c0_201 = arith.constant 0 : index
    %279 = vector.load %arg7[%c18, %c0_201] : memref<20x128xf32, #tpu.memory_space<vmem>>, vector<1x128xf32>
    %c3584 = arith.constant 3584 : index
    %c0_202 = arith.constant 0 : index
    %280 = vector.load %arg5[%c3584, %c0_202] : memref<4864x128xf32, #tpu.memory_space<vmem>>, vector<256x128xf32>
    %cst_203 = arith.constant dense<0.000000e+00> : vector<2x128xf32>
    %281 = tpu.matmul %277, %280, %cst_203 {dimension_numbers = #tpu.dot_dimension_numbers<[1], [0], [0], [1], [0, 0, 1, 1], [], []>} : vector<2x256xf32>, vector<256x128xf32>, vector<2x128xf32> -> vector<2x128xf32>
    %282 = vector.broadcast %279 : vector<1x128xf32> to vector<2x128xf32>
    %283 = arith.addf %282, %281 : vector<2x128xf32>
    %c3840 = arith.constant 3840 : index
    %c0_204 = arith.constant 0 : index
    %284 = vector.load %arg5[%c3840, %c0_204] : memref<4864x128xf32, #tpu.memory_space<vmem>>, vector<256x128xf32>
    %cst_205 = arith.constant dense<0.000000e+00> : vector<2x128xf32>
    %285 = tpu.matmul %278, %284, %cst_205 {dimension_numbers = #tpu.dot_dimension_numbers<[1], [0], [0], [1], [0, 0, 1, 1], [], []>} : vector<2x256xf32>, vector<256x128xf32>, vector<2x128xf32> -> vector<2x128xf32>
    %286 = arith.addf %283, %285 : vector<2x128xf32>
    %cst_206 = arith.constant 0.000000e+00 : f32
    %287 = vector.broadcast %cst_206 : f32 to vector<2x128xf32>
    %288 = arith.maximumf %286, %287 : vector<2x128xf32>
    %c2816_207 = arith.constant 2816 : index
    %c0_208 = arith.constant 0 : index
    %289 = vector.load %arg6[%c2816_207, %c0_208] : memref<3072x128xf32, #tpu.memory_space<vmem>>, vector<128x128xf32>
    %cst_209 = arith.constant dense<0.000000e+00> : vector<2x128xf32>
    %290 = tpu.matmul %288, %289, %cst_209 {dimension_numbers = #tpu.dot_dimension_numbers<[1], [1], [0], [0], [0, 0, 1, 0], [], []>} : vector<2x128xf32>, vector<128x128xf32>, vector<2x128xf32> -> vector<2x128xf32>
    %c18_210 = arith.constant 18 : index
    %c0_211 = arith.constant 0 : index
    %291 = vector.load %arg8[%c18_210, %c0_211] : memref<20x256xf32, #tpu.memory_space<vmem>>, vector<1x128xf32>
    %292 = vector.broadcast %291 : vector<1x128xf32> to vector<2x128xf32>
    %293 = arith.addf %290, %292 : vector<2x128xf32>
    %294 = vector.shape_cast %293 : vector<2x128xf32> to vector<2x1x128xf32>
    %c0_212 = arith.constant 0 : index
    %c0_213 = arith.constant 0 : index
    %c0_214 = arith.constant 0 : index
    %295 = vector.load %arg9[%c0_212, %c0_213, %c0_214] : memref<2x1x128xf32, #tpu.memory_space<vmem>>, vector<2x1x128xf32>
    tpu.vector_store %arg9[%c0_212, %c0_213, %c0_214], %294 {strides = array<i32>} : memref<2x1x128xf32, #tpu.memory_space<vmem>>, vector<2x1x128xf32>,
    %c19 = arith.constant 19 : index
    %c0_215 = arith.constant 0 : index
    %296 = vector.load %arg7[%c19, %c0_215] : memref<20x128xf32, #tpu.memory_space<vmem>>, vector<1x128xf32>
    %c4096 = arith.constant 4096 : index
    %c0_216 = arith.constant 0 : index
    %297 = vector.load %arg5[%c4096, %c0_216] : memref<4864x128xf32, #tpu.memory_space<vmem>>, vector<256x128xf32>
    %cst_217 = arith.constant dense<0.000000e+00> : vector<2x128xf32>
    %298 = tpu.matmul %277, %297, %cst_217 {dimension_numbers = #tpu.dot_dimension_numbers<[1], [0], [0], [1], [0, 0, 1, 1], [], []>} : vector<2x256xf32>, vector<256x128xf32>, vector<2x128xf32> -> vector<2x128xf32>
    %299 = vector.broadcast %296 : vector<1x128xf32> to vector<2x128xf32>
    %300 = arith.addf %299, %298 : vector<2x128xf32>
    %c4352 = arith.constant 4352 : index
    %c0_218 = arith.constant 0 : index
    %301 = vector.load %arg5[%c4352, %c0_218] : memref<4864x128xf32, #tpu.memory_space<vmem>>, vector<256x128xf32>
    %cst_219 = arith.constant dense<0.000000e+00> : vector<2x128xf32>
    %302 = tpu.matmul %278, %301, %cst_219 {dimension_numbers = #tpu.dot_dimension_numbers<[1], [0], [0], [1], [0, 0, 1, 1], [], []>} : vector<2x256xf32>, vector<256x128xf32>, vector<2x128xf32> -> vector<2x128xf32>
    %303 = arith.addf %300, %302 : vector<2x128xf32>
    %c4608 = arith.constant 4608 : index
    %c0_220 = arith.constant 0 : index
    %304 = vector.load %arg5[%c4608, %c0_220] : memref<4864x128xf32, #tpu.memory_space<vmem>>, vector<256x128xf32>
    %cst_221 = arith.constant dense<0.000000e+00> : vector<32x128xf32>
    %305 = tpu.matmul %269, %304, %cst_221 {dimension_numbers = #tpu.dot_dimension_numbers<[1], [0], [0], [1], [0, 0, 1, 1], [], []>} : vector<32x256xf32>, vector<256x128xf32>, vector<32x128xf32> -> vector<32x128xf32>
    %306 = vector.shape_cast %305 : vector<32x128xf32> to vector<2x16x128xf32>
    %307 = vector.shape_cast %303 : vector<2x128xf32> to vector<2x1x128xf32>
    %308 = vector.broadcast %307 : vector<2x1x128xf32> to vector<2x16x128xf32>
    %309 = arith.addf %306, %308 : vector<2x16x128xf32>
    %cst_222 = arith.constant 0.000000e+00 : f32
    %310 = vector.broadcast %cst_222 : f32 to vector<2x16x128xf32>
    %311 = arith.maximumf %309, %310 : vector<2x16x128xf32>
    %312 = vector.shape_cast %311 : vector<2x16x128xf32> to vector<32x128xf32>
    %c2944 = arith.constant 2944 : index
    %c0_223 = arith.constant 0 : index
    %313 = vector.load %arg6[%c2944, %c0_223] : memref<3072x128xf32, #tpu.memory_space<vmem>>, vector<128x128xf32>
    %cst_224 = arith.constant dense<0.000000e+00> : vector<32x128xf32>
    %314 = tpu.matmul %312, %313, %cst_224 {dimension_numbers = #tpu.dot_dimension_numbers<[1], [1], [0], [0], [0, 0, 1, 0], [], []>} : vector<32x128xf32>, vector<128x128xf32>, vector<32x128xf32> -> vector<32x128xf32>
    %c19_225 = arith.constant 19 : index
    %c0_226 = arith.constant 0 : index
    %315 = vector.load %arg8[%c19_225, %c0_226] : memref<20x256xf32, #tpu.memory_space<vmem>>, vector<1x128xf32>
    %316 = vector.broadcast %315 : vector<1x128xf32> to vector<32x128xf32>
    %317 = arith.addf %314, %316 : vector<32x128xf32>
    %318 = vector.shape_cast %317 : vector<32x128xf32> to vector<2x16x128xf32>
    %c0_227 = arith.constant 0 : index
    %c0_228 = arith.constant 0 : index
    %c0_229 = arith.constant 0 : index
    %319 = vector.load %arg10[%c0_227, %c0_228, %c0_229] : memref<2x16x128xf32, #tpu.memory_space<vmem>>, vector<2x16x128xf32>
    tpu.vector_store %arg10[%c0_227, %c0_228, %c0_229], %318 {strides = array<i32>} : memref<2x16x128xf32, #tpu.memory_space<vmem>>, vector<2x16x128xf32>,
    return
  }
  func.func @transform_0(%arg0: i32) -> (i32, i32, i32) {
    %c0_i32 = arith.constant 0 : i32
    %c0_i32_0 = arith.constant 0 : i32
    %c0_i32_1 = arith.constant 0 : i32
    return %arg0, %c0_i32, %c0_i32_0 : i32, i32, i32
  }
  func.func @transform_1(%arg0: i32) -> (i32, i32, i32) {
    %c0_i32 = arith.constant 0 : i32
    %c0_i32_0 = arith.constant 0 : i32
    %c0_i32_1 = arith.constant 0 : i32
    return %arg0, %c0_i32, %c0_i32_0 : i32, i32, i32
  }
  func.func @transform_2(%arg0: i32) -> (i32, i32, i32) {
    %c0_i32 = arith.constant 0 : i32
    %c0_i32_0 = arith.constant 0 : i32
    %c0_i32_1 = arith.constant 0 : i32
    return %arg0, %c0_i32, %c0_i32_0 : i32, i32, i32
  }
  func.func @transform_3(%arg0: i32) -> (i32, i32, i32) {
    %c0_i32 = arith.constant 0 : i32
    %c0_i32_0 = arith.constant 0 : i32
    %c0_i32_1 = arith.constant 0 : i32
    return %arg0, %c0_i32, %c0_i32_0 : i32, i32, i32
  }
  func.func @transform_4(%arg0: i32) -> (i32, i32) {
    %c0_i32 = arith.constant 0 : i32
    %c0_i32_0 = arith.constant 0 : i32
    %c0_i32_1 = arith.constant 0 : i32
    return %c0_i32, %c0_i32_0 : i32, i32
  }
  func.func @transform_5(%arg0: i32) -> (i32, i32) {
    %c0_i32 = arith.constant 0 : i32
    %c0_i32_0 = arith.constant 0 : i32
    %c0_i32_1 = arith.constant 0 : i32
    return %c0_i32, %c0_i32_0 : i32, i32
  }
  func.func @transform_6(%arg0: i32) -> (i32, i32) {
    %c0_i32 = arith.constant 0 : i32
    %c0_i32_0 = arith.constant 0 : i32
    %c0_i32_1 = arith.constant 0 : i32
    return %c0_i32, %c0_i32_0 : i32, i32
  }
  func.func @transform_7(%arg0: i32) -> (i32, i32) {
    %c0_i32 = arith.constant 0 : i32
    %c0_i32_0 = arith.constant 0 : i32
    %c0_i32_1 = arith.constant 0 : i32
    return %c0_i32, %c0_i32_0 : i32, i32
  }
  func.func @transform_8(%arg0: i32) -> (i32, i32, i32) {
    %c0_i32 = arith.constant 0 : i32
    %c0_i32_0 = arith.constant 0 : i32
    %c0_i32_1 = arith.constant 0 : i32
    return %arg0, %c0_i32, %c0_i32_0 : i32, i32, i32
  }
  func.func @transform_9(%arg0: i32) -> (i32, i32, i32) {
    %c0_i32 = arith.constant 0 : i32
    %c0_i32_0 = arith.constant 0 : i32
    %c0_i32_1 = arith.constant 0 : i32
    return %arg0, %c0_i32, %c0_i32_0 : i32, i32, i32
  }
}

</mosaic_0001>

<llo_original>
// kernel: tpu_custom_call.1
$region0: #{tpu_custom_call.1}
  #allocation0 [shape = 'u32[]', space=smem, size = 0x4, offset = 0x4, fixed_abs, tag = 'smem constant byte address 0x4 - core index']
  #allocation1 [shape = 'u32[144,128]{1,0:T(1,128)}', space=vmem, size = 0x12000, scoped, tag = 'internal scratch']
  %s0 = inlined_call_operand.hbm [shape: f32[2,8,128], index: 0, kind: input, shape index: {}]
  %s1 = inlined_call_operand.hbm [shape: f32[2,16,128], index: 1, kind: input, shape index: {}]
  %s2 = inlined_call_operand.hbm [shape: f32[2,8,16], index: 2, kind: input, shape index: {}]
  %s3 = inlined_call_operand.vmem [shape: f32[2,16,8], index: 3, kind: input, shape index: {}]
  %s4 = inlined_call_operand.hbm [shape: f32[4864,128], index: 4, kind: input, shape index: {}]
  %s5 = inlined_call_operand.hbm [shape: f32[3072,128], index: 5, kind: input, shape index: {}]
  %s6 = inlined_call_operand.hbm [shape: f32[20,128], index: 6, kind: input, shape index: {}]
  %s7 = inlined_call_operand.hbm [shape: f32[20,256], index: 7, kind: input, shape index: {}]
  %s8 = inlined_call_operand.hbm [shape: f32[2,1,128], index: 8, kind: output, shape index: {0}]
  %s9 = inlined_call_operand.hbm [shape: f32[2,16,128], index: 9, kind: output, shape index: {1}]
  %10 = xla_tuple %s8, %s9
  %s11 = sld [smem:[#allocation0]]
  $region78: #{tpu_custom_call.1} parent=0
    _
  %s13 = ssub.s32 1, %s11
  %s14 = scalar_select 0, %s13, %s11
  $region1: #{tpu_custom_call.1} parent=0
    #allocation2 [shape = 'u8[8192]{0}', space=vmem, size = 0x2000, scoped, tag = 'input window, operand 0, single buffered']
    #allocation3 [shape = 's32[1]{0}', space=sflag, size = 0x4, scoped, tag = 'scoped memory for tpu_custom_call.1']
    #allocation4 [shape = 's32[1]{0}', space=sflag, size = 0x4, scoped, tag = 'scoped memory for tpu_custom_call.1']
    #allocation5 [shape = 'u8[16384]{0}', space=vmem, size = 0x4000, scoped, tag = 'input window, operand 1, single buffered']
    #allocation6 [shape = 's32[1]{0}', space=sflag, size = 0x4, scoped, tag = 'scoped memory for tpu_custom_call.1']
    #allocation7 [shape = 'u8[8192]{0}', space=vmem, size = 0x2000, scoped, tag = 'input window, operand 2, single buffered']
    #allocation8 [shape = 'u8[2490368]{0}', space=vmem, size = 0x260000, scoped, tag = 'input window, operand 4, single buffered']
    #allocation9 [shape = 's32[1]{0}', space=sflag, size = 0x4, scoped, tag = 'scoped memory for tpu_custom_call.1']
    #allocation10 [shape = 'u8[1572864]{0}', space=vmem, size = 0x180000, scoped, tag = 'input window, operand 5, single buffered']
    #allocation11 [shape = 'u8[12288]{0}', space=vmem, size = 0x3000, scoped, tag = 'input window, operand 6, single buffered']
    #allocation12 [shape = 's32[1]{0}', space=sflag, size = 0x4, scoped, tag = 'scoped memory for tpu_custom_call.1']
    #allocation13 [shape = 'u8[24576]{0}', space=vmem, size = 0x6000, scoped, tag = 'input window, operand 7, single buffered']
    #allocation14 [shape = 'u8[1024]{0}', space=vmem, size = 0x400, scoped, tag = 'output window, operand 0, single buffered']
    #allocation15 [shape = 'u8[16384]{0}', space=vmem, size = 0x4000, scoped, tag = 'output window, operand 1, single buffered']
    #allocation16 [shape = 's32[1]{0}', space=sflag, size = 0x4, scoped, tag = 'scoped memory for tpu_custom_call.1']
    %15 = vsyncpa [#allocation3], 0
    %16 = vsyncpa [#allocation6], 0
    %17 = vsyncpa [#allocation9], 0
    %18 = vsyncpa [#allocation12], 0
    %19 = vsyncpa [#allocation4], 0
    %20 = vsyncpa [#allocation16], 0
    // Predicated region
    $region2: #{tpu_custom_call.1} parent=1 // pred_check
      _
    $region3: #{tpu_custom_call.1} parent=1 // pred_check_branch
      %22 = sbr.rel (0) target = $region5
    $region4: #{tpu_custom_call.1} parent=1 // pred_region
      %s24 = ssub.s32 256, 256
      %25 = vsyncadd [#allocation3], %s24
      %s26 = sshll.u32 [#allocation2], 4
      %s27 = int_to_ptr.vmem [resolvable:$true] %s26
      %32 = dma.hbm_to_vmem [thread:$0]  %s0, 256, %s27, [#allocation3], 128, 128, 8
    $region5: #{tpu_custom_call.1} parent=1 // pred_fallthru
      _
    // Predicated region
    $region6: #{tpu_custom_call.1} parent=1 // pred_check
      _
    $region7: #{tpu_custom_call.1} parent=1 // pred_check_branch
      %34 = sbr.rel (0) target = $region9
    $region8: #{tpu_custom_call.1} parent=1 // pred_region
      %s36 = ssub.s32 512, 512
      %37 = vsyncadd [#allocation6], %s36
      %s38 = sshll.u32 [#allocation5], 4
      %s39 = int_to_ptr.vmem [resolvable:$true] %s38
      %44 = dma.hbm_to_vmem [thread:$0]  %s1, 512, %s39, [#allocation6], 128, 128, 8
    $region9: #{tpu_custom_call.1} parent=1 // pred_fallthru
      _
    // Predicated region
    $region10: #{tpu_custom_call.1} parent=1 // pred_check
      _
    $region11: #{tpu_custom_call.1} parent=1 // pred_check_branch
      %46 = sbr.rel (0) target = $region13
    $region12: #{tpu_custom_call.1} parent=1 // pred_region
      %s48 = ssub.s32 256, 256
      %49 = vsyncadd [#allocation6], %s48
      %s50 = sshll.u32 [#allocation7], 4
      %s51 = int_to_ptr.vmem [resolvable:$true] %s50
      %56 = dma.hbm_to_vmem [thread:$0]  %s2, 256, %s51, [#allocation6], 128, 128, 8
    $region13: #{tpu_custom_call.1} parent=1 // pred_fallthru
      _
    // Predicated region
    $region14: #{tpu_custom_call.1} parent=1 // pred_check
      _
    $region15: #{tpu_custom_call.1} parent=1 // pred_check_branch
      %58 = sbr.rel (0) target = $region17
    $region16: #{tpu_custom_call.1} parent=1 // pred_region
      _
    $region17: #{tpu_custom_call.1} parent=1 // pred_fallthru
      _
    // Predicated region
    $region18: #{tpu_custom_call.1} parent=1 // pred_check
      _
    $region19: #{tpu_custom_call.1} parent=1 // pred_check_branch
      %60 = sbr.rel (0) target = $region21
    $region20: #{tpu_custom_call.1} parent=1 // pred_region
      %s62 = ssub.s32 77824, 77824
      %63 = vsyncadd [#allocation9], %s62
      %s64 = sshll.u32 [#allocation8], 4
      %s65 = int_to_ptr.vmem [resolvable:$true] %s64
      %70 = dma.hbm_to_vmem [thread:$0]  %s4, 77824, %s65, [#allocation9], 128, 128, 8
    $region21: #{tpu_custom_call.1} parent=1 // pred_fallthru
      _
    // Predicated region
    $region22: #{tpu_custom_call.1} parent=1 // pred_check
      _
    $region23: #{tpu_custom_call.1} parent=1 // pred_check_branch
      %72 = sbr.rel (0) target = $region25
    $region24: #{tpu_custom_call.1} parent=1 // pred_region
      %s74 = ssub.s32 49152, 49152
      %75 = vsyncadd [#allocation9], %s74
      %s76 = sshll.u32 [#allocation10], 4
      %s77 = int_to_ptr.vmem [resolvable:$true] %s76
      %82 = dma.hbm_to_vmem [thread:$0]  %s5, 49152, %s77, [#allocation9], 128, 128, 8
    $region25: #{tpu_custom_call.1} parent=1 // pred_fallthru
      _
    // Predicated region
    $region26: #{tpu_custom_call.1} parent=1 // pred_check
      _
    $region27: #{tpu_custom_call.1} parent=1 // pred_check_branch
      %84 = sbr.rel (0) target = $region29
    $region28: #{tpu_custom_call.1} parent=1 // pred_region
      %s86 = ssub.s32 384, 384
      %87 = vsyncadd [#allocation12], %s86
      %s88 = sshll.u32 [#allocation11], 4
      %s89 = int_to_ptr.vmem [resolvable:$true] %s88
      %94 = dma.hbm_to_vmem [thread:$0]  %s6, 384, %s89, [#allocation12], 128, 128, 8
    $region29: #{tpu_custom_call.1} parent=1 // pred_fallthru
      _
    // Predicated region
    $region30: #{tpu_custom_call.1} parent=1 // pred_check
      _
    $region31: #{tpu_custom_call.1} parent=1 // pred_check_branch
      %96 = sbr.rel (0) target = $region33
    $region32: #{tpu_custom_call.1} parent=1 // pred_region
      %s98 = ssub.s32 768, 768
      %99 = vsyncadd [#allocation12], %s98
      %s100 = sshll.u32 [#allocation13], 4
      %s101 = int_to_ptr.vmem [resolvable:$true] %s100
      %106 = dma.hbm_to_vmem [thread:$0]  %s7, 768, %s101, [#allocation12], 256, 256, 16
    $region33: #{tpu_custom_call.1} parent=1 // pred_fallthru
      _
    // Predicated region
    $region34: #{tpu_custom_call.1} parent=1 // pred_check
      _
    $region35: #{tpu_custom_call.1} parent=1 // pred_check_branch
      %108 = sbr.rel (0) target = $region37
    $region36: #{tpu_custom_call.1} parent=1 // pred_region
      %109 = dma.done [#allocation3], 256
    $region37: #{tpu_custom_call.1} parent=1 // pred_fallthru
      _
    // Predicated region
    $region38: #{tpu_custom_call.1} parent=1 // pred_check
      _
    $region39: #{tpu_custom_call.1} parent=1 // pred_check_branch
      %111 = sbr.rel (0) target = $region41
    $region40: #{tpu_custom_call.1} parent=1 // pred_region
      %112 = dma.done [#allocation6], 512
    $region41: #{tpu_custom_call.1} parent=1 // pred_fallthru
      _
    // Predicated region
    $region42: #{tpu_custom_call.1} parent=1 // pred_check
      _
    $region43: #{tpu_custom_call.1} parent=1 // pred_check_branch
      %114 = sbr.rel (0) target = $region45
    $region44: #{tpu_custom_call.1} parent=1 // pred_region
      %115 = dma.done [#allocation6], 256
    $region45: #{tpu_custom_call.1} parent=1 // pred_fallthru
      _
    // Predicated region
    $region46: #{tpu_custom_call.1} parent=1 // pred_check
      _
    $region47: #{tpu_custom_call.1} parent=1 // pred_check_branch
      %117 = sbr.rel (0) target = $region49
    $region48: #{tpu_custom_call.1} parent=1 // pred_region
      %118 = dma.done [#allocation9], 77824
    $region49: #{tpu_custom_call.1} parent=1 // pred_fallthru
      _
    // Predicated region
    $region50: #{tpu_custom_call.1} parent=1 // pred_check
      _
    $region51: #{tpu_custom_call.1} parent=1 // pred_check_branch
      %120 = sbr.rel (0) target = $region53
    $region52: #{tpu_custom_call.1} parent=1 // pred_region
      %121 = dma.done [#allocation9], 49152
    $region53: #{tpu_custom_call.1} parent=1 // pred_fallthru
      _
    // Predicated region
    $region54: #{tpu_custom_call.1} parent=1 // pred_check
      _
    $region55: #{tpu_custom_call.1} parent=1 // pred_check_branch
      %123 = sbr.rel (0) target = $region57
    $region56: #{tpu_custom_call.1} parent=1 // pred_region
      %124 = dma.done [#allocation12], 384
    $region57: #{tpu_custom_call.1} parent=1 // pred_fallthru
      _
    // Predicated region
    $region58: #{tpu_custom_call.1} parent=1 // pred_check
      _
    $region59: #{tpu_custom_call.1} parent=1 // pred_check_branch
      %126 = sbr.rel (0) target = $region61
    $region60: #{tpu_custom_call.1} parent=1 // pred_region
      %127 = dma.done [#allocation12], 768
    $region61: #{tpu_custom_call.1} parent=1 // pred_fallthru
      _
    %v128 = vld [vmem:[#allocation2] sm:$0xff]
    %v129 = vld [vmem:[#allocation2 + $0x8] sm:$0xff]
    %v130 = vld [vmem:[#allocation5] sm:$0xff]
    %v131 = vld [vmem:[#allocation5 + $0x8] sm:$0xff]
    %v132 = vld [vmem:[#allocation5 + $0x10] sm:$0xff]
    %v133 = vld [vmem:[#allocation5 + $0x18] sm:$0xff]
    %v134 = vld [vmem:[#allocation7] sm:$0xff]
    %v135 = vld [vmem:[#allocation7 + $0x8] sm:$0xff]
    %v136 = vld [vmem:[%s3] sm:$0xff]
    %v137 = vld [vmem:[%s3 + $0x8] sm:$0xff]
    %v138 = vld [vmem:[%s3 + $0x10] sm:$0xff]
    %v139 = vld [vmem:[%s3 + $0x18] sm:$0xff]
    %v140 = vld [vmem:[#allocation11] sm:$0x1]
    %v141 = vld [vmem:[#allocation8] sm:$0xff]
    %v142 = vld [vmem:[#allocation8 + $0x8] sm:$0xff]
    %v143 = vld [vmem:[#allocation8 + $0x10] sm:$0xff]
    %v144 = vld [vmem:[#allocation8 + $0x18] sm:$0xff]
    %v145 = vld [vmem:[#allocation8 + $0x20] sm:$0xff]
    %v146 = vld [vmem:[#allocation8 + $0x28] sm:$0xff]
    %v147 = vld [vmem:[#allocation8 + $0x30] sm:$0xff]
    %v148 = vld [vmem:[#allocation8 + $0x38] sm:$0xff]
    %v149 = vld [vmem:[#allocation8 + $0x40] sm:$0xff]
    %v150 = vld [vmem:[#allocation8 + $0x48] sm:$0xff]
    %v151 = vld [vmem:[#allocation8 + $0x50] sm:$0xff]
    %v152 = vld [vmem:[#allocation8 + $0x58] sm:$0xff]
    %v153 = vld [vmem:[#allocation8 + $0x60] sm:$0xff]
    %v154 = vld [vmem:[#allocation8 + $0x68] sm:$0xff]
    %v155 = vld [vmem:[#allocation8 + $0x70] sm:$0xff]
    %v156 = vld [vmem:[#allocation8 + $0x78] sm:$0xff]
    %157 = vmatprep.subr.mxu0 0.0
    %158 = vmatpush1.msra.mxu0 %v156
    %159 = vmatprep.subr.mxu0 0.0
    %160 = vmatpush1.msra.mxu0 %v155
    %161 = vmatprep.subr.mxu0 0.0
    %162 = vmatpush1.msra.mxu0 %v154
    %163 = vmatprep.subr.mxu0 0.0
    %164 = vmatpush1.msra.mxu0 %v153
    %165 = vmatprep.subr.mxu0 0.0
    %166 = vmatpush1.msra.mxu0 %v152
    %167 = vmatprep.subr.mxu0 0.0
    %168 = vmatpush1.msra.mxu0 %v151
    %169 = vmatprep.subr.mxu0 0.0
    %170 = vmatpush1.msra.mxu0 %v150
    %171 = vmatprep.subr.mxu0 0.0
    %172 = vmatpush1.msra.mxu0 %v149
    %173 = vmatprep.subr.mxu0 0.0
    %174 = vmatpush1.msra.mxu0 %v148
    %175 = vmatprep.subr.mxu0 0.0
    %176 = vmatpush1.msra.mxu0 %v147
    %177 = vmatprep.subr.mxu0 0.0
    %178 = vmatpush1.msra.mxu0 %v146
    %179 = vmatprep.subr.mxu0 0.0
    %180 = vmatpush1.msra.mxu0 %v145
    %181 = vmatprep.subr.mxu0 0.0
    %182 = vmatpush1.msra.mxu0 %v144
    %183 = vmatprep.subr.mxu0 0.0
    %184 = vmatpush1.msra.mxu0 %v143
    %185 = vmatprep.subr.mxu0 0.0
    %186 = vmatpush1.msra.mxu0 %v142
    %187 = vmatprep.subr.mxu0 0.0
    %188 = vmatpush1.msra.mxu0 %v141
    %189 = vmatprep.subr.mxu0 0.0
    %190 = vmatpush2.msra.mxu0 0.0
    %191 = vmatprep.subr.mxu0 0.0
    %192 = vmatpush2.msra.mxu0 0.0
    %193 = vmatprep.subr.mxu0 0.0
    %194 = vmatpush2.msra.mxu0 0.0
    %195 = vmatprep.subr.mxu0 0.0
    %196 = vmatpush2.msra.mxu0 0.0
    %197 = vmatprep.subr.mxu0 0.0
    %198 = vmatpush2.msra.mxu0 0.0
    %199 = vmatprep.subr.mxu0 0.0
    %200 = vmatpush2.msra.mxu0 0.0
    %201 = vmatprep.subr.mxu0 0.0
    %202 = vmatpush2.msra.mxu0 0.0
    %203 = vmatprep.subr.mxu0 0.0
    %204 = vmatpush2.msra.mxu0 0.0
    %205 = vmatprep.subr.mxu0 0.0
    %206 = vmatpush2.msra.mxu0 0.0
    %207 = vmatprep.subr.mxu0 0.0
    %208 = vmatpush2.msra.mxu0 0.0
    %209 = vmatprep.subr.mxu0 0.0
    %210 = vmatpush2.msra.mxu0 0.0
    %211 = vmatprep.subr.mxu0 0.0
    %212 = vmatpush2.msra.mxu0 0.0
    %213 = vmatprep.subr.mxu0 0.0
    %214 = vmatpush2.msra.mxu0 0.0
    %215 = vmatprep.subr.mxu0 0.0
    %216 = vmatpush2.msra.mxu0 0.0
    %217 = vmatprep.subr.mxu0 0.0
    %218 = vmatpush2.msra.mxu0 0.0
    %219 = vmatprep.subr.mxu0 0.0
    %220 = vmatpush2.msra.mxu0 0.0
    %221 = vmatprep.mubr.f32.mxu0 0.0
    %222 = vmatmul.mubr.f32.gmra.mxu0 %v128
    %v223 = vpop.f32.mrf.mxu0
    %v224 = vadd.f32 0.0, %v223
    %v225 = vpop.f32.mrf.mxu0
    %226 = vmatprep.mubr.f32.mxu0 0.0
    %227 = vmatmul.mubr.f32.gmra.mxu0 %v129
    %v228 = vpop.f32.mrf.mxu0
    %v229 = vadd.f32 0.0, %v228
    %v230 = vpop.f32.mrf.mxu0
    %231 = vdwg.mxu0
    %v232 = vlaneseq
    %v233 = vshrl.u32 %v232, 7
    %v234 = vsub.s32 0, %v233
    %v235 = vrot.slane %v140, %v234
    %v236 = vadd.f32 %v235, %v224
    %v237 = vadd.f32 %v235, %v229
    %v238 = vmax.f32 %v236, 0.0
    %v239 = vmax.f32 %v237, 0.0
    %v240 = vld [vmem:[#allocation10] sm:$0xff]
    %v241 = vld [vmem:[#allocation10 + $0x8] sm:$0xff]
    %v242 = vld [vmem:[#allocation10 + $0x10] sm:$0xff]
    %v243 = vld [vmem:[#allocation10 + $0x18] sm:$0xff]
    %v244 = vld [vmem:[#allocation10 + $0x20] sm:$0xff]
    %v245 = vld [vmem:[#allocation10 + $0x28] sm:$0xff]
    %v246 = vld [vmem:[#allocation10 + $0x30] sm:$0xff]
    %v247 = vld [vmem:[#allocation10 + $0x38] sm:$0xff]
    %v248 = vld [vmem:[#allocation10 + $0x40] sm:$0xff]
    %v249 = vld [vmem:[#allocation10 + $0x48] sm:$0xff]
    %v250 = vld [vmem:[#allocation10 + $0x50] sm:$0xff]
    %v251 = vld [vmem:[#allocation10 + $0x58] sm:$0xff]
    %v252 = vld [vmem:[#allocation10 + $0x60] sm:$0xff]
    %v253 = vld [vmem:[#allocation10 + $0x68] sm:$0xff]
    %v254 = vld [vmem:[#allocation10 + $0x70] sm:$0xff]
    %v255 = vld [vmem:[#allocation10 + $0x78] sm:$0xff]
    %v256 = vld [vmem:[#allocation13] ss:$0 sm:$0xff]
    %257 = vmatprep.subr.mxu0 0.0
    %258 = vmatpush1.xpose.msra.mxu0 %v255
    %259 = vmatprep.subr.mxu0 0.0
    %260 = vmatpush1.xpose.msra.mxu0 %v254
    %261 = vmatprep.subr.mxu0 0.0
    %262 = vmatpush1.xpose.msra.mxu0 %v253
    %263 = vmatprep.subr.mxu0 0.0
    %264 = vmatpush1.xpose.msra.mxu0 %v252
    %265 = vmatprep.subr.mxu0 0.0
    %266 = vmatpush1.xpose.msra.mxu0 %v251
    %267 = vmatprep.subr.mxu0 0.0
    %268 = vmatpush1.xpose.msra.mxu0 %v250
    %269 = vmatprep.subr.mxu0 0.0
    %270 = vmatpush1.xpose.msra.mxu0 %v249
    %271 = vmatprep.subr.mxu0 0.0
    %272 = vmatpush1.xpose.msra.mxu0 %v248
    %273 = vmatprep.subr.mxu0 0.0
    %274 = vmatpush1.xpose.msra.mxu0 %v247
    %275 = vmatprep.subr.mxu0 0.0
    %276 = vmatpush1.xpose.msra.mxu0 %v246
    %277 = vmatprep.subr.mxu0 0.0
    %278 = vmatpush1.xpose.msra.mxu0 %v245
    %279 = vmatprep.subr.mxu0 0.0
    %280 = vmatpush1.xpose.msra.mxu0 %v244
    %281 = vmatprep.subr.mxu0 0.0
    %282 = vmatpush1.xpose.msra.mxu0 %v243
    %283 = vmatprep.subr.mxu0 0.0
    %284 = vmatpush1.xpose.msra.mxu0 %v242
    %285 = vmatprep.subr.mxu0 0.0
    %286 = vmatpush1.xpose.msra.mxu0 %v241
    %287 = vmatprep.subr.mxu0 0.0
    %288 = vmatpush1.xpose.msra.mxu0 %v240
    %289 = vmatprep.subr.mxu0 0.0
    %290 = vmatpush2.xpose.msra.mxu0 0.0
    %291 = vmatprep.subr.mxu0 0.0
    %292 = vmatpush2.xpose.msra.mxu0 0.0
    %293 = vmatprep.subr.mxu0 0.0
    %294 = vmatpush2.xpose.msra.mxu0 0.0
    %295 = vmatprep.subr.mxu0 0.0
    %296 = vmatpush2.xpose.msra.mxu0 0.0
    %297 = vmatprep.subr.mxu0 0.0
    %298 = vmatpush2.xpose.msra.mxu0 0.0
    %299 = vmatprep.subr.mxu0 0.0
    %300 = vmatpush2.xpose.msra.mxu0 0.0
    %301 = vmatprep.subr.mxu0 0.0
    %302 = vmatpush2.xpose.msra.mxu0 0.0
    %303 = vmatprep.subr.mxu0 0.0
    %304 = vmatpush2.xpose.msra.mxu0 0.0
    %305 = vmatprep.subr.mxu0 0.0
    %306 = vmatpush2.xpose.msra.mxu0 0.0
    %307 = vmatprep.subr.mxu0 0.0
    %308 = vmatpush2.xpose.msra.mxu0 0.0
    %309 = vmatprep.subr.mxu0 0.0
    %310 = vmatpush2.xpose.msra.mxu0 0.0
    %311 = vmatprep.subr.mxu0 0.0
    %312 = vmatpush2.xpose.msra.mxu0 0.0
    %313 = vmatprep.subr.mxu0 0.0
    %314 = vmatpush2.xpose.msra.mxu0 0.0
    %315 = vmatprep.subr.mxu0 0.0
    %316 = vmatpush2.xpose.msra.mxu0 0.0
    %317 = vmatprep.subr.mxu0 0.0
    %318 = vmatpush2.xpose.msra.mxu0 0.0
    %319 = vmatprep.subr.mxu0 0.0
    %320 = vmatpush2.xpose.msra.mxu0 0.0
    %321 = vmatprep.mubr.f32.mxu0 0.0
    %322 = vmatmul.mubr.f32.gmra.mxu0 %v238
    %v323 = vpop.f32.mrf.mxu0
    %v324 = vadd.f32 %v256, %v323
    %v325 = vpop.f32.mrf.mxu0
    %326 = vmatprep.mubr.f32.mxu0 0.0
    %327 = vmatmul.mubr.f32.gmra.mxu0 %v239
    %v328 = vpop.f32.mrf.mxu0
    %v329 = vadd.f32 %v256, %v328
    %v330 = vpop.f32.mrf.mxu0
    %331 = vdwg.mxu0
    %v332 = vld [vmem:[#allocation11 + $0x1] sm:$0x1]
    %v333 = vld [vmem:[#allocation8 + $0x80] sm:$0xff]
    %v334 = vld [vmem:[#allocation8 + $0x88] sm:$0xff]
    %v335 = vld [vmem:[#allocation8 + $0x90] sm:$0xff]
    %v336 = vld [vmem:[#allocation8 + $0x98] sm:$0xff]
    %v337 = vld [vmem:[#allocation8 + $0xa0] sm:$0xff]
    %v338 = vld [vmem:[#allocation8 + $0xa8] sm:$0xff]
    %v339 = vld [vmem:[#allocation8 + $0xb0] sm:$0xff]
    %v340 = vld [vmem:[#allocation8 + $0xb8] sm:$0xff]
    %v341 = vld [vmem:[#allocation8 + $0xc0] sm:$0xff]
    %v342 = vld [vmem:[#allocation8 + $0xc8] sm:$0xff]
    %v343 = vld [vmem:[#allocation8 + $0xd0] sm:$0xff]
    %v344 = vld [vmem:[#allocation8 + $0xd8] sm:$0xff]
    %v345 = vld [vmem:[#allocation8 + $0xe0] sm:$0xff]
    %v346 = vld [vmem:[#allocation8 + $0xe8] sm:$0xff]
    %v347 = vld [vmem:[#allocation8 + $0xf0] sm:$0xff]
    %v348 = vld [vmem:[#allocation8 + $0xf8] sm:$0xff]
    %349 = vmatprep.subr.mxu0 0.0
    %350 = vmatpush1.msra.mxu0 %v348
    %351 = vmatprep.subr.mxu0 0.0
    %352 = vmatpush1.msra.mxu0 %v347
    %353 = vmatprep.subr.mxu0 0.0
    %354 = vmatpush1.msra.mxu0 %v346
    %355 = vmatprep.subr.mxu0 0.0
    %356 = vmatpush1.msra.mxu0 %v345
    %357 = vmatprep.subr.mxu0 0.0
    %358 = vmatpush1.msra.mxu0 %v344
    %359 = vmatprep.subr.mxu0 0.0
    %360 = vmatpush1.msra.mxu0 %v343
    %361 = vmatprep.subr.mxu0 0.0
    %362 = vmatpush1.msra.mxu0 %v342
    %363 = vmatprep.subr.mxu0 0.0
    %364 = vmatpush1.msra.mxu0 %v341
    %365 = vmatprep.subr.mxu0 0.0
    %366 = vmatpush1.msra.mxu0 %v340
    %367 = vmatprep.subr.mxu0 0.0
    %368 = vmatpush1.msra.mxu0 %v339
    %369 = vmatprep.subr.mxu0 0.0
    %370 = vmatpush1.msra.mxu0 %v338
    %371 = vmatprep.subr.mxu0 0.0
    %372 = vmatpush1.msra.mxu0 %v337
    %373 = vmatprep.subr.mxu0 0.0
    %374 = vmatpush1.msra.mxu0 %v336
    %375 = vmatprep.subr.mxu0 0.0
    %376 = vmatpush1.msra.mxu0 %v335
    %377 = vmatprep.subr.mxu0 0.0
    %378 = vmatpush1.msra.mxu0 %v334
    %379 = vmatprep.subr.mxu0 0.0
    %380 = vmatpush1.msra.mxu0 %v333
    %381 = vmatprep.subr.mxu0 0.0
    %382 = vmatpush2.msra.mxu0 0.0
    %383 = vmatprep.subr.mxu0 0.0
    %384 = vmatpush2.msra.mxu0 0.0
    %385 = vmatprep.subr.mxu0 0.0
    %386 = vmatpush2.msra.mxu0 0.0
    %387 = vmatprep.subr.mxu0 0.0
    %388 = vmatpush2.msra.mxu0 0.0
    %389 = vmatprep.subr.mxu0 0.0
    %390 = vmatpush2.msra.mxu0 0.0
    %391 = vmatprep.subr.mxu0 0.0
    %392 = vmatpush2.msra.mxu0 0.0
    %393 = vmatprep.subr.mxu0 0.0
    %394 = vmatpush2.msra.mxu0 0.0
    %395 = vmatprep.subr.mxu0 0.0
    %396 = vmatpush2.msra.mxu0 0.0
    %397 = vmatprep.subr.mxu0 0.0
    %398 = vmatpush2.msra.mxu0 0.0
    %399 = vmatprep.subr.mxu0 0.0
    %400 = vmatpush2.msra.mxu0 0.0
    %401 = vmatprep.subr.mxu0 0.0
    %402 = vmatpush2.msra.mxu0 0.0
    %403 = vmatprep.subr.mxu0 0.0
    %404 = vmatpush2.msra.mxu0 0.0
    %405 = vmatprep.subr.mxu0 0.0
    %406 = vmatpush2.msra.mxu0 0.0
    %407 = vmatprep.subr.mxu0 0.0
    %408 = vmatpush2.msra.mxu0 0.0
    %409 = vmatprep.subr.mxu0 0.0
    %410 = vmatpush2.msra.mxu0 0.0
    %411 = vmatprep.subr.mxu0 0.0
    %412 = vmatpush2.msra.mxu0 0.0
    %413 = vmatprep.mubr.f32.mxu0 0.0
    %414 = vmatmul.mubr.f32.gmra.mxu0 %v130
    %v415 = vpop.f32.mrf.mxu0
    %v416 = vadd.f32 0.0, %v415
    %v417 = vpop.f32.mrf.mxu0
    %418 = vmatprep.mubr.f32.mxu0 0.0
    %419 = vmatmul.mubr.f32.gmra.mxu0 %v131
    %v420 = vpop.f32.mrf.mxu0
    %v421 = vadd.f32 0.0, %v420
    %v422 = vpop.f32.mrf.mxu0
    %423 = vmatprep.mubr.f32.mxu0 0.0
    %424 = vmatmul.mubr.f32.gmra.mxu0 %v132
    %v425 = vpop.f32.mrf.mxu0
    %v426 = vadd.f32 0.0, %v425
    %v427 = vpop.f32.mrf.mxu0
    %428 = vmatprep.mubr.f32.mxu0 0.0
    %429 = vmatmul.mubr.f32.gmra.mxu0 %v133
    %v430 = vpop.f32.mrf.mxu0
    %v431 = vadd.f32 0.0, %v430
    %v432 = vpop.f32.mrf.mxu0
    %433 = vdwg.mxu0
    %v434 = vlaneseq
    %v435 = vshrl.u32 %v434, 7
    %v436 = vsub.s32 0, %v435
    %v437 = vrot.slane %v332, %v436
    %v438 = vadd.f32 %v437, %v416
    %v439 = vadd.f32 %v437, %v421
    %v440 = vadd.f32 %v437, %v426
    %v441 = vadd.f32 %v437, %v431
    %v442 = vmax.f32 %v438, 0.0
    %v443 = vmax.f32 %v439, 0.0
    %v444 = vmax.f32 %v440, 0.0
    %v445 = vmax.f32 %v441, 0.0
    %v446 = vld [vmem:[#allocation10 + $0x80] sm:$0xff]
    %v447 = vld [vmem:[#allocation10 + $0x88] sm:$0xff]
    %v448 = vld [vmem:[#allocation10 + $0x90] sm:$0xff]
    %v449 = vld [vmem:[#allocation10 + $0x98] sm:$0xff]
    %v450 = vld [vmem:[#allocation10 + $0xa0] sm:$0xff]
    %v451 = vld [vmem:[#allocation10 + $0xa8] sm:$0xff]
    %v452 = vld [vmem:[#allocation10 + $0xb0] sm:$0xff]
    %v453 = vld [vmem:[#allocation10 + $0xb8] sm:$0xff]
    %v454 = vld [vmem:[#allocation10 + $0xc0] sm:$0xff]
    %v455 = vld [vmem:[#allocation10 + $0xc8] sm:$0xff]
    %v456 = vld [vmem:[#allocation10 + $0xd0] sm:$0xff]
    %v457 = vld [vmem:[#allocation10 + $0xd8] sm:$0xff]
    %v458 = vld [vmem:[#allocation10 + $0xe0] sm:$0xff]
    %v459 = vld [vmem:[#allocation10 + $0xe8] sm:$0xff]
    %v460 = vld [vmem:[#allocation10 + $0xf0] sm:$0xff]
    %v461 = vld [vmem:[#allocation10 + $0xf8] sm:$0xff]
    %v462 = vld [vmem:[#allocation13 + $0x1] ss:$0 sm:$0xff]
    %463 = vmatprep.subr.mxu0 0.0
    %464 = vmatpush1.xpose.msra.mxu0 %v461
    %465 = vmatprep.subr.mxu0 0.0
    %466 = vmatpush1.xpose.msra.mxu0 %v460
    %467 = vmatprep.subr.mxu0 0.0
    %468 = vmatpush1.xpose.msra.mxu0 %v459
    %469 = vmatprep.subr.mxu0 0.0
    %470 = vmatpush1.xpose.msra.mxu0 %v458
    %471 = vmatprep.subr.mxu0 0.0
    %472 = vmatpush1.xpose.msra.mxu0 %v457
    %473 = vmatprep.subr.mxu0 0.0
    %474 = vmatpush1.xpose.msra.mxu0 %v456
    %475 = vmatprep.subr.mxu0 0.0
    %476 = vmatpush1.xpose.msra.mxu0 %v455
    %477 = vmatprep.subr.mxu0 0.0
    %478 = vmatpush1.xpose.msra.mxu0 %v454
    %479 = vmatprep.subr.mxu0 0.0
    %480 = vmatpush1.xpose.msra.mxu0 %v453
    %481 = vmatprep.subr.mxu0 0.0
    %482 = vmatpush1.xpose.msra.mxu0 %v452
    %483 = vmatprep.subr.mxu0 0.0
    %484 = vmatpush1.xpose.msra.mxu0 %v451
    %485 = vmatprep.subr.mxu0 0.0
    %486 = vmatpush1.xpose.msra.mxu0 %v450
    %487 = vmatprep.subr.mxu0 0.0
    %488 = vmatpush1.xpose.msra.mxu0 %v449
    %489 = vmatprep.subr.mxu0 0.0
    %490 = vmatpush1.xpose.msra.mxu0 %v448
    %491 = vmatprep.subr.mxu0 0.0
    %492 = vmatpush1.xpose.msra.mxu0 %v447
    %493 = vmatprep.subr.mxu0 0.0
    %494 = vmatpush1.xpose.msra.mxu0 %v446
    %495 = vmatprep.subr.mxu0 0.0
    %496 = vmatpush2.xpose.msra.mxu0 0.0
    %497 = vmatprep.subr.mxu0 0.0
    %498 = vmatpush2.xpose.msra.mxu0 0.0
    %499 = vmatprep.subr.mxu0 0.0
    %500 = vmatpush2.xpose.msra.mxu0 0.0
    %501 = vmatprep.subr.mxu0 0.0
    %502 = vmatpush2.xpose.msra.mxu0 0.0
    %503 = vmatprep.subr.mxu0 0.0
    %504 = vmatpush2.xpose.msra.mxu0 0.0
    %505 = vmatprep.subr.mxu0 0.0
    %506 = vmatpush2.xpose.msra.mxu0 0.0
    %507 = vmatprep.subr.mxu0 0.0
    %508 = vmatpush2.xpose.msra.mxu0 0.0
    %509 = vmatprep.subr.mxu0 0.0
    %510 = vmatpush2.xpose.msra.mxu0 0.0
    %511 = vmatprep.subr.mxu0 0.0
    %512 = vmatpush2.xpose.msra.mxu0 0.0
    %513 = vmatprep.subr.mxu0 0.0
    %514 = vmatpush2.xpose.msra.mxu0 0.0
    %515 = vmatprep.subr.mxu0 0.0
    %516 = vmatpush2.xpose.msra.mxu0 0.0
    %517 = vmatprep.subr.mxu0 0.0
    %518 = vmatpush2.xpose.msra.mxu0 0.0
    %519 = vmatprep.subr.mxu0 0.0
    %520 = vmatpush2.xpose.msra.mxu0 0.0
    %521 = vmatprep.subr.mxu0 0.0
    %522 = vmatpush2.xpose.msra.mxu0 0.0
    %523 = vmatprep.subr.mxu0 0.0
    %524 = vmatpush2.xpose.msra.mxu0 0.0
    %525 = vmatprep.subr.mxu0 0.0
    %526 = vmatpush2.xpose.msra.mxu0 0.0
    %527 = vmatprep.mubr.f32.mxu0 0.0
    %528 = vmatmul.mubr.f32.gmra.mxu0 %v442
    %v529 = vpop.f32.mrf.mxu0
    %v530 = vadd.f32 %v462, %v529
    %v531 = vpop.f32.mrf.mxu0
    %532 = vmatprep.mubr.f32.mxu0 0.0
    %533 = vmatmul.mubr.f32.gmra.mxu0 %v443
    %v534 = vpop.f32.mrf.mxu0
    %v535 = vadd.f32 %v462, %v534
    %v536 = vpop.f32.mrf.mxu0
    %537 = vmatprep.mubr.f32.mxu0 0.0
    %538 = vmatmul.mubr.f32.gmra.mxu0 %v444
    %v539 = vpop.f32.mrf.mxu0
    %v540 = vadd.f32 %v462, %v539
    %v541 = vpop.f32.mrf.mxu0
    %542 = vmatprep.mubr.f32.mxu0 0.0
    %543 = vmatmul.mubr.f32.gmra.mxu0 %v445
    %v544 = vpop.f32.mrf.mxu0
    %v545 = vadd.f32 %v462, %v544
    %v546 = vpop.f32.mrf.mxu0
    %547 = vdwg.mxu0
    %v548 = vld [vmem:[#allocation11 + $0x4] sm:$0x1]
    %v549 = vld [vmem:[#allocation8 + $0x280] sm:$0xff]
    %v550 = vld [vmem:[#allocation8 + $0x288] sm:$0xff]
    %v551 = vld [vmem:[#allocation8 + $0x290] sm:$0xff]
    %v552 = vld [vmem:[#allocation8 + $0x298] sm:$0xff]
    %v553 = vld [vmem:[#allocation8 + $0x2a0] sm:$0xff]
    %v554 = vld [vmem:[#allocation8 + $0x2a8] sm:$0xff]
    %v555 = vld [vmem:[#allocation8 + $0x2b0] sm:$0xff]
    %v556 = vld [vmem:[#allocation8 + $0x2b8] sm:$0xff]
    %v557 = vld [vmem:[#allocation8 + $0x2c0] sm:$0xff]
    %v558 = vld [vmem:[#allocation8 + $0x2c8] sm:$0xff]
    %v559 = vld [vmem:[#allocation8 + $0x2d0] sm:$0xff]
    %v560 = vld [vmem:[#allocation8 + $0x2d8] sm:$0xff]
    %v561 = vld [vmem:[#allocation8 + $0x2e0] sm:$0xff]
    %v562 = vld [vmem:[#allocation8 + $0x2e8] sm:$0xff]
    %v563 = vld [vmem:[#allocation8 + $0x2f0] sm:$0xff]
    %v564 = vld [vmem:[#allocation8 + $0x2f8] sm:$0xff]
    %565 = vmatprep.subr.mxu0 0.0
    %566 = vmatpush1.msra.mxu0 %v564
    %567 = vmatprep.subr.mxu0 0.0
    %568 = vmatpush1.msra.mxu0 %v563
    %569 = vmatprep.subr.mxu0 0.0
    %570 = vmatpush1.msra.mxu0 %v562
    %571 = vmatprep.subr.mxu0 0.0
    %572 = vmatpush1.msra.mxu0 %v561
    %573 = vmatprep.subr.mxu0 0.0
    %574 = vmatpush1.msra.mxu0 %v560
    %575 = vmatprep.subr.mxu0 0.0
    %576 = vmatpush1.msra.mxu0 %v559
    %577 = vmatprep.subr.mxu0 0.0
    %578 = vmatpush1.msra.mxu0 %v558
    %579 = vmatprep.subr.mxu0 0.0
    %580 = vmatpush1.msra.mxu0 %v557
    %581 = vmatprep.subr.mxu0 0.0
    %582 = vmatpush1.msra.mxu0 %v556
    %583 = vmatprep.subr.mxu0 0.0
    %584 = vmatpush1.msra.mxu0 %v555
    %585 = vmatprep.subr.mxu0 0.0
    %586 = vmatpush1.msra.mxu0 %v554
    %587 = vmatprep.subr.mxu0 0.0
    %588 = vmatpush1.msra.mxu0 %v553
    %589 = vmatprep.subr.mxu0 0.0
    %590 = vmatpush1.msra.mxu0 %v552
    %591 = vmatprep.subr.mxu0 0.0
    %592 = vmatpush1.msra.mxu0 %v551
    %593 = vmatprep.subr.mxu0 0.0
    %594 = vmatpush1.msra.mxu0 %v550
    %595 = vmatprep.subr.mxu0 0.0
    %596 = vmatpush1.msra.mxu0 %v549
    %597 = vmatprep.subr.mxu0 0.0
    %598 = vmatpush2.msra.mxu0 0.0
    %599 = vmatprep.subr.mxu0 0.0
    %600 = vmatpush2.msra.mxu0 0.0
    %601 = vmatprep.subr.mxu0 0.0
    %602 = vmatpush2.msra.mxu0 0.0
    %603 = vmatprep.subr.mxu0 0.0
    %604 = vmatpush2.msra.mxu0 0.0
    %605 = vmatprep.subr.mxu0 0.0
    %606 = vmatpush2.msra.mxu0 0.0
    %607 = vmatprep.subr.mxu0 0.0
    %608 = vmatpush2.msra.mxu0 0.0
    %609 = vmatprep.subr.mxu0 0.0
    %610 = vmatpush2.msra.mxu0 0.0
    %611 = vmatprep.subr.mxu0 0.0
    %612 = vmatpush2.msra.mxu0 0.0
    %613 = vmatprep.subr.mxu0 0.0
    %614 = vmatpush2.msra.mxu0 0.0
    %615 = vmatprep.subr.mxu0 0.0
    %616 = vmatpush2.msra.mxu0 0.0
    %617 = vmatprep.subr.mxu0 0.0
    %618 = vmatpush2.msra.mxu0 0.0
    %619 = vmatprep.subr.mxu0 0.0
    %620 = vmatpush2.msra.mxu0 0.0
    %621 = vmatprep.subr.mxu0 0.0
    %622 = vmatpush2.msra.mxu0 0.0
    %623 = vmatprep.subr.mxu0 0.0
    %624 = vmatpush2.msra.mxu0 0.0
    %625 = vmatprep.subr.mxu0 0.0
    %626 = vmatpush2.msra.mxu0 0.0
    %627 = vmatprep.subr.mxu0 0.0
    %628 = vmatpush2.msra.mxu0 0.0
    %629 = vmatprep.mubr.f32.mxu0 0.0
    %630 = vmatmul.mubr.f32.gmra.mxu0 %v530
    %v631 = vpop.f32.mrf.mxu0
    %v632 = vadd.f32 0.0, %v631
    %v633 = vpop.f32.mrf.mxu0
    %634 = vmatprep.mubr.f32.mxu0 0.0
    %635 = vmatmul.mubr.f32.gmra.mxu0 %v535
    %v636 = vpop.f32.mrf.mxu0
    %v637 = vadd.f32 0.0, %v636
    %v638 = vpop.f32.mrf.mxu0
    %639 = vmatprep.mubr.f32.mxu0 0.0
    %640 = vmatmul.mubr.f32.gmra.mxu0 %v540
    %v641 = vpop.f32.mrf.mxu0
    %v642 = vadd.f32 0.0, %v641
    %v643 = vpop.f32.mrf.mxu0
    %644 = vmatprep.mubr.f32.mxu0 0.0
    %645 = vmatmul.mubr.f32.gmra.mxu0 %v545
    %v646 = vpop.f32.mrf.mxu0
    %v647 = vadd.f32 0.0, %v646
    %v648 = vpop.f32.mrf.mxu0
    %649 = vdwg.mxu0
    %v650 = vlaneseq
    %v651 = vshrl.u32 %v650, 7
    %v652 = vsub.s32 0, %v651
    %v653 = vrot.slane %v548, %v652
    %v654 = vadd.f32 %v653, %v632
    %v655 = vadd.f32 %v653, %v637
    %v656 = vadd.f32 %v653, %v642
    %v657 = vadd.f32 %v653, %v647
    %v658 = vmax.f32 %v654, 0.0
    %v659 = vmax.f32 %v655, 0.0
    %v660 = vmax.f32 %v656, 0.0
    %v661 = vmax.f32 %v657, 0.0
    %v662 = vld [vmem:[#allocation10 + $0x200] sm:$0xff]
    %v663 = vld [vmem:[#allocation10 + $0x208] sm:$0xff]
    %v664 = vld [vmem:[#allocation10 + $0x210] sm:$0xff]
    %v665 = vld [vmem:[#allocation10 + $0x218] sm:$0xff]
    %v666 = vld [vmem:[#allocation10 + $0x220] sm:$0xff]
    %v667 = vld [vmem:[#allocation10 + $0x228] sm:$0xff]
    %v668 = vld [vmem:[#allocation10 + $0x230] sm:$0xff]
    %v669 = vld [vmem:[#allocation10 + $0x238] sm:$0xff]
    %v670 = vld [vmem:[#allocation10 + $0x240] sm:$0xff]
    %v671 = vld [vmem:[#allocation10 + $0x248] sm:$0xff]
    %v672 = vld [vmem:[#allocation10 + $0x250] sm:$0xff]
    %v673 = vld [vmem:[#allocation10 + $0x258] sm:$0xff]
    %v674 = vld [vmem:[#allocation10 + $0x260] sm:$0xff]
    %v675 = vld [vmem:[#allocation10 + $0x268] sm:$0xff]
    %v676 = vld [vmem:[#allocation10 + $0x270] sm:$0xff]
    %v677 = vld [vmem:[#allocation10 + $0x278] sm:$0xff]
    %v678 = vld [vmem:[#allocation13 + $0x4] ss:$0 sm:$0xff]
    %679 = vmatprep.subr.mxu0 0.0
    %680 = vmatpush1.xpose.msra.mxu0 %v677
    %681 = vmatprep.subr.mxu0 0.0
    %682 = vmatpush1.xpose.msra.mxu0 %v676
    %683 = vmatprep.subr.mxu0 0.0
    %684 = vmatpush1.xpose.msra.mxu0 %v675
    %685 = vmatprep.subr.mxu0 0.0
    %686 = vmatpush1.xpose.msra.mxu0 %v674
    %687 = vmatprep.subr.mxu0 0.0
    %688 = vmatpush1.xpose.msra.mxu0 %v673
    %689 = vmatprep.subr.mxu0 0.0
    %690 = vmatpush1.xpose.msra.mxu0 %v672
    %691 = vmatprep.subr.mxu0 0.0
    %692 = vmatpush1.xpose.msra.mxu0 %v671
    %693 = vmatprep.subr.mxu0 0.0
    %694 = vmatpush1.xpose.msra.mxu0 %v670
    %695 = vmatprep.subr.mxu0 0.0
    %696 = vmatpush1.xpose.msra.mxu0 %v669
    %697 = vmatprep.subr.mxu0 0.0
    %698 = vmatpush1.xpose.msra.mxu0 %v668
    %699 = vmatprep.subr.mxu0 0.0
    %700 = vmatpush1.xpose.msra.mxu0 %v667
    %701 = vmatprep.subr.mxu0 0.0
    %702 = vmatpush1.xpose.msra.mxu0 %v666
    %703 = vmatprep.subr.mxu0 0.0
    %704 = vmatpush1.xpose.msra.mxu0 %v665
    %705 = vmatprep.subr.mxu0 0.0
    %706 = vmatpush1.xpose.msra.mxu0 %v664
    %707 = vmatprep.subr.mxu0 0.0
    %708 = vmatpush1.xpose.msra.mxu0 %v663
    %709 = vmatprep.subr.mxu0 0.0
    %710 = vmatpush1.xpose.msra.mxu0 %v662
    %711 = vmatprep.subr.mxu0 0.0
    %712 = vmatpush2.xpose.msra.mxu0 0.0
    %713 = vmatprep.subr.mxu0 0.0
    %714 = vmatpush2.xpose.msra.mxu0 0.0
    %715 = vmatprep.subr.mxu0 0.0
    %716 = vmatpush2.xpose.msra.mxu0 0.0
    %717 = vmatprep.subr.mxu0 0.0
    %718 = vmatpush2.xpose.msra.mxu0 0.0
    %719 = vmatprep.subr.mxu0 0.0
    %720 = vmatpush2.xpose.msra.mxu0 0.0
    %721 = vmatprep.subr.mxu0 0.0
    %722 = vmatpush2.xpose.msra.mxu0 0.0
    %723 = vmatprep.subr.mxu0 0.0
    %724 = vmatpush2.xpose.msra.mxu0 0.0
    %725 = vmatprep.subr.mxu0 0.0
    %726 = vmatpush2.xpose.msra.mxu0 0.0
    %727 = vmatprep.subr.mxu0 0.0
    %728 = vmatpush2.xpose.msra.mxu0 0.0
    %729 = vmatprep.subr.mxu0 0.0
    %730 = vmatpush2.xpose.msra.mxu0 0.0
    %731 = vmatprep.subr.mxu0 0.0
    %732 = vmatpush2.xpose.msra.mxu0 0.0
    %733 = vmatprep.subr.mxu0 0.0
    %734 = vmatpush2.xpose.msra.mxu0 0.0
    %735 = vmatprep.subr.mxu0 0.0
    %736 = vmatpush2.xpose.msra.mxu0 0.0
    %737 = vmatprep.subr.mxu0 0.0
    %738 = vmatpush2.xpose.msra.mxu0 0.0
    %739 = vmatprep.subr.mxu0 0.0
    %740 = vmatpush2.xpose.msra.mxu0 0.0
    %741 = vmatprep.subr.mxu0 0.0
    %742 = vmatpush2.xpose.msra.mxu0 0.0
    %743 = vmatprep.mubr.f32.mxu0 0.0
    %744 = vmatmul.mubr.f32.gmra.mxu0 %v658
    %v745 = vpop.f32.mrf.mxu0
    %v746 = vadd.f32 %v678, %v745
    %v747 = vpop.f32.mrf.mxu0
    %748 = vmatprep.mubr.f32.mxu0 0.0
    %749 = vmatmul.mubr.f32.gmra.mxu0 %v659
    %v750 = vpop.f32.mrf.mxu0
    %v751 = vadd.f32 %v678, %v750
    %v752 = vpop.f32.mrf.mxu0
    %753 = vmatprep.mubr.f32.mxu0 0.0
    %754 = vmatmul.mubr.f32.gmra.mxu0 %v660
    %v755 = vpop.f32.mrf.mxu0
    %v756 = vadd.f32 %v678, %v755
    %v757 = vpop.f32.mrf.mxu0
    %758 = vmatprep.mubr.f32.mxu0 0.0
    %759 = vmatmul.mubr.f32.gmra.mxu0 %v661
    %v760 = vpop.f32.mrf.mxu0
    %v761 = vadd.f32 %v678, %v760
    %v762 = vpop.f32.mrf.mxu0
    %763 = vdwg.mxu0
    %vm764 = vcmask 130048
    %v766 = vsel %vm764, %v134, 0
    %768 = vmatprep.subr.mxu0 0.0
    %769 = vmatpush1.msra.mxu0 0.0
    %770 = vmatprep.subr.mxu0 0.0
    %771 = vmatpush1.msra.mxu0 0.0
    %772 = vmatprep.subr.mxu0 0.0
    %773 = vmatpush1.msra.mxu0 0.0
    %774 = vmatprep.subr.mxu0 0.0
    %775 = vmatpush1.msra.mxu0 0.0
    %776 = vmatprep.subr.mxu0 0.0
    %777 = vmatpush1.msra.mxu0 0.0
    %778 = vmatprep.subr.mxu0 0.0
    %779 = vmatpush1.msra.mxu0 0.0
    %780 = vmatprep.subr.mxu0 0.0
    %781 = vmatpush1.msra.mxu0 0.0
    %782 = vmatprep.subr.mxu0 0.0
    %783 = vmatpush1.msra.mxu0 0.0
    %784 = vmatprep.subr.mxu0 0.0
    %785 = vmatpush1.msra.mxu0 0.0
    %786 = vmatprep.subr.mxu0 0.0
    %787 = vmatpush1.msra.mxu0 0.0
    %788 = vmatprep.subr.mxu0 0.0
    %789 = vmatpush1.msra.mxu0 0.0
    %790 = vmatprep.subr.mxu0 0.0
    %791 = vmatpush1.msra.mxu0 0.0
    %792 = vmatprep.subr.mxu0 0.0
    %793 = vmatpush1.msra.mxu0 0.0
    %794 = vmatprep.subr.mxu0 0.0
    %795 = vmatpush1.msra.mxu0 0.0
    %796 = vmatprep.subr.mxu0 0.0
    %797 = vmatpush1.msra.mxu0 %v751
    %798 = vmatprep.subr.mxu0 0.0
    %799 = vmatpush1.msra.mxu0 %v746
    %800 = vmatprep.subr.mxu0 0.0
    %801 = vmatpush2.msra.mxu0 0.0
    %802 = vmatprep.subr.mxu0 0.0
    %803 = vmatpush2.msra.mxu0 0.0
    %804 = vmatprep.subr.mxu0 0.0
    %805 = vmatpush2.msra.mxu0 0.0
    %806 = vmatprep.subr.mxu0 0.0
    %807 = vmatpush2.msra.mxu0 0.0
    %808 = vmatprep.subr.mxu0 0.0
    %809 = vmatpush2.msra.mxu0 0.0
    %810 = vmatprep.subr.mxu0 0.0
    %811 = vmatpush2.msra.mxu0 0.0
    %812 = vmatprep.subr.mxu0 0.0
    %813 = vmatpush2.msra.mxu0 0.0
    %814 = vmatprep.subr.mxu0 0.0
    %815 = vmatpush2.msra.mxu0 0.0
    %816 = vmatprep.subr.mxu0 0.0
    %817 = vmatpush2.msra.mxu0 0.0
    %818 = vmatprep.subr.mxu0 0.0
    %819 = vmatpush2.msra.mxu0 0.0
    %820 = vmatprep.subr.mxu0 0.0
    %821 = vmatpush2.msra.mxu0 0.0
    %822 = vmatprep.subr.mxu0 0.0
    %823 = vmatpush2.msra.mxu0 0.0
    %824 = vmatprep.subr.mxu0 0.0
    %825 = vmatpush2.msra.mxu0 0.0
    %826 = vmatprep.subr.mxu0 0.0
    %827 = vmatpush2.msra.mxu0 0.0
    %828 = vmatprep.subr.mxu0 0.0
    %829 = vmatpush2.msra.mxu0 0.0
    %830 = vmatprep.subr.mxu0 0.0
    %831 = vmatpush2.msra.mxu0 0.0
    %832 = vmatprep.mubr.f32.mxu0 0.0
    %833 = vmatmul.mubr.f32.gmra.mxu0 %v766
    %v834 = vpop.f32.mrf.mxu0
    %v835 = vadd.f32 0.0, %v834
    %v836 = vpop.f32.mrf.mxu0
    %837 = vdwg.mxu0
    %v839 = vsel %vm764, %v135, 0
    %841 = vmatprep.subr.mxu0 0.0
    %842 = vmatpush1.msra.mxu0 0.0
    %843 = vmatprep.subr.mxu0 0.0
    %844 = vmatpush1.msra.mxu0 0.0
    %845 = vmatprep.subr.mxu0 0.0
    %846 = vmatpush1.msra.mxu0 0.0
    %847 = vmatprep.subr.mxu0 0.0
    %848 = vmatpush1.msra.mxu0 0.0
    %849 = vmatprep.subr.mxu0 0.0
    %850 = vmatpush1.msra.mxu0 0.0
    %851 = vmatprep.subr.mxu0 0.0
    %852 = vmatpush1.msra.mxu0 0.0
    %853 = vmatprep.subr.mxu0 0.0
    %854 = vmatpush1.msra.mxu0 0.0
    %855 = vmatprep.subr.mxu0 0.0
    %856 = vmatpush1.msra.mxu0 0.0
    %857 = vmatprep.subr.mxu0 0.0
    %858 = vmatpush1.msra.mxu0 0.0
    %859 = vmatprep.subr.mxu0 0.0
    %860 = vmatpush1.msra.mxu0 0.0
    %861 = vmatprep.subr.mxu0 0.0
    %862 = vmatpush1.msra.mxu0 0.0
    %863 = vmatprep.subr.mxu0 0.0
    %864 = vmatpush1.msra.mxu0 0.0
    %865 = vmatprep.subr.mxu0 0.0
    %866 = vmatpush1.msra.mxu0 0.0
    %867 = vmatprep.subr.mxu0 0.0
    %868 = vmatpush1.msra.mxu0 0.0
    %869 = vmatprep.subr.mxu0 0.0
    %870 = vmatpush1.msra.mxu0 %v761
    %871 = vmatprep.subr.mxu0 0.0
    %872 = vmatpush1.msra.mxu0 %v756
    %873 = vmatprep.subr.mxu0 0.0
    %874 = vmatpush2.msra.mxu0 0.0
    %875 = vmatprep.subr.mxu0 0.0
    %876 = vmatpush2.msra.mxu0 0.0
    %877 = vmatprep.subr.mxu0 0.0
    %878 = vmatpush2.msra.mxu0 0.0
    %879 = vmatprep.subr.mxu0 0.0
    %880 = vmatpush2.msra.mxu0 0.0
    %881 = vmatprep.subr.mxu0 0.0
    %882 = vmatpush2.msra.mxu0 0.0
    %883 = vmatprep.subr.mxu0 0.0
    %884 = vmatpush2.msra.mxu0 0.0
    %885 = vmatprep.subr.mxu0 0.0
    %886 = vmatpush2.msra.mxu0 0.0
    %887 = vmatprep.subr.mxu0 0.0
    %888 = vmatpush2.msra.mxu0 0.0
    %889 = vmatprep.subr.mxu0 0.0
    %890 = vmatpush2.msra.mxu0 0.0
    %891 = vmatprep.subr.mxu0 0.0
    %892 = vmatpush2.msra.mxu0 0.0
    %893 = vmatprep.subr.mxu0 0.0
    %894 = vmatpush2.msra.mxu0 0.0
    %895 = vmatprep.subr.mxu0 0.0
    %896 = vmatpush2.msra.mxu0 0.0
    %897 = vmatprep.subr.mxu0 0.0
    %898 = vmatpush2.msra.mxu0 0.0
    %899 = vmatprep.subr.mxu0 0.0
    %900 = vmatpush2.msra.mxu0 0.0
    %901 = vmatprep.subr.mxu0 0.0
    %902 = vmatpush2.msra.mxu0 0.0
    %903 = vmatprep.subr.mxu0 0.0
    %904 = vmatpush2.msra.mxu0 0.0
    %905 = vmatprep.mubr.f32.mxu0 0.0
    %906 = vmatmul.mubr.f32.gmra.mxu0 %v839
    %v907 = vpop.f32.mrf.mxu0
    %v908 = vadd.f32 0.0, %v907
    %v909 = vpop.f32.mrf.mxu0
    %910 = vdwg.mxu0
    %v911 = vld [vmem:[#allocation11 + $0x2] sm:$0x1]
    %v912 = vld [vmem:[#allocation8 + $0x100] sm:$0xff]
    %v913 = vld [vmem:[#allocation8 + $0x108] sm:$0xff]
    %v914 = vld [vmem:[#allocation8 + $0x110] sm:$0xff]
    %v915 = vld [vmem:[#allocation8 + $0x118] sm:$0xff]
    %v916 = vld [vmem:[#allocation8 + $0x120] sm:$0xff]
    %v917 = vld [vmem:[#allocation8 + $0x128] sm:$0xff]
    %v918 = vld [vmem:[#allocation8 + $0x130] sm:$0xff]
    %v919 = vld [vmem:[#allocation8 + $0x138] sm:$0xff]
    %v920 = vld [vmem:[#allocation8 + $0x140] sm:$0xff]
    %v921 = vld [vmem:[#allocation8 + $0x148] sm:$0xff]
    %v922 = vld [vmem:[#allocation8 + $0x150] sm:$0xff]
    %v923 = vld [vmem:[#allocation8 + $0x158] sm:$0xff]
    %v924 = vld [vmem:[#allocation8 + $0x160] sm:$0xff]
    %v925 = vld [vmem:[#allocation8 + $0x168] sm:$0xff]
    %v926 = vld [vmem:[#allocation8 + $0x170] sm:$0xff]
    %v927 = vld [vmem:[#allocation8 + $0x178] sm:$0xff]
    %928 = vmatprep.subr.mxu0 0.0
    %929 = vmatpush1.msra.mxu0 %v927
    %930 = vmatprep.subr.mxu0 0.0
    %931 = vmatpush1.msra.mxu0 %v926
    %932 = vmatprep.subr.mxu0 0.0
    %933 = vmatpush1.msra.mxu0 %v925
    %934 = vmatprep.subr.mxu0 0.0
    %935 = vmatpush1.msra.mxu0 %v924
    %936 = vmatprep.subr.mxu0 0.0
    %937 = vmatpush1.msra.mxu0 %v923
    %938 = vmatprep.subr.mxu0 0.0
    %939 = vmatpush1.msra.mxu0 %v922
    %940 = vmatprep.subr.mxu0 0.0
    %941 = vmatpush1.msra.mxu0 %v921
    %942 = vmatprep.subr.mxu0 0.0
    %943 = vmatpush1.msra.mxu0 %v920
    %944 = vmatprep.subr.mxu0 0.0
    %945 = vmatpush1.msra.mxu0 %v919
    %946 = vmatprep.subr.mxu0 0.0
    %947 = vmatpush1.msra.mxu0 %v918
    %948 = vmatprep.subr.mxu0 0.0
    %949 = vmatpush1.msra.mxu0 %v917
    %950 = vmatprep.subr.mxu0 0.0
    %951 = vmatpush1.msra.mxu0 %v916
    %952 = vmatprep.subr.mxu0 0.0
    %953 = vmatpush1.msra.mxu0 %v915
    %954 = vmatprep.subr.mxu0 0.0
    %955 = vmatpush1.msra.mxu0 %v914
    %956 = vmatprep.subr.mxu0 0.0
    %957 = vmatpush1.msra.mxu0 %v913
    %958 = vmatprep.subr.mxu0 0.0
    %959 = vmatpush1.msra.mxu0 %v912
    %960 = vmatprep.subr.mxu0 0.0
    %961 = vmatpush2.msra.mxu0 0.0
    %962 = vmatprep.subr.mxu0 0.0
    %963 = vmatpush2.msra.mxu0 0.0
    %964 = vmatprep.subr.mxu0 0.0
    %965 = vmatpush2.msra.mxu0 0.0
    %966 = vmatprep.subr.mxu0 0.0
    %967 = vmatpush2.msra.mxu0 0.0
    %968 = vmatprep.subr.mxu0 0.0
    %969 = vmatpush2.msra.mxu0 0.0
    %970 = vmatprep.subr.mxu0 0.0
    %971 = vmatpush2.msra.mxu0 0.0
    %972 = vmatprep.subr.mxu0 0.0
    %973 = vmatpush2.msra.mxu0 0.0
    %974 = vmatprep.subr.mxu0 0.0
    %975 = vmatpush2.msra.mxu0 0.0
    %976 = vmatprep.subr.mxu0 0.0
    %977 = vmatpush2.msra.mxu0 0.0
    %978 = vmatprep.subr.mxu0 0.0
    %979 = vmatpush2.msra.mxu0 0.0
    %980 = vmatprep.subr.mxu0 0.0
    %981 = vmatpush2.msra.mxu0 0.0
    %982 = vmatprep.subr.mxu0 0.0
    %983 = vmatpush2.msra.mxu0 0.0
    %984 = vmatprep.subr.mxu0 0.0
    %985 = vmatpush2.msra.mxu0 0.0
    %986 = vmatprep.subr.mxu0 0.0
    %987 = vmatpush2.msra.mxu0 0.0
    %988 = vmatprep.subr.mxu0 0.0
    %989 = vmatpush2.msra.mxu0 0.0
    %990 = vmatprep.subr.mxu0 0.0
    %991 = vmatpush2.msra.mxu0 0.0
    %992 = vmatprep.mubr.f32.mxu0 0.0
    %993 = vmatmul.mubr.f32.gmra.mxu0 %v324
    %v994 = vpop.f32.mrf.mxu0
    %v995 = vadd.f32 0.0, %v994
    %v996 = vpop.f32.mrf.mxu0
    %997 = vmatprep.mubr.f32.mxu0 0.0
    %998 = vmatmul.mubr.f32.gmra.mxu0 %v329
    %v999 = vpop.f32.mrf.mxu0
    %v1000 = vadd.f32 0.0, %v999
    %v1001 = vpop.f32.mrf.mxu0
    %1002 = vdwg.mxu0
    %v1003 = vlaneseq
    %v1004 = vshrl.u32 %v1003, 7
    %v1005 = vsub.s32 0, %v1004
    %v1006 = vrot.slane %v911, %v1005
    %v1007 = vadd.f32 %v1006, %v995
    %v1008 = vadd.f32 %v1006, %v1000
    %v1009 = vmax.f32 %v1007, 0.0
    %v1010 = vmax.f32 %v1008, 0.0
    %v1011 = vld [vmem:[#allocation10 + $0x100] sm:$0xff]
    %v1012 = vld [vmem:[#allocation10 + $0x108] sm:$0xff]
    %v1013 = vld [vmem:[#allocation10 + $0x110] sm:$0xff]
    %v1014 = vld [vmem:[#allocation10 + $0x118] sm:$0xff]
    %v1015 = vld [vmem:[#allocation10 + $0x120] sm:$0xff]
    %v1016 = vld [vmem:[#allocation10 + $0x128] sm:$0xff]
    %v1017 = vld [vmem:[#allocation10 + $0x130] sm:$0xff]
    %v1018 = vld [vmem:[#allocation10 + $0x138] sm:$0xff]
    %v1019 = vld [vmem:[#allocation10 + $0x140] sm:$0xff]
    %v1020 = vld [vmem:[#allocation10 + $0x148] sm:$0xff]
    %v1021 = vld [vmem:[#allocation10 + $0x150] sm:$0xff]
    %v1022 = vld [vmem:[#allocation10 + $0x158] sm:$0xff]
    %v1023 = vld [vmem:[#allocation10 + $0x160] sm:$0xff]
    %v1024 = vld [vmem:[#allocation10 + $0x168] sm:$0xff]
    %v1025 = vld [vmem:[#allocation10 + $0x170] sm:$0xff]
    %v1026 = vld [vmem:[#allocation10 + $0x178] sm:$0xff]
    %v1027 = vld [vmem:[#allocation13 + $0x2] ss:$0 sm:$0xff]
    %1028 = vmatprep.subr.mxu0 0.0
    %1029 = vmatpush1.xpose.msra.mxu0 %v1026
    %1030 = vmatprep.subr.mxu0 0.0
    %1031 = vmatpush1.xpose.msra.mxu0 %v1025
    %1032 = vmatprep.subr.mxu0 0.0
    %1033 = vmatpush1.xpose.msra.mxu0 %v1024
    %1034 = vmatprep.subr.mxu0 0.0
    %1035 = vmatpush1.xpose.msra.mxu0 %v1023
    %1036 = vmatprep.subr.mxu0 0.0
    %1037 = vmatpush1.xpose.msra.mxu0 %v1022
    %1038 = vmatprep.subr.mxu0 0.0
    %1039 = vmatpush1.xpose.msra.mxu0 %v1021
    %1040 = vmatprep.subr.mxu0 0.0
    %1041 = vmatpush1.xpose.msra.mxu0 %v1020
    %1042 = vmatprep.subr.mxu0 0.0
    %1043 = vmatpush1.xpose.msra.mxu0 %v1019
    %1044 = vmatprep.subr.mxu0 0.0
    %1045 = vmatpush1.xpose.msra.mxu0 %v1018
    %1046 = vmatprep.subr.mxu0 0.0
    %1047 = vmatpush1.xpose.msra.mxu0 %v1017
    %1048 = vmatprep.subr.mxu0 0.0
    %1049 = vmatpush1.xpose.msra.mxu0 %v1016
    %1050 = vmatprep.subr.mxu0 0.0
    %1051 = vmatpush1.xpose.msra.mxu0 %v1015
    %1052 = vmatprep.subr.mxu0 0.0
    %1053 = vmatpush1.xpose.msra.mxu0 %v1014
    %1054 = vmatprep.subr.mxu0 0.0
    %1055 = vmatpush1.xpose.msra.mxu0 %v1013
    %1056 = vmatprep.subr.mxu0 0.0
    %1057 = vmatpush1.xpose.msra.mxu0 %v1012
    %1058 = vmatprep.subr.mxu0 0.0
    %1059 = vmatpush1.xpose.msra.mxu0 %v1011
    %1060 = vmatprep.subr.mxu0 0.0
    %1061 = vmatpush2.xpose.msra.mxu0 0.0
    %1062 = vmatprep.subr.mxu0 0.0
    %1063 = vmatpush2.xpose.msra.mxu0 0.0
    %1064 = vmatprep.subr.mxu0 0.0
    %1065 = vmatpush2.xpose.msra.mxu0 0.0
    %1066 = vmatprep.subr.mxu0 0.0
    %1067 = vmatpush2.xpose.msra.mxu0 0.0
    %1068 = vmatprep.subr.mxu0 0.0
    %1069 = vmatpush2.xpose.msra.mxu0 0.0
    %1070 = vmatprep.subr.mxu0 0.0
    %1071 = vmatpush2.xpose.msra.mxu0 0.0
    %1072 = vmatprep.subr.mxu0 0.0
    %1073 = vmatpush2.xpose.msra.mxu0 0.0
    %1074 = vmatprep.subr.mxu0 0.0
    %1075 = vmatpush2.xpose.msra.mxu0 0.0
    %1076 = vmatprep.subr.mxu0 0.0
    %1077 = vmatpush2.xpose.msra.mxu0 0.0
    %1078 = vmatprep.subr.mxu0 0.0
    %1079 = vmatpush2.xpose.msra.mxu0 0.0
    %1080 = vmatprep.subr.mxu0 0.0
    %1081 = vmatpush2.xpose.msra.mxu0 0.0
    %1082 = vmatprep.subr.mxu0 0.0
    %1083 = vmatpush2.xpose.msra.mxu0 0.0
    %1084 = vmatprep.subr.mxu0 0.0
    %1085 = vmatpush2.xpose.msra.mxu0 0.0
    %1086 = vmatprep.subr.mxu0 0.0
    %1087 = vmatpush2.xpose.msra.mxu0 0.0
    %1088 = vmatprep.subr.mxu0 0.0
    %1089 = vmatpush2.xpose.msra.mxu0 0.0
    %1090 = vmatprep.subr.mxu0 0.0
    %1091 = vmatpush2.xpose.msra.mxu0 0.0
    %1092 = vmatprep.mubr.f32.mxu0 0.0
    %1093 = vmatmul.mubr.f32.gmra.mxu0 %v1009
    %v1094 = vpop.f32.mrf.mxu0
    %v1095 = vadd.f32 %v1027, %v1094
    %v1096 = vpop.f32.mrf.mxu0
    %1097 = vmatprep.mubr.f32.mxu0 0.0
    %1098 = vmatmul.mubr.f32.gmra.mxu0 %v1010
    %v1099 = vpop.f32.mrf.mxu0
    %v1100 = vadd.f32 %v1027, %v1099
    %v1101 = vpop.f32.mrf.mxu0
    %1102 = vdwg.mxu0
    %vm1103 = vcmask 64512
    %v1105 = vsel %vm1103, %v136, 0
    %v1108 = vsel %vm1103, %v137, 0
    %1110 = vmatprep.subr.mxu0 0.0
    %1111 = vmatpush1.msra.mxu0 0.0
    %1112 = vmatprep.subr.mxu0 0.0
    %1113 = vmatpush1.msra.mxu0 0.0
    %1114 = vmatprep.subr.mxu0 0.0
    %1115 = vmatpush1.msra.mxu0 0.0
    %1116 = vmatprep.subr.mxu0 0.0
    %1117 = vmatpush1.msra.mxu0 0.0
    %1118 = vmatprep.subr.mxu0 0.0
    %1119 = vmatpush1.msra.mxu0 0.0
    %1120 = vmatprep.subr.mxu0 0.0
    %1121 = vmatpush1.msra.mxu0 0.0
    %1122 = vmatprep.subr.mxu0 0.0
    %1123 = vmatpush1.msra.mxu0 0.0
    %1124 = vmatprep.subr.mxu0 0.0
    %1125 = vmatpush1.msra.mxu0 0.0
    %1126 = vmatprep.subr.mxu0 0.0
    %1127 = vmatpush1.msra.mxu0 0.0
    %1128 = vmatprep.subr.mxu0 0.0
    %1129 = vmatpush1.msra.mxu0 0.0
    %1130 = vmatprep.subr.mxu0 0.0
    %1131 = vmatpush1.msra.mxu0 0.0
    %1132 = vmatprep.subr.mxu0 0.0
    %1133 = vmatpush1.msra.mxu0 0.0
    %1134 = vmatprep.subr.mxu0 0.0
    %1135 = vmatpush1.msra.mxu0 0.0
    %1136 = vmatprep.subr.mxu0 0.0
    %1137 = vmatpush1.msra.mxu0 0.0
    %1138 = vmatprep.subr.mxu0 0.0
    %1139 = vmatpush1.msra.mxu0 0.0
    %1140 = vmatprep.subr.mxu0 0.0
    %1141 = vmatpush1.msra.mxu0 %v1095
    %1142 = vmatprep.subr.mxu0 0.0
    %1143 = vmatpush2.msra.mxu0 0.0
    %1144 = vmatprep.subr.mxu0 0.0
    %1145 = vmatpush2.msra.mxu0 0.0
    %1146 = vmatprep.subr.mxu0 0.0
    %1147 = vmatpush2.msra.mxu0 0.0
    %1148 = vmatprep.subr.mxu0 0.0
    %1149 = vmatpush2.msra.mxu0 0.0
    %1150 = vmatprep.subr.mxu0 0.0
    %1151 = vmatpush2.msra.mxu0 0.0
    %1152 = vmatprep.subr.mxu0 0.0
    %1153 = vmatpush2.msra.mxu0 0.0
    %1154 = vmatprep.subr.mxu0 0.0
    %1155 = vmatpush2.msra.mxu0 0.0
    %1156 = vmatprep.subr.mxu0 0.0
    %1157 = vmatpush2.msra.mxu0 0.0
    %1158 = vmatprep.subr.mxu0 0.0
    %1159 = vmatpush2.msra.mxu0 0.0
    %1160 = vmatprep.subr.mxu0 0.0
    %1161 = vmatpush2.msra.mxu0 0.0
    %1162 = vmatprep.subr.mxu0 0.0
    %1163 = vmatpush2.msra.mxu0 0.0
    %1164 = vmatprep.subr.mxu0 0.0
    %1165 = vmatpush2.msra.mxu0 0.0
    %1166 = vmatprep.subr.mxu0 0.0
    %1167 = vmatpush2.msra.mxu0 0.0
    %1168 = vmatprep.subr.mxu0 0.0
    %1169 = vmatpush2.msra.mxu0 0.0
    %1170 = vmatprep.subr.mxu0 0.0
    %1171 = vmatpush2.msra.mxu0 0.0
    %1172 = vmatprep.subr.mxu0 0.0
    %1173 = vmatpush2.msra.mxu0 0.0
    %1174 = vmatprep.mubr.f32.mxu0 0.0
    %1175 = vmatmul.mubr.f32.gmra.mxu0 %v1105
    %v1176 = vpop.f32.mrf.mxu0
    %v1177 = vadd.f32 0.0, %v1176
    %v1178 = vpop.f32.mrf.mxu0
    %1179 = vmatprep.mubr.f32.mxu0 0.0
    %1180 = vmatmul.mubr.f32.gmra.mxu0 %v1108
    %v1181 = vpop.f32.mrf.mxu0
    %v1182 = vadd.f32 0.0, %v1181
    %v1183 = vpop.f32.mrf.mxu0
    %1184 = vdwg.mxu0
    %v1186 = vsel %vm1103, %v138, 0
    %v1189 = vsel %vm1103, %v139, 0
    %1191 = vmatprep.subr.mxu0 0.0
    %1192 = vmatpush1.msra.mxu0 0.0
    %1193 = vmatprep.subr.mxu0 0.0
    %1194 = vmatpush1.msra.mxu0 0.0
    %1195 = vmatprep.subr.mxu0 0.0
    %1196 = vmatpush1.msra.mxu0 0.0
    %1197 = vmatprep.subr.mxu0 0.0
    %1198 = vmatpush1.msra.mxu0 0.0
    %1199 = vmatprep.subr.mxu0 0.0
    %1200 = vmatpush1.msra.mxu0 0.0
    %1201 = vmatprep.subr.mxu0 0.0
    %1202 = vmatpush1.msra.mxu0 0.0
    %1203 = vmatprep.subr.mxu0 0.0
    %1204 = vmatpush1.msra.mxu0 0.0
    %1205 = vmatprep.subr.mxu0 0.0
    %1206 = vmatpush1.msra.mxu0 0.0
    %1207 = vmatprep.subr.mxu0 0.0
    %1208 = vmatpush1.msra.mxu0 0.0
    %1209 = vmatprep.subr.mxu0 0.0
    %1210 = vmatpush1.msra.mxu0 0.0
    %1211 = vmatprep.subr.mxu0 0.0
    %1212 = vmatpush1.msra.mxu0 0.0
    %1213 = vmatprep.subr.mxu0 0.0
    %1214 = vmatpush1.msra.mxu0 0.0
    %1215 = vmatprep.subr.mxu0 0.0
    %1216 = vmatpush1.msra.mxu0 0.0
    %1217 = vmatprep.subr.mxu0 0.0
    %1218 = vmatpush1.msra.mxu0 0.0
    %1219 = vmatprep.subr.mxu0 0.0
    %1220 = vmatpush1.msra.mxu0 0.0
    %1221 = vmatprep.subr.mxu0 0.0
    %1222 = vmatpush1.msra.mxu0 %v1100
    %1223 = vmatprep.subr.mxu0 0.0
    %1224 = vmatpush2.msra.mxu0 0.0
    %1225 = vmatprep.subr.mxu0 0.0
    %1226 = vmatpush2.msra.mxu0 0.0
    %1227 = vmatprep.subr.mxu0 0.0
    %1228 = vmatpush2.msra.mxu0 0.0
    %1229 = vmatprep.subr.mxu0 0.0
    %1230 = vmatpush2.msra.mxu0 0.0
    %1231 = vmatprep.subr.mxu0 0.0
    %1232 = vmatpush2.msra.mxu0 0.0
    %1233 = vmatprep.subr.mxu0 0.0
    %1234 = vmatpush2.msra.mxu0 0.0
    %1235 = vmatprep.subr.mxu0 0.0
    %1236 = vmatpush2.msra.mxu0 0.0
    %1237 = vmatprep.subr.mxu0 0.0
    %1238 = vmatpush2.msra.mxu0 0.0
    %1239 = vmatprep.subr.mxu0 0.0
    %1240 = vmatpush2.msra.mxu0 0.0
    %1241 = vmatprep.subr.mxu0 0.0
    %1242 = vmatpush2.msra.mxu0 0.0
    %1243 = vmatprep.subr.mxu0 0.0
    %1244 = vmatpush2.msra.mxu0 0.0
    %1245 = vmatprep.subr.mxu0 0.0
    %1246 = vmatpush2.msra.mxu0 0.0
    %1247 = vmatprep.subr.mxu0 0.0
    %1248 = vmatpush2.msra.mxu0 0.0
    %1249 = vmatprep.subr.mxu0 0.0
    %1250 = vmatpush2.msra.mxu0 0.0
    %1251 = vmatprep.subr.mxu0 0.0
    %1252 = vmatpush2.msra.mxu0 0.0
    %1253 = vmatprep.subr.mxu0 0.0
    %1254 = vmatpush2.msra.mxu0 0.0
    %1255 = vmatprep.mubr.f32.mxu0 0.0
    %1256 = vmatmul.mubr.f32.gmra.mxu0 %v1186
    %v1257 = vpop.f32.mrf.mxu0
    %v1258 = vadd.f32 0.0, %v1257
    %v1259 = vpop.f32.mrf.mxu0
    %1260 = vmatprep.mubr.f32.mxu0 0.0
    %1261 = vmatmul.mubr.f32.gmra.mxu0 %v1189
    %v1262 = vpop.f32.mrf.mxu0
    %v1263 = vadd.f32 0.0, %v1262
    %v1264 = vpop.f32.mrf.mxu0
    %1265 = vdwg.mxu0
    %v1266 = vld [vmem:[#allocation11 + $0x3] sm:$0x1]
    %v1267 = vld [vmem:[#allocation8 + $0x180] sm:$0xff]
    %v1268 = vld [vmem:[#allocation8 + $0x188] sm:$0xff]
    %v1269 = vld [vmem:[#allocation8 + $0x190] sm:$0xff]
    %v1270 = vld [vmem:[#allocation8 + $0x198] sm:$0xff]
    %v1271 = vld [vmem:[#allocation8 + $0x1a0] sm:$0xff]
    %v1272 = vld [vmem:[#allocation8 + $0x1a8] sm:$0xff]
    %v1273 = vld [vmem:[#allocation8 + $0x1b0] sm:$0xff]
    %v1274 = vld [vmem:[#allocation8 + $0x1b8] sm:$0xff]
    %v1275 = vld [vmem:[#allocation8 + $0x1c0] sm:$0xff]
    %v1276 = vld [vmem:[#allocation8 + $0x1c8] sm:$0xff]
    %v1277 = vld [vmem:[#allocation8 + $0x1d0] sm:$0xff]
    %v1278 = vld [vmem:[#allocation8 + $0x1d8] sm:$0xff]
    %v1279 = vld [vmem:[#allocation8 + $0x1e0] sm:$0xff]
    %v1280 = vld [vmem:[#allocation8 + $0x1e8] sm:$0xff]
    %v1281 = vld [vmem:[#allocation8 + $0x1f0] sm:$0xff]
    %v1282 = vld [vmem:[#allocation8 + $0x1f8] sm:$0xff]
    %1283 = vmatprep.subr.mxu0 0.0
    %1284 = vmatpush1.msra.mxu0 %v1282
    %1285 = vmatprep.subr.mxu0 0.0
    %1286 = vmatpush1.msra.mxu0 %v1281
    %1287 = vmatprep.subr.mxu0 0.0
    %1288 = vmatpush1.msra.mxu0 %v1280
    %1289 = vmatprep.subr.mxu0 0.0
    %1290 = vmatpush1.msra.mxu0 %v1279
    %1291 = vmatprep.subr.mxu0 0.0
    %1292 = vmatpush1.msra.mxu0 %v1278
    %1293 = vmatprep.subr.mxu0 0.0
    %1294 = vmatpush1.msra.mxu0 %v1277
    %1295 = vmatprep.subr.mxu0 0.0
    %1296 = vmatpush1.msra.mxu0 %v1276
    %1297 = vmatprep.subr.mxu0 0.0
    %1298 = vmatpush1.msra.mxu0 %v1275
    %1299 = vmatprep.subr.mxu0 0.0
    %1300 = vmatpush1.msra.mxu0 %v1274
    %1301 = vmatprep.subr.mxu0 0.0
    %1302 = vmatpush1.msra.mxu0 %v1273
    %1303 = vmatprep.subr.mxu0 0.0
    %1304 = vmatpush1.msra.mxu0 %v1272
    %1305 = vmatprep.subr.mxu0 0.0
    %1306 = vmatpush1.msra.mxu0 %v1271
    %1307 = vmatprep.subr.mxu0 0.0
    %1308 = vmatpush1.msra.mxu0 %v1270
    %1309 = vmatprep.subr.mxu0 0.0
    %1310 = vmatpush1.msra.mxu0 %v1269
    %1311 = vmatprep.subr.mxu0 0.0
    %1312 = vmatpush1.msra.mxu0 %v1268
    %1313 = vmatprep.subr.mxu0 0.0
    %1314 = vmatpush1.msra.mxu0 %v1267
    %1315 = vmatprep.subr.mxu0 0.0
    %1316 = vmatpush2.msra.mxu0 0.0
    %1317 = vmatprep.subr.mxu0 0.0
    %1318 = vmatpush2.msra.mxu0 0.0
    %1319 = vmatprep.subr.mxu0 0.0
    %1320 = vmatpush2.msra.mxu0 0.0
    %1321 = vmatprep.subr.mxu0 0.0
    %1322 = vmatpush2.msra.mxu0 0.0
    %1323 = vmatprep.subr.mxu0 0.0
    %1324 = vmatpush2.msra.mxu0 0.0
    %1325 = vmatprep.subr.mxu0 0.0
    %1326 = vmatpush2.msra.mxu0 0.0
    %1327 = vmatprep.subr.mxu0 0.0
    %1328 = vmatpush2.msra.mxu0 0.0
    %1329 = vmatprep.subr.mxu0 0.0
    %1330 = vmatpush2.msra.mxu0 0.0
    %1331 = vmatprep.subr.mxu0 0.0
    %1332 = vmatpush2.msra.mxu0 0.0
    %1333 = vmatprep.subr.mxu0 0.0
    %1334 = vmatpush2.msra.mxu0 0.0
    %1335 = vmatprep.subr.mxu0 0.0
    %1336 = vmatpush2.msra.mxu0 0.0
    %1337 = vmatprep.subr.mxu0 0.0
    %1338 = vmatpush2.msra.mxu0 0.0
    %1339 = vmatprep.subr.mxu0 0.0
    %1340 = vmatpush2.msra.mxu0 0.0
    %1341 = vmatprep.subr.mxu0 0.0
    %1342 = vmatpush2.msra.mxu0 0.0
    %1343 = vmatprep.subr.mxu0 0.0
    %1344 = vmatpush2.msra.mxu0 0.0
    %1345 = vmatprep.subr.mxu0 0.0
    %1346 = vmatpush2.msra.mxu0 0.0
    %1347 = vmatprep.mubr.f32.mxu0 0.0
    %1348 = vmatmul.mubr.f32.gmra.mxu0 %v324
    %v1349 = vpop.f32.mrf.mxu0
    %v1350 = vadd.f32 0.0, %v1349
    %v1351 = vpop.f32.mrf.mxu0
    %1352 = vmatprep.mubr.f32.mxu0 0.0
    %1353 = vmatmul.mubr.f32.gmra.mxu0 %v329
    %v1354 = vpop.f32.mrf.mxu0
    %v1355 = vadd.f32 0.0, %v1354
    %v1356 = vpop.f32.mrf.mxu0
    %1357 = vdwg.mxu0
    %v1358 = vlaneseq
    %v1359 = vshrl.u32 %v1358, 7
    %v1360 = vsub.s32 0, %v1359
    %v1361 = vrot.slane %v1266, %v1360
    %v1362 = vadd.f32 %v1361, %v1350
    %v1363 = vadd.f32 %v1361, %v1355
    %v1364 = vld [vmem:[#allocation8 + $0x200] sm:$0xff]
    %v1365 = vld [vmem:[#allocation8 + $0x208] sm:$0xff]
    %v1366 = vld [vmem:[#allocation8 + $0x210] sm:$0xff]
    %v1367 = vld [vmem:[#allocation8 + $0x218] sm:$0xff]
    %v1368 = vld [vmem:[#allocation8 + $0x220] sm:$0xff]
    %v1369 = vld [vmem:[#allocation8 + $0x228] sm:$0xff]
    %v1370 = vld [vmem:[#allocation8 + $0x230] sm:$0xff]
    %v1371 = vld [vmem:[#allocation8 + $0x238] sm:$0xff]
    %v1372 = vld [vmem:[#allocation8 + $0x240] sm:$0xff]
    %v1373 = vld [vmem:[#allocation8 + $0x248] sm:$0xff]
    %v1374 = vld [vmem:[#allocation8 + $0x250] sm:$0xff]
    %v1375 = vld [vmem:[#allocation8 + $0x258] sm:$0xff]
    %v1376 = vld [vmem:[#allocation8 + $0x260] sm:$0xff]
    %v1377 = vld [vmem:[#allocation8 + $0x268] sm:$0xff]
    %v1378 = vld [vmem:[#allocation8 + $0x270] sm:$0xff]
    %v1379 = vld [vmem:[#allocation8 + $0x278] sm:$0xff]
    %1380 = vmatprep.subr.mxu0 0.0
    %1381 = vmatpush1.msra.mxu0 %v1379
    %1382 = vmatprep.subr.mxu0 0.0
    %1383 = vmatpush1.msra.mxu0 %v1378
    %1384 = vmatprep.subr.mxu0 0.0
    %1385 = vmatpush1.msra.mxu0 %v1377
    %1386 = vmatprep.subr.mxu0 0.0
    %1387 = vmatpush1.msra.mxu0 %v1376
    %1388 = vmatprep.subr.mxu0 0.0
    %1389 = vmatpush1.msra.mxu0 %v1375
    %1390 = vmatprep.subr.mxu0 0.0
    %1391 = vmatpush1.msra.mxu0 %v1374
    %1392 = vmatprep.subr.mxu0 0.0
    %1393 = vmatpush1.msra.mxu0 %v1373
    %1394 = vmatprep.subr.mxu0 0.0
    %1395 = vmatpush1.msra.mxu0 %v1372
    %1396 = vmatprep.subr.mxu0 0.0
    %1397 = vmatpush1.msra.mxu0 %v1371
    %1398 = vmatprep.subr.mxu0 0.0
    %1399 = vmatpush1.msra.mxu0 %v1370
    %1400 = vmatprep.subr.mxu0 0.0
    %1401 = vmatpush1.msra.mxu0 %v1369
    %1402 = vmatprep.subr.mxu0 0.0
    %1403 = vmatpush1.msra.mxu0 %v1368
    %1404 = vmatprep.subr.mxu0 0.0
    %1405 = vmatpush1.msra.mxu0 %v1367
    %1406 = vmatprep.subr.mxu0 0.0
    %1407 = vmatpush1.msra.mxu0 %v1366
    %1408 = vmatprep.subr.mxu0 0.0
    %1409 = vmatpush1.msra.mxu0 %v1365
    %1410 = vmatprep.subr.mxu0 0.0
    %1411 = vmatpush1.msra.mxu0 %v1364
    %1412 = vmatprep.subr.mxu0 0.0
    %1413 = vmatpush2.msra.mxu0 0.0
    %1414 = vmatprep.subr.mxu0 0.0
    %1415 = vmatpush2.msra.mxu0 0.0
    %1416 = vmatprep.subr.mxu0 0.0
    %1417 = vmatpush2.msra.mxu0 0.0
    %1418 = vmatprep.subr.mxu0 0.0
    %1419 = vmatpush2.msra.mxu0 0.0
    %1420 = vmatprep.subr.mxu0 0.0
    %1421 = vmatpush2.msra.mxu0 0.0
    %1422 = vmatprep.subr.mxu0 0.0
    %1423 = vmatpush2.msra.mxu0 0.0
    %1424 = vmatprep.subr.mxu0 0.0
    %1425 = vmatpush2.msra.mxu0 0.0
    %1426 = vmatprep.subr.mxu0 0.0
    %1427 = vmatpush2.msra.mxu0 0.0
    %1428 = vmatprep.subr.mxu0 0.0
    %1429 = vmatpush2.msra.mxu0 0.0
    %1430 = vmatprep.subr.mxu0 0.0
    %1431 = vmatpush2.msra.mxu0 0.0
    %1432 = vmatprep.subr.mxu0 0.0
    %1433 = vmatpush2.msra.mxu0 0.0
    %1434 = vmatprep.subr.mxu0 0.0
    %1435 = vmatpush2.msra.mxu0 0.0
    %1436 = vmatprep.subr.mxu0 0.0
    %1437 = vmatpush2.msra.mxu0 0.0
    %1438 = vmatprep.subr.mxu0 0.0
    %1439 = vmatpush2.msra.mxu0 0.0
    %1440 = vmatprep.subr.mxu0 0.0
    %1441 = vmatpush2.msra.mxu0 0.0
    %1442 = vmatprep.subr.mxu0 0.0
    %1443 = vmatpush2.msra.mxu0 0.0
    %1444 = vmatprep.mubr.f32.mxu0 0.0
    %1445 = vmatmul.mubr.f32.gmra.mxu0 %v835
    %v1446 = vpop.f32.mrf.mxu0
    %v1447 = vadd.f32 0.0, %v1446
    %v1448 = vpop.f32.mrf.mxu0
    %1449 = vmatprep.mubr.f32.mxu0 0.0
    %1450 = vmatmul.mubr.f32.gmra.mxu0 %v908
    %v1451 = vpop.f32.mrf.mxu0
    %v1452 = vadd.f32 0.0, %v1451
    %v1453 = vpop.f32.mrf.mxu0
    %1454 = vdwg.mxu0
    %v1455 = vadd.f32 %v1362, %v1447
    %v1456 = vadd.f32 %v1363, %v1452
    %v1457 = vmax.f32 %v1455, 0.0
    %v1458 = vmax.f32 %v1456, 0.0
    %v1459 = vld [vmem:[#allocation10 + $0x180] sm:$0xff]
    %v1460 = vld [vmem:[#allocation10 + $0x188] sm:$0xff]
    %v1461 = vld [vmem:[#allocation10 + $0x190] sm:$0xff]
    %v1462 = vld [vmem:[#allocation10 + $0x198] sm:$0xff]
    %v1463 = vld [vmem:[#allocation10 + $0x1a0] sm:$0xff]
    %v1464 = vld [vmem:[#allocation10 + $0x1a8] sm:$0xff]
    %v1465 = vld [vmem:[#allocation10 + $0x1b0] sm:$0xff]
    %v1466 = vld [vmem:[#allocation10 + $0x1b8] sm:$0xff]
    %v1467 = vld [vmem:[#allocation10 + $0x1c0] sm:$0xff]
    %v1468 = vld [vmem:[#allocation10 + $0x1c8] sm:$0xff]
    %v1469 = vld [vmem:[#allocation10 + $0x1d0] sm:$0xff]
    %v1470 = vld [vmem:[#allocation10 + $0x1d8] sm:$0xff]
    %v1471 = vld [vmem:[#allocation10 + $0x1e0] sm:$0xff]
    %v1472 = vld [vmem:[#allocation10 + $0x1e8] sm:$0xff]
    %v1473 = vld [vmem:[#allocation10 + $0x1f0] sm:$0xff]
    %v1474 = vld [vmem:[#allocation10 + $0x1f8] sm:$0xff]
    %v1475 = vld [vmem:[#allocation13 + $0x3] ss:$0 sm:$0xff]
    %1476 = vmatprep.subr.mxu0 0.0
    %1477 = vmatpush1.xpose.msra.mxu0 %v1474
    %1478 = vmatprep.subr.mxu0 0.0
    %1479 = vmatpush1.xpose.msra.mxu0 %v1473
    %1480 = vmatprep.subr.mxu0 0.0
    %1481 = vmatpush1.xpose.msra.mxu0 %v1472
    %1482 = vmatprep.subr.mxu0 0.0
    %1483 = vmatpush1.xpose.msra.mxu0 %v1471
    %1484 = vmatprep.subr.mxu0 0.0
    %1485 = vmatpush1.xpose.msra.mxu0 %v1470
    %1486 = vmatprep.subr.mxu0 0.0
    %1487 = vmatpush1.xpose.msra.mxu0 %v1469
    %1488 = vmatprep.subr.mxu0 0.0
    %1489 = vmatpush1.xpose.msra.mxu0 %v1468
    %1490 = vmatprep.subr.mxu0 0.0
    %1491 = vmatpush1.xpose.msra.mxu0 %v1467
    %1492 = vmatprep.subr.mxu0 0.0
    %1493 = vmatpush1.xpose.msra.mxu0 %v1466
    %1494 = vmatprep.subr.mxu0 0.0
    %1495 = vmatpush1.xpose.msra.mxu0 %v1465
    %1496 = vmatprep.subr.mxu0 0.0
    %1497 = vmatpush1.xpose.msra.mxu0 %v1464
    %1498 = vmatprep.subr.mxu0 0.0
    %1499 = vmatpush1.xpose.msra.mxu0 %v1463
    %1500 = vmatprep.subr.mxu0 0.0
    %1501 = vmatpush1.xpose.msra.mxu0 %v1462
    %1502 = vmatprep.subr.mxu0 0.0
    %1503 = vmatpush1.xpose.msra.mxu0 %v1461
    %1504 = vmatprep.subr.mxu0 0.0
    %1505 = vmatpush1.xpose.msra.mxu0 %v1460
    %1506 = vmatprep.subr.mxu0 0.0
    %1507 = vmatpush1.xpose.msra.mxu0 %v1459
    %1508 = vmatprep.subr.mxu0 0.0
    %1509 = vmatpush2.xpose.msra.mxu0 0.0
    %1510 = vmatprep.subr.mxu0 0.0
    %1511 = vmatpush2.xpose.msra.mxu0 0.0
    %1512 = vmatprep.subr.mxu0 0.0
    %1513 = vmatpush2.xpose.msra.mxu0 0.0
    %1514 = vmatprep.subr.mxu0 0.0
    %1515 = vmatpush2.xpose.msra.mxu0 0.0
    %1516 = vmatprep.subr.mxu0 0.0
    %1517 = vmatpush2.xpose.msra.mxu0 0.0
    %1518 = vmatprep.subr.mxu0 0.0
    %1519 = vmatpush2.xpose.msra.mxu0 0.0
    %1520 = vmatprep.subr.mxu0 0.0
    %1521 = vmatpush2.xpose.msra.mxu0 0.0
    %1522 = vmatprep.subr.mxu0 0.0
    %1523 = vmatpush2.xpose.msra.mxu0 0.0
    %1524 = vmatprep.subr.mxu0 0.0
    %1525 = vmatpush2.xpose.msra.mxu0 0.0
    %1526 = vmatprep.subr.mxu0 0.0
    %1527 = vmatpush2.xpose.msra.mxu0 0.0
    %1528 = vmatprep.subr.mxu0 0.0
    %1529 = vmatpush2.xpose.msra.mxu0 0.0
    %1530 = vmatprep.subr.mxu0 0.0
    %1531 = vmatpush2.xpose.msra.mxu0 0.0
    %1532 = vmatprep.subr.mxu0 0.0
    %1533 = vmatpush2.xpose.msra.mxu0 0.0
    %1534 = vmatprep.subr.mxu0 0.0
    %1535 = vmatpush2.xpose.msra.mxu0 0.0
    %1536 = vmatprep.subr.mxu0 0.0
    %1537 = vmatpush2.xpose.msra.mxu0 0.0
    %1538 = vmatprep.subr.mxu0 0.0
    %1539 = vmatpush2.xpose.msra.mxu0 0.0
    %1540 = vmatprep.mubr.f32.mxu0 0.0
    %1541 = vmatmul.mubr.f32.gmra.mxu0 %v1457
    %v1542 = vpop.f32.mrf.mxu0
    %v1543 = vadd.f32 %v1475, %v1542
    %v1544 = vpop.f32.mrf.mxu0
    %1545 = vmatprep.mubr.f32.mxu0 0.0
    %1546 = vmatmul.mubr.f32.gmra.mxu0 %v1458
    %v1547 = vpop.f32.mrf.mxu0
    %v1548 = vadd.f32 %v1475, %v1547
    %v1549 = vpop.f32.mrf.mxu0
    %1550 = vdwg.mxu0
    %v1551 = vld [vmem:[#allocation11 + $0x5] sm:$0x1]
    %v1552 = vld [vmem:[#allocation8 + $0x300] sm:$0xff]
    %v1553 = vld [vmem:[#allocation8 + $0x308] sm:$0xff]
    %v1554 = vld [vmem:[#allocation8 + $0x310] sm:$0xff]
    %v1555 = vld [vmem:[#allocation8 + $0x318] sm:$0xff]
    %v1556 = vld [vmem:[#allocation8 + $0x320] sm:$0xff]
    %v1557 = vld [vmem:[#allocation8 + $0x328] sm:$0xff]
    %v1558 = vld [vmem:[#allocation8 + $0x330] sm:$0xff]
    %v1559 = vld [vmem:[#allocation8 + $0x338] sm:$0xff]
    %v1560 = vld [vmem:[#allocation8 + $0x340] sm:$0xff]
    %v1561 = vld [vmem:[#allocation8 + $0x348] sm:$0xff]
    %v1562 = vld [vmem:[#allocation8 + $0x350] sm:$0xff]
    %v1563 = vld [vmem:[#allocation8 + $0x358] sm:$0xff]
    %v1564 = vld [vmem:[#allocation8 + $0x360] sm:$0xff]
    %v1565 = vld [vmem:[#allocation8 + $0x368] sm:$0xff]
    %v1566 = vld [vmem:[#allocation8 + $0x370] sm:$0xff]
    %v1567 = vld [vmem:[#allocation8 + $0x378] sm:$0xff]
    %1568 = vmatprep.subr.mxu0 0.0
    %1569 = vmatpush1.msra.mxu0 %v1567
    %1570 = vmatprep.subr.mxu0 0.0
    %1571 = vmatpush1.msra.mxu0 %v1566
    %1572 = vmatprep.subr.mxu0 0.0
    %1573 = vmatpush1.msra.mxu0 %v1565
    %1574 = vmatprep.subr.mxu0 0.0
    %1575 = vmatpush1.msra.mxu0 %v1564
    %1576 = vmatprep.subr.mxu0 0.0
    %1577 = vmatpush1.msra.mxu0 %v1563
    %1578 = vmatprep.subr.mxu0 0.0
    %1579 = vmatpush1.msra.mxu0 %v1562
    %1580 = vmatprep.subr.mxu0 0.0
    %1581 = vmatpush1.msra.mxu0 %v1561
    %1582 = vmatprep.subr.mxu0 0.0
    %1583 = vmatpush1.msra.mxu0 %v1560
    %1584 = vmatprep.subr.mxu0 0.0
    %1585 = vmatpush1.msra.mxu0 %v1559
    %1586 = vmatprep.subr.mxu0 0.0
    %1587 = vmatpush1.msra.mxu0 %v1558
    %1588 = vmatprep.subr.mxu0 0.0
    %1589 = vmatpush1.msra.mxu0 %v1557
    %1590 = vmatprep.subr.mxu0 0.0
    %1591 = vmatpush1.msra.mxu0 %v1556
    %1592 = vmatprep.subr.mxu0 0.0
    %1593 = vmatpush1.msra.mxu0 %v1555
    %1594 = vmatprep.subr.mxu0 0.0
    %1595 = vmatpush1.msra.mxu0 %v1554
    %1596 = vmatprep.subr.mxu0 0.0
    %1597 = vmatpush1.msra.mxu0 %v1553
    %1598 = vmatprep.subr.mxu0 0.0
    %1599 = vmatpush1.msra.mxu0 %v1552
    %1600 = vmatprep.subr.mxu0 0.0
    %1601 = vmatpush2.msra.mxu0 0.0
    %1602 = vmatprep.subr.mxu0 0.0
    %1603 = vmatpush2.msra.mxu0 0.0
    %1604 = vmatprep.subr.mxu0 0.0
    %1605 = vmatpush2.msra.mxu0 0.0
    %1606 = vmatprep.subr.mxu0 0.0
    %1607 = vmatpush2.msra.mxu0 0.0
    %1608 = vmatprep.subr.mxu0 0.0
    %1609 = vmatpush2.msra.mxu0 0.0
    %1610 = vmatprep.subr.mxu0 0.0
    %1611 = vmatpush2.msra.mxu0 0.0
    %1612 = vmatprep.subr.mxu0 0.0
    %1613 = vmatpush2.msra.mxu0 0.0
    %1614 = vmatprep.subr.mxu0 0.0
    %1615 = vmatpush2.msra.mxu0 0.0
    %1616 = vmatprep.subr.mxu0 0.0
    %1617 = vmatpush2.msra.mxu0 0.0
    %1618 = vmatprep.subr.mxu0 0.0
    %1619 = vmatpush2.msra.mxu0 0.0
    %1620 = vmatprep.subr.mxu0 0.0
    %1621 = vmatpush2.msra.mxu0 0.0
    %1622 = vmatprep.subr.mxu0 0.0
    %1623 = vmatpush2.msra.mxu0 0.0
    %1624 = vmatprep.subr.mxu0 0.0
    %1625 = vmatpush2.msra.mxu0 0.0
    %1626 = vmatprep.subr.mxu0 0.0
    %1627 = vmatpush2.msra.mxu0 0.0
    %1628 = vmatprep.subr.mxu0 0.0
    %1629 = vmatpush2.msra.mxu0 0.0
    %1630 = vmatprep.subr.mxu0 0.0
    %1631 = vmatpush2.msra.mxu0 0.0
    %1632 = vmatprep.mubr.f32.mxu0 0.0
    %1633 = vmatmul.mubr.f32.gmra.mxu0 %v530
    %v1634 = vpop.f32.mrf.mxu0
    %v1635 = vadd.f32 0.0, %v1634
    %v1636 = vpop.f32.mrf.mxu0
    %1637 = vmatprep.mubr.f32.mxu0 0.0
    %1638 = vmatmul.mubr.f32.gmra.mxu0 %v535
    %v1639 = vpop.f32.mrf.mxu0
    %v1640 = vadd.f32 0.0, %v1639
    %v1641 = vpop.f32.mrf.mxu0
    %1642 = vmatprep.mubr.f32.mxu0 0.0
    %1643 = vmatmul.mubr.f32.gmra.mxu0 %v540
    %v1644 = vpop.f32.mrf.mxu0
    %v1645 = vadd.f32 0.0, %v1644
    %v1646 = vpop.f32.mrf.mxu0
    %1647 = vmatprep.mubr.f32.mxu0 0.0
    %1648 = vmatmul.mubr.f32.gmra.mxu0 %v545
    %v1649 = vpop.f32.mrf.mxu0
    %v1650 = vadd.f32 0.0, %v1649
    %v1651 = vpop.f32.mrf.mxu0
    %1652 = vdwg.mxu0
    %v1653 = vlaneseq
    %v1654 = vshrl.u32 %v1653, 7
    %v1655 = vsub.s32 0, %v1654
    %v1656 = vrot.slane %v1551, %v1655
    %v1657 = vadd.f32 %v1656, %v1635
    %v1658 = vadd.f32 %v1656, %v1640
    %v1659 = vadd.f32 %v1656, %v1645
    %v1660 = vadd.f32 %v1656, %v1650
    %v1661 = vld [vmem:[#allocation8 + $0x380] sm:$0xff]
    %v1662 = vld [vmem:[#allocation8 + $0x388] sm:$0xff]
    %v1663 = vld [vmem:[#allocation8 + $0x390] sm:$0xff]
    %v1664 = vld [vmem:[#allocation8 + $0x398] sm:$0xff]
    %v1665 = vld [vmem:[#allocation8 + $0x3a0] sm:$0xff]
    %v1666 = vld [vmem:[#allocation8 + $0x3a8] sm:$0xff]
    %v1667 = vld [vmem:[#allocation8 + $0x3b0] sm:$0xff]
    %v1668 = vld [vmem:[#allocation8 + $0x3b8] sm:$0xff]
    %v1669 = vld [vmem:[#allocation8 + $0x3c0] sm:$0xff]
    %v1670 = vld [vmem:[#allocation8 + $0x3c8] sm:$0xff]
    %v1671 = vld [vmem:[#allocation8 + $0x3d0] sm:$0xff]
    %v1672 = vld [vmem:[#allocation8 + $0x3d8] sm:$0xff]
    %v1673 = vld [vmem:[#allocation8 + $0x3e0] sm:$0xff]
    %v1674 = vld [vmem:[#allocation8 + $0x3e8] sm:$0xff]
    %v1675 = vld [vmem:[#allocation8 + $0x3f0] sm:$0xff]
    %v1676 = vld [vmem:[#allocation8 + $0x3f8] sm:$0xff]
    %1677 = vmatprep.subr.mxu0 0.0
    %1678 = vmatpush1.msra.mxu0 %v1676
    %1679 = vmatprep.subr.mxu0 0.0
    %1680 = vmatpush1.msra.mxu0 %v1675
    %1681 = vmatprep.subr.mxu0 0.0
    %1682 = vmatpush1.msra.mxu0 %v1674
    %1683 = vmatprep.subr.mxu0 0.0
    %1684 = vmatpush1.msra.mxu0 %v1673
    %1685 = vmatprep.subr.mxu0 0.0
    %1686 = vmatpush1.msra.mxu0 %v1672
    %1687 = vmatprep.subr.mxu0 0.0
    %1688 = vmatpush1.msra.mxu0 %v1671
    %1689 = vmatprep.subr.mxu0 0.0
    %1690 = vmatpush1.msra.mxu0 %v1670
    %1691 = vmatprep.subr.mxu0 0.0
    %1692 = vmatpush1.msra.mxu0 %v1669
    %1693 = vmatprep.subr.mxu0 0.0
    %1694 = vmatpush1.msra.mxu0 %v1668
    %1695 = vmatprep.subr.mxu0 0.0
    %1696 = vmatpush1.msra.mxu0 %v1667
    %1697 = vmatprep.subr.mxu0 0.0
    %1698 = vmatpush1.msra.mxu0 %v1666
    %1699 = vmatprep.subr.mxu0 0.0
    %1700 = vmatpush1.msra.mxu0 %v1665
    %1701 = vmatprep.subr.mxu0 0.0
    %1702 = vmatpush1.msra.mxu0 %v1664
    %1703 = vmatprep.subr.mxu0 0.0
    %1704 = vmatpush1.msra.mxu0 %v1663
    %1705 = vmatprep.subr.mxu0 0.0
    %1706 = vmatpush1.msra.mxu0 %v1662
    %1707 = vmatprep.subr.mxu0 0.0
    %1708 = vmatpush1.msra.mxu0 %v1661
    %1709 = vmatprep.subr.mxu0 0.0
    %1710 = vmatpush2.msra.mxu0 0.0
    %1711 = vmatprep.subr.mxu0 0.0
    %1712 = vmatpush2.msra.mxu0 0.0
    %1713 = vmatprep.subr.mxu0 0.0
    %1714 = vmatpush2.msra.mxu0 0.0
    %1715 = vmatprep.subr.mxu0 0.0
    %1716 = vmatpush2.msra.mxu0 0.0
    %1717 = vmatprep.subr.mxu0 0.0
    %1718 = vmatpush2.msra.mxu0 0.0
    %1719 = vmatprep.subr.mxu0 0.0
    %1720 = vmatpush2.msra.mxu0 0.0
    %1721 = vmatprep.subr.mxu0 0.0
    %1722 = vmatpush2.msra.mxu0 0.0
    %1723 = vmatprep.subr.mxu0 0.0
    %1724 = vmatpush2.msra.mxu0 0.0
    %1725 = vmatprep.subr.mxu0 0.0
    %1726 = vmatpush2.msra.mxu0 0.0
    %1727 = vmatprep.subr.mxu0 0.0
    %1728 = vmatpush2.msra.mxu0 0.0
    %1729 = vmatprep.subr.mxu0 0.0
    %1730 = vmatpush2.msra.mxu0 0.0
    %1731 = vmatprep.subr.mxu0 0.0
    %1732 = vmatpush2.msra.mxu0 0.0
    %1733 = vmatprep.subr.mxu0 0.0
    %1734 = vmatpush2.msra.mxu0 0.0
    %1735 = vmatprep.subr.mxu0 0.0
    %1736 = vmatpush2.msra.mxu0 0.0
    %1737 = vmatprep.subr.mxu0 0.0
    %1738 = vmatpush2.msra.mxu0 0.0
    %1739 = vmatprep.subr.mxu0 0.0
    %1740 = vmatpush2.msra.mxu0 0.0
    %1741 = vmatprep.mubr.f32.mxu0 0.0
    %1742 = vmatmul.mubr.f32.gmra.mxu0 %v1177
    %v1743 = vpop.f32.mrf.mxu0
    %v1744 = vadd.f32 0.0, %v1743
    %v1745 = vpop.f32.mrf.mxu0
    %1746 = vmatprep.mubr.f32.mxu0 0.0
    %1747 = vmatmul.mubr.f32.gmra.mxu0 %v1182
    %v1748 = vpop.f32.mrf.mxu0
    %v1749 = vadd.f32 0.0, %v1748
    %v1750 = vpop.f32.mrf.mxu0
    %1751 = vmatprep.mubr.f32.mxu0 0.0
    %1752 = vmatmul.mubr.f32.gmra.mxu0 %v1258
    %v1753 = vpop.f32.mrf.mxu0
    %v1754 = vadd.f32 0.0, %v1753
    %v1755 = vpop.f32.mrf.mxu0
    %1756 = vmatprep.mubr.f32.mxu0 0.0
    %1757 = vmatmul.mubr.f32.gmra.mxu0 %v1263
    %v1758 = vpop.f32.mrf.mxu0
    %v1759 = vadd.f32 0.0, %v1758
    %v1760 = vpop.f32.mrf.mxu0
    %1761 = vdwg.mxu0
    %v1762 = vadd.f32 %v1657, %v1744
    %v1763 = vadd.f32 %v1658, %v1749
    %v1764 = vadd.f32 %v1659, %v1754
    %v1765 = vadd.f32 %v1660, %v1759
    %v1766 = vmax.f32 %v1762, 0.0
    %v1767 = vmax.f32 %v1763, 0.0
    %v1768 = vmax.f32 %v1764, 0.0
    %v1769 = vmax.f32 %v1765, 0.0
    %v1770 = vld [vmem:[#allocation10 + $0x280] sm:$0xff]
    %v1771 = vld [vmem:[#allocation10 + $0x288] sm:$0xff]
    %v1772 = vld [vmem:[#allocation10 + $0x290] sm:$0xff]
    %v1773 = vld [vmem:[#allocation10 + $0x298] sm:$0xff]
    %v1774 = vld [vmem:[#allocation10 + $0x2a0] sm:$0xff]
    %v1775 = vld [vmem:[#allocation10 + $0x2a8] sm:$0xff]
    %v1776 = vld [vmem:[#allocation10 + $0x2b0] sm:$0xff]
    %v1777 = vld [vmem:[#allocation10 + $0x2b8] sm:$0xff]
    %v1778 = vld [vmem:[#allocation10 + $0x2c0] sm:$0xff]
    %v1779 = vld [vmem:[#allocation10 + $0x2c8] sm:$0xff]
    %v1780 = vld [vmem:[#allocation10 + $0x2d0] sm:$0xff]
    %v1781 = vld [vmem:[#allocation10 + $0x2d8] sm:$0xff]
    %v1782 = vld [vmem:[#allocation10 + $0x2e0] sm:$0xff]
    %v1783 = vld [vmem:[#allocation10 + $0x2e8] sm:$0xff]
    %v1784 = vld [vmem:[#allocation10 + $0x2f0] sm:$0xff]
    %v1785 = vld [vmem:[#allocation10 + $0x2f8] sm:$0xff]
    %v1786 = vld [vmem:[#allocation13 + $0x5] ss:$0 sm:$0xff]
    %1787 = vmatprep.subr.mxu0 0.0
    %1788 = vmatpush1.xpose.msra.mxu0 %v1785
    %1789 = vmatprep.subr.mxu0 0.0
    %1790 = vmatpush1.xpose.msra.mxu0 %v1784
    %1791 = vmatprep.subr.mxu0 0.0
    %1792 = vmatpush1.xpose.msra.mxu0 %v1783
    %1793 = vmatprep.subr.mxu0 0.0
    %1794 = vmatpush1.xpose.msra.mxu0 %v1782
    %1795 = vmatprep.subr.mxu0 0.0
    %1796 = vmatpush1.xpose.msra.mxu0 %v1781
    %1797 = vmatprep.subr.mxu0 0.0
    %1798 = vmatpush1.xpose.msra.mxu0 %v1780
    %1799 = vmatprep.subr.mxu0 0.0
    %1800 = vmatpush1.xpose.msra.mxu0 %v1779
    %1801 = vmatprep.subr.mxu0 0.0
    %1802 = vmatpush1.xpose.msra.mxu0 %v1778
    %1803 = vmatprep.subr.mxu0 0.0
    %1804 = vmatpush1.xpose.msra.mxu0 %v1777
    %1805 = vmatprep.subr.mxu0 0.0
    %1806 = vmatpush1.xpose.msra.mxu0 %v1776
    %1807 = vmatprep.subr.mxu0 0.0
    %1808 = vmatpush1.xpose.msra.mxu0 %v1775
    %1809 = vmatprep.subr.mxu0 0.0
    %1810 = vmatpush1.xpose.msra.mxu0 %v1774
    %1811 = vmatprep.subr.mxu0 0.0
    %1812 = vmatpush1.xpose.msra.mxu0 %v1773
    %1813 = vmatprep.subr.mxu0 0.0
    %1814 = vmatpush1.xpose.msra.mxu0 %v1772
    %1815 = vmatprep.subr.mxu0 0.0
    %1816 = vmatpush1.xpose.msra.mxu0 %v1771
    %1817 = vmatprep.subr.mxu0 0.0
    %1818 = vmatpush1.xpose.msra.mxu0 %v1770
    %1819 = vmatprep.subr.mxu0 0.0
    %1820 = vmatpush2.xpose.msra.mxu0 0.0
    %1821 = vmatprep.subr.mxu0 0.0
    %1822 = vmatpush2.xpose.msra.mxu0 0.0
    %1823 = vmatprep.subr.mxu0 0.0
    %1824 = vmatpush2.xpose.msra.mxu0 0.0
    %1825 = vmatprep.subr.mxu0 0.0
    %1826 = vmatpush2.xpose.msra.mxu0 0.0
    %1827 = vmatprep.subr.mxu0 0.0
    %1828 = vmatpush2.xpose.msra.mxu0 0.0
    %1829 = vmatprep.subr.mxu0 0.0
    %1830 = vmatpush2.xpose.msra.mxu0 0.0
    %1831 = vmatprep.subr.mxu0 0.0
    %1832 = vmatpush2.xpose.msra.mxu0 0.0
    %1833 = vmatprep.subr.mxu0 0.0
    %1834 = vmatpush2.xpose.msra.mxu0 0.0
    %1835 = vmatprep.subr.mxu0 0.0
    %1836 = vmatpush2.xpose.msra.mxu0 0.0
    %1837 = vmatprep.subr.mxu0 0.0
    %1838 = vmatpush2.xpose.msra.mxu0 0.0
    %1839 = vmatprep.subr.mxu0 0.0
    %1840 = vmatpush2.xpose.msra.mxu0 0.0
    %1841 = vmatprep.subr.mxu0 0.0
    %1842 = vmatpush2.xpose.msra.mxu0 0.0
    %1843 = vmatprep.subr.mxu0 0.0
    %1844 = vmatpush2.xpose.msra.mxu0 0.0
    %1845 = vmatprep.subr.mxu0 0.0
    %1846 = vmatpush2.xpose.msra.mxu0 0.0
    %1847 = vmatprep.subr.mxu0 0.0
    %1848 = vmatpush2.xpose.msra.mxu0 0.0
    %1849 = vmatprep.subr.mxu0 0.0
    %1850 = vmatpush2.xpose.msra.mxu0 0.0
    %1851 = vmatprep.mubr.f32.mxu0 0.0
    %1852 = vmatmul.mubr.f32.gmra.mxu0 %v1766
    %v1853 = vpop.f32.mrf.mxu0
    %v1854 = vadd.f32 %v1786, %v1853
    %v1855 = vpop.f32.mrf.mxu0
    %1856 = vmatprep.mubr.f32.mxu0 0.0
    %1857 = vmatmul.mubr.f32.gmra.mxu0 %v1767
    %v1858 = vpop.f32.mrf.mxu0
    %v1859 = vadd.f32 %v1786, %v1858
    %v1860 = vpop.f32.mrf.mxu0
    %1861 = vmatprep.mubr.f32.mxu0 0.0
    %1862 = vmatmul.mubr.f32.gmra.mxu0 %v1768
    %v1863 = vpop.f32.mrf.mxu0
    %v1864 = vadd.f32 %v1786, %v1863
    %v1865 = vpop.f32.mrf.mxu0
    %1866 = vmatprep.mubr.f32.mxu0 0.0
    %1867 = vmatmul.mubr.f32.gmra.mxu0 %v1769
    %v1868 = vpop.f32.mrf.mxu0
    %v1869 = vadd.f32 %v1786, %v1868
    %v1870 = vpop.f32.mrf.mxu0
    %1871 = vdwg.mxu0
    %v1872 = vld [vmem:[#allocation11 + $0x8] sm:$0x1]
    %v1873 = vld [vmem:[#allocation8 + $0x580] sm:$0xff]
    %v1874 = vld [vmem:[#allocation8 + $0x588] sm:$0xff]
    %v1875 = vld [vmem:[#allocation8 + $0x590] sm:$0xff]
    %v1876 = vld [vmem:[#allocation8 + $0x598] sm:$0xff]
    %v1877 = vld [vmem:[#allocation8 + $0x5a0] sm:$0xff]
    %v1878 = vld [vmem:[#allocation8 + $0x5a8] sm:$0xff]
    %v1879 = vld [vmem:[#allocation8 + $0x5b0] sm:$0xff]
    %v1880 = vld [vmem:[#allocation8 + $0x5b8] sm:$0xff]
    %v1881 = vld [vmem:[#allocation8 + $0x5c0] sm:$0xff]
    %v1882 = vld [vmem:[#allocation8 + $0x5c8] sm:$0xff]
    %v1883 = vld [vmem:[#allocation8 + $0x5d0] sm:$0xff]
    %v1884 = vld [vmem:[#allocation8 + $0x5d8] sm:$0xff]
    %v1885 = vld [vmem:[#allocation8 + $0x5e0] sm:$0xff]
    %v1886 = vld [vmem:[#allocation8 + $0x5e8] sm:$0xff]
    %v1887 = vld [vmem:[#allocation8 + $0x5f0] sm:$0xff]
    %v1888 = vld [vmem:[#allocation8 + $0x5f8] sm:$0xff]
    %1889 = vmatprep.subr.mxu0 0.0
    %1890 = vmatpush1.msra.mxu0 %v1888
    %1891 = vmatprep.subr.mxu0 0.0
    %1892 = vmatpush1.msra.mxu0 %v1887
    %1893 = vmatprep.subr.mxu0 0.0
    %1894 = vmatpush1.msra.mxu0 %v1886
    %1895 = vmatprep.subr.mxu0 0.0
    %1896 = vmatpush1.msra.mxu0 %v1885
    %1897 = vmatprep.subr.mxu0 0.0
    %1898 = vmatpush1.msra.mxu0 %v1884
    %1899 = vmatprep.subr.mxu0 0.0
    %1900 = vmatpush1.msra.mxu0 %v1883
    %1901 = vmatprep.subr.mxu0 0.0
    %1902 = vmatpush1.msra.mxu0 %v1882
    %1903 = vmatprep.subr.mxu0 0.0
    %1904 = vmatpush1.msra.mxu0 %v1881
    %1905 = vmatprep.subr.mxu0 0.0
    %1906 = vmatpush1.msra.mxu0 %v1880
    %1907 = vmatprep.subr.mxu0 0.0
    %1908 = vmatpush1.msra.mxu0 %v1879
    %1909 = vmatprep.subr.mxu0 0.0
    %1910 = vmatpush1.msra.mxu0 %v1878
    %1911 = vmatprep.subr.mxu0 0.0
    %1912 = vmatpush1.msra.mxu0 %v1877
    %1913 = vmatprep.subr.mxu0 0.0
    %1914 = vmatpush1.msra.mxu0 %v1876
    %1915 = vmatprep.subr.mxu0 0.0
    %1916 = vmatpush1.msra.mxu0 %v1875
    %1917 = vmatprep.subr.mxu0 0.0
    %1918 = vmatpush1.msra.mxu0 %v1874
    %1919 = vmatprep.subr.mxu0 0.0
    %1920 = vmatpush1.msra.mxu0 %v1873
    %1921 = vmatprep.subr.mxu0 0.0
    %1922 = vmatpush2.msra.mxu0 0.0
    %1923 = vmatprep.subr.mxu0 0.0
    %1924 = vmatpush2.msra.mxu0 0.0
    %1925 = vmatprep.subr.mxu0 0.0
    %1926 = vmatpush2.msra.mxu0 0.0
    %1927 = vmatprep.subr.mxu0 0.0
    %1928 = vmatpush2.msra.mxu0 0.0
    %1929 = vmatprep.subr.mxu0 0.0
    %1930 = vmatpush2.msra.mxu0 0.0
    %1931 = vmatprep.subr.mxu0 0.0
    %1932 = vmatpush2.msra.mxu0 0.0
    %1933 = vmatprep.subr.mxu0 0.0
    %1934 = vmatpush2.msra.mxu0 0.0
    %1935 = vmatprep.subr.mxu0 0.0
    %1936 = vmatpush2.msra.mxu0 0.0
    %1937 = vmatprep.subr.mxu0 0.0
    %1938 = vmatpush2.msra.mxu0 0.0
    %1939 = vmatprep.subr.mxu0 0.0
    %1940 = vmatpush2.msra.mxu0 0.0
    %1941 = vmatprep.subr.mxu0 0.0
    %1942 = vmatpush2.msra.mxu0 0.0
    %1943 = vmatprep.subr.mxu0 0.0
    %1944 = vmatpush2.msra.mxu0 0.0
    %1945 = vmatprep.subr.mxu0 0.0
    %1946 = vmatpush2.msra.mxu0 0.0
    %1947 = vmatprep.subr.mxu0 0.0
    %1948 = vmatpush2.msra.mxu0 0.0
    %1949 = vmatprep.subr.mxu0 0.0
    %1950 = vmatpush2.msra.mxu0 0.0
    %1951 = vmatprep.subr.mxu0 0.0
    %1952 = vmatpush2.msra.mxu0 0.0
    %1953 = vmatprep.mubr.f32.mxu0 0.0
    %1954 = vmatmul.mubr.f32.gmra.mxu0 %v1854
    %v1955 = vpop.f32.mrf.mxu0
    %v1956 = vadd.f32 0.0, %v1955
    %v1957 = vpop.f32.mrf.mxu0
    %1958 = vmatprep.mubr.f32.mxu0 0.0
    %1959 = vmatmul.mubr.f32.gmra.mxu0 %v1859
    %v1960 = vpop.f32.mrf.mxu0
    %v1961 = vadd.f32 0.0, %v1960
    %v1962 = vpop.f32.mrf.mxu0
    %1963 = vmatprep.mubr.f32.mxu0 0.0
    %1964 = vmatmul.mubr.f32.gmra.mxu0 %v1864
    %v1965 = vpop.f32.mrf.mxu0
    %v1966 = vadd.f32 0.0, %v1965
    %v1967 = vpop.f32.mrf.mxu0
    %1968 = vmatprep.mubr.f32.mxu0 0.0
    %1969 = vmatmul.mubr.f32.gmra.mxu0 %v1869
    %v1970 = vpop.f32.mrf.mxu0
    %v1971 = vadd.f32 0.0, %v1970
    %v1972 = vpop.f32.mrf.mxu0
    %1973 = vdwg.mxu0
    %v1974 = vlaneseq
    %v1975 = vshrl.u32 %v1974, 7
    %v1976 = vsub.s32 0, %v1975
    %v1977 = vrot.slane %v1872, %v1976
    %v1978 = vadd.f32 %v1977, %v1956
    %v1979 = vadd.f32 %v1977, %v1961
    %v1980 = vadd.f32 %v1977, %v1966
    %v1981 = vadd.f32 %v1977, %v1971
    %v1982 = vmax.f32 %v1978, 0.0
    %v1983 = vmax.f32 %v1979, 0.0
    %v1984 = vmax.f32 %v1980, 0.0
    %v1985 = vmax.f32 %v1981, 0.0
    %v1986 = vld [vmem:[#allocation10 + $0x400] sm:$0xff]
    %v1987 = vld [vmem:[#allocation10 + $0x408] sm:$0xff]
    %v1988 = vld [vmem:[#allocation10 + $0x410] sm:$0xff]
    %v1989 = vld [vmem:[#allocation10 + $0x418] sm:$0xff]
    %v1990 = vld [vmem:[#allocation10 + $0x420] sm:$0xff]
    %v1991 = vld [vmem:[#allocation10 + $0x428] sm:$0xff]
    %v1992 = vld [vmem:[#allocation10 + $0x430] sm:$0xff]
    %v1993 = vld [vmem:[#allocation10 + $0x438] sm:$0xff]
    %v1994 = vld [vmem:[#allocation10 + $0x440] sm:$0xff]
    %v1995 = vld [vmem:[#allocation10 + $0x448] sm:$0xff]
    %v1996 = vld [vmem:[#allocation10 + $0x450] sm:$0xff]
    %v1997 = vld [vmem:[#allocation10 + $0x458] sm:$0xff]
    %v1998 = vld [vmem:[#allocation10 + $0x460] sm:$0xff]
    %v1999 = vld [vmem:[#allocation10 + $0x468] sm:$0xff]
    %v2000 = vld [vmem:[#allocation10 + $0x470] sm:$0xff]
    %v2001 = vld [vmem:[#allocation10 + $0x478] sm:$0xff]
    %v2002 = vld [vmem:[#allocation13 + $0x10] ss:$0 sm:$0xff]
    %2003 = vmatprep.subr.mxu0 0.0
    %2004 = vmatpush1.xpose.msra.mxu0 %v2001
    %2005 = vmatprep.subr.mxu0 0.0
    %2006 = vmatpush1.xpose.msra.mxu0 %v2000
    %2007 = vmatprep.subr.mxu0 0.0
    %2008 = vmatpush1.xpose.msra.mxu0 %v1999
    %2009 = vmatprep.subr.mxu0 0.0
    %2010 = vmatpush1.xpose.msra.mxu0 %v1998
    %2011 = vmatprep.subr.mxu0 0.0
    %2012 = vmatpush1.xpose.msra.mxu0 %v1997
    %2013 = vmatprep.subr.mxu0 0.0
    %2014 = vmatpush1.xpose.msra.mxu0 %v1996
    %2015 = vmatprep.subr.mxu0 0.0
    %2016 = vmatpush1.xpose.msra.mxu0 %v1995
    %2017 = vmatprep.subr.mxu0 0.0
    %2018 = vmatpush1.xpose.msra.mxu0 %v1994
    %2019 = vmatprep.subr.mxu0 0.0
    %2020 = vmatpush1.xpose.msra.mxu0 %v1993
    %2021 = vmatprep.subr.mxu0 0.0
    %2022 = vmatpush1.xpose.msra.mxu0 %v1992
    %2023 = vmatprep.subr.mxu0 0.0
    %2024 = vmatpush1.xpose.msra.mxu0 %v1991
    %2025 = vmatprep.subr.mxu0 0.0
    %2026 = vmatpush1.xpose.msra.mxu0 %v1990
    %2027 = vmatprep.subr.mxu0 0.0
    %2028 = vmatpush1.xpose.msra.mxu0 %v1989
    %2029 = vmatprep.subr.mxu0 0.0
    %2030 = vmatpush1.xpose.msra.mxu0 %v1988
    %2031 = vmatprep.subr.mxu0 0.0
    %2032 = vmatpush1.xpose.msra.mxu0 %v1987
    %2033 = vmatprep.subr.mxu0 0.0
    %2034 = vmatpush1.xpose.msra.mxu0 %v1986
    %2035 = vmatprep.subr.mxu0 0.0
    %2036 = vmatpush2.xpose.msra.mxu0 0.0
    %2037 = vmatprep.subr.mxu0 0.0
    %2038 = vmatpush2.xpose.msra.mxu0 0.0
    %2039 = vmatprep.subr.mxu0 0.0
    %2040 = vmatpush2.xpose.msra.mxu0 0.0
    %2041 = vmatprep.subr.mxu0 0.0
    %2042 = vmatpush2.xpose.msra.mxu0 0.0
    %2043 = vmatprep.subr.mxu0 0.0
    %2044 = vmatpush2.xpose.msra.mxu0 0.0
    %2045 = vmatprep.subr.mxu0 0.0
    %2046 = vmatpush2.xpose.msra.mxu0 0.0
    %2047 = vmatprep.subr.mxu0 0.0
    %2048 = vmatpush2.xpose.msra.mxu0 0.0
    %2049 = vmatprep.subr.mxu0 0.0
    %2050 = vmatpush2.xpose.msra.mxu0 0.0
    %2051 = vmatprep.subr.mxu0 0.0
    %2052 = vmatpush2.xpose.msra.mxu0 0.0
    %2053 = vmatprep.subr.mxu0 0.0
    %2054 = vmatpush2.xpose.msra.mxu0 0.0
    %2055 = vmatprep.subr.mxu0 0.0
    %2056 = vmatpush2.xpose.msra.mxu0 0.0
    %2057 = vmatprep.subr.mxu0 0.0
    %2058 = vmatpush2.xpose.msra.mxu0 0.0
    %2059 = vmatprep.subr.mxu0 0.0
    %2060 = vmatpush2.xpose.msra.mxu0 0.0
    %2061 = vmatprep.subr.mxu0 0.0
    %2062 = vmatpush2.xpose.msra.mxu0 0.0
    %2063 = vmatprep.subr.mxu0 0.0
    %2064 = vmatpush2.xpose.msra.mxu0 0.0
    %2065 = vmatprep.subr.mxu0 0.0
    %2066 = vmatpush2.xpose.msra.mxu0 0.0
    %2067 = vmatprep.mubr.f32.mxu0 0.0
    %2068 = vmatmul.mubr.f32.gmra.mxu0 %v1982
    %v2069 = vpop.f32.mrf.mxu0
    %v2070 = vadd.f32 %v2002, %v2069
    %v2071 = vpop.f32.mrf.mxu0
    %2072 = vmatprep.mubr.f32.mxu0 0.0
    %2073 = vmatmul.mubr.f32.gmra.mxu0 %v1983
    %v2074 = vpop.f32.mrf.mxu0
    %v2075 = vadd.f32 %v2002, %v2074
    %v2076 = vpop.f32.mrf.mxu0
    %2077 = vmatprep.mubr.f32.mxu0 0.0
    %2078 = vmatmul.mubr.f32.gmra.mxu0 %v1984
    %v2079 = vpop.f32.mrf.mxu0
    %v2080 = vadd.f32 %v2002, %v2079
    %v2081 = vpop.f32.mrf.mxu0
    %2082 = vmatprep.mubr.f32.mxu0 0.0
    %2083 = vmatmul.mubr.f32.gmra.mxu0 %v1985
    %v2084 = vpop.f32.mrf.mxu0
    %v2085 = vadd.f32 %v2002, %v2084
    %v2086 = vpop.f32.mrf.mxu0
    %2087 = vdwg.mxu0
    %2088 = vmatprep.subr.mxu0 0.0
    %2089 = vmatpush1.msra.mxu0 0.0
    %2090 = vmatprep.subr.mxu0 0.0
    %2091 = vmatpush1.msra.mxu0 0.0
    %2092 = vmatprep.subr.mxu0 0.0
    %2093 = vmatpush1.msra.mxu0 0.0
    %2094 = vmatprep.subr.mxu0 0.0
    %2095 = vmatpush1.msra.mxu0 0.0
    %2096 = vmatprep.subr.mxu0 0.0
    %2097 = vmatpush1.msra.mxu0 0.0
    %2098 = vmatprep.subr.mxu0 0.0
    %2099 = vmatpush1.msra.mxu0 0.0
    %2100 = vmatprep.subr.mxu0 0.0
    %2101 = vmatpush1.msra.mxu0 0.0
    %2102 = vmatprep.subr.mxu0 0.0
    %2103 = vmatpush1.msra.mxu0 0.0
    %2104 = vmatprep.subr.mxu0 0.0
    %2105 = vmatpush1.msra.mxu0 0.0
    %2106 = vmatprep.subr.mxu0 0.0
    %2107 = vmatpush1.msra.mxu0 0.0
    %2108 = vmatprep.subr.mxu0 0.0
    %2109 = vmatpush1.msra.mxu0 0.0
    %2110 = vmatprep.subr.mxu0 0.0
    %2111 = vmatpush1.msra.mxu0 0.0
    %2112 = vmatprep.subr.mxu0 0.0
    %2113 = vmatpush1.msra.mxu0 0.0
    %2114 = vmatprep.subr.mxu0 0.0
    %2115 = vmatpush1.msra.mxu0 0.0
    %2116 = vmatprep.subr.mxu0 0.0
    %2117 = vmatpush1.msra.mxu0 %v2075
    %2118 = vmatprep.subr.mxu0 0.0
    %2119 = vmatpush1.msra.mxu0 %v2070
    %2120 = vmatprep.subr.mxu0 0.0
    %2121 = vmatpush2.msra.mxu0 0.0
    %2122 = vmatprep.subr.mxu0 0.0
    %2123 = vmatpush2.msra.mxu0 0.0
    %2124 = vmatprep.subr.mxu0 0.0
    %2125 = vmatpush2.msra.mxu0 0.0
    %2126 = vmatprep.subr.mxu0 0.0
    %2127 = vmatpush2.msra.mxu0 0.0
    %2128 = vmatprep.subr.mxu0 0.0
    %2129 = vmatpush2.msra.mxu0 0.0
    %2130 = vmatprep.subr.mxu0 0.0
    %2131 = vmatpush2.msra.mxu0 0.0
    %2132 = vmatprep.subr.mxu0 0.0
    %2133 = vmatpush2.msra.mxu0 0.0
    %2134 = vmatprep.subr.mxu0 0.0
    %2135 = vmatpush2.msra.mxu0 0.0
    %2136 = vmatprep.subr.mxu0 0.0
    %2137 = vmatpush2.msra.mxu0 0.0
    %2138 = vmatprep.subr.mxu0 0.0
    %2139 = vmatpush2.msra.mxu0 0.0
    %2140 = vmatprep.subr.mxu0 0.0
    %2141 = vmatpush2.msra.mxu0 0.0
    %2142 = vmatprep.subr.mxu0 0.0
    %2143 = vmatpush2.msra.mxu0 0.0
    %2144 = vmatprep.subr.mxu0 0.0
    %2145 = vmatpush2.msra.mxu0 0.0
    %2146 = vmatprep.subr.mxu0 0.0
    %2147 = vmatpush2.msra.mxu0 0.0
    %2148 = vmatprep.subr.mxu0 0.0
    %2149 = vmatpush2.msra.mxu0 0.0
    %2150 = vmatprep.subr.mxu0 0.0
    %2151 = vmatpush2.msra.mxu0 0.0
    %2152 = vmatprep.mubr.f32.mxu0 0.0
    %2153 = vmatmul.mubr.f32.gmra.mxu0 %v766
    %v2154 = vpop.f32.mrf.mxu0
    %v2155 = vadd.f32 0.0, %v2154
    %v2156 = vpop.f32.mrf.mxu0
    %2157 = vdwg.mxu0
    %2158 = vmatprep.subr.mxu0 0.0
    %2159 = vmatpush1.msra.mxu0 0.0
    %2160 = vmatprep.subr.mxu0 0.0
    %2161 = vmatpush1.msra.mxu0 0.0
    %2162 = vmatprep.subr.mxu0 0.0
    %2163 = vmatpush1.msra.mxu0 0.0
    %2164 = vmatprep.subr.mxu0 0.0
    %2165 = vmatpush1.msra.mxu0 0.0
    %2166 = vmatprep.subr.mxu0 0.0
    %2167 = vmatpush1.msra.mxu0 0.0
    %2168 = vmatprep.subr.mxu0 0.0
    %2169 = vmatpush1.msra.mxu0 0.0
    %2170 = vmatprep.subr.mxu0 0.0
    %2171 = vmatpush1.msra.mxu0 0.0
    %2172 = vmatprep.subr.mxu0 0.0
    %2173 = vmatpush1.msra.mxu0 0.0
    %2174 = vmatprep.subr.mxu0 0.0
    %2175 = vmatpush1.msra.mxu0 0.0
    %2176 = vmatprep.subr.mxu0 0.0
    %2177 = vmatpush1.msra.mxu0 0.0
    %2178 = vmatprep.subr.mxu0 0.0
    %2179 = vmatpush1.msra.mxu0 0.0
    %2180 = vmatprep.subr.mxu0 0.0
    %2181 = vmatpush1.msra.mxu0 0.0
    %2182 = vmatprep.subr.mxu0 0.0
    %2183 = vmatpush1.msra.mxu0 0.0
    %2184 = vmatprep.subr.mxu0 0.0
    %2185 = vmatpush1.msra.mxu0 0.0
    %2186 = vmatprep.subr.mxu0 0.0
    %2187 = vmatpush1.msra.mxu0 %v2085
    %2188 = vmatprep.subr.mxu0 0.0
    %2189 = vmatpush1.msra.mxu0 %v2080
    %2190 = vmatprep.subr.mxu0 0.0
    %2191 = vmatpush2.msra.mxu0 0.0
    %2192 = vmatprep.subr.mxu0 0.0
    %2193 = vmatpush2.msra.mxu0 0.0
    %2194 = vmatprep.subr.mxu0 0.0
    %2195 = vmatpush2.msra.mxu0 0.0
    %2196 = vmatprep.subr.mxu0 0.0
    %2197 = vmatpush2.msra.mxu0 0.0
    %2198 = vmatprep.subr.mxu0 0.0
    %2199 = vmatpush2.msra.mxu0 0.0
    %2200 = vmatprep.subr.mxu0 0.0
    %2201 = vmatpush2.msra.mxu0 0.0
    %2202 = vmatprep.subr.mxu0 0.0
    %2203 = vmatpush2.msra.mxu0 0.0
    %2204 = vmatprep.subr.mxu0 0.0
    %2205 = vmatpush2.msra.mxu0 0.0
    %2206 = vmatprep.subr.mxu0 0.0
    %2207 = vmatpush2.msra.mxu0 0.0
    %2208 = vmatprep.subr.mxu0 0.0
    %2209 = vmatpush2.msra.mxu0 0.0
    %2210 = vmatprep.subr.mxu0 0.0
    %2211 = vmatpush2.msra.mxu0 0.0
    %2212 = vmatprep.subr.mxu0 0.0
    %2213 = vmatpush2.msra.mxu0 0.0
    %2214 = vmatprep.subr.mxu0 0.0
    %2215 = vmatpush2.msra.mxu0 0.0
    %2216 = vmatprep.subr.mxu0 0.0
    %2217 = vmatpush2.msra.mxu0 0.0
    %2218 = vmatprep.subr.mxu0 0.0
    %2219 = vmatpush2.msra.mxu0 0.0
    %2220 = vmatprep.subr.mxu0 0.0
    %2221 = vmatpush2.msra.mxu0 0.0
    %2222 = vmatprep.mubr.f32.mxu0 0.0
    %2223 = vmatmul.mubr.f32.gmra.mxu0 %v839
    %v2224 = vpop.f32.mrf.mxu0
    %v2225 = vadd.f32 0.0, %v2224
    %v2226 = vpop.f32.mrf.mxu0
    %2227 = vdwg.mxu0
    %v2228 = vld [vmem:[#allocation11 + $0x6] sm:$0x1]
    %v2229 = vld [vmem:[#allocation8 + $0x400] sm:$0xff]
    %v2230 = vld [vmem:[#allocation8 + $0x408] sm:$0xff]
    %v2231 = vld [vmem:[#allocation8 + $0x410] sm:$0xff]
    %v2232 = vld [vmem:[#allocation8 + $0x418] sm:$0xff]
    %v2233 = vld [vmem:[#allocation8 + $0x420] sm:$0xff]
    %v2234 = vld [vmem:[#allocation8 + $0x428] sm:$0xff]
    %v2235 = vld [vmem:[#allocation8 + $0x430] sm:$0xff]
    %v2236 = vld [vmem:[#allocation8 + $0x438] sm:$0xff]
    %v2237 = vld [vmem:[#allocation8 + $0x440] sm:$0xff]
    %v2238 = vld [vmem:[#allocation8 + $0x448] sm:$0xff]
    %v2239 = vld [vmem:[#allocation8 + $0x450] sm:$0xff]
    %v2240 = vld [vmem:[#allocation8 + $0x458] sm:$0xff]
    %v2241 = vld [vmem:[#allocation8 + $0x460] sm:$0xff]
    %v2242 = vld [vmem:[#allocation8 + $0x468] sm:$0xff]
    %v2243 = vld [vmem:[#allocation8 + $0x470] sm:$0xff]
    %v2244 = vld [vmem:[#allocation8 + $0x478] sm:$0xff]
    %2245 = vmatprep.subr.mxu0 0.0
    %2246 = vmatpush1.msra.mxu0 %v2244
    %2247 = vmatprep.subr.mxu0 0.0
    %2248 = vmatpush1.msra.mxu0 %v2243
    %2249 = vmatprep.subr.mxu0 0.0
    %2250 = vmatpush1.msra.mxu0 %v2242
    %2251 = vmatprep.subr.mxu0 0.0
    %2252 = vmatpush1.msra.mxu0 %v2241
    %2253 = vmatprep.subr.mxu0 0.0
    %2254 = vmatpush1.msra.mxu0 %v2240
    %2255 = vmatprep.subr.mxu0 0.0
    %2256 = vmatpush1.msra.mxu0 %v2239
    %2257 = vmatprep.subr.mxu0 0.0
    %2258 = vmatpush1.msra.mxu0 %v2238
    %2259 = vmatprep.subr.mxu0 0.0
    %2260 = vmatpush1.msra.mxu0 %v2237
    %2261 = vmatprep.subr.mxu0 0.0
    %2262 = vmatpush1.msra.mxu0 %v2236
    %2263 = vmatprep.subr.mxu0 0.0
    %2264 = vmatpush1.msra.mxu0 %v2235
    %2265 = vmatprep.subr.mxu0 0.0
    %2266 = vmatpush1.msra.mxu0 %v2234
    %2267 = vmatprep.subr.mxu0 0.0
    %2268 = vmatpush1.msra.mxu0 %v2233
    %2269 = vmatprep.subr.mxu0 0.0
    %2270 = vmatpush1.msra.mxu0 %v2232
    %2271 = vmatprep.subr.mxu0 0.0
    %2272 = vmatpush1.msra.mxu0 %v2231
    %2273 = vmatprep.subr.mxu0 0.0
    %2274 = vmatpush1.msra.mxu0 %v2230
    %2275 = vmatprep.subr.mxu0 0.0
    %2276 = vmatpush1.msra.mxu0 %v2229
    %2277 = vmatprep.subr.mxu0 0.0
    %2278 = vmatpush2.msra.mxu0 0.0
    %2279 = vmatprep.subr.mxu0 0.0
    %2280 = vmatpush2.msra.mxu0 0.0
    %2281 = vmatprep.subr.mxu0 0.0
    %2282 = vmatpush2.msra.mxu0 0.0
    %2283 = vmatprep.subr.mxu0 0.0
    %2284 = vmatpush2.msra.mxu0 0.0
    %2285 = vmatprep.subr.mxu0 0.0
    %2286 = vmatpush2.msra.mxu0 0.0
    %2287 = vmatprep.subr.mxu0 0.0
    %2288 = vmatpush2.msra.mxu0 0.0
    %2289 = vmatprep.subr.mxu0 0.0
    %2290 = vmatpush2.msra.mxu0 0.0
    %2291 = vmatprep.subr.mxu0 0.0
    %2292 = vmatpush2.msra.mxu0 0.0
    %2293 = vmatprep.subr.mxu0 0.0
    %2294 = vmatpush2.msra.mxu0 0.0
    %2295 = vmatprep.subr.mxu0 0.0
    %2296 = vmatpush2.msra.mxu0 0.0
    %2297 = vmatprep.subr.mxu0 0.0
    %2298 = vmatpush2.msra.mxu0 0.0
    %2299 = vmatprep.subr.mxu0 0.0
    %2300 = vmatpush2.msra.mxu0 0.0
    %2301 = vmatprep.subr.mxu0 0.0
    %2302 = vmatpush2.msra.mxu0 0.0
    %2303 = vmatprep.subr.mxu0 0.0
    %2304 = vmatpush2.msra.mxu0 0.0
    %2305 = vmatprep.subr.mxu0 0.0
    %2306 = vmatpush2.msra.mxu0 0.0
    %2307 = vmatprep.subr.mxu0 0.0
    %2308 = vmatpush2.msra.mxu0 0.0
    %2309 = vmatprep.mubr.f32.mxu0 0.0
    %2310 = vmatmul.mubr.f32.gmra.mxu0 %v1543
    %v2311 = vpop.f32.mrf.mxu0
    %v2312 = vadd.f32 0.0, %v2311
    %v2313 = vpop.f32.mrf.mxu0
    %2314 = vmatprep.mubr.f32.mxu0 0.0
    %2315 = vmatmul.mubr.f32.gmra.mxu0 %v1548
    %v2316 = vpop.f32.mrf.mxu0
    %v2317 = vadd.f32 0.0, %v2316
    %v2318 = vpop.f32.mrf.mxu0
    %2319 = vdwg.mxu0
    %v2320 = vlaneseq
    %v2321 = vshrl.u32 %v2320, 7
    %v2322 = vsub.s32 0, %v2321
    %v2323 = vrot.slane %v2228, %v2322
    %v2324 = vadd.f32 %v2323, %v2312
    %v2325 = vadd.f32 %v2323, %v2317
    %v2326 = vmax.f32 %v2324, 0.0
    %v2327 = vmax.f32 %v2325, 0.0
    %v2328 = vld [vmem:[#allocation10 + $0x300] sm:$0xff]
    %v2329 = vld [vmem:[#allocation10 + $0x308] sm:$0xff]
    %v2330 = vld [vmem:[#allocation10 + $0x310] sm:$0xff]
    %v2331 = vld [vmem:[#allocation10 + $0x318] sm:$0xff]
    %v2332 = vld [vmem:[#allocation10 + $0x320] sm:$0xff]
    %v2333 = vld [vmem:[#allocation10 + $0x328] sm:$0xff]
    %v2334 = vld [vmem:[#allocation10 + $0x330] sm:$0xff]
    %v2335 = vld [vmem:[#allocation10 + $0x338] sm:$0xff]
    %v2336 = vld [vmem:[#allocation10 + $0x340] sm:$0xff]
    %v2337 = vld [vmem:[#allocation10 + $0x348] sm:$0xff]
    %v2338 = vld [vmem:[#allocation10 + $0x350] sm:$0xff]
    %v2339 = vld [vmem:[#allocation10 + $0x358] sm:$0xff]
    %v2340 = vld [vmem:[#allocation10 + $0x360] sm:$0xff]
    %v2341 = vld [vmem:[#allocation10 + $0x368] sm:$0xff]
    %v2342 = vld [vmem:[#allocation10 + $0x370] sm:$0xff]
    %v2343 = vld [vmem:[#allocation10 + $0x378] sm:$0xff]
    %v2344 = vld [vmem:[#allocation13 + $0x6] ss:$0 sm:$0xff]
    %2345 = vmatprep.subr.mxu0 0.0
    %2346 = vmatpush1.xpose.msra.mxu0 %v2343
    %2347 = vmatprep.subr.mxu0 0.0
    %2348 = vmatpush1.xpose.msra.mxu0 %v2342
    %2349 = vmatprep.subr.mxu0 0.0
    %2350 = vmatpush1.xpose.msra.mxu0 %v2341
    %2351 = vmatprep.subr.mxu0 0.0
    %2352 = vmatpush1.xpose.msra.mxu0 %v2340
    %2353 = vmatprep.subr.mxu0 0.0
    %2354 = vmatpush1.xpose.msra.mxu0 %v2339
    %2355 = vmatprep.subr.mxu0 0.0
    %2356 = vmatpush1.xpose.msra.mxu0 %v2338
    %2357 = vmatprep.subr.mxu0 0.0
    %2358 = vmatpush1.xpose.msra.mxu0 %v2337
    %2359 = vmatprep.subr.mxu0 0.0
    %2360 = vmatpush1.xpose.msra.mxu0 %v2336
    %2361 = vmatprep.subr.mxu0 0.0
    %2362 = vmatpush1.xpose.msra.mxu0 %v2335
    %2363 = vmatprep.subr.mxu0 0.0
    %2364 = vmatpush1.xpose.msra.mxu0 %v2334
    %2365 = vmatprep.subr.mxu0 0.0
    %2366 = vmatpush1.xpose.msra.mxu0 %v2333
    %2367 = vmatprep.subr.mxu0 0.0
    %2368 = vmatpush1.xpose.msra.mxu0 %v2332
    %2369 = vmatprep.subr.mxu0 0.0
    %2370 = vmatpush1.xpose.msra.mxu0 %v2331
    %2371 = vmatprep.subr.mxu0 0.0
    %2372 = vmatpush1.xpose.msra.mxu0 %v2330
    %2373 = vmatprep.subr.mxu0 0.0
    %2374 = vmatpush1.xpose.msra.mxu0 %v2329
    %2375 = vmatprep.subr.mxu0 0.0
    %2376 = vmatpush1.xpose.msra.mxu0 %v2328
    %2377 = vmatprep.subr.mxu0 0.0
    %2378 = vmatpush2.xpose.msra.mxu0 0.0
    %2379 = vmatprep.subr.mxu0 0.0
    %2380 = vmatpush2.xpose.msra.mxu0 0.0
    %2381 = vmatprep.subr.mxu0 0.0
    %2382 = vmatpush2.xpose.msra.mxu0 0.0
    %2383 = vmatprep.subr.mxu0 0.0
    %2384 = vmatpush2.xpose.msra.mxu0 0.0
    %2385 = vmatprep.subr.mxu0 0.0
    %2386 = vmatpush2.xpose.msra.mxu0 0.0
    %2387 = vmatprep.subr.mxu0 0.0
    %2388 = vmatpush2.xpose.msra.mxu0 0.0
    %2389 = vmatprep.subr.mxu0 0.0
    %2390 = vmatpush2.xpose.msra.mxu0 0.0
    %2391 = vmatprep.subr.mxu0 0.0
    %2392 = vmatpush2.xpose.msra.mxu0 0.0
    %2393 = vmatprep.subr.mxu0 0.0
    %2394 = vmatpush2.xpose.msra.mxu0 0.0
    %2395 = vmatprep.subr.mxu0 0.0
    %2396 = vmatpush2.xpose.msra.mxu0 0.0
    %2397 = vmatprep.subr.mxu0 0.0
    %2398 = vmatpush2.xpose.msra.mxu0 0.0
    %2399 = vmatprep.subr.mxu0 0.0
    %2400 = vmatpush2.xpose.msra.mxu0 0.0
    %2401 = vmatprep.subr.mxu0 0.0
    %2402 = vmatpush2.xpose.msra.mxu0 0.0
    %2403 = vmatprep.subr.mxu0 0.0
    %2404 = vmatpush2.xpose.msra.mxu0 0.0
    %2405 = vmatprep.subr.mxu0 0.0
    %2406 = vmatpush2.xpose.msra.mxu0 0.0
    %2407 = vmatprep.subr.mxu0 0.0
    %2408 = vmatpush2.xpose.msra.mxu0 0.0
    %2409 = vmatprep.mubr.f32.mxu0 0.0
    %2410 = vmatmul.mubr.f32.gmra.mxu0 %v2326
    %v2411 = vpop.f32.mrf.mxu0
    %v2412 = vadd.f32 %v2344, %v2411
    %v2413 = vpop.f32.mrf.mxu0
    %2414 = vmatprep.mubr.f32.mxu0 0.0
    %2415 = vmatmul.mubr.f32.gmra.mxu0 %v2327
    %v2416 = vpop.f32.mrf.mxu0
    %v2417 = vadd.f32 %v2344, %v2416
    %v2418 = vpop.f32.mrf.mxu0
    %2419 = vdwg.mxu0
    %2420 = vmatprep.subr.mxu0 0.0
    %2421 = vmatpush1.msra.mxu0 0.0
    %2422 = vmatprep.subr.mxu0 0.0
    %2423 = vmatpush1.msra.mxu0 0.0
    %2424 = vmatprep.subr.mxu0 0.0
    %2425 = vmatpush1.msra.mxu0 0.0
    %2426 = vmatprep.subr.mxu0 0.0
    %2427 = vmatpush1.msra.mxu0 0.0
    %2428 = vmatprep.subr.mxu0 0.0
    %2429 = vmatpush1.msra.mxu0 0.0
    %2430 = vmatprep.subr.mxu0 0.0
    %2431 = vmatpush1.msra.mxu0 0.0
    %2432 = vmatprep.subr.mxu0 0.0
    %2433 = vmatpush1.msra.mxu0 0.0
    %2434 = vmatprep.subr.mxu0 0.0
    %2435 = vmatpush1.msra.mxu0 0.0
    %2436 = vmatprep.subr.mxu0 0.0
    %2437 = vmatpush1.msra.mxu0 0.0
    %2438 = vmatprep.subr.mxu0 0.0
    %2439 = vmatpush1.msra.mxu0 0.0
    %2440 = vmatprep.subr.mxu0 0.0
    %2441 = vmatpush1.msra.mxu0 0.0
    %2442 = vmatprep.subr.mxu0 0.0
    %2443 = vmatpush1.msra.mxu0 0.0
    %2444 = vmatprep.subr.mxu0 0.0
    %2445 = vmatpush1.msra.mxu0 0.0
    %2446 = vmatprep.subr.mxu0 0.0
    %2447 = vmatpush1.msra.mxu0 0.0
    %2448 = vmatprep.subr.mxu0 0.0
    %2449 = vmatpush1.msra.mxu0 0.0
    %2450 = vmatprep.subr.mxu0 0.0
    %2451 = vmatpush1.msra.mxu0 %v2412
    %2452 = vmatprep.subr.mxu0 0.0
    %2453 = vmatpush2.msra.mxu0 0.0
    %2454 = vmatprep.subr.mxu0 0.0
    %2455 = vmatpush2.msra.mxu0 0.0
    %2456 = vmatprep.subr.mxu0 0.0
    %2457 = vmatpush2.msra.mxu0 0.0
    %2458 = vmatprep.subr.mxu0 0.0
    %2459 = vmatpush2.msra.mxu0 0.0
    %2460 = vmatprep.subr.mxu0 0.0
    %2461 = vmatpush2.msra.mxu0 0.0
    %2462 = vmatprep.subr.mxu0 0.0
    %2463 = vmatpush2.msra.mxu0 0.0
    %2464 = vmatprep.subr.mxu0 0.0
    %2465 = vmatpush2.msra.mxu0 0.0
    %2466 = vmatprep.subr.mxu0 0.0
    %2467 = vmatpush2.msra.mxu0 0.0
    %2468 = vmatprep.subr.mxu0 0.0
    %2469 = vmatpush2.msra.mxu0 0.0
    %2470 = vmatprep.subr.mxu0 0.0
    %2471 = vmatpush2.msra.mxu0 0.0
    %2472 = vmatprep.subr.mxu0 0.0
    %2473 = vmatpush2.msra.mxu0 0.0
    %2474 = vmatprep.subr.mxu0 0.0
    %2475 = vmatpush2.msra.mxu0 0.0
    %2476 = vmatprep.subr.mxu0 0.0
    %2477 = vmatpush2.msra.mxu0 0.0
    %2478 = vmatprep.subr.mxu0 0.0
    %2479 = vmatpush2.msra.mxu0 0.0
    %2480 = vmatprep.subr.mxu0 0.0
    %2481 = vmatpush2.msra.mxu0 0.0
    %2482 = vmatprep.subr.mxu0 0.0
    %2483 = vmatpush2.msra.mxu0 0.0
    %2484 = vmatprep.mubr.f32.mxu0 0.0
    %2485 = vmatmul.mubr.f32.gmra.mxu0 %v1105
    %v2486 = vpop.f32.mrf.mxu0
    %v2487 = vadd.f32 0.0, %v2486
    %v2488 = vpop.f32.mrf.mxu0
    %2489 = vmatprep.mubr.f32.mxu0 0.0
    %2490 = vmatmul.mubr.f32.gmra.mxu0 %v1108
    %v2491 = vpop.f32.mrf.mxu0
    %v2492 = vadd.f32 0.0, %v2491
    %v2493 = vpop.f32.mrf.mxu0
    %2494 = vdwg.mxu0
    %2495 = vmatprep.subr.mxu0 0.0
    %2496 = vmatpush1.msra.mxu0 0.0
    %2497 = vmatprep.subr.mxu0 0.0
    %2498 = vmatpush1.msra.mxu0 0.0
    %2499 = vmatprep.subr.mxu0 0.0
    %2500 = vmatpush1.msra.mxu0 0.0
    %2501 = vmatprep.subr.mxu0 0.0
    %2502 = vmatpush1.msra.mxu0 0.0
    %2503 = vmatprep.subr.mxu0 0.0
    %2504 = vmatpush1.msra.mxu0 0.0
    %2505 = vmatprep.subr.mxu0 0.0
    %2506 = vmatpush1.msra.mxu0 0.0
    %2507 = vmatprep.subr.mxu0 0.0
    %2508 = vmatpush1.msra.mxu0 0.0
    %2509 = vmatprep.subr.mxu0 0.0
    %2510 = vmatpush1.msra.mxu0 0.0
    %2511 = vmatprep.subr.mxu0 0.0
    %2512 = vmatpush1.msra.mxu0 0.0
    %2513 = vmatprep.subr.mxu0 0.0
    %2514 = vmatpush1.msra.mxu0 0.0
    %2515 = vmatprep.subr.mxu0 0.0
    %2516 = vmatpush1.msra.mxu0 0.0
    %2517 = vmatprep.subr.mxu0 0.0
    %2518 = vmatpush1.msra.mxu0 0.0
    %2519 = vmatprep.subr.mxu0 0.0
    %2520 = vmatpush1.msra.mxu0 0.0
    %2521 = vmatprep.subr.mxu0 0.0
    %2522 = vmatpush1.msra.mxu0 0.0
    %2523 = vmatprep.subr.mxu0 0.0
    %2524 = vmatpush1.msra.mxu0 0.0
    %2525 = vmatprep.subr.mxu0 0.0
    %2526 = vmatpush1.msra.mxu0 %v2417
    %2527 = vmatprep.subr.mxu0 0.0
    %2528 = vmatpush2.msra.mxu0 0.0
    %2529 = vmatprep.subr.mxu0 0.0
    %2530 = vmatpush2.msra.mxu0 0.0
    %2531 = vmatprep.subr.mxu0 0.0
    %2532 = vmatpush2.msra.mxu0 0.0
    %2533 = vmatprep.subr.mxu0 0.0
    %2534 = vmatpush2.msra.mxu0 0.0
    %2535 = vmatprep.subr.mxu0 0.0
    %2536 = vmatpush2.msra.mxu0 0.0
    %2537 = vmatprep.subr.mxu0 0.0
    %2538 = vmatpush2.msra.mxu0 0.0
    %2539 = vmatprep.subr.mxu0 0.0
    %2540 = vmatpush2.msra.mxu0 0.0
    %2541 = vmatprep.subr.mxu0 0.0
    %2542 = vmatpush2.msra.mxu0 0.0
    %2543 = vmatprep.subr.mxu0 0.0
    %2544 = vmatpush2.msra.mxu0 0.0
    %2545 = vmatprep.subr.mxu0 0.0
    %2546 = vmatpush2.msra.mxu0 0.0
    %2547 = vmatprep.subr.mxu0 0.0
    %2548 = vmatpush2.msra.mxu0 0.0
    %2549 = vmatprep.subr.mxu0 0.0
    %2550 = vmatpush2.msra.mxu0 0.0
    %2551 = vmatprep.subr.mxu0 0.0
    %2552 = vmatpush2.msra.mxu0 0.0
    %2553 = vmatprep.subr.mxu0 0.0
    %2554 = vmatpush2.msra.mxu0 0.0
    %2555 = vmatprep.subr.mxu0 0.0
    %2556 = vmatpush2.msra.mxu0 0.0
    %2557 = vmatprep.subr.mxu0 0.0
    %2558 = vmatpush2.msra.mxu0 0.0
    %2559 = vmatprep.mubr.f32.mxu0 0.0
    %2560 = vmatmul.mubr.f32.gmra.mxu0 %v1186
    %v2561 = vpop.f32.mrf.mxu0
    %v2562 = vadd.f32 0.0, %v2561
    %v2563 = vpop.f32.mrf.mxu0
    %2564 = vmatprep.mubr.f32.mxu0 0.0
    %2565 = vmatmul.mubr.f32.gmra.mxu0 %v1189
    %v2566 = vpop.f32.mrf.mxu0
    %v2567 = vadd.f32 0.0, %v2566
    %v2568 = vpop.f32.mrf.mxu0
    %2569 = vdwg.mxu0
    %v2570 = vld [vmem:[#allocation11 + $0x7] sm:$0x1]
    %v2571 = vld [vmem:[#allocation8 + $0x480] sm:$0xff]
    %v2572 = vld [vmem:[#allocation8 + $0x488] sm:$0xff]
    %v2573 = vld [vmem:[#allocation8 + $0x490] sm:$0xff]
    %v2574 = vld [vmem:[#allocation8 + $0x498] sm:$0xff]
    %v2575 = vld [vmem:[#allocation8 + $0x4a0] sm:$0xff]
    %v2576 = vld [vmem:[#allocation8 + $0x4a8] sm:$0xff]
    %v2577 = vld [vmem:[#allocation8 + $0x4b0] sm:$0xff]
    %v2578 = vld [vmem:[#allocation8 + $0x4b8] sm:$0xff]
    %v2579 = vld [vmem:[#allocation8 + $0x4c0] sm:$0xff]
    %v2580 = vld [vmem:[#allocation8 + $0x4c8] sm:$0xff]
    %v2581 = vld [vmem:[#allocation8 + $0x4d0] sm:$0xff]
    %v2582 = vld [vmem:[#allocation8 + $0x4d8] sm:$0xff]
    %v2583 = vld [vmem:[#allocation8 + $0x4e0] sm:$0xff]
    %v2584 = vld [vmem:[#allocation8 + $0x4e8] sm:$0xff]
    %v2585 = vld [vmem:[#allocation8 + $0x4f0] sm:$0xff]
    %v2586 = vld [vmem:[#allocation8 + $0x4f8] sm:$0xff]
    %2587 = vmatprep.subr.mxu0 0.0
    %2588 = vmatpush1.msra.mxu0 %v2586
    %2589 = vmatprep.subr.mxu0 0.0
    %2590 = vmatpush1.msra.mxu0 %v2585
    %2591 = vmatprep.subr.mxu0 0.0
    %2592 = vmatpush1.msra.mxu0 %v2584
    %2593 = vmatprep.subr.mxu0 0.0
    %2594 = vmatpush1.msra.mxu0 %v2583
    %2595 = vmatprep.subr.mxu0 0.0
    %2596 = vmatpush1.msra.mxu0 %v2582
    %2597 = vmatprep.subr.mxu0 0.0
    %2598 = vmatpush1.msra.mxu0 %v2581
    %2599 = vmatprep.subr.mxu0 0.0
    %2600 = vmatpush1.msra.mxu0 %v2580
    %2601 = vmatprep.subr.mxu0 0.0
    %2602 = vmatpush1.msra.mxu0 %v2579
    %2603 = vmatprep.subr.mxu0 0.0
    %2604 = vmatpush1.msra.mxu0 %v2578
    %2605 = vmatprep.subr.mxu0 0.0
    %2606 = vmatpush1.msra.mxu0 %v2577
    %2607 = vmatprep.subr.mxu0 0.0
    %2608 = vmatpush1.msra.mxu0 %v2576
    %2609 = vmatprep.subr.mxu0 0.0
    %2610 = vmatpush1.msra.mxu0 %v2575
    %2611 = vmatprep.subr.mxu0 0.0
    %2612 = vmatpush1.msra.mxu0 %v2574
    %2613 = vmatprep.subr.mxu0 0.0
    %2614 = vmatpush1.msra.mxu0 %v2573
    %2615 = vmatprep.subr.mxu0 0.0
    %2616 = vmatpush1.msra.mxu0 %v2572
    %2617 = vmatprep.subr.mxu0 0.0
    %2618 = vmatpush1.msra.mxu0 %v2571
    %2619 = vmatprep.subr.mxu0 0.0
    %2620 = vmatpush2.msra.mxu0 0.0
    %2621 = vmatprep.subr.mxu0 0.0
    %2622 = vmatpush2.msra.mxu0 0.0
    %2623 = vmatprep.subr.mxu0 0.0
    %2624 = vmatpush2.msra.mxu0 0.0
    %2625 = vmatprep.subr.mxu0 0.0
    %2626 = vmatpush2.msra.mxu0 0.0
    %2627 = vmatprep.subr.mxu0 0.0
    %2628 = vmatpush2.msra.mxu0 0.0
    %2629 = vmatprep.subr.mxu0 0.0
    %2630 = vmatpush2.msra.mxu0 0.0
    %2631 = vmatprep.subr.mxu0 0.0
    %2632 = vmatpush2.msra.mxu0 0.0
    %2633 = vmatprep.subr.mxu0 0.0
    %2634 = vmatpush2.msra.mxu0 0.0
    %2635 = vmatprep.subr.mxu0 0.0
    %2636 = vmatpush2.msra.mxu0 0.0
    %2637 = vmatprep.subr.mxu0 0.0
    %2638 = vmatpush2.msra.mxu0 0.0
    %2639 = vmatprep.subr.mxu0 0.0
    %2640 = vmatpush2.msra.mxu0 0.0
    %2641 = vmatprep.subr.mxu0 0.0
    %2642 = vmatpush2.msra.mxu0 0.0
    %2643 = vmatprep.subr.mxu0 0.0
    %2644 = vmatpush2.msra.mxu0 0.0
    %2645 = vmatprep.subr.mxu0 0.0
    %2646 = vmatpush2.msra.mxu0 0.0
    %2647 = vmatprep.subr.mxu0 0.0
    %2648 = vmatpush2.msra.mxu0 0.0
    %2649 = vmatprep.subr.mxu0 0.0
    %2650 = vmatpush2.msra.mxu0 0.0
    %2651 = vmatprep.mubr.f32.mxu0 0.0
    %2652 = vmatmul.mubr.f32.gmra.mxu0 %v1543
    %v2653 = vpop.f32.mrf.mxu0
    %v2654 = vadd.f32 0.0, %v2653
    %v2655 = vpop.f32.mrf.mxu0
    %2656 = vmatprep.mubr.f32.mxu0 0.0
    %2657 = vmatmul.mubr.f32.gmra.mxu0 %v1548
    %v2658 = vpop.f32.mrf.mxu0
    %v2659 = vadd.f32 0.0, %v2658
    %v2660 = vpop.f32.mrf.mxu0
    %2661 = vdwg.mxu0
    %v2662 = vlaneseq
    %v2663 = vshrl.u32 %v2662, 7
    %v2664 = vsub.s32 0, %v2663
    %v2665 = vrot.slane %v2570, %v2664
    %v2666 = vadd.f32 %v2665, %v2654
    %v2667 = vadd.f32 %v2665, %v2659
    %v2668 = vld [vmem:[#allocation8 + $0x500] sm:$0xff]
    %v2669 = vld [vmem:[#allocation8 + $0x508] sm:$0xff]
    %v2670 = vld [vmem:[#allocation8 + $0x510] sm:$0xff]
    %v2671 = vld [vmem:[#allocation8 + $0x518] sm:$0xff]
    %v2672 = vld [vmem:[#allocation8 + $0x520] sm:$0xff]
    %v2673 = vld [vmem:[#allocation8 + $0x528] sm:$0xff]
    %v2674 = vld [vmem:[#allocation8 + $0x530] sm:$0xff]
    %v2675 = vld [vmem:[#allocation8 + $0x538] sm:$0xff]
    %v2676 = vld [vmem:[#allocation8 + $0x540] sm:$0xff]
    %v2677 = vld [vmem:[#allocation8 + $0x548] sm:$0xff]
    %v2678 = vld [vmem:[#allocation8 + $0x550] sm:$0xff]
    %v2679 = vld [vmem:[#allocation8 + $0x558] sm:$0xff]
    %v2680 = vld [vmem:[#allocation8 + $0x560] sm:$0xff]
    %v2681 = vld [vmem:[#allocation8 + $0x568] sm:$0xff]
    %v2682 = vld [vmem:[#allocation8 + $0x570] sm:$0xff]
    %v2683 = vld [vmem:[#allocation8 + $0x578] sm:$0xff]
    %2684 = vmatprep.subr.mxu0 0.0
    %2685 = vmatpush1.msra.mxu0 %v2683
    %2686 = vmatprep.subr.mxu0 0.0
    %2687 = vmatpush1.msra.mxu0 %v2682
    %2688 = vmatprep.subr.mxu0 0.0
    %2689 = vmatpush1.msra.mxu0 %v2681
    %2690 = vmatprep.subr.mxu0 0.0
    %2691 = vmatpush1.msra.mxu0 %v2680
    %2692 = vmatprep.subr.mxu0 0.0
    %2693 = vmatpush1.msra.mxu0 %v2679
    %2694 = vmatprep.subr.mxu0 0.0
    %2695 = vmatpush1.msra.mxu0 %v2678
    %2696 = vmatprep.subr.mxu0 0.0
    %2697 = vmatpush1.msra.mxu0 %v2677
    %2698 = vmatprep.subr.mxu0 0.0
    %2699 = vmatpush1.msra.mxu0 %v2676
    %2700 = vmatprep.subr.mxu0 0.0
    %2701 = vmatpush1.msra.mxu0 %v2675
    %2702 = vmatprep.subr.mxu0 0.0
    %2703 = vmatpush1.msra.mxu0 %v2674
    %2704 = vmatprep.subr.mxu0 0.0
    %2705 = vmatpush1.msra.mxu0 %v2673
    %2706 = vmatprep.subr.mxu0 0.0
    %2707 = vmatpush1.msra.mxu0 %v2672
    %2708 = vmatprep.subr.mxu0 0.0
    %2709 = vmatpush1.msra.mxu0 %v2671
    %2710 = vmatprep.subr.mxu0 0.0
    %2711 = vmatpush1.msra.mxu0 %v2670
    %2712 = vmatprep.subr.mxu0 0.0
    %2713 = vmatpush1.msra.mxu0 %v2669
    %2714 = vmatprep.subr.mxu0 0.0
    %2715 = vmatpush1.msra.mxu0 %v2668
    %2716 = vmatprep.subr.mxu0 0.0
    %2717 = vmatpush2.msra.mxu0 0.0
    %2718 = vmatprep.subr.mxu0 0.0
    %2719 = vmatpush2.msra.mxu0 0.0
    %2720 = vmatprep.subr.mxu0 0.0
    %2721 = vmatpush2.msra.mxu0 0.0
    %2722 = vmatprep.subr.mxu0 0.0
    %2723 = vmatpush2.msra.mxu0 0.0
    %2724 = vmatprep.subr.mxu0 0.0
    %2725 = vmatpush2.msra.mxu0 0.0
    %2726 = vmatprep.subr.mxu0 0.0
    %2727 = vmatpush2.msra.mxu0 0.0
    %2728 = vmatprep.subr.mxu0 0.0
    %2729 = vmatpush2.msra.mxu0 0.0
    %2730 = vmatprep.subr.mxu0 0.0
    %2731 = vmatpush2.msra.mxu0 0.0
    %2732 = vmatprep.subr.mxu0 0.0
    %2733 = vmatpush2.msra.mxu0 0.0
    %2734 = vmatprep.subr.mxu0 0.0
    %2735 = vmatpush2.msra.mxu0 0.0
    %2736 = vmatprep.subr.mxu0 0.0
    %2737 = vmatpush2.msra.mxu0 0.0
    %2738 = vmatprep.subr.mxu0 0.0
    %2739 = vmatpush2.msra.mxu0 0.0
    %2740 = vmatprep.subr.mxu0 0.0
    %2741 = vmatpush2.msra.mxu0 0.0
    %2742 = vmatprep.subr.mxu0 0.0
    %2743 = vmatpush2.msra.mxu0 0.0
    %2744 = vmatprep.subr.mxu0 0.0
    %2745 = vmatpush2.msra.mxu0 0.0
    %2746 = vmatprep.subr.mxu0 0.0
    %2747 = vmatpush2.msra.mxu0 0.0
    %2748 = vmatprep.mubr.f32.mxu0 0.0
    %2749 = vmatmul.mubr.f32.gmra.mxu0 %v2155
    %v2750 = vpop.f32.mrf.mxu0
    %v2751 = vadd.f32 0.0, %v2750
    %v2752 = vpop.f32.mrf.mxu0
    %2753 = vmatprep.mubr.f32.mxu0 0.0
    %2754 = vmatmul.mubr.f32.gmra.mxu0 %v2225
    %v2755 = vpop.f32.mrf.mxu0
    %v2756 = vadd.f32 0.0, %v2755
    %v2757 = vpop.f32.mrf.mxu0
    %2758 = vdwg.mxu0
    %v2759 = vadd.f32 %v2666, %v2751
    %v2760 = vadd.f32 %v2667, %v2756
    %v2761 = vmax.f32 %v2759, 0.0
    %v2762 = vmax.f32 %v2760, 0.0
    %v2763 = vld [vmem:[#allocation10 + $0x380] sm:$0xff]
    %v2764 = vld [vmem:[#allocation10 + $0x388] sm:$0xff]
    %v2765 = vld [vmem:[#allocation10 + $0x390] sm:$0xff]
    %v2766 = vld [vmem:[#allocation10 + $0x398] sm:$0xff]
    %v2767 = vld [vmem:[#allocation10 + $0x3a0] sm:$0xff]
    %v2768 = vld [vmem:[#allocation10 + $0x3a8] sm:$0xff]
    %v2769 = vld [vmem:[#allocation10 + $0x3b0] sm:$0xff]
    %v2770 = vld [vmem:[#allocation10 + $0x3b8] sm:$0xff]
    %v2771 = vld [vmem:[#allocation10 + $0x3c0] sm:$0xff]
    %v2772 = vld [vmem:[#allocation10 + $0x3c8] sm:$0xff]
    %v2773 = vld [vmem:[#allocation10 + $0x3d0] sm:$0xff]
    %v2774 = vld [vmem:[#allocation10 + $0x3d8] sm:$0xff]
    %v2775 = vld [vmem:[#allocation10 + $0x3e0] sm:$0xff]
    %v2776 = vld [vmem:[#allocation10 + $0x3e8] sm:$0xff]
    %v2777 = vld [vmem:[#allocation10 + $0x3f0] sm:$0xff]
    %v2778 = vld [vmem:[#allocation10 + $0x3f8] sm:$0xff]
    %v2779 = vld [vmem:[#allocation13 + $0x7] ss:$0 sm:$0xff]
    %2780 = vmatprep.subr.mxu0 0.0
    %2781 = vmatpush1.xpose.msra.mxu0 %v2778
    %2782 = vmatprep.subr.mxu0 0.0
    %2783 = vmatpush1.xpose.msra.mxu0 %v2777
    %2784 = vmatprep.subr.mxu0 0.0
    %2785 = vmatpush1.xpose.msra.mxu0 %v2776
    %2786 = vmatprep.subr.mxu0 0.0
    %2787 = vmatpush1.xpose.msra.mxu0 %v2775
    %2788 = vmatprep.subr.mxu0 0.0
    %2789 = vmatpush1.xpose.msra.mxu0 %v2774
    %2790 = vmatprep.subr.mxu0 0.0
    %2791 = vmatpush1.xpose.msra.mxu0 %v2773
    %2792 = vmatprep.subr.mxu0 0.0
    %2793 = vmatpush1.xpose.msra.mxu0 %v2772
    %2794 = vmatprep.subr.mxu0 0.0
    %2795 = vmatpush1.xpose.msra.mxu0 %v2771
    %2796 = vmatprep.subr.mxu0 0.0
    %2797 = vmatpush1.xpose.msra.mxu0 %v2770
    %2798 = vmatprep.subr.mxu0 0.0
    %2799 = vmatpush1.xpose.msra.mxu0 %v2769
    %2800 = vmatprep.subr.mxu0 0.0
    %2801 = vmatpush1.xpose.msra.mxu0 %v2768
    %2802 = vmatprep.subr.mxu0 0.0
    %2803 = vmatpush1.xpose.msra.mxu0 %v2767
    %2804 = vmatprep.subr.mxu0 0.0
    %2805 = vmatpush1.xpose.msra.mxu0 %v2766
    %2806 = vmatprep.subr.mxu0 0.0
    %2807 = vmatpush1.xpose.msra.mxu0 %v2765
    %2808 = vmatprep.subr.mxu0 0.0
    %2809 = vmatpush1.xpose.msra.mxu0 %v2764
    %2810 = vmatprep.subr.mxu0 0.0
    %2811 = vmatpush1.xpose.msra.mxu0 %v2763
    %2812 = vmatprep.subr.mxu0 0.0
    %2813 = vmatpush2.xpose.msra.mxu0 0.0
    %2814 = vmatprep.subr.mxu0 0.0
    %2815 = vmatpush2.xpose.msra.mxu0 0.0
    %2816 = vmatprep.subr.mxu0 0.0
    %2817 = vmatpush2.xpose.msra.mxu0 0.0
    %2818 = vmatprep.subr.mxu0 0.0
    %2819 = vmatpush2.xpose.msra.mxu0 0.0
    %2820 = vmatprep.subr.mxu0 0.0
    %2821 = vmatpush2.xpose.msra.mxu0 0.0
    %2822 = vmatprep.subr.mxu0 0.0
    %2823 = vmatpush2.xpose.msra.mxu0 0.0
    %2824 = vmatprep.subr.mxu0 0.0
    %2825 = vmatpush2.xpose.msra.mxu0 0.0
    %2826 = vmatprep.subr.mxu0 0.0
    %2827 = vmatpush2.xpose.msra.mxu0 0.0
    %2828 = vmatprep.subr.mxu0 0.0
    %2829 = vmatpush2.xpose.msra.mxu0 0.0
    %2830 = vmatprep.subr.mxu0 0.0
    %2831 = vmatpush2.xpose.msra.mxu0 0.0
    %2832 = vmatprep.subr.mxu0 0.0
    %2833 = vmatpush2.xpose.msra.mxu0 0.0
    %2834 = vmatprep.subr.mxu0 0.0
    %2835 = vmatpush2.xpose.msra.mxu0 0.0
    %2836 = vmatprep.subr.mxu0 0.0
    %2837 = vmatpush2.xpose.msra.mxu0 0.0
    %2838 = vmatprep.subr.mxu0 0.0
    %2839 = vmatpush2.xpose.msra.mxu0 0.0
    %2840 = vmatprep.subr.mxu0 0.0
    %2841 = vmatpush2.xpose.msra.mxu0 0.0
    %2842 = vmatprep.subr.mxu0 0.0
    %2843 = vmatpush2.xpose.msra.mxu0 0.0
    %2844 = vmatprep.mubr.f32.mxu0 0.0
    %2845 = vmatmul.mubr.f32.gmra.mxu0 %v2761
    %v2846 = vpop.f32.mrf.mxu0
    %v2847 = vadd.f32 %v2779, %v2846
    %v2848 = vpop.f32.mrf.mxu0
    %2849 = vmatprep.mubr.f32.mxu0 0.0
    %2850 = vmatmul.mubr.f32.gmra.mxu0 %v2762
    %v2851 = vpop.f32.mrf.mxu0
    %v2852 = vadd.f32 %v2779, %v2851
    %v2853 = vpop.f32.mrf.mxu0
    %2854 = vdwg.mxu0
    %v2855 = vld [vmem:[#allocation11 + $0x9] sm:$0x1]
    %v2856 = vld [vmem:[#allocation8 + $0x600] sm:$0xff]
    %v2857 = vld [vmem:[#allocation8 + $0x608] sm:$0xff]
    %v2858 = vld [vmem:[#allocation8 + $0x610] sm:$0xff]
    %v2859 = vld [vmem:[#allocation8 + $0x618] sm:$0xff]
    %v2860 = vld [vmem:[#allocation8 + $0x620] sm:$0xff]
    %v2861 = vld [vmem:[#allocation8 + $0x628] sm:$0xff]
    %v2862 = vld [vmem:[#allocation8 + $0x630] sm:$0xff]
    %v2863 = vld [vmem:[#allocation8 + $0x638] sm:$0xff]
    %v2864 = vld [vmem:[#allocation8 + $0x640] sm:$0xff]
    %v2865 = vld [vmem:[#allocation8 + $0x648] sm:$0xff]
    %v2866 = vld [vmem:[#allocation8 + $0x650] sm:$0xff]
    %v2867 = vld [vmem:[#allocation8 + $0x658] sm:$0xff]
    %v2868 = vld [vmem:[#allocation8 + $0x660] sm:$0xff]
    %v2869 = vld [vmem:[#allocation8 + $0x668] sm:$0xff]
    %v2870 = vld [vmem:[#allocation8 + $0x670] sm:$0xff]
    %v2871 = vld [vmem:[#allocation8 + $0x678] sm:$0xff]
    %2872 = vmatprep.subr.mxu0 0.0
    %2873 = vmatpush1.msra.mxu0 %v2871
    %2874 = vmatprep.subr.mxu0 0.0
    %2875 = vmatpush1.msra.mxu0 %v2870
    %2876 = vmatprep.subr.mxu0 0.0
    %2877 = vmatpush1.msra.mxu0 %v2869
    %2878 = vmatprep.subr.mxu0 0.0
    %2879 = vmatpush1.msra.mxu0 %v2868
    %2880 = vmatprep.subr.mxu0 0.0
    %2881 = vmatpush1.msra.mxu0 %v2867
    %2882 = vmatprep.subr.mxu0 0.0
    %2883 = vmatpush1.msra.mxu0 %v2866
    %2884 = vmatprep.subr.mxu0 0.0
    %2885 = vmatpush1.msra.mxu0 %v2865
    %2886 = vmatprep.subr.mxu0 0.0
    %2887 = vmatpush1.msra.mxu0 %v2864
    %2888 = vmatprep.subr.mxu0 0.0
    %2889 = vmatpush1.msra.mxu0 %v2863
    %2890 = vmatprep.subr.mxu0 0.0
    %2891 = vmatpush1.msra.mxu0 %v2862
    %2892 = vmatprep.subr.mxu0 0.0
    %2893 = vmatpush1.msra.mxu0 %v2861
    %2894 = vmatprep.subr.mxu0 0.0
    %2895 = vmatpush1.msra.mxu0 %v2860
    %2896 = vmatprep.subr.mxu0 0.0
    %2897 = vmatpush1.msra.mxu0 %v2859
    %2898 = vmatprep.subr.mxu0 0.0
    %2899 = vmatpush1.msra.mxu0 %v2858
    %2900 = vmatprep.subr.mxu0 0.0
    %2901 = vmatpush1.msra.mxu0 %v2857
    %2902 = vmatprep.subr.mxu0 0.0
    %2903 = vmatpush1.msra.mxu0 %v2856
    %2904 = vmatprep.subr.mxu0 0.0
    %2905 = vmatpush2.msra.mxu0 0.0
    %2906 = vmatprep.subr.mxu0 0.0
    %2907 = vmatpush2.msra.mxu0 0.0
    %2908 = vmatprep.subr.mxu0 0.0
    %2909 = vmatpush2.msra.mxu0 0.0
    %2910 = vmatprep.subr.mxu0 0.0
    %2911 = vmatpush2.msra.mxu0 0.0
    %2912 = vmatprep.subr.mxu0 0.0
    %2913 = vmatpush2.msra.mxu0 0.0
    %2914 = vmatprep.subr.mxu0 0.0
    %2915 = vmatpush2.msra.mxu0 0.0
    %2916 = vmatprep.subr.mxu0 0.0
    %2917 = vmatpush2.msra.mxu0 0.0
    %2918 = vmatprep.subr.mxu0 0.0
    %2919 = vmatpush2.msra.mxu0 0.0
    %2920 = vmatprep.subr.mxu0 0.0
    %2921 = vmatpush2.msra.mxu0 0.0
    %2922 = vmatprep.subr.mxu0 0.0
    %2923 = vmatpush2.msra.mxu0 0.0
    %2924 = vmatprep.subr.mxu0 0.0
    %2925 = vmatpush2.msra.mxu0 0.0
    %2926 = vmatprep.subr.mxu0 0.0
    %2927 = vmatpush2.msra.mxu0 0.0
    %2928 = vmatprep.subr.mxu0 0.0
    %2929 = vmatpush2.msra.mxu0 0.0
    %2930 = vmatprep.subr.mxu0 0.0
    %2931 = vmatpush2.msra.mxu0 0.0
    %2932 = vmatprep.subr.mxu0 0.0
    %2933 = vmatpush2.msra.mxu0 0.0
    %2934 = vmatprep.subr.mxu0 0.0
    %2935 = vmatpush2.msra.mxu0 0.0
    %2936 = vmatprep.mubr.f32.mxu0 0.0
    %2937 = vmatmul.mubr.f32.gmra.mxu0 %v1854
    %v2938 = vpop.f32.mrf.mxu0
    %v2939 = vadd.f32 0.0, %v2938
    %v2940 = vpop.f32.mrf.mxu0
    %2941 = vmatprep.mubr.f32.mxu0 0.0
    %2942 = vmatmul.mubr.f32.gmra.mxu0 %v1859
    %v2943 = vpop.f32.mrf.mxu0
    %v2944 = vadd.f32 0.0, %v2943
    %v2945 = vpop.f32.mrf.mxu0
    %2946 = vmatprep.mubr.f32.mxu0 0.0
    %2947 = vmatmul.mubr.f32.gmra.mxu0 %v1864
    %v2948 = vpop.f32.mrf.mxu0
    %v2949 = vadd.f32 0.0, %v2948
    %v2950 = vpop.f32.mrf.mxu0
    %2951 = vmatprep.mubr.f32.mxu0 0.0
    %2952 = vmatmul.mubr.f32.gmra.mxu0 %v1869
    %v2953 = vpop.f32.mrf.mxu0
    %v2954 = vadd.f32 0.0, %v2953
    %v2955 = vpop.f32.mrf.mxu0
    %2956 = vdwg.mxu0
    %v2957 = vlaneseq
    %v2958 = vshrl.u32 %v2957, 7
    %v2959 = vsub.s32 0, %v2958
    %v2960 = vrot.slane %v2855, %v2959
    %v2961 = vadd.f32 %v2960, %v2939
    %v2962 = vadd.f32 %v2960, %v2944
    %v2963 = vadd.f32 %v2960, %v2949
    %v2964 = vadd.f32 %v2960, %v2954
    %v2965 = vld [vmem:[#allocation8 + $0x680] sm:$0xff]
    %v2966 = vld [vmem:[#allocation8 + $0x688] sm:$0xff]
    %v2967 = vld [vmem:[#allocation8 + $0x690] sm:$0xff]
    %v2968 = vld [vmem:[#allocation8 + $0x698] sm:$0xff]
    %v2969 = vld [vmem:[#allocation8 + $0x6a0] sm:$0xff]
    %v2970 = vld [vmem:[#allocation8 + $0x6a8] sm:$0xff]
    %v2971 = vld [vmem:[#allocation8 + $0x6b0] sm:$0xff]
    %v2972 = vld [vmem:[#allocation8 + $0x6b8] sm:$0xff]
    %v2973 = vld [vmem:[#allocation8 + $0x6c0] sm:$0xff]
    %v2974 = vld [vmem:[#allocation8 + $0x6c8] sm:$0xff]
    %v2975 = vld [vmem:[#allocation8 + $0x6d0] sm:$0xff]
    %v2976 = vld [vmem:[#allocation8 + $0x6d8] sm:$0xff]
    %v2977 = vld [vmem:[#allocation8 + $0x6e0] sm:$0xff]
    %v2978 = vld [vmem:[#allocation8 + $0x6e8] sm:$0xff]
    %v2979 = vld [vmem:[#allocation8 + $0x6f0] sm:$0xff]
    %v2980 = vld [vmem:[#allocation8 + $0x6f8] sm:$0xff]
    %2981 = vmatprep.subr.mxu0 0.0
    %2982 = vmatpush1.msra.mxu0 %v2980
    %2983 = vmatprep.subr.mxu0 0.0
    %2984 = vmatpush1.msra.mxu0 %v2979
    %2985 = vmatprep.subr.mxu0 0.0
    %2986 = vmatpush1.msra.mxu0 %v2978
    %2987 = vmatprep.subr.mxu0 0.0
    %2988 = vmatpush1.msra.mxu0 %v2977
    %2989 = vmatprep.subr.mxu0 0.0
    %2990 = vmatpush1.msra.mxu0 %v2976
    %2991 = vmatprep.subr.mxu0 0.0
    %2992 = vmatpush1.msra.mxu0 %v2975
    %2993 = vmatprep.subr.mxu0 0.0
    %2994 = vmatpush1.msra.mxu0 %v2974
    %2995 = vmatprep.subr.mxu0 0.0
    %2996 = vmatpush1.msra.mxu0 %v2973
    %2997 = vmatprep.subr.mxu0 0.0
    %2998 = vmatpush1.msra.mxu0 %v2972
    %2999 = vmatprep.subr.mxu0 0.0
    %3000 = vmatpush1.msra.mxu0 %v2971
    %3001 = vmatprep.subr.mxu0 0.0
    %3002 = vmatpush1.msra.mxu0 %v2970
    %3003 = vmatprep.subr.mxu0 0.0
    %3004 = vmatpush1.msra.mxu0 %v2969
    %3005 = vmatprep.subr.mxu0 0.0
    %3006 = vmatpush1.msra.mxu0 %v2968
    %3007 = vmatprep.subr.mxu0 0.0
    %3008 = vmatpush1.msra.mxu0 %v2967
    %3009 = vmatprep.subr.mxu0 0.0
    %3010 = vmatpush1.msra.mxu0 %v2966
    %3011 = vmatprep.subr.mxu0 0.0
    %3012 = vmatpush1.msra.mxu0 %v2965
    %3013 = vmatprep.subr.mxu0 0.0
    %3014 = vmatpush2.msra.mxu0 0.0
    %3015 = vmatprep.subr.mxu0 0.0
    %3016 = vmatpush2.msra.mxu0 0.0
    %3017 = vmatprep.subr.mxu0 0.0
    %3018 = vmatpush2.msra.mxu0 0.0
    %3019 = vmatprep.subr.mxu0 0.0
    %3020 = vmatpush2.msra.mxu0 0.0
    %3021 = vmatprep.subr.mxu0 0.0
    %3022 = vmatpush2.msra.mxu0 0.0
    %3023 = vmatprep.subr.mxu0 0.0
    %3024 = vmatpush2.msra.mxu0 0.0
    %3025 = vmatprep.subr.mxu0 0.0
    %3026 = vmatpush2.msra.mxu0 0.0
    %3027 = vmatprep.subr.mxu0 0.0
    %3028 = vmatpush2.msra.mxu0 0.0
    %3029 = vmatprep.subr.mxu0 0.0
    %3030 = vmatpush2.msra.mxu0 0.0
    %3031 = vmatprep.subr.mxu0 0.0
    %3032 = vmatpush2.msra.mxu0 0.0
    %3033 = vmatprep.subr.mxu0 0.0
    %3034 = vmatpush2.msra.mxu0 0.0
    %3035 = vmatprep.subr.mxu0 0.0
    %3036 = vmatpush2.msra.mxu0 0.0
    %3037 = vmatprep.subr.mxu0 0.0
    %3038 = vmatpush2.msra.mxu0 0.0
    %3039 = vmatprep.subr.mxu0 0.0
    %3040 = vmatpush2.msra.mxu0 0.0
    %3041 = vmatprep.subr.mxu0 0.0
    %3042 = vmatpush2.msra.mxu0 0.0
    %3043 = vmatprep.subr.mxu0 0.0
    %3044 = vmatpush2.msra.mxu0 0.0
    %3045 = vmatprep.mubr.f32.mxu0 0.0
    %3046 = vmatmul.mubr.f32.gmra.mxu0 %v2487
    %v3047 = vpop.f32.mrf.mxu0
    %v3048 = vadd.f32 0.0, %v3047
    %v3049 = vpop.f32.mrf.mxu0
    %3050 = vmatprep.mubr.f32.mxu0 0.0
    %3051 = vmatmul.mubr.f32.gmra.mxu0 %v2492
    %v3052 = vpop.f32.mrf.mxu0
    %v3053 = vadd.f32 0.0, %v3052
    %v3054 = vpop.f32.mrf.mxu0
    %3055 = vmatprep.mubr.f32.mxu0 0.0
    %3056 = vmatmul.mubr.f32.gmra.mxu0 %v2562
    %v3057 = vpop.f32.mrf.mxu0
    %v3058 = vadd.f32 0.0, %v3057
    %v3059 = vpop.f32.mrf.mxu0
    %3060 = vmatprep.mubr.f32.mxu0 0.0
    %3061 = vmatmul.mubr.f32.gmra.mxu0 %v2567
    %v3062 = vpop.f32.mrf.mxu0
    %v3063 = vadd.f32 0.0, %v3062
    %v3064 = vpop.f32.mrf.mxu0
    %3065 = vdwg.mxu0
    %v3066 = vadd.f32 %v2961, %v3048
    %v3067 = vadd.f32 %v2962, %v3053
    %v3068 = vadd.f32 %v2963, %v3058
    %v3069 = vadd.f32 %v2964, %v3063
    %v3070 = vmax.f32 %v3066, 0.0
    %v3071 = vmax.f32 %v3067, 0.0
    %v3072 = vmax.f32 %v3068, 0.0
    %v3073 = vmax.f32 %v3069, 0.0
    %v3074 = vld [vmem:[#allocation10 + $0x480] sm:$0xff]
    %v3075 = vld [vmem:[#allocation10 + $0x488] sm:$0xff]
    %v3076 = vld [vmem:[#allocation10 + $0x490] sm:$0xff]
    %v3077 = vld [vmem:[#allocation10 + $0x498] sm:$0xff]
    %v3078 = vld [vmem:[#allocation10 + $0x4a0] sm:$0xff]
    %v3079 = vld [vmem:[#allocation10 + $0x4a8] sm:$0xff]
    %v3080 = vld [vmem:[#allocation10 + $0x4b0] sm:$0xff]
    %v3081 = vld [vmem:[#allocation10 + $0x4b8] sm:$0xff]
    %v3082 = vld [vmem:[#allocation10 + $0x4c0] sm:$0xff]
    %v3083 = vld [vmem:[#allocation10 + $0x4c8] sm:$0xff]
    %v3084 = vld [vmem:[#allocation10 + $0x4d0] sm:$0xff]
    %v3085 = vld [vmem:[#allocation10 + $0x4d8] sm:$0xff]
    %v3086 = vld [vmem:[#allocation10 + $0x4e0] sm:$0xff]
    %v3087 = vld [vmem:[#allocation10 + $0x4e8] sm:$0xff]
    %v3088 = vld [vmem:[#allocation10 + $0x4f0] sm:$0xff]
    %v3089 = vld [vmem:[#allocation10 + $0x4f8] sm:$0xff]
    %v3090 = vld [vmem:[#allocation13 + $0x11] ss:$0 sm:$0xff]
    %3091 = vmatprep.subr.mxu0 0.0
    %3092 = vmatpush1.xpose.msra.mxu0 %v3089
    %3093 = vmatprep.subr.mxu0 0.0
    %3094 = vmatpush1.xpose.msra.mxu0 %v3088
    %3095 = vmatprep.subr.mxu0 0.0
    %3096 = vmatpush1.xpose.msra.mxu0 %v3087
    %3097 = vmatprep.subr.mxu0 0.0
    %3098 = vmatpush1.xpose.msra.mxu0 %v3086
    %3099 = vmatprep.subr.mxu0 0.0
    %3100 = vmatpush1.xpose.msra.mxu0 %v3085
    %3101 = vmatprep.subr.mxu0 0.0
    %3102 = vmatpush1.xpose.msra.mxu0 %v3084
    %3103 = vmatprep.subr.mxu0 0.0
    %3104 = vmatpush1.xpose.msra.mxu0 %v3083
    %3105 = vmatprep.subr.mxu0 0.0
    %3106 = vmatpush1.xpose.msra.mxu0 %v3082
    %3107 = vmatprep.subr.mxu0 0.0
    %3108 = vmatpush1.xpose.msra.mxu0 %v3081
    %3109 = vmatprep.subr.mxu0 0.0
    %3110 = vmatpush1.xpose.msra.mxu0 %v3080
    %3111 = vmatprep.subr.mxu0 0.0
    %3112 = vmatpush1.xpose.msra.mxu0 %v3079
    %3113 = vmatprep.subr.mxu0 0.0
    %3114 = vmatpush1.xpose.msra.mxu0 %v3078
    %3115 = vmatprep.subr.mxu0 0.0
    %3116 = vmatpush1.xpose.msra.mxu0 %v3077
    %3117 = vmatprep.subr.mxu0 0.0
    %3118 = vmatpush1.xpose.msra.mxu0 %v3076
    %3119 = vmatprep.subr.mxu0 0.0
    %3120 = vmatpush1.xpose.msra.mxu0 %v3075
    %3121 = vmatprep.subr.mxu0 0.0
    %3122 = vmatpush1.xpose.msra.mxu0 %v3074
    %3123 = vmatprep.subr.mxu0 0.0
    %3124 = vmatpush2.xpose.msra.mxu0 0.0
    %3125 = vmatprep.subr.mxu0 0.0
    %3126 = vmatpush2.xpose.msra.mxu0 0.0
    %3127 = vmatprep.subr.mxu0 0.0
    %3128 = vmatpush2.xpose.msra.mxu0 0.0
    %3129 = vmatprep.subr.mxu0 0.0
    %3130 = vmatpush2.xpose.msra.mxu0 0.0
    %3131 = vmatprep.subr.mxu0 0.0
    %3132 = vmatpush2.xpose.msra.mxu0 0.0
    %3133 = vmatprep.subr.mxu0 0.0
    %3134 = vmatpush2.xpose.msra.mxu0 0.0
    %3135 = vmatprep.subr.mxu0 0.0
    %3136 = vmatpush2.xpose.msra.mxu0 0.0
    %3137 = vmatprep.subr.mxu0 0.0
    %3138 = vmatpush2.xpose.msra.mxu0 0.0
    %3139 = vmatprep.subr.mxu0 0.0
    %3140 = vmatpush2.xpose.msra.mxu0 0.0
    %3141 = vmatprep.subr.mxu0 0.0
    %3142 = vmatpush2.xpose.msra.mxu0 0.0
    %3143 = vmatprep.subr.mxu0 0.0
    %3144 = vmatpush2.xpose.msra.mxu0 0.0
    %3145 = vmatprep.subr.mxu0 0.0
    %3146 = vmatpush2.xpose.msra.mxu0 0.0
    %3147 = vmatprep.subr.mxu0 0.0
    %3148 = vmatpush2.xpose.msra.mxu0 0.0
    %3149 = vmatprep.subr.mxu0 0.0
    %3150 = vmatpush2.xpose.msra.mxu0 0.0
    %3151 = vmatprep.subr.mxu0 0.0
    %3152 = vmatpush2.xpose.msra.mxu0 0.0
    %3153 = vmatprep.subr.mxu0 0.0
    %3154 = vmatpush2.xpose.msra.mxu0 0.0
    %3155 = vmatprep.mubr.f32.mxu0 0.0
    %3156 = vmatmul.mubr.f32.gmra.mxu0 %v3070
    %v3157 = vpop.f32.mrf.mxu0
    %v3158 = vadd.f32 %v3090, %v3157
    %v3159 = vpop.f32.mrf.mxu0
    %3160 = vmatprep.mubr.f32.mxu0 0.0
    %3161 = vmatmul.mubr.f32.gmra.mxu0 %v3071
    %v3162 = vpop.f32.mrf.mxu0
    %v3163 = vadd.f32 %v3090, %v3162
    %v3164 = vpop.f32.mrf.mxu0
    %3165 = vmatprep.mubr.f32.mxu0 0.0
    %3166 = vmatmul.mubr.f32.gmra.mxu0 %v3072
    %v3167 = vpop.f32.mrf.mxu0
    %v3168 = vadd.f32 %v3090, %v3167
    %v3169 = vpop.f32.mrf.mxu0
    %3170 = vmatprep.mubr.f32.mxu0 0.0
    %3171 = vmatmul.mubr.f32.gmra.mxu0 %v3073
    %v3172 = vpop.f32.mrf.mxu0
    %v3173 = vadd.f32 %v3090, %v3172
    %v3174 = vpop.f32.mrf.mxu0
    %3175 = vdwg.mxu0
    %v3176 = vld [vmem:[#allocation11 + $0xc] sm:$0x1]
    %v3177 = vld [vmem:[#allocation8 + $0x880] sm:$0xff]
    %v3178 = vld [vmem:[#allocation8 + $0x888] sm:$0xff]
    %v3179 = vld [vmem:[#allocation8 + $0x890] sm:$0xff]
    %v3180 = vld [vmem:[#allocation8 + $0x898] sm:$0xff]
    %v3181 = vld [vmem:[#allocation8 + $0x8a0] sm:$0xff]
    %v3182 = vld [vmem:[#allocation8 + $0x8a8] sm:$0xff]
    %v3183 = vld [vmem:[#allocation8 + $0x8b0] sm:$0xff]
    %v3184 = vld [vmem:[#allocation8 + $0x8b8] sm:$0xff]
    %v3185 = vld [vmem:[#allocation8 + $0x8c0] sm:$0xff]
    %v3186 = vld [vmem:[#allocation8 + $0x8c8] sm:$0xff]
    %v3187 = vld [vmem:[#allocation8 + $0x8d0] sm:$0xff]
    %v3188 = vld [vmem:[#allocation8 + $0x8d8] sm:$0xff]
    %v3189 = vld [vmem:[#allocation8 + $0x8e0] sm:$0xff]
    %v3190 = vld [vmem:[#allocation8 + $0x8e8] sm:$0xff]
    %v3191 = vld [vmem:[#allocation8 + $0x8f0] sm:$0xff]
    %v3192 = vld [vmem:[#allocation8 + $0x8f8] sm:$0xff]
    %3193 = vmatprep.subr.mxu0 0.0
    %3194 = vmatpush1.msra.mxu0 %v3192
    %3195 = vmatprep.subr.mxu0 0.0
    %3196 = vmatpush1.msra.mxu0 %v3191
    %3197 = vmatprep.subr.mxu0 0.0
    %3198 = vmatpush1.msra.mxu0 %v3190
    %3199 = vmatprep.subr.mxu0 0.0
    %3200 = vmatpush1.msra.mxu0 %v3189
    %3201 = vmatprep.subr.mxu0 0.0
    %3202 = vmatpush1.msra.mxu0 %v3188
    %3203 = vmatprep.subr.mxu0 0.0
    %3204 = vmatpush1.msra.mxu0 %v3187
    %3205 = vmatprep.subr.mxu0 0.0
    %3206 = vmatpush1.msra.mxu0 %v3186
    %3207 = vmatprep.subr.mxu0 0.0
    %3208 = vmatpush1.msra.mxu0 %v3185
    %3209 = vmatprep.subr.mxu0 0.0
    %3210 = vmatpush1.msra.mxu0 %v3184
    %3211 = vmatprep.subr.mxu0 0.0
    %3212 = vmatpush1.msra.mxu0 %v3183
    %3213 = vmatprep.subr.mxu0 0.0
    %3214 = vmatpush1.msra.mxu0 %v3182
    %3215 = vmatprep.subr.mxu0 0.0
    %3216 = vmatpush1.msra.mxu0 %v3181
    %3217 = vmatprep.subr.mxu0 0.0
    %3218 = vmatpush1.msra.mxu0 %v3180
    %3219 = vmatprep.subr.mxu0 0.0
    %3220 = vmatpush1.msra.mxu0 %v3179
    %3221 = vmatprep.subr.mxu0 0.0
    %3222 = vmatpush1.msra.mxu0 %v3178
    %3223 = vmatprep.subr.mxu0 0.0
    %3224 = vmatpush1.msra.mxu0 %v3177
    %3225 = vmatprep.subr.mxu0 0.0
    %3226 = vmatpush2.msra.mxu0 0.0
    %3227 = vmatprep.subr.mxu0 0.0
    %3228 = vmatpush2.msra.mxu0 0.0
    %3229 = vmatprep.subr.mxu0 0.0
    %3230 = vmatpush2.msra.mxu0 0.0
    %3231 = vmatprep.subr.mxu0 0.0
    %3232 = vmatpush2.msra.mxu0 0.0
    %3233 = vmatprep.subr.mxu0 0.0
    %3234 = vmatpush2.msra.mxu0 0.0
    %3235 = vmatprep.subr.mxu0 0.0
    %3236 = vmatpush2.msra.mxu0 0.0
    %3237 = vmatprep.subr.mxu0 0.0
    %3238 = vmatpush2.msra.mxu0 0.0
    %3239 = vmatprep.subr.mxu0 0.0
    %3240 = vmatpush2.msra.mxu0 0.0
    %3241 = vmatprep.subr.mxu0 0.0
    %3242 = vmatpush2.msra.mxu0 0.0
    %3243 = vmatprep.subr.mxu0 0.0
    %3244 = vmatpush2.msra.mxu0 0.0
    %3245 = vmatprep.subr.mxu0 0.0
    %3246 = vmatpush2.msra.mxu0 0.0
    %3247 = vmatprep.subr.mxu0 0.0
    %3248 = vmatpush2.msra.mxu0 0.0
    %3249 = vmatprep.subr.mxu0 0.0
    %3250 = vmatpush2.msra.mxu0 0.0
    %3251 = vmatprep.subr.mxu0 0.0
    %3252 = vmatpush2.msra.mxu0 0.0
    %3253 = vmatprep.subr.mxu0 0.0
    %3254 = vmatpush2.msra.mxu0 0.0
    %3255 = vmatprep.subr.mxu0 0.0
    %3256 = vmatpush2.msra.mxu0 0.0
    %3257 = vmatprep.mubr.f32.mxu0 0.0
    %3258 = vmatmul.mubr.f32.gmra.mxu0 %v3158
    %v3259 = vpop.f32.mrf.mxu0
    %v3260 = vadd.f32 0.0, %v3259
    %v3261 = vpop.f32.mrf.mxu0
    %3262 = vmatprep.mubr.f32.mxu0 0.0
    %3263 = vmatmul.mubr.f32.gmra.mxu0 %v3163
    %v3264 = vpop.f32.mrf.mxu0
    %v3265 = vadd.f32 0.0, %v3264
    %v3266 = vpop.f32.mrf.mxu0
    %3267 = vmatprep.mubr.f32.mxu0 0.0
    %3268 = vmatmul.mubr.f32.gmra.mxu0 %v3168
    %v3269 = vpop.f32.mrf.mxu0
    %v3270 = vadd.f32 0.0, %v3269
    %v3271 = vpop.f32.mrf.mxu0
    %3272 = vmatprep.mubr.f32.mxu0 0.0
    %3273 = vmatmul.mubr.f32.gmra.mxu0 %v3173
    %v3274 = vpop.f32.mrf.mxu0
    %v3275 = vadd.f32 0.0, %v3274
    %v3276 = vpop.f32.mrf.mxu0
    %3277 = vdwg.mxu0
    %v3278 = vlaneseq
    %v3279 = vshrl.u32 %v3278, 7
    %v3280 = vsub.s32 0, %v3279
    %v3281 = vrot.slane %v3176, %v3280
    %v3282 = vadd.f32 %v3281, %v3260
    %v3283 = vadd.f32 %v3281, %v3265
    %v3284 = vadd.f32 %v3281, %v3270
    %v3285 = vadd.f32 %v3281, %v3275
    %v3286 = vmax.f32 %v3282, 0.0
    %v3287 = vmax.f32 %v3283, 0.0
    %v3288 = vmax.f32 %v3284, 0.0
    %v3289 = vmax.f32 %v3285, 0.0
    %v3290 = vld [vmem:[#allocation10 + $0x600] sm:$0xff]
    %v3291 = vld [vmem:[#allocation10 + $0x608] sm:$0xff]
    %v3292 = vld [vmem:[#allocation10 + $0x610] sm:$0xff]
    %v3293 = vld [vmem:[#allocation10 + $0x618] sm:$0xff]
    %v3294 = vld [vmem:[#allocation10 + $0x620] sm:$0xff]
    %v3295 = vld [vmem:[#allocation10 + $0x628] sm:$0xff]
    %v3296 = vld [vmem:[#allocation10 + $0x630] sm:$0xff]
    %v3297 = vld [vmem:[#allocation10 + $0x638] sm:$0xff]
    %v3298 = vld [vmem:[#allocation10 + $0x640] sm:$0xff]
    %v3299 = vld [vmem:[#allocation10 + $0x648] sm:$0xff]
    %v3300 = vld [vmem:[#allocation10 + $0x650] sm:$0xff]
    %v3301 = vld [vmem:[#allocation10 + $0x658] sm:$0xff]
    %v3302 = vld [vmem:[#allocation10 + $0x660] sm:$0xff]
    %v3303 = vld [vmem:[#allocation10 + $0x668] sm:$0xff]
    %v3304 = vld [vmem:[#allocation10 + $0x670] sm:$0xff]
    %v3305 = vld [vmem:[#allocation10 + $0x678] sm:$0xff]
    %v3306 = vld [vmem:[#allocation13 + $0x14] ss:$0 sm:$0xff]
    %3307 = vmatprep.subr.mxu0 0.0
    %3308 = vmatpush1.xpose.msra.mxu0 %v3305
    %3309 = vmatprep.subr.mxu0 0.0
    %3310 = vmatpush1.xpose.msra.mxu0 %v3304
    %3311 = vmatprep.subr.mxu0 0.0
    %3312 = vmatpush1.xpose.msra.mxu0 %v3303
    %3313 = vmatprep.subr.mxu0 0.0
    %3314 = vmatpush1.xpose.msra.mxu0 %v3302
    %3315 = vmatprep.subr.mxu0 0.0
    %3316 = vmatpush1.xpose.msra.mxu0 %v3301
    %3317 = vmatprep.subr.mxu0 0.0
    %3318 = vmatpush1.xpose.msra.mxu0 %v3300
    %3319 = vmatprep.subr.mxu0 0.0
    %3320 = vmatpush1.xpose.msra.mxu0 %v3299
    %3321 = vmatprep.subr.mxu0 0.0
    %3322 = vmatpush1.xpose.msra.mxu0 %v3298
    %3323 = vmatprep.subr.mxu0 0.0
    %3324 = vmatpush1.xpose.msra.mxu0 %v3297
    %3325 = vmatprep.subr.mxu0 0.0
    %3326 = vmatpush1.xpose.msra.mxu0 %v3296
    %3327 = vmatprep.subr.mxu0 0.0
    %3328 = vmatpush1.xpose.msra.mxu0 %v3295
    %3329 = vmatprep.subr.mxu0 0.0
    %3330 = vmatpush1.xpose.msra.mxu0 %v3294
    %3331 = vmatprep.subr.mxu0 0.0
    %3332 = vmatpush1.xpose.msra.mxu0 %v3293
    %3333 = vmatprep.subr.mxu0 0.0
    %3334 = vmatpush1.xpose.msra.mxu0 %v3292
    %3335 = vmatprep.subr.mxu0 0.0
    %3336 = vmatpush1.xpose.msra.mxu0 %v3291
    %3337 = vmatprep.subr.mxu0 0.0
    %3338 = vmatpush1.xpose.msra.mxu0 %v3290
    %3339 = vmatprep.subr.mxu0 0.0
    %3340 = vmatpush2.xpose.msra.mxu0 0.0
    %3341 = vmatprep.subr.mxu0 0.0
    %3342 = vmatpush2.xpose.msra.mxu0 0.0
    %3343 = vmatprep.subr.mxu0 0.0
    %3344 = vmatpush2.xpose.msra.mxu0 0.0
    %3345 = vmatprep.subr.mxu0 0.0
    %3346 = vmatpush2.xpose.msra.mxu0 0.0
    %3347 = vmatprep.subr.mxu0 0.0
    %3348 = vmatpush2.xpose.msra.mxu0 0.0
    %3349 = vmatprep.subr.mxu0 0.0
    %3350 = vmatpush2.xpose.msra.mxu0 0.0
    %3351 = vmatprep.subr.mxu0 0.0
    %3352 = vmatpush2.xpose.msra.mxu0 0.0
    %3353 = vmatprep.subr.mxu0 0.0
    %3354 = vmatpush2.xpose.msra.mxu0 0.0
    %3355 = vmatprep.subr.mxu0 0.0
    %3356 = vmatpush2.xpose.msra.mxu0 0.0
    %3357 = vmatprep.subr.mxu0 0.0
    %3358 = vmatpush2.xpose.msra.mxu0 0.0
    %3359 = vmatprep.subr.mxu0 0.0
    %3360 = vmatpush2.xpose.msra.mxu0 0.0
    %3361 = vmatprep.subr.mxu0 0.0
    %3362 = vmatpush2.xpose.msra.mxu0 0.0
    %3363 = vmatprep.subr.mxu0 0.0
    %3364 = vmatpush2.xpose.msra.mxu0 0.0
    %3365 = vmatprep.subr.mxu0 0.0
    %3366 = vmatpush2.xpose.msra.mxu0 0.0
    %3367 = vmatprep.subr.mxu0 0.0
    %3368 = vmatpush2.xpose.msra.mxu0 0.0
    %3369 = vmatprep.subr.mxu0 0.0
    %3370 = vmatpush2.xpose.msra.mxu0 0.0
    %3371 = vmatprep.mubr.f32.mxu0 0.0
    %3372 = vmatmul.mubr.f32.gmra.mxu0 %v3286
    %v3373 = vpop.f32.mrf.mxu0
    %v3374 = vadd.f32 %v3306, %v3373
    %v3375 = vpop.f32.mrf.mxu0
    %3376 = vmatprep.mubr.f32.mxu0 0.0
    %3377 = vmatmul.mubr.f32.gmra.mxu0 %v3287
    %v3378 = vpop.f32.mrf.mxu0
    %v3379 = vadd.f32 %v3306, %v3378
    %v3380 = vpop.f32.mrf.mxu0
    %3381 = vmatprep.mubr.f32.mxu0 0.0
    %3382 = vmatmul.mubr.f32.gmra.mxu0 %v3288
    %v3383 = vpop.f32.mrf.mxu0
    %v3384 = vadd.f32 %v3306, %v3383
    %v3385 = vpop.f32.mrf.mxu0
    %3386 = vmatprep.mubr.f32.mxu0 0.0
    %3387 = vmatmul.mubr.f32.gmra.mxu0 %v3289
    %v3388 = vpop.f32.mrf.mxu0
    %v3389 = vadd.f32 %v3306, %v3388
    %v3390 = vpop.f32.mrf.mxu0
    %3391 = vdwg.mxu0
    %3392 = vmatprep.subr.mxu0 0.0
    %3393 = vmatpush1.msra.mxu0 0.0
    %3394 = vmatprep.subr.mxu0 0.0
    %3395 = vmatpush1.msra.mxu0 0.0
    %3396 = vmatprep.subr.mxu0 0.0
    %3397 = vmatpush1.msra.mxu0 0.0
    %3398 = vmatprep.subr.mxu0 0.0
    %3399 = vmatpush1.msra.mxu0 0.0
    %3400 = vmatprep.subr.mxu0 0.0
    %3401 = vmatpush1.msra.mxu0 0.0
    %3402 = vmatprep.subr.mxu0 0.0
    %3403 = vmatpush1.msra.mxu0 0.0
    %3404 = vmatprep.subr.mxu0 0.0
    %3405 = vmatpush1.msra.mxu0 0.0
    %3406 = vmatprep.subr.mxu0 0.0
    %3407 = vmatpush1.msra.mxu0 0.0
    %3408 = vmatprep.subr.mxu0 0.0
    %3409 = vmatpush1.msra.mxu0 0.0
    %3410 = vmatprep.subr.mxu0 0.0
    %3411 = vmatpush1.msra.mxu0 0.0
    %3412 = vmatprep.subr.mxu0 0.0
    %3413 = vmatpush1.msra.mxu0 0.0
    %3414 = vmatprep.subr.mxu0 0.0
    %3415 = vmatpush1.msra.mxu0 0.0
    %3416 = vmatprep.subr.mxu0 0.0
    %3417 = vmatpush1.msra.mxu0 0.0
    %3418 = vmatprep.subr.mxu0 0.0
    %3419 = vmatpush1.msra.mxu0 0.0
    %3420 = vmatprep.subr.mxu0 0.0
    %3421 = vmatpush1.msra.mxu0 %v3379
    %3422 = vmatprep.subr.mxu0 0.0
    %3423 = vmatpush1.msra.mxu0 %v3374
    %3424 = vmatprep.subr.mxu0 0.0
    %3425 = vmatpush2.msra.mxu0 0.0
    %3426 = vmatprep.subr.mxu0 0.0
    %3427 = vmatpush2.msra.mxu0 0.0
    %3428 = vmatprep.subr.mxu0 0.0
    %3429 = vmatpush2.msra.mxu0 0.0
    %3430 = vmatprep.subr.mxu0 0.0
    %3431 = vmatpush2.msra.mxu0 0.0
    %3432 = vmatprep.subr.mxu0 0.0
    %3433 = vmatpush2.msra.mxu0 0.0
    %3434 = vmatprep.subr.mxu0 0.0
    %3435 = vmatpush2.msra.mxu0 0.0
    %3436 = vmatprep.subr.mxu0 0.0
    %3437 = vmatpush2.msra.mxu0 0.0
    %3438 = vmatprep.subr.mxu0 0.0
    %3439 = vmatpush2.msra.mxu0 0.0
    %3440 = vmatprep.subr.mxu0 0.0
    %3441 = vmatpush2.msra.mxu0 0.0
    %3442 = vmatprep.subr.mxu0 0.0
    %3443 = vmatpush2.msra.mxu0 0.0
    %3444 = vmatprep.subr.mxu0 0.0
    %3445 = vmatpush2.msra.mxu0 0.0
    %3446 = vmatprep.subr.mxu0 0.0
    %3447 = vmatpush2.msra.mxu0 0.0
    %3448 = vmatprep.subr.mxu0 0.0
    %3449 = vmatpush2.msra.mxu0 0.0
    %3450 = vmatprep.subr.mxu0 0.0
    %3451 = vmatpush2.msra.mxu0 0.0
    %3452 = vmatprep.subr.mxu0 0.0
    %3453 = vmatpush2.msra.mxu0 0.0
    %3454 = vmatprep.subr.mxu0 0.0
    %3455 = vmatpush2.msra.mxu0 0.0
    %3456 = vmatprep.mubr.f32.mxu0 0.0
    %3457 = vmatmul.mubr.f32.gmra.mxu0 %v766
    %v3458 = vpop.f32.mrf.mxu0
    %v3459 = vadd.f32 0.0, %v3458
    %v3460 = vpop.f32.mrf.mxu0
    %3461 = vdwg.mxu0
    %3462 = vmatprep.subr.mxu0 0.0
    %3463 = vmatpush1.msra.mxu0 0.0
    %3464 = vmatprep.subr.mxu0 0.0
    %3465 = vmatpush1.msra.mxu0 0.0
    %3466 = vmatprep.subr.mxu0 0.0
    %3467 = vmatpush1.msra.mxu0 0.0
    %3468 = vmatprep.subr.mxu0 0.0
    %3469 = vmatpush1.msra.mxu0 0.0
    %3470 = vmatprep.subr.mxu0 0.0
    %3471 = vmatpush1.msra.mxu0 0.0
    %3472 = vmatprep.subr.mxu0 0.0
    %3473 = vmatpush1.msra.mxu0 0.0
    %3474 = vmatprep.subr.mxu0 0.0
    %3475 = vmatpush1.msra.mxu0 0.0
    %3476 = vmatprep.subr.mxu0 0.0
    %3477 = vmatpush1.msra.mxu0 0.0
    %3478 = vmatprep.subr.mxu0 0.0
    %3479 = vmatpush1.msra.mxu0 0.0
    %3480 = vmatprep.subr.mxu0 0.0
    %3481 = vmatpush1.msra.mxu0 0.0
    %3482 = vmatprep.subr.mxu0 0.0
    %3483 = vmatpush1.msra.mxu0 0.0
    %3484 = vmatprep.subr.mxu0 0.0
    %3485 = vmatpush1.msra.mxu0 0.0
    %3486 = vmatprep.subr.mxu0 0.0
    %3487 = vmatpush1.msra.mxu0 0.0
    %3488 = vmatprep.subr.mxu0 0.0
    %3489 = vmatpush1.msra.mxu0 0.0
    %3490 = vmatprep.subr.mxu0 0.0
    %3491 = vmatpush1.msra.mxu0 %v3389
    %3492 = vmatprep.subr.mxu0 0.0
    %3493 = vmatpush1.msra.mxu0 %v3384
    %3494 = vmatprep.subr.mxu0 0.0
    %3495 = vmatpush2.msra.mxu0 0.0
    %3496 = vmatprep.subr.mxu0 0.0
    %3497 = vmatpush2.msra.mxu0 0.0
    %3498 = vmatprep.subr.mxu0 0.0
    %3499 = vmatpush2.msra.mxu0 0.0
    %3500 = vmatprep.subr.mxu0 0.0
    %3501 = vmatpush2.msra.mxu0 0.0
    %3502 = vmatprep.subr.mxu0 0.0
    %3503 = vmatpush2.msra.mxu0 0.0
    %3504 = vmatprep.subr.mxu0 0.0
    %3505 = vmatpush2.msra.mxu0 0.0
    %3506 = vmatprep.subr.mxu0 0.0
    %3507 = vmatpush2.msra.mxu0 0.0
    %3508 = vmatprep.subr.mxu0 0.0
    %3509 = vmatpush2.msra.mxu0 0.0
    %3510 = vmatprep.subr.mxu0 0.0
    %3511 = vmatpush2.msra.mxu0 0.0
    %3512 = vmatprep.subr.mxu0 0.0
    %3513 = vmatpush2.msra.mxu0 0.0
    %3514 = vmatprep.subr.mxu0 0.0
    %3515 = vmatpush2.msra.mxu0 0.0
    %3516 = vmatprep.subr.mxu0 0.0
    %3517 = vmatpush2.msra.mxu0 0.0
    %3518 = vmatprep.subr.mxu0 0.0
    %3519 = vmatpush2.msra.mxu0 0.0
    %3520 = vmatprep.subr.mxu0 0.0
    %3521 = vmatpush2.msra.mxu0 0.0
    %3522 = vmatprep.subr.mxu0 0.0
    %3523 = vmatpush2.msra.mxu0 0.0
    %3524 = vmatprep.subr.mxu0 0.0
    %3525 = vmatpush2.msra.mxu0 0.0
    %3526 = vmatprep.mubr.f32.mxu0 0.0
    %3527 = vmatmul.mubr.f32.gmra.mxu0 %v839
    %v3528 = vpop.f32.mrf.mxu0
    %v3529 = vadd.f32 0.0, %v3528
    %v3530 = vpop.f32.mrf.mxu0
    %3531 = vdwg.mxu0
    %v3532 = vld [vmem:[#allocation11 + $0xa] sm:$0x1]
    %v3533 = vld [vmem:[#allocation8 + $0x700] sm:$0xff]
    %v3534 = vld [vmem:[#allocation8 + $0x708] sm:$0xff]
    %v3535 = vld [vmem:[#allocation8 + $0x710] sm:$0xff]
    %v3536 = vld [vmem:[#allocation8 + $0x718] sm:$0xff]
    %v3537 = vld [vmem:[#allocation8 + $0x720] sm:$0xff]
    %v3538 = vld [vmem:[#allocation8 + $0x728] sm:$0xff]
    %v3539 = vld [vmem:[#allocation8 + $0x730] sm:$0xff]
    %v3540 = vld [vmem:[#allocation8 + $0x738] sm:$0xff]
    %v3541 = vld [vmem:[#allocation8 + $0x740] sm:$0xff]
    %v3542 = vld [vmem:[#allocation8 + $0x748] sm:$0xff]
    %v3543 = vld [vmem:[#allocation8 + $0x750] sm:$0xff]
    %v3544 = vld [vmem:[#allocation8 + $0x758] sm:$0xff]
    %v3545 = vld [vmem:[#allocation8 + $0x760] sm:$0xff]
    %v3546 = vld [vmem:[#allocation8 + $0x768] sm:$0xff]
    %v3547 = vld [vmem:[#allocation8 + $0x770] sm:$0xff]
    %v3548 = vld [vmem:[#allocation8 + $0x778] sm:$0xff]
    %3549 = vmatprep.subr.mxu0 0.0
    %3550 = vmatpush1.msra.mxu0 %v3548
    %3551 = vmatprep.subr.mxu0 0.0
    %3552 = vmatpush1.msra.mxu0 %v3547
    %3553 = vmatprep.subr.mxu0 0.0
    %3554 = vmatpush1.msra.mxu0 %v3546
    %3555 = vmatprep.subr.mxu0 0.0
    %3556 = vmatpush1.msra.mxu0 %v3545
    %3557 = vmatprep.subr.mxu0 0.0
    %3558 = vmatpush1.msra.mxu0 %v3544
    %3559 = vmatprep.subr.mxu0 0.0
    %3560 = vmatpush1.msra.mxu0 %v3543
    %3561 = vmatprep.subr.mxu0 0.0
    %3562 = vmatpush1.msra.mxu0 %v3542
    %3563 = vmatprep.subr.mxu0 0.0
    %3564 = vmatpush1.msra.mxu0 %v3541
    %3565 = vmatprep.subr.mxu0 0.0
    %3566 = vmatpush1.msra.mxu0 %v3540
    %3567 = vmatprep.subr.mxu0 0.0
    %3568 = vmatpush1.msra.mxu0 %v3539
    %3569 = vmatprep.subr.mxu0 0.0
    %3570 = vmatpush1.msra.mxu0 %v3538
    %3571 = vmatprep.subr.mxu0 0.0
    %3572 = vmatpush1.msra.mxu0 %v3537
    %3573 = vmatprep.subr.mxu0 0.0
    %3574 = vmatpush1.msra.mxu0 %v3536
    %3575 = vmatprep.subr.mxu0 0.0
    %3576 = vmatpush1.msra.mxu0 %v3535
    %3577 = vmatprep.subr.mxu0 0.0
    %3578 = vmatpush1.msra.mxu0 %v3534
    %3579 = vmatprep.subr.mxu0 0.0
    %3580 = vmatpush1.msra.mxu0 %v3533
    %3581 = vmatprep.subr.mxu0 0.0
    %3582 = vmatpush2.msra.mxu0 0.0
    %3583 = vmatprep.subr.mxu0 0.0
    %3584 = vmatpush2.msra.mxu0 0.0
    %3585 = vmatprep.subr.mxu0 0.0
    %3586 = vmatpush2.msra.mxu0 0.0
    %3587 = vmatprep.subr.mxu0 0.0
    %3588 = vmatpush2.msra.mxu0 0.0
    %3589 = vmatprep.subr.mxu0 0.0
    %3590 = vmatpush2.msra.mxu0 0.0
    %3591 = vmatprep.subr.mxu0 0.0
    %3592 = vmatpush2.msra.mxu0 0.0
    %3593 = vmatprep.subr.mxu0 0.0
    %3594 = vmatpush2.msra.mxu0 0.0
    %3595 = vmatprep.subr.mxu0 0.0
    %3596 = vmatpush2.msra.mxu0 0.0
    %3597 = vmatprep.subr.mxu0 0.0
    %3598 = vmatpush2.msra.mxu0 0.0
    %3599 = vmatprep.subr.mxu0 0.0
    %3600 = vmatpush2.msra.mxu0 0.0
    %3601 = vmatprep.subr.mxu0 0.0
    %3602 = vmatpush2.msra.mxu0 0.0
    %3603 = vmatprep.subr.mxu0 0.0
    %3604 = vmatpush2.msra.mxu0 0.0
    %3605 = vmatprep.subr.mxu0 0.0
    %3606 = vmatpush2.msra.mxu0 0.0
    %3607 = vmatprep.subr.mxu0 0.0
    %3608 = vmatpush2.msra.mxu0 0.0
    %3609 = vmatprep.subr.mxu0 0.0
    %3610 = vmatpush2.msra.mxu0 0.0
    %3611 = vmatprep.subr.mxu0 0.0
    %3612 = vmatpush2.msra.mxu0 0.0
    %3613 = vmatprep.mubr.f32.mxu0 0.0
    %3614 = vmatmul.mubr.f32.gmra.mxu0 %v2847
    %v3615 = vpop.f32.mrf.mxu0
    %v3616 = vadd.f32 0.0, %v3615
    %v3617 = vpop.f32.mrf.mxu0
    %3618 = vmatprep.mubr.f32.mxu0 0.0
    %3619 = vmatmul.mubr.f32.gmra.mxu0 %v2852
    %v3620 = vpop.f32.mrf.mxu0
    %v3621 = vadd.f32 0.0, %v3620
    %v3622 = vpop.f32.mrf.mxu0
    %3623 = vdwg.mxu0
    %v3624 = vlaneseq
    %v3625 = vshrl.u32 %v3624, 7
    %v3626 = vsub.s32 0, %v3625
    %v3627 = vrot.slane %v3532, %v3626
    %v3628 = vadd.f32 %v3627, %v3616
    %v3629 = vadd.f32 %v3627, %v3621
    %v3630 = vmax.f32 %v3628, 0.0
    %v3631 = vmax.f32 %v3629, 0.0
    %v3632 = vld [vmem:[#allocation10 + $0x500] sm:$0xff]
    %v3633 = vld [vmem:[#allocation10 + $0x508] sm:$0xff]
    %v3634 = vld [vmem:[#allocation10 + $0x510] sm:$0xff]
    %v3635 = vld [vmem:[#allocation10 + $0x518] sm:$0xff]
    %v3636 = vld [vmem:[#allocation10 + $0x520] sm:$0xff]
    %v3637 = vld [vmem:[#allocation10 + $0x528] sm:$0xff]
    %v3638 = vld [vmem:[#allocation10 + $0x530] sm:$0xff]
    %v3639 = vld [vmem:[#allocation10 + $0x538] sm:$0xff]
    %v3640 = vld [vmem:[#allocation10 + $0x540] sm:$0xff]
    %v3641 = vld [vmem:[#allocation10 + $0x548] sm:$0xff]
    %v3642 = vld [vmem:[#allocation10 + $0x550] sm:$0xff]
    %v3643 = vld [vmem:[#allocation10 + $0x558] sm:$0xff]
    %v3644 = vld [vmem:[#allocation10 + $0x560] sm:$0xff]
    %v3645 = vld [vmem:[#allocation10 + $0x568] sm:$0xff]
    %v3646 = vld [vmem:[#allocation10 + $0x570] sm:$0xff]
    %v3647 = vld [vmem:[#allocation10 + $0x578] sm:$0xff]
    %v3648 = vld [vmem:[#allocation13 + $0x12] ss:$0 sm:$0xff]
    %3649 = vmatprep.subr.mxu0 0.0
    %3650 = vmatpush1.xpose.msra.mxu0 %v3647
    %3651 = vmatprep.subr.mxu0 0.0
    %3652 = vmatpush1.xpose.msra.mxu0 %v3646
    %3653 = vmatprep.subr.mxu0 0.0
    %3654 = vmatpush1.xpose.msra.mxu0 %v3645
    %3655 = vmatprep.subr.mxu0 0.0
    %3656 = vmatpush1.xpose.msra.mxu0 %v3644
    %3657 = vmatprep.subr.mxu0 0.0
    %3658 = vmatpush1.xpose.msra.mxu0 %v3643
    %3659 = vmatprep.subr.mxu0 0.0
    %3660 = vmatpush1.xpose.msra.mxu0 %v3642
    %3661 = vmatprep.subr.mxu0 0.0
    %3662 = vmatpush1.xpose.msra.mxu0 %v3641
    %3663 = vmatprep.subr.mxu0 0.0
    %3664 = vmatpush1.xpose.msra.mxu0 %v3640
    %3665 = vmatprep.subr.mxu0 0.0
    %3666 = vmatpush1.xpose.msra.mxu0 %v3639
    %3667 = vmatprep.subr.mxu0 0.0
    %3668 = vmatpush1.xpose.msra.mxu0 %v3638
    %3669 = vmatprep.subr.mxu0 0.0
    %3670 = vmatpush1.xpose.msra.mxu0 %v3637
    %3671 = vmatprep.subr.mxu0 0.0
    %3672 = vmatpush1.xpose.msra.mxu0 %v3636
    %3673 = vmatprep.subr.mxu0 0.0
    %3674 = vmatpush1.xpose.msra.mxu0 %v3635
    %3675 = vmatprep.subr.mxu0 0.0
    %3676 = vmatpush1.xpose.msra.mxu0 %v3634
    %3677 = vmatprep.subr.mxu0 0.0
    %3678 = vmatpush1.xpose.msra.mxu0 %v3633
    %3679 = vmatprep.subr.mxu0 0.0
    %3680 = vmatpush1.xpose.msra.mxu0 %v3632
    %3681 = vmatprep.subr.mxu0 0.0
    %3682 = vmatpush2.xpose.msra.mxu0 0.0
    %3683 = vmatprep.subr.mxu0 0.0
    %3684 = vmatpush2.xpose.msra.mxu0 0.0
    %3685 = vmatprep.subr.mxu0 0.0
    %3686 = vmatpush2.xpose.msra.mxu0 0.0
    %3687 = vmatprep.subr.mxu0 0.0
    %3688 = vmatpush2.xpose.msra.mxu0 0.0
    %3689 = vmatprep.subr.mxu0 0.0
    %3690 = vmatpush2.xpose.msra.mxu0 0.0
    %3691 = vmatprep.subr.mxu0 0.0
    %3692 = vmatpush2.xpose.msra.mxu0 0.0
    %3693 = vmatprep.subr.mxu0 0.0
    %3694 = vmatpush2.xpose.msra.mxu0 0.0
    %3695 = vmatprep.subr.mxu0 0.0
    %3696 = vmatpush2.xpose.msra.mxu0 0.0
    %3697 = vmatprep.subr.mxu0 0.0
    %3698 = vmatpush2.xpose.msra.mxu0 0.0
    %3699 = vmatprep.subr.mxu0 0.0
    %3700 = vmatpush2.xpose.msra.mxu0 0.0
    %3701 = vmatprep.subr.mxu0 0.0
    %3702 = vmatpush2.xpose.msra.mxu0 0.0
    %3703 = vmatprep.subr.mxu0 0.0
    %3704 = vmatpush2.xpose.msra.mxu0 0.0
    %3705 = vmatprep.subr.mxu0 0.0
    %3706 = vmatpush2.xpose.msra.mxu0 0.0
    %3707 = vmatprep.subr.mxu0 0.0
    %3708 = vmatpush2.xpose.msra.mxu0 0.0
    %3709 = vmatprep.subr.mxu0 0.0
    %3710 = vmatpush2.xpose.msra.mxu0 0.0
    %3711 = vmatprep.subr.mxu0 0.0
    %3712 = vmatpush2.xpose.msra.mxu0 0.0
    %3713 = vmatprep.mubr.f32.mxu0 0.0
    %3714 = vmatmul.mubr.f32.gmra.mxu0 %v3630
    %v3715 = vpop.f32.mrf.mxu0
    %v3716 = vadd.f32 %v3648, %v3715
    %v3717 = vpop.f32.mrf.mxu0
    %3718 = vmatprep.mubr.f32.mxu0 0.0
    %3719 = vmatmul.mubr.f32.gmra.mxu0 %v3631
    %v3720 = vpop.f32.mrf.mxu0
    %v3721 = vadd.f32 %v3648, %v3720
    %v3722 = vpop.f32.mrf.mxu0
    %3723 = vdwg.mxu0
    %3724 = vmatprep.subr.mxu0 0.0
    %3725 = vmatpush1.msra.mxu0 0.0
    %3726 = vmatprep.subr.mxu0 0.0
    %3727 = vmatpush1.msra.mxu0 0.0
    %3728 = vmatprep.subr.mxu0 0.0
    %3729 = vmatpush1.msra.mxu0 0.0
    %3730 = vmatprep.subr.mxu0 0.0
    %3731 = vmatpush1.msra.mxu0 0.0
    %3732 = vmatprep.subr.mxu0 0.0
    %3733 = vmatpush1.msra.mxu0 0.0
    %3734 = vmatprep.subr.mxu0 0.0
    %3735 = vmatpush1.msra.mxu0 0.0
    %3736 = vmatprep.subr.mxu0 0.0
    %3737 = vmatpush1.msra.mxu0 0.0
    %3738 = vmatprep.subr.mxu0 0.0
    %3739 = vmatpush1.msra.mxu0 0.0
    %3740 = vmatprep.subr.mxu0 0.0
    %3741 = vmatpush1.msra.mxu0 0.0
    %3742 = vmatprep.subr.mxu0 0.0
    %3743 = vmatpush1.msra.mxu0 0.0
    %3744 = vmatprep.subr.mxu0 0.0
    %3745 = vmatpush1.msra.mxu0 0.0
    %3746 = vmatprep.subr.mxu0 0.0
    %3747 = vmatpush1.msra.mxu0 0.0
    %3748 = vmatprep.subr.mxu0 0.0
    %3749 = vmatpush1.msra.mxu0 0.0
    %3750 = vmatprep.subr.mxu0 0.0
    %3751 = vmatpush1.msra.mxu0 0.0
    %3752 = vmatprep.subr.mxu0 0.0
    %3753 = vmatpush1.msra.mxu0 0.0
    %3754 = vmatprep.subr.mxu0 0.0
    %3755 = vmatpush1.msra.mxu0 %v3716
    %3756 = vmatprep.subr.mxu0 0.0
    %3757 = vmatpush2.msra.mxu0 0.0
    %3758 = vmatprep.subr.mxu0 0.0
    %3759 = vmatpush2.msra.mxu0 0.0
    %3760 = vmatprep.subr.mxu0 0.0
    %3761 = vmatpush2.msra.mxu0 0.0
    %3762 = vmatprep.subr.mxu0 0.0
    %3763 = vmatpush2.msra.mxu0 0.0
    %3764 = vmatprep.subr.mxu0 0.0
    %3765 = vmatpush2.msra.mxu0 0.0
    %3766 = vmatprep.subr.mxu0 0.0
    %3767 = vmatpush2.msra.mxu0 0.0
    %3768 = vmatprep.subr.mxu0 0.0
    %3769 = vmatpush2.msra.mxu0 0.0
    %3770 = vmatprep.subr.mxu0 0.0
    %3771 = vmatpush2.msra.mxu0 0.0
    %3772 = vmatprep.subr.mxu0 0.0
    %3773 = vmatpush2.msra.mxu0 0.0
    %3774 = vmatprep.subr.mxu0 0.0
    %3775 = vmatpush2.msra.mxu0 0.0
    %3776 = vmatprep.subr.mxu0 0.0
    %3777 = vmatpush2.msra.mxu0 0.0
    %3778 = vmatprep.subr.mxu0 0.0
    %3779 = vmatpush2.msra.mxu0 0.0
    %3780 = vmatprep.subr.mxu0 0.0
    %3781 = vmatpush2.msra.mxu0 0.0
    %3782 = vmatprep.subr.mxu0 0.0
    %3783 = vmatpush2.msra.mxu0 0.0
    %3784 = vmatprep.subr.mxu0 0.0
    %3785 = vmatpush2.msra.mxu0 0.0
    %3786 = vmatprep.subr.mxu0 0.0
    %3787 = vmatpush2.msra.mxu0 0.0
    %3788 = vmatprep.mubr.f32.mxu0 0.0
    %3789 = vmatmul.mubr.f32.gmra.mxu0 %v1105
    %v3790 = vpop.f32.mrf.mxu0
    %v3791 = vadd.f32 0.0, %v3790
    %v3792 = vpop.f32.mrf.mxu0
    %3793 = vmatprep.mubr.f32.mxu0 0.0
    %3794 = vmatmul.mubr.f32.gmra.mxu0 %v1108
    %v3795 = vpop.f32.mrf.mxu0
    %v3796 = vadd.f32 0.0, %v3795
    %v3797 = vpop.f32.mrf.mxu0
    %3798 = vdwg.mxu0
    %3799 = vmatprep.subr.mxu0 0.0
    %3800 = vmatpush1.msra.mxu0 0.0
    %3801 = vmatprep.subr.mxu0 0.0
    %3802 = vmatpush1.msra.mxu0 0.0
    %3803 = vmatprep.subr.mxu0 0.0
    %3804 = vmatpush1.msra.mxu0 0.0
    %3805 = vmatprep.subr.mxu0 0.0
    %3806 = vmatpush1.msra.mxu0 0.0
    %3807 = vmatprep.subr.mxu0 0.0
    %3808 = vmatpush1.msra.mxu0 0.0
    %3809 = vmatprep.subr.mxu0 0.0
    %3810 = vmatpush1.msra.mxu0 0.0
    %3811 = vmatprep.subr.mxu0 0.0
    %3812 = vmatpush1.msra.mxu0 0.0
    %3813 = vmatprep.subr.mxu0 0.0
    %3814 = vmatpush1.msra.mxu0 0.0
    %3815 = vmatprep.subr.mxu0 0.0
    %3816 = vmatpush1.msra.mxu0 0.0
    %3817 = vmatprep.subr.mxu0 0.0
    %3818 = vmatpush1.msra.mxu0 0.0
    %3819 = vmatprep.subr.mxu0 0.0
    %3820 = vmatpush1.msra.mxu0 0.0
    %3821 = vmatprep.subr.mxu0 0.0
    %3822 = vmatpush1.msra.mxu0 0.0
    %3823 = vmatprep.subr.mxu0 0.0
    %3824 = vmatpush1.msra.mxu0 0.0
    %3825 = vmatprep.subr.mxu0 0.0
    %3826 = vmatpush1.msra.mxu0 0.0
    %3827 = vmatprep.subr.mxu0 0.0
    %3828 = vmatpush1.msra.mxu0 0.0
    %3829 = vmatprep.subr.mxu0 0.0
    %3830 = vmatpush1.msra.mxu0 %v3721
    %3831 = vmatprep.subr.mxu0 0.0
    %3832 = vmatpush2.msra.mxu0 0.0
    %3833 = vmatprep.subr.mxu0 0.0
    %3834 = vmatpush2.msra.mxu0 0.0
    %3835 = vmatprep.subr.mxu0 0.0
    %3836 = vmatpush2.msra.mxu0 0.0
    %3837 = vmatprep.subr.mxu0 0.0
    %3838 = vmatpush2.msra.mxu0 0.0
    %3839 = vmatprep.subr.mxu0 0.0
    %3840 = vmatpush2.msra.mxu0 0.0
    %3841 = vmatprep.subr.mxu0 0.0
    %3842 = vmatpush2.msra.mxu0 0.0
    %3843 = vmatprep.subr.mxu0 0.0
    %3844 = vmatpush2.msra.mxu0 0.0
    %3845 = vmatprep.subr.mxu0 0.0
    %3846 = vmatpush2.msra.mxu0 0.0
    %3847 = vmatprep.subr.mxu0 0.0
    %3848 = vmatpush2.msra.mxu0 0.0
    %3849 = vmatprep.subr.mxu0 0.0
    %3850 = vmatpush2.msra.mxu0 0.0
    %3851 = vmatprep.subr.mxu0 0.0
    %3852 = vmatpush2.msra.mxu0 0.0
    %3853 = vmatprep.subr.mxu0 0.0
    %3854 = vmatpush2.msra.mxu0 0.0
    %3855 = vmatprep.subr.mxu0 0.0
    %3856 = vmatpush2.msra.mxu0 0.0
    %3857 = vmatprep.subr.mxu0 0.0
    %3858 = vmatpush2.msra.mxu0 0.0
    %3859 = vmatprep.subr.mxu0 0.0
    %3860 = vmatpush2.msra.mxu0 0.0
    %3861 = vmatprep.subr.mxu0 0.0
    %3862 = vmatpush2.msra.mxu0 0.0
    %3863 = vmatprep.mubr.f32.mxu0 0.0
    %3864 = vmatmul.mubr.f32.gmra.mxu0 %v1186
    %v3865 = vpop.f32.mrf.mxu0
    %v3866 = vadd.f32 0.0, %v3865
    %v3867 = vpop.f32.mrf.mxu0
    %3868 = vmatprep.mubr.f32.mxu0 0.0
    %3869 = vmatmul.mubr.f32.gmra.mxu0 %v1189
    %v3870 = vpop.f32.mrf.mxu0
    %v3871 = vadd.f32 0.0, %v3870
    %v3872 = vpop.f32.mrf.mxu0
    %3873 = vdwg.mxu0
    %v3874 = vld [vmem:[#allocation11 + $0xb] sm:$0x1]
    %v3875 = vld [vmem:[#allocation8 + $0x780] sm:$0xff]
    %v3876 = vld [vmem:[#allocation8 + $0x788] sm:$0xff]
    %v3877 = vld [vmem:[#allocation8 + $0x790] sm:$0xff]
    %v3878 = vld [vmem:[#allocation8 + $0x798] sm:$0xff]
    %v3879 = vld [vmem:[#allocation8 + $0x7a0] sm:$0xff]
    %v3880 = vld [vmem:[#allocation8 + $0x7a8] sm:$0xff]
    %v3881 = vld [vmem:[#allocation8 + $0x7b0] sm:$0xff]
    %v3882 = vld [vmem:[#allocation8 + $0x7b8] sm:$0xff]
    %v3883 = vld [vmem:[#allocation8 + $0x7c0] sm:$0xff]
    %v3884 = vld [vmem:[#allocation8 + $0x7c8] sm:$0xff]
    %v3885 = vld [vmem:[#allocation8 + $0x7d0] sm:$0xff]
    %v3886 = vld [vmem:[#allocation8 + $0x7d8] sm:$0xff]
    %v3887 = vld [vmem:[#allocation8 + $0x7e0] sm:$0xff]
    %v3888 = vld [vmem:[#allocation8 + $0x7e8] sm:$0xff]
    %v3889 = vld [vmem:[#allocation8 + $0x7f0] sm:$0xff]
    %v3890 = vld [vmem:[#allocation8 + $0x7f8] sm:$0xff]
    %3891 = vmatprep.subr.mxu0 0.0
    %3892 = vmatpush1.msra.mxu0 %v3890
    %3893 = vmatprep.subr.mxu0 0.0
    %3894 = vmatpush1.msra.mxu0 %v3889
    %3895 = vmatprep.subr.mxu0 0.0
    %3896 = vmatpush1.msra.mxu0 %v3888
    %3897 = vmatprep.subr.mxu0 0.0
    %3898 = vmatpush1.msra.mxu0 %v3887
    %3899 = vmatprep.subr.mxu0 0.0
    %3900 = vmatpush1.msra.mxu0 %v3886
    %3901 = vmatprep.subr.mxu0 0.0
    %3902 = vmatpush1.msra.mxu0 %v3885
    %3903 = vmatprep.subr.mxu0 0.0
    %3904 = vmatpush1.msra.mxu0 %v3884
    %3905 = vmatprep.subr.mxu0 0.0
    %3906 = vmatpush1.msra.mxu0 %v3883
    %3907 = vmatprep.subr.mxu0 0.0
    %3908 = vmatpush1.msra.mxu0 %v3882
    %3909 = vmatprep.subr.mxu0 0.0
    %3910 = vmatpush1.msra.mxu0 %v3881
    %3911 = vmatprep.subr.mxu0 0.0
    %3912 = vmatpush1.msra.mxu0 %v3880
    %3913 = vmatprep.subr.mxu0 0.0
    %3914 = vmatpush1.msra.mxu0 %v3879
    %3915 = vmatprep.subr.mxu0 0.0
    %3916 = vmatpush1.msra.mxu0 %v3878
    %3917 = vmatprep.subr.mxu0 0.0
    %3918 = vmatpush1.msra.mxu0 %v3877
    %3919 = vmatprep.subr.mxu0 0.0
    %3920 = vmatpush1.msra.mxu0 %v3876
    %3921 = vmatprep.subr.mxu0 0.0
    %3922 = vmatpush1.msra.mxu0 %v3875
    %3923 = vmatprep.subr.mxu0 0.0
    %3924 = vmatpush2.msra.mxu0 0.0
    %3925 = vmatprep.subr.mxu0 0.0
    %3926 = vmatpush2.msra.mxu0 0.0
    %3927 = vmatprep.subr.mxu0 0.0
    %3928 = vmatpush2.msra.mxu0 0.0
    %3929 = vmatprep.subr.mxu0 0.0
    %3930 = vmatpush2.msra.mxu0 0.0
    %3931 = vmatprep.subr.mxu0 0.0
    %3932 = vmatpush2.msra.mxu0 0.0
    %3933 = vmatprep.subr.mxu0 0.0
    %3934 = vmatpush2.msra.mxu0 0.0
    %3935 = vmatprep.subr.mxu0 0.0
    %3936 = vmatpush2.msra.mxu0 0.0
    %3937 = vmatprep.subr.mxu0 0.0
    %3938 = vmatpush2.msra.mxu0 0.0
    %3939 = vmatprep.subr.mxu0 0.0
    %3940 = vmatpush2.msra.mxu0 0.0
    %3941 = vmatprep.subr.mxu0 0.0
    %3942 = vmatpush2.msra.mxu0 0.0
    %3943 = vmatprep.subr.mxu0 0.0
    %3944 = vmatpush2.msra.mxu0 0.0
    %3945 = vmatprep.subr.mxu0 0.0
    %3946 = vmatpush2.msra.mxu0 0.0
    %3947 = vmatprep.subr.mxu0 0.0
    %3948 = vmatpush2.msra.mxu0 0.0
    %3949 = vmatprep.subr.mxu0 0.0
    %3950 = vmatpush2.msra.mxu0 0.0
    %3951 = vmatprep.subr.mxu0 0.0
    %3952 = vmatpush2.msra.mxu0 0.0
    %3953 = vmatprep.subr.mxu0 0.0
    %3954 = vmatpush2.msra.mxu0 0.0
    %3955 = vmatprep.mubr.f32.mxu0 0.0
    %3956 = vmatmul.mubr.f32.gmra.mxu0 %v2847
    %v3957 = vpop.f32.mrf.mxu0
    %v3958 = vadd.f32 0.0, %v3957
    %v3959 = vpop.f32.mrf.mxu0
    %3960 = vmatprep.mubr.f32.mxu0 0.0
    %3961 = vmatmul.mubr.f32.gmra.mxu0 %v2852
    %v3962 = vpop.f32.mrf.mxu0
    %v3963 = vadd.f32 0.0, %v3962
    %v3964 = vpop.f32.mrf.mxu0
    %3965 = vdwg.mxu0
    %v3966 = vlaneseq
    %v3967 = vshrl.u32 %v3966, 7
    %v3968 = vsub.s32 0, %v3967
    %v3969 = vrot.slane %v3874, %v3968
    %v3970 = vadd.f32 %v3969, %v3958
    %v3971 = vadd.f32 %v3969, %v3963
    %v3972 = vld [vmem:[#allocation8 + $0x800] sm:$0xff]
    %v3973 = vld [vmem:[#allocation8 + $0x808] sm:$0xff]
    %v3974 = vld [vmem:[#allocation8 + $0x810] sm:$0xff]
    %v3975 = vld [vmem:[#allocation8 + $0x818] sm:$0xff]
    %v3976 = vld [vmem:[#allocation8 + $0x820] sm:$0xff]
    %v3977 = vld [vmem:[#allocation8 + $0x828] sm:$0xff]
    %v3978 = vld [vmem:[#allocation8 + $0x830] sm:$0xff]
    %v3979 = vld [vmem:[#allocation8 + $0x838] sm:$0xff]
    %v3980 = vld [vmem:[#allocation8 + $0x840] sm:$0xff]
    %v3981 = vld [vmem:[#allocation8 + $0x848] sm:$0xff]
    %v3982 = vld [vmem:[#allocation8 + $0x850] sm:$0xff]
    %v3983 = vld [vmem:[#allocation8 + $0x858] sm:$0xff]
    %v3984 = vld [vmem:[#allocation8 + $0x860] sm:$0xff]
    %v3985 = vld [vmem:[#allocation8 + $0x868] sm:$0xff]
    %v3986 = vld [vmem:[#allocation8 + $0x870] sm:$0xff]
    %v3987 = vld [vmem:[#allocation8 + $0x878] sm:$0xff]
    %3988 = vmatprep.subr.mxu0 0.0
    %3989 = vmatpush1.msra.mxu0 %v3987
    %3990 = vmatprep.subr.mxu0 0.0
    %3991 = vmatpush1.msra.mxu0 %v3986
    %3992 = vmatprep.subr.mxu0 0.0
    %3993 = vmatpush1.msra.mxu0 %v3985
    %3994 = vmatprep.subr.mxu0 0.0
    %3995 = vmatpush1.msra.mxu0 %v3984
    %3996 = vmatprep.subr.mxu0 0.0
    %3997 = vmatpush1.msra.mxu0 %v3983
    %3998 = vmatprep.subr.mxu0 0.0
    %3999 = vmatpush1.msra.mxu0 %v3982
    %4000 = vmatprep.subr.mxu0 0.0
    %4001 = vmatpush1.msra.mxu0 %v3981
    %4002 = vmatprep.subr.mxu0 0.0
    %4003 = vmatpush1.msra.mxu0 %v3980
    %4004 = vmatprep.subr.mxu0 0.0
    %4005 = vmatpush1.msra.mxu0 %v3979
    %4006 = vmatprep.subr.mxu0 0.0
    %4007 = vmatpush1.msra.mxu0 %v3978
    %4008 = vmatprep.subr.mxu0 0.0
    %4009 = vmatpush1.msra.mxu0 %v3977
    %4010 = vmatprep.subr.mxu0 0.0
    %4011 = vmatpush1.msra.mxu0 %v3976
    %4012 = vmatprep.subr.mxu0 0.0
    %4013 = vmatpush1.msra.mxu0 %v3975
    %4014 = vmatprep.subr.mxu0 0.0
    %4015 = vmatpush1.msra.mxu0 %v3974
    %4016 = vmatprep.subr.mxu0 0.0
    %4017 = vmatpush1.msra.mxu0 %v3973
    %4018 = vmatprep.subr.mxu0 0.0
    %4019 = vmatpush1.msra.mxu0 %v3972
    %4020 = vmatprep.subr.mxu0 0.0
    %4021 = vmatpush2.msra.mxu0 0.0
    %4022 = vmatprep.subr.mxu0 0.0
    %4023 = vmatpush2.msra.mxu0 0.0
    %4024 = vmatprep.subr.mxu0 0.0
    %4025 = vmatpush2.msra.mxu0 0.0
    %4026 = vmatprep.subr.mxu0 0.0
    %4027 = vmatpush2.msra.mxu0 0.0
    %4028 = vmatprep.subr.mxu0 0.0
    %4029 = vmatpush2.msra.mxu0 0.0
    %4030 = vmatprep.subr.mxu0 0.0
    %4031 = vmatpush2.msra.mxu0 0.0
    %4032 = vmatprep.subr.mxu0 0.0
    %4033 = vmatpush2.msra.mxu0 0.0
    %4034 = vmatprep.subr.mxu0 0.0
    %4035 = vmatpush2.msra.mxu0 0.0
    %4036 = vmatprep.subr.mxu0 0.0
    %4037 = vmatpush2.msra.mxu0 0.0
    %4038 = vmatprep.subr.mxu0 0.0
    %4039 = vmatpush2.msra.mxu0 0.0
    %4040 = vmatprep.subr.mxu0 0.0
    %4041 = vmatpush2.msra.mxu0 0.0
    %4042 = vmatprep.subr.mxu0 0.0
    %4043 = vmatpush2.msra.mxu0 0.0
    %4044 = vmatprep.subr.mxu0 0.0
    %4045 = vmatpush2.msra.mxu0 0.0
    %4046 = vmatprep.subr.mxu0 0.0
    %4047 = vmatpush2.msra.mxu0 0.0
    %4048 = vmatprep.subr.mxu0 0.0
    %4049 = vmatpush2.msra.mxu0 0.0
    %4050 = vmatprep.subr.mxu0 0.0
    %4051 = vmatpush2.msra.mxu0 0.0
    %4052 = vmatprep.mubr.f32.mxu0 0.0
    %4053 = vmatmul.mubr.f32.gmra.mxu0 %v3459
    %v4054 = vpop.f32.mrf.mxu0
    %v4055 = vadd.f32 0.0, %v4054
    %v4056 = vpop.f32.mrf.mxu0
    %4057 = vmatprep.mubr.f32.mxu0 0.0
    %4058 = vmatmul.mubr.f32.gmra.mxu0 %v3529
    %v4059 = vpop.f32.mrf.mxu0
    %v4060 = vadd.f32 0.0, %v4059
    %v4061 = vpop.f32.mrf.mxu0
    %4062 = vdwg.mxu0
    %v4063 = vadd.f32 %v3970, %v4055
    %v4064 = vadd.f32 %v3971, %v4060
    %v4065 = vmax.f32 %v4063, 0.0
    %v4066 = vmax.f32 %v4064, 0.0
    %v4067 = vld [vmem:[#allocation10 + $0x580] sm:$0xff]
    %v4068 = vld [vmem:[#allocation10 + $0x588] sm:$0xff]
    %v4069 = vld [vmem:[#allocation10 + $0x590] sm:$0xff]
    %v4070 = vld [vmem:[#allocation10 + $0x598] sm:$0xff]
    %v4071 = vld [vmem:[#allocation10 + $0x5a0] sm:$0xff]
    %v4072 = vld [vmem:[#allocation10 + $0x5a8] sm:$0xff]
    %v4073 = vld [vmem:[#allocation10 + $0x5b0] sm:$0xff]
    %v4074 = vld [vmem:[#allocation10 + $0x5b8] sm:$0xff]
    %v4075 = vld [vmem:[#allocation10 + $0x5c0] sm:$0xff]
    %v4076 = vld [vmem:[#allocation10 + $0x5c8] sm:$0xff]
    %v4077 = vld [vmem:[#allocation10 + $0x5d0] sm:$0xff]
    %v4078 = vld [vmem:[#allocation10 + $0x5d8] sm:$0xff]
    %v4079 = vld [vmem:[#allocation10 + $0x5e0] sm:$0xff]
    %v4080 = vld [vmem:[#allocation10 + $0x5e8] sm:$0xff]
    %v4081 = vld [vmem:[#allocation10 + $0x5f0] sm:$0xff]
    %v4082 = vld [vmem:[#allocation10 + $0x5f8] sm:$0xff]
    %v4083 = vld [vmem:[#allocation13 + $0x13] ss:$0 sm:$0xff]
    %4084 = vmatprep.subr.mxu0 0.0
    %4085 = vmatpush1.xpose.msra.mxu0 %v4082
    %4086 = vmatprep.subr.mxu0 0.0
    %4087 = vmatpush1.xpose.msra.mxu0 %v4081
    %4088 = vmatprep.subr.mxu0 0.0
    %4089 = vmatpush1.xpose.msra.mxu0 %v4080
    %4090 = vmatprep.subr.mxu0 0.0
    %4091 = vmatpush1.xpose.msra.mxu0 %v4079
    %4092 = vmatprep.subr.mxu0 0.0
    %4093 = vmatpush1.xpose.msra.mxu0 %v4078
    %4094 = vmatprep.subr.mxu0 0.0
    %4095 = vmatpush1.xpose.msra.mxu0 %v4077
    %4096 = vmatprep.subr.mxu0 0.0
    %4097 = vmatpush1.xpose.msra.mxu0 %v4076
    %4098 = vmatprep.subr.mxu0 0.0
    %4099 = vmatpush1.xpose.msra.mxu0 %v4075
    %4100 = vmatprep.subr.mxu0 0.0
    %4101 = vmatpush1.xpose.msra.mxu0 %v4074
    %4102 = vmatprep.subr.mxu0 0.0
    %4103 = vmatpush1.xpose.msra.mxu0 %v4073
    %4104 = vmatprep.subr.mxu0 0.0
    %4105 = vmatpush1.xpose.msra.mxu0 %v4072
    %4106 = vmatprep.subr.mxu0 0.0
    %4107 = vmatpush1.xpose.msra.mxu0 %v4071
    %4108 = vmatprep.subr.mxu0 0.0
    %4109 = vmatpush1.xpose.msra.mxu0 %v4070
    %4110 = vmatprep.subr.mxu0 0.0
    %4111 = vmatpush1.xpose.msra.mxu0 %v4069
    %4112 = vmatprep.subr.mxu0 0.0
    %4113 = vmatpush1.xpose.msra.mxu0 %v4068
    %4114 = vmatprep.subr.mxu0 0.0
    %4115 = vmatpush1.xpose.msra.mxu0 %v4067
    %4116 = vmatprep.subr.mxu0 0.0
    %4117 = vmatpush2.xpose.msra.mxu0 0.0
    %4118 = vmatprep.subr.mxu0 0.0
    %4119 = vmatpush2.xpose.msra.mxu0 0.0
    %4120 = vmatprep.subr.mxu0 0.0
    %4121 = vmatpush2.xpose.msra.mxu0 0.0
    %4122 = vmatprep.subr.mxu0 0.0
    %4123 = vmatpush2.xpose.msra.mxu0 0.0
    %4124 = vmatprep.subr.mxu0 0.0
    %4125 = vmatpush2.xpose.msra.mxu0 0.0
    %4126 = vmatprep.subr.mxu0 0.0
    %4127 = vmatpush2.xpose.msra.mxu0 0.0
    %4128 = vmatprep.subr.mxu0 0.0
    %4129 = vmatpush2.xpose.msra.mxu0 0.0
    %4130 = vmatprep.subr.mxu0 0.0
    %4131 = vmatpush2.xpose.msra.mxu0 0.0
    %4132 = vmatprep.subr.mxu0 0.0
    %4133 = vmatpush2.xpose.msra.mxu0 0.0
    %4134 = vmatprep.subr.mxu0 0.0
    %4135 = vmatpush2.xpose.msra.mxu0 0.0
    %4136 = vmatprep.subr.mxu0 0.0
    %4137 = vmatpush2.xpose.msra.mxu0 0.0
    %4138 = vmatprep.subr.mxu0 0.0
    %4139 = vmatpush2.xpose.msra.mxu0 0.0
    %4140 = vmatprep.subr.mxu0 0.0
    %4141 = vmatpush2.xpose.msra.mxu0 0.0
    %4142 = vmatprep.subr.mxu0 0.0
    %4143 = vmatpush2.xpose.msra.mxu0 0.0
    %4144 = vmatprep.subr.mxu0 0.0
    %4145 = vmatpush2.xpose.msra.mxu0 0.0
    %4146 = vmatprep.subr.mxu0 0.0
    %4147 = vmatpush2.xpose.msra.mxu0 0.0
    %4148 = vmatprep.mubr.f32.mxu0 0.0
    %4149 = vmatmul.mubr.f32.gmra.mxu0 %v4065
    %v4150 = vpop.f32.mrf.mxu0
    %v4151 = vadd.f32 %v4083, %v4150
    %v4152 = vpop.f32.mrf.mxu0
    %4153 = vmatprep.mubr.f32.mxu0 0.0
    %4154 = vmatmul.mubr.f32.gmra.mxu0 %v4066
    %v4155 = vpop.f32.mrf.mxu0
    %v4156 = vadd.f32 %v4083, %v4155
    %v4157 = vpop.f32.mrf.mxu0
    %4158 = vdwg.mxu0
    %v4159 = vld [vmem:[#allocation11 + $0xd] sm:$0x1]
    %v4160 = vld [vmem:[#allocation8 + $0x900] sm:$0xff]
    %v4161 = vld [vmem:[#allocation8 + $0x908] sm:$0xff]
    %v4162 = vld [vmem:[#allocation8 + $0x910] sm:$0xff]
    %v4163 = vld [vmem:[#allocation8 + $0x918] sm:$0xff]
    %v4164 = vld [vmem:[#allocation8 + $0x920] sm:$0xff]
    %v4165 = vld [vmem:[#allocation8 + $0x928] sm:$0xff]
    %v4166 = vld [vmem:[#allocation8 + $0x930] sm:$0xff]
    %v4167 = vld [vmem:[#allocation8 + $0x938] sm:$0xff]
    %v4168 = vld [vmem:[#allocation8 + $0x940] sm:$0xff]
    %v4169 = vld [vmem:[#allocation8 + $0x948] sm:$0xff]
    %v4170 = vld [vmem:[#allocation8 + $0x950] sm:$0xff]
    %v4171 = vld [vmem:[#allocation8 + $0x958] sm:$0xff]
    %v4172 = vld [vmem:[#allocation8 + $0x960] sm:$0xff]
    %v4173 = vld [vmem:[#allocation8 + $0x968] sm:$0xff]
    %v4174 = vld [vmem:[#allocation8 + $0x970] sm:$0xff]
    %v4175 = vld [vmem:[#allocation8 + $0x978] sm:$0xff]
    %4176 = vmatprep.subr.mxu0 0.0
    %4177 = vmatpush1.msra.mxu0 %v4175
    %4178 = vmatprep.subr.mxu0 0.0
    %4179 = vmatpush1.msra.mxu0 %v4174
    %4180 = vmatprep.subr.mxu0 0.0
    %4181 = vmatpush1.msra.mxu0 %v4173
    %4182 = vmatprep.subr.mxu0 0.0
    %4183 = vmatpush1.msra.mxu0 %v4172
    %4184 = vmatprep.subr.mxu0 0.0
    %4185 = vmatpush1.msra.mxu0 %v4171
    %4186 = vmatprep.subr.mxu0 0.0
    %4187 = vmatpush1.msra.mxu0 %v4170
    %4188 = vmatprep.subr.mxu0 0.0
    %4189 = vmatpush1.msra.mxu0 %v4169
    %4190 = vmatprep.subr.mxu0 0.0
    %4191 = vmatpush1.msra.mxu0 %v4168
    %4192 = vmatprep.subr.mxu0 0.0
    %4193 = vmatpush1.msra.mxu0 %v4167
    %4194 = vmatprep.subr.mxu0 0.0
    %4195 = vmatpush1.msra.mxu0 %v4166
    %4196 = vmatprep.subr.mxu0 0.0
    %4197 = vmatpush1.msra.mxu0 %v4165
    %4198 = vmatprep.subr.mxu0 0.0
    %4199 = vmatpush1.msra.mxu0 %v4164
    %4200 = vmatprep.subr.mxu0 0.0
    %4201 = vmatpush1.msra.mxu0 %v4163
    %4202 = vmatprep.subr.mxu0 0.0
    %4203 = vmatpush1.msra.mxu0 %v4162
    %4204 = vmatprep.subr.mxu0 0.0
    %4205 = vmatpush1.msra.mxu0 %v4161
    %4206 = vmatprep.subr.mxu0 0.0
    %4207 = vmatpush1.msra.mxu0 %v4160
    %4208 = vmatprep.subr.mxu0 0.0
    %4209 = vmatpush2.msra.mxu0 0.0
    %4210 = vmatprep.subr.mxu0 0.0
    %4211 = vmatpush2.msra.mxu0 0.0
    %4212 = vmatprep.subr.mxu0 0.0
    %4213 = vmatpush2.msra.mxu0 0.0
    %4214 = vmatprep.subr.mxu0 0.0
    %4215 = vmatpush2.msra.mxu0 0.0
    %4216 = vmatprep.subr.mxu0 0.0
    %4217 = vmatpush2.msra.mxu0 0.0
    %4218 = vmatprep.subr.mxu0 0.0
    %4219 = vmatpush2.msra.mxu0 0.0
    %4220 = vmatprep.subr.mxu0 0.0
    %4221 = vmatpush2.msra.mxu0 0.0
    %4222 = vmatprep.subr.mxu0 0.0
    %4223 = vmatpush2.msra.mxu0 0.0
    %4224 = vmatprep.subr.mxu0 0.0
    %4225 = vmatpush2.msra.mxu0 0.0
    %4226 = vmatprep.subr.mxu0 0.0
    %4227 = vmatpush2.msra.mxu0 0.0
    %4228 = vmatprep.subr.mxu0 0.0
    %4229 = vmatpush2.msra.mxu0 0.0
    %4230 = vmatprep.subr.mxu0 0.0
    %4231 = vmatpush2.msra.mxu0 0.0
    %4232 = vmatprep.subr.mxu0 0.0
    %4233 = vmatpush2.msra.mxu0 0.0
    %4234 = vmatprep.subr.mxu0 0.0
    %4235 = vmatpush2.msra.mxu0 0.0
    %4236 = vmatprep.subr.mxu0 0.0
    %4237 = vmatpush2.msra.mxu0 0.0
    %4238 = vmatprep.subr.mxu0 0.0
    %4239 = vmatpush2.msra.mxu0 0.0
    %4240 = vmatprep.mubr.f32.mxu0 0.0
    %4241 = vmatmul.mubr.f32.gmra.mxu0 %v3158
    %v4242 = vpop.f32.mrf.mxu0
    %v4243 = vadd.f32 0.0, %v4242
    %v4244 = vpop.f32.mrf.mxu0
    %4245 = vmatprep.mubr.f32.mxu0 0.0
    %4246 = vmatmul.mubr.f32.gmra.mxu0 %v3163
    %v4247 = vpop.f32.mrf.mxu0
    %v4248 = vadd.f32 0.0, %v4247
    %v4249 = vpop.f32.mrf.mxu0
    %4250 = vmatprep.mubr.f32.mxu0 0.0
    %4251 = vmatmul.mubr.f32.gmra.mxu0 %v3168
    %v4252 = vpop.f32.mrf.mxu0
    %v4253 = vadd.f32 0.0, %v4252
    %v4254 = vpop.f32.mrf.mxu0
    %4255 = vmatprep.mubr.f32.mxu0 0.0
    %4256 = vmatmul.mubr.f32.gmra.mxu0 %v3173
    %v4257 = vpop.f32.mrf.mxu0
    %v4258 = vadd.f32 0.0, %v4257
    %v4259 = vpop.f32.mrf.mxu0
    %4260 = vdwg.mxu0
    %v4261 = vlaneseq
    %v4262 = vshrl.u32 %v4261, 7
    %v4263 = vsub.s32 0, %v4262
    %v4264 = vrot.slane %v4159, %v4263
    %v4265 = vadd.f32 %v4264, %v4243
    %v4266 = vadd.f32 %v4264, %v4248
    %v4267 = vadd.f32 %v4264, %v4253
    %v4268 = vadd.f32 %v4264, %v4258
    %v4269 = vld [vmem:[#allocation8 + $0x980] sm:$0xff]
    %v4270 = vld [vmem:[#allocation8 + $0x988] sm:$0xff]
    %v4271 = vld [vmem:[#allocation8 + $0x990] sm:$0xff]
    %v4272 = vld [vmem:[#allocation8 + $0x998] sm:$0xff]
    %v4273 = vld [vmem:[#allocation8 + $0x9a0] sm:$0xff]
    %v4274 = vld [vmem:[#allocation8 + $0x9a8] sm:$0xff]
    %v4275 = vld [vmem:[#allocation8 + $0x9b0] sm:$0xff]
    %v4276 = vld [vmem:[#allocation8 + $0x9b8] sm:$0xff]
    %v4277 = vld [vmem:[#allocation8 + $0x9c0] sm:$0xff]
    %v4278 = vld [vmem:[#allocation8 + $0x9c8] sm:$0xff]
    %v4279 = vld [vmem:[#allocation8 + $0x9d0] sm:$0xff]
    %v4280 = vld [vmem:[#allocation8 + $0x9d8] sm:$0xff]
    %v4281 = vld [vmem:[#allocation8 + $0x9e0] sm:$0xff]
    %v4282 = vld [vmem:[#allocation8 + $0x9e8] sm:$0xff]
    %v4283 = vld [vmem:[#allocation8 + $0x9f0] sm:$0xff]
    %v4284 = vld [vmem:[#allocation8 + $0x9f8] sm:$0xff]
    %4285 = vmatprep.subr.mxu0 0.0
    %4286 = vmatpush1.msra.mxu0 %v4284
    %4287 = vmatprep.subr.mxu0 0.0
    %4288 = vmatpush1.msra.mxu0 %v4283
    %4289 = vmatprep.subr.mxu0 0.0
    %4290 = vmatpush1.msra.mxu0 %v4282
    %4291 = vmatprep.subr.mxu0 0.0
    %4292 = vmatpush1.msra.mxu0 %v4281
    %4293 = vmatprep.subr.mxu0 0.0
    %4294 = vmatpush1.msra.mxu0 %v4280
    %4295 = vmatprep.subr.mxu0 0.0
    %4296 = vmatpush1.msra.mxu0 %v4279
    %4297 = vmatprep.subr.mxu0 0.0
    %4298 = vmatpush1.msra.mxu0 %v4278
    %4299 = vmatprep.subr.mxu0 0.0
    %4300 = vmatpush1.msra.mxu0 %v4277
    %4301 = vmatprep.subr.mxu0 0.0
    %4302 = vmatpush1.msra.mxu0 %v4276
    %4303 = vmatprep.subr.mxu0 0.0
    %4304 = vmatpush1.msra.mxu0 %v4275
    %4305 = vmatprep.subr.mxu0 0.0
    %4306 = vmatpush1.msra.mxu0 %v4274
    %4307 = vmatprep.subr.mxu0 0.0
    %4308 = vmatpush1.msra.mxu0 %v4273
    %4309 = vmatprep.subr.mxu0 0.0
    %4310 = vmatpush1.msra.mxu0 %v4272
    %4311 = vmatprep.subr.mxu0 0.0
    %4312 = vmatpush1.msra.mxu0 %v4271
    %4313 = vmatprep.subr.mxu0 0.0
    %4314 = vmatpush1.msra.mxu0 %v4270
    %4315 = vmatprep.subr.mxu0 0.0
    %4316 = vmatpush1.msra.mxu0 %v4269
    %4317 = vmatprep.subr.mxu0 0.0
    %4318 = vmatpush2.msra.mxu0 0.0
    %4319 = vmatprep.subr.mxu0 0.0
    %4320 = vmatpush2.msra.mxu0 0.0
    %4321 = vmatprep.subr.mxu0 0.0
    %4322 = vmatpush2.msra.mxu0 0.0
    %4323 = vmatprep.subr.mxu0 0.0
    %4324 = vmatpush2.msra.mxu0 0.0
    %4325 = vmatprep.subr.mxu0 0.0
    %4326 = vmatpush2.msra.mxu0 0.0
    %4327 = vmatprep.subr.mxu0 0.0
    %4328 = vmatpush2.msra.mxu0 0.0
    %4329 = vmatprep.subr.mxu0 0.0
    %4330 = vmatpush2.msra.mxu0 0.0
    %4331 = vmatprep.subr.mxu0 0.0
    %4332 = vmatpush2.msra.mxu0 0.0
    %4333 = vmatprep.subr.mxu0 0.0
    %4334 = vmatpush2.msra.mxu0 0.0
    %4335 = vmatprep.subr.mxu0 0.0
    %4336 = vmatpush2.msra.mxu0 0.0
    %4337 = vmatprep.subr.mxu0 0.0
    %4338 = vmatpush2.msra.mxu0 0.0
    %4339 = vmatprep.subr.mxu0 0.0
    %4340 = vmatpush2.msra.mxu0 0.0
    %4341 = vmatprep.subr.mxu0 0.0
    %4342 = vmatpush2.msra.mxu0 0.0
    %4343 = vmatprep.subr.mxu0 0.0
    %4344 = vmatpush2.msra.mxu0 0.0
    %4345 = vmatprep.subr.mxu0 0.0
    %4346 = vmatpush2.msra.mxu0 0.0
    %4347 = vmatprep.subr.mxu0 0.0
    %4348 = vmatpush2.msra.mxu0 0.0
    %4349 = vmatprep.mubr.f32.mxu0 0.0
    %4350 = vmatmul.mubr.f32.gmra.mxu0 %v3791
    %v4351 = vpop.f32.mrf.mxu0
    %v4352 = vadd.f32 0.0, %v4351
    %v4353 = vpop.f32.mrf.mxu0
    %4354 = vmatprep.mubr.f32.mxu0 0.0
    %4355 = vmatmul.mubr.f32.gmra.mxu0 %v3796
    %v4356 = vpop.f32.mrf.mxu0
    %v4357 = vadd.f32 0.0, %v4356
    %v4358 = vpop.f32.mrf.mxu0
    %4359 = vmatprep.mubr.f32.mxu0 0.0
    %4360 = vmatmul.mubr.f32.gmra.mxu0 %v3866
    %v4361 = vpop.f32.mrf.mxu0
    %v4362 = vadd.f32 0.0, %v4361
    %v4363 = vpop.f32.mrf.mxu0
    %4364 = vmatprep.mubr.f32.mxu0 0.0
    %4365 = vmatmul.mubr.f32.gmra.mxu0 %v3871
    %v4366 = vpop.f32.mrf.mxu0
    %v4367 = vadd.f32 0.0, %v4366
    %v4368 = vpop.f32.mrf.mxu0
    %4369 = vdwg.mxu0
    %v4370 = vadd.f32 %v4265, %v4352
    %v4371 = vadd.f32 %v4266, %v4357
    %v4372 = vadd.f32 %v4267, %v4362
    %v4373 = vadd.f32 %v4268, %v4367
    %v4374 = vmax.f32 %v4370, 0.0
    %v4375 = vmax.f32 %v4371, 0.0
    %v4376 = vmax.f32 %v4372, 0.0
    %v4377 = vmax.f32 %v4373, 0.0
    %v4378 = vld [vmem:[#allocation10 + $0x680] sm:$0xff]
    %v4379 = vld [vmem:[#allocation10 + $0x688] sm:$0xff]
    %v4380 = vld [vmem:[#allocation10 + $0x690] sm:$0xff]
    %v4381 = vld [vmem:[#allocation10 + $0x698] sm:$0xff]
    %v4382 = vld [vmem:[#allocation10 + $0x6a0] sm:$0xff]
    %v4383 = vld [vmem:[#allocation10 + $0x6a8] sm:$0xff]
    %v4384 = vld [vmem:[#allocation10 + $0x6b0] sm:$0xff]
    %v4385 = vld [vmem:[#allocation10 + $0x6b8] sm:$0xff]
    %v4386 = vld [vmem:[#allocation10 + $0x6c0] sm:$0xff]
    %v4387 = vld [vmem:[#allocation10 + $0x6c8] sm:$0xff]
    %v4388 = vld [vmem:[#allocation10 + $0x6d0] sm:$0xff]
    %v4389 = vld [vmem:[#allocation10 + $0x6d8] sm:$0xff]
    %v4390 = vld [vmem:[#allocation10 + $0x6e0] sm:$0xff]
    %v4391 = vld [vmem:[#allocation10 + $0x6e8] sm:$0xff]
    %v4392 = vld [vmem:[#allocation10 + $0x6f0] sm:$0xff]
    %v4393 = vld [vmem:[#allocation10 + $0x6f8] sm:$0xff]
    %v4394 = vld [vmem:[#allocation13 + $0x15] ss:$0 sm:$0xff]
    %4395 = vmatprep.subr.mxu0 0.0
    %4396 = vmatpush1.xpose.msra.mxu0 %v4393
    %4397 = vmatprep.subr.mxu0 0.0
    %4398 = vmatpush1.xpose.msra.mxu0 %v4392
    %4399 = vmatprep.subr.mxu0 0.0
    %4400 = vmatpush1.xpose.msra.mxu0 %v4391
    %4401 = vmatprep.subr.mxu0 0.0
    %4402 = vmatpush1.xpose.msra.mxu0 %v4390
    %4403 = vmatprep.subr.mxu0 0.0
    %4404 = vmatpush1.xpose.msra.mxu0 %v4389
    %4405 = vmatprep.subr.mxu0 0.0
    %4406 = vmatpush1.xpose.msra.mxu0 %v4388
    %4407 = vmatprep.subr.mxu0 0.0
    %4408 = vmatpush1.xpose.msra.mxu0 %v4387
    %4409 = vmatprep.subr.mxu0 0.0
    %4410 = vmatpush1.xpose.msra.mxu0 %v4386
    %4411 = vmatprep.subr.mxu0 0.0
    %4412 = vmatpush1.xpose.msra.mxu0 %v4385
    %4413 = vmatprep.subr.mxu0 0.0
    %4414 = vmatpush1.xpose.msra.mxu0 %v4384
    %4415 = vmatprep.subr.mxu0 0.0
    %4416 = vmatpush1.xpose.msra.mxu0 %v4383
    %4417 = vmatprep.subr.mxu0 0.0
    %4418 = vmatpush1.xpose.msra.mxu0 %v4382
    %4419 = vmatprep.subr.mxu0 0.0
    %4420 = vmatpush1.xpose.msra.mxu0 %v4381
    %4421 = vmatprep.subr.mxu0 0.0
    %4422 = vmatpush1.xpose.msra.mxu0 %v4380
    %4423 = vmatprep.subr.mxu0 0.0
    %4424 = vmatpush1.xpose.msra.mxu0 %v4379
    %4425 = vmatprep.subr.mxu0 0.0
    %4426 = vmatpush1.xpose.msra.mxu0 %v4378
    %4427 = vmatprep.subr.mxu0 0.0
    %4428 = vmatpush2.xpose.msra.mxu0 0.0
    %4429 = vmatprep.subr.mxu0 0.0
    %4430 = vmatpush2.xpose.msra.mxu0 0.0
    %4431 = vmatprep.subr.mxu0 0.0
    %4432 = vmatpush2.xpose.msra.mxu0 0.0
    %4433 = vmatprep.subr.mxu0 0.0
    %4434 = vmatpush2.xpose.msra.mxu0 0.0
    %4435 = vmatprep.subr.mxu0 0.0
    %4436 = vmatpush2.xpose.msra.mxu0 0.0
    %4437 = vmatprep.subr.mxu0 0.0
    %4438 = vmatpush2.xpose.msra.mxu0 0.0
    %4439 = vmatprep.subr.mxu0 0.0
    %4440 = vmatpush2.xpose.msra.mxu0 0.0
    %4441 = vmatprep.subr.mxu0 0.0
    %4442 = vmatpush2.xpose.msra.mxu0 0.0
    %4443 = vmatprep.subr.mxu0 0.0
    %4444 = vmatpush2.xpose.msra.mxu0 0.0
    %4445 = vmatprep.subr.mxu0 0.0
    %4446 = vmatpush2.xpose.msra.mxu0 0.0
    %4447 = vmatprep.subr.mxu0 0.0
    %4448 = vmatpush2.xpose.msra.mxu0 0.0
    %4449 = vmatprep.subr.mxu0 0.0
    %4450 = vmatpush2.xpose.msra.mxu0 0.0
    %4451 = vmatprep.subr.mxu0 0.0
    %4452 = vmatpush2.xpose.msra.mxu0 0.0
    %4453 = vmatprep.subr.mxu0 0.0
    %4454 = vmatpush2.xpose.msra.mxu0 0.0
    %4455 = vmatprep.subr.mxu0 0.0
    %4456 = vmatpush2.xpose.msra.mxu0 0.0
    %4457 = vmatprep.subr.mxu0 0.0
    %4458 = vmatpush2.xpose.msra.mxu0 0.0
    %4459 = vmatprep.mubr.f32.mxu0 0.0
    %4460 = vmatmul.mubr.f32.gmra.mxu0 %v4374
    %v4461 = vpop.f32.mrf.mxu0
    %v4462 = vadd.f32 %v4394, %v4461
    %v4463 = vpop.f32.mrf.mxu0
    %4464 = vmatprep.mubr.f32.mxu0 0.0
    %4465 = vmatmul.mubr.f32.gmra.mxu0 %v4375
    %v4466 = vpop.f32.mrf.mxu0
    %v4467 = vadd.f32 %v4394, %v4466
    %v4468 = vpop.f32.mrf.mxu0
    %4469 = vmatprep.mubr.f32.mxu0 0.0
    %4470 = vmatmul.mubr.f32.gmra.mxu0 %v4376
    %v4471 = vpop.f32.mrf.mxu0
    %v4472 = vadd.f32 %v4394, %v4471
    %v4473 = vpop.f32.mrf.mxu0
    %4474 = vmatprep.mubr.f32.mxu0 0.0
    %4475 = vmatmul.mubr.f32.gmra.mxu0 %v4377
    %v4476 = vpop.f32.mrf.mxu0
    %v4477 = vadd.f32 %v4394, %v4476
    %v4478 = vpop.f32.mrf.mxu0
    %4479 = vdwg.mxu0
    %v4480 = vld [vmem:[#allocation11 + $0x10] sm:$0x1]
    %v4481 = vld [vmem:[#allocation8 + $0xc00] sm:$0xff]
    %v4482 = vld [vmem:[#allocation8 + $0xc08] sm:$0xff]
    %v4483 = vld [vmem:[#allocation8 + $0xc10] sm:$0xff]
    %v4484 = vld [vmem:[#allocation8 + $0xc18] sm:$0xff]
    %v4485 = vld [vmem:[#allocation8 + $0xc20] sm:$0xff]
    %v4486 = vld [vmem:[#allocation8 + $0xc28] sm:$0xff]
    %v4487 = vld [vmem:[#allocation8 + $0xc30] sm:$0xff]
    %v4488 = vld [vmem:[#allocation8 + $0xc38] sm:$0xff]
    %v4489 = vld [vmem:[#allocation8 + $0xc40] sm:$0xff]
    %v4490 = vld [vmem:[#allocation8 + $0xc48] sm:$0xff]
    %v4491 = vld [vmem:[#allocation8 + $0xc50] sm:$0xff]
    %v4492 = vld [vmem:[#allocation8 + $0xc58] sm:$0xff]
    %v4493 = vld [vmem:[#allocation8 + $0xc60] sm:$0xff]
    %v4494 = vld [vmem:[#allocation8 + $0xc68] sm:$0xff]
    %v4495 = vld [vmem:[#allocation8 + $0xc70] sm:$0xff]
    %v4496 = vld [vmem:[#allocation8 + $0xc78] sm:$0xff]
    %4497 = vmatprep.subr.mxu0 0.0
    %4498 = vmatpush1.msra.mxu0 %v4496
    %4499 = vmatprep.subr.mxu0 0.0
    %4500 = vmatpush1.msra.mxu0 %v4495
    %4501 = vmatprep.subr.mxu0 0.0
    %4502 = vmatpush1.msra.mxu0 %v4494
    %4503 = vmatprep.subr.mxu0 0.0
    %4504 = vmatpush1.msra.mxu0 %v4493
    %4505 = vmatprep.subr.mxu0 0.0
    %4506 = vmatpush1.msra.mxu0 %v4492
    %4507 = vmatprep.subr.mxu0 0.0
    %4508 = vmatpush1.msra.mxu0 %v4491
    %4509 = vmatprep.subr.mxu0 0.0
    %4510 = vmatpush1.msra.mxu0 %v4490
    %4511 = vmatprep.subr.mxu0 0.0
    %4512 = vmatpush1.msra.mxu0 %v4489
    %4513 = vmatprep.subr.mxu0 0.0
    %4514 = vmatpush1.msra.mxu0 %v4488
    %4515 = vmatprep.subr.mxu0 0.0
    %4516 = vmatpush1.msra.mxu0 %v4487
    %4517 = vmatprep.subr.mxu0 0.0
    %4518 = vmatpush1.msra.mxu0 %v4486
    %4519 = vmatprep.subr.mxu0 0.0
    %4520 = vmatpush1.msra.mxu0 %v4485
    %4521 = vmatprep.subr.mxu0 0.0
    %4522 = vmatpush1.msra.mxu0 %v4484
    %4523 = vmatprep.subr.mxu0 0.0
    %4524 = vmatpush1.msra.mxu0 %v4483
    %4525 = vmatprep.subr.mxu0 0.0
    %4526 = vmatpush1.msra.mxu0 %v4482
    %4527 = vmatprep.subr.mxu0 0.0
    %4528 = vmatpush1.msra.mxu0 %v4481
    %4529 = vmatprep.subr.mxu0 0.0
    %4530 = vmatpush2.msra.mxu0 0.0
    %4531 = vmatprep.subr.mxu0 0.0
    %4532 = vmatpush2.msra.mxu0 0.0
    %4533 = vmatprep.subr.mxu0 0.0
    %4534 = vmatpush2.msra.mxu0 0.0
    %4535 = vmatprep.subr.mxu0 0.0
    %4536 = vmatpush2.msra.mxu0 0.0
    %4537 = vmatprep.subr.mxu0 0.0
    %4538 = vmatpush2.msra.mxu0 0.0
    %4539 = vmatprep.subr.mxu0 0.0
    %4540 = vmatpush2.msra.mxu0 0.0
    %4541 = vmatprep.subr.mxu0 0.0
    %4542 = vmatpush2.msra.mxu0 0.0
    %4543 = vmatprep.subr.mxu0 0.0
    %4544 = vmatpush2.msra.mxu0 0.0
    %4545 = vmatprep.subr.mxu0 0.0
    %4546 = vmatpush2.msra.mxu0 0.0
    %4547 = vmatprep.subr.mxu0 0.0
    %4548 = vmatpush2.msra.mxu0 0.0
    %4549 = vmatprep.subr.mxu0 0.0
    %4550 = vmatpush2.msra.mxu0 0.0
    %4551 = vmatprep.subr.mxu0 0.0
    %4552 = vmatpush2.msra.mxu0 0.0
    %4553 = vmatprep.subr.mxu0 0.0
    %4554 = vmatpush2.msra.mxu0 0.0
    %4555 = vmatprep.subr.mxu0 0.0
    %4556 = vmatpush2.msra.mxu0 0.0
    %4557 = vmatprep.subr.mxu0 0.0
    %4558 = vmatpush2.msra.mxu0 0.0
    %4559 = vmatprep.subr.mxu0 0.0
    %4560 = vmatpush2.msra.mxu0 0.0
    %4561 = vmatprep.mubr.f32.mxu0 0.0
    %4562 = vmatmul.mubr.f32.gmra.mxu0 %v4462
    %v4563 = vpop.f32.mrf.mxu0
    %v4564 = vadd.f32 0.0, %v4563
    %v4565 = vpop.f32.mrf.mxu0
    %4566 = vmatprep.mubr.f32.mxu0 0.0
    %4567 = vmatmul.mubr.f32.gmra.mxu0 %v4467
    %v4568 = vpop.f32.mrf.mxu0
    %v4569 = vadd.f32 0.0, %v4568
    %v4570 = vpop.f32.mrf.mxu0
    %4571 = vmatprep.mubr.f32.mxu0 0.0
    %4572 = vmatmul.mubr.f32.gmra.mxu0 %v4472
    %v4573 = vpop.f32.mrf.mxu0
    %v4574 = vadd.f32 0.0, %v4573
    %v4575 = vpop.f32.mrf.mxu0
    %4576 = vmatprep.mubr.f32.mxu0 0.0
    %4577 = vmatmul.mubr.f32.gmra.mxu0 %v4477
    %v4578 = vpop.f32.mrf.mxu0
    %v4579 = vadd.f32 0.0, %v4578
    %v4580 = vpop.f32.mrf.mxu0
    %4581 = vdwg.mxu0
    %v4582 = vlaneseq
    %v4583 = vshrl.u32 %v4582, 7
    %v4584 = vsub.s32 0, %v4583
    %v4585 = vrot.slane %v4480, %v4584
    %v4586 = vadd.f32 %v4585, %v4564
    %v4587 = vadd.f32 %v4585, %v4569
    %v4588 = vadd.f32 %v4585, %v4574
    %v4589 = vadd.f32 %v4585, %v4579
    %v4590 = vmax.f32 %v4586, 0.0
    %v4591 = vmax.f32 %v4587, 0.0
    %v4592 = vmax.f32 %v4588, 0.0
    %v4593 = vmax.f32 %v4589, 0.0
    %v4594 = vld [vmem:[#allocation10 + $0x900] sm:$0xff]
    %v4595 = vld [vmem:[#allocation10 + $0x908] sm:$0xff]
    %v4596 = vld [vmem:[#allocation10 + $0x910] sm:$0xff]
    %v4597 = vld [vmem:[#allocation10 + $0x918] sm:$0xff]
    %v4598 = vld [vmem:[#allocation10 + $0x920] sm:$0xff]
    %v4599 = vld [vmem:[#allocation10 + $0x928] sm:$0xff]
    %v4600 = vld [vmem:[#allocation10 + $0x930] sm:$0xff]
    %v4601 = vld [vmem:[#allocation10 + $0x938] sm:$0xff]
    %v4602 = vld [vmem:[#allocation10 + $0x940] sm:$0xff]
    %v4603 = vld [vmem:[#allocation10 + $0x948] sm:$0xff]
    %v4604 = vld [vmem:[#allocation10 + $0x950] sm:$0xff]
    %v4605 = vld [vmem:[#allocation10 + $0x958] sm:$0xff]
    %v4606 = vld [vmem:[#allocation10 + $0x960] sm:$0xff]
    %v4607 = vld [vmem:[#allocation10 + $0x968] sm:$0xff]
    %v4608 = vld [vmem:[#allocation10 + $0x970] sm:$0xff]
    %v4609 = vld [vmem:[#allocation10 + $0x978] sm:$0xff]
    %v4610 = vld [vmem:[#allocation10 + $0x980] sm:$0xff]
    %v4611 = vld [vmem:[#allocation10 + $0x988] sm:$0xff]
    %v4612 = vld [vmem:[#allocation10 + $0x990] sm:$0xff]
    %v4613 = vld [vmem:[#allocation10 + $0x998] sm:$0xff]
    %v4614 = vld [vmem:[#allocation10 + $0x9a0] sm:$0xff]
    %v4615 = vld [vmem:[#allocation10 + $0x9a8] sm:$0xff]
    %v4616 = vld [vmem:[#allocation10 + $0x9b0] sm:$0xff]
    %v4617 = vld [vmem:[#allocation10 + $0x9b8] sm:$0xff]
    %v4618 = vld [vmem:[#allocation10 + $0x9c0] sm:$0xff]
    %v4619 = vld [vmem:[#allocation10 + $0x9c8] sm:$0xff]
    %v4620 = vld [vmem:[#allocation10 + $0x9d0] sm:$0xff]
    %v4621 = vld [vmem:[#allocation10 + $0x9d8] sm:$0xff]
    %v4622 = vld [vmem:[#allocation10 + $0x9e0] sm:$0xff]
    %v4623 = vld [vmem:[#allocation10 + $0x9e8] sm:$0xff]
    %v4624 = vld [vmem:[#allocation10 + $0x9f0] sm:$0xff]
    %v4625 = vld [vmem:[#allocation10 + $0x9f8] sm:$0xff]
    %s4626 = scalar_lea.vmem [#allocation13], 32
    %v4627 = vld [vmem:[%s4626] ss:$8 sm:$0x3]
    %v4629 = vlaneseq
    %v4630 = vshrl.u32 %v4629, 7
    %v4631 = vsub.s32 0, %v4630
    %v4632 = vrot.slane %v4627, %v4631
    %v4633 = vlaneseq
    %v4634 = vshrl.u32 %v4633, 7
    %v4635 = vsub.s32 1, %v4634
    %v4636 = vrot.slane %v4627, %v4635
    %4639 = vmatprep.subr.mxu0 0.0
    %4640 = vmatpush1.xpose.msra.mxu0 %v4609
    %4641 = vmatprep.subr.mxu0 0.0
    %4642 = vmatpush1.xpose.msra.mxu0 %v4608
    %4643 = vmatprep.subr.mxu0 0.0
    %4644 = vmatpush1.xpose.msra.mxu0 %v4607
    %4645 = vmatprep.subr.mxu0 0.0
    %4646 = vmatpush1.xpose.msra.mxu0 %v4606
    %4647 = vmatprep.subr.mxu0 0.0
    %4648 = vmatpush1.xpose.msra.mxu0 %v4605
    %4649 = vmatprep.subr.mxu0 0.0
    %4650 = vmatpush1.xpose.msra.mxu0 %v4604
    %4651 = vmatprep.subr.mxu0 0.0
    %4652 = vmatpush1.xpose.msra.mxu0 %v4603
    %4653 = vmatprep.subr.mxu0 0.0
    %4654 = vmatpush1.xpose.msra.mxu0 %v4602
    %4655 = vmatprep.subr.mxu0 0.0
    %4656 = vmatpush1.xpose.msra.mxu0 %v4601
    %4657 = vmatprep.subr.mxu0 0.0
    %4658 = vmatpush1.xpose.msra.mxu0 %v4600
    %4659 = vmatprep.subr.mxu0 0.0
    %4660 = vmatpush1.xpose.msra.mxu0 %v4599
    %4661 = vmatprep.subr.mxu0 0.0
    %4662 = vmatpush1.xpose.msra.mxu0 %v4598
    %4663 = vmatprep.subr.mxu0 0.0
    %4664 = vmatpush1.xpose.msra.mxu0 %v4597
    %4665 = vmatprep.subr.mxu0 0.0
    %4666 = vmatpush1.xpose.msra.mxu0 %v4596
    %4667 = vmatprep.subr.mxu0 0.0
    %4668 = vmatpush1.xpose.msra.mxu0 %v4595
    %4669 = vmatprep.subr.mxu0 0.0
    %4670 = vmatpush1.xpose.msra.mxu0 %v4594
    %4671 = vmatprep.subr.mxu0 0.0
    %4672 = vmatpush2.xpose.msra.mxu0 %v4625
    %4673 = vmatprep.subr.mxu0 0.0
    %4674 = vmatpush2.xpose.msra.mxu0 %v4624
    %4675 = vmatprep.subr.mxu0 0.0
    %4676 = vmatpush2.xpose.msra.mxu0 %v4623
    %4677 = vmatprep.subr.mxu0 0.0
    %4678 = vmatpush2.xpose.msra.mxu0 %v4622
    %4679 = vmatprep.subr.mxu0 0.0
    %4680 = vmatpush2.xpose.msra.mxu0 %v4621
    %4681 = vmatprep.subr.mxu0 0.0
    %4682 = vmatpush2.xpose.msra.mxu0 %v4620
    %4683 = vmatprep.subr.mxu0 0.0
    %4684 = vmatpush2.xpose.msra.mxu0 %v4619
    %4685 = vmatprep.subr.mxu0 0.0
    %4686 = vmatpush2.xpose.msra.mxu0 %v4618
    %4687 = vmatprep.subr.mxu0 0.0
    %4688 = vmatpush2.xpose.msra.mxu0 %v4617
    %4689 = vmatprep.subr.mxu0 0.0
    %4690 = vmatpush2.xpose.msra.mxu0 %v4616
    %4691 = vmatprep.subr.mxu0 0.0
    %4692 = vmatpush2.xpose.msra.mxu0 %v4615
    %4693 = vmatprep.subr.mxu0 0.0
    %4694 = vmatpush2.xpose.msra.mxu0 %v4614
    %4695 = vmatprep.subr.mxu0 0.0
    %4696 = vmatpush2.xpose.msra.mxu0 %v4613
    %4697 = vmatprep.subr.mxu0 0.0
    %4698 = vmatpush2.xpose.msra.mxu0 %v4612
    %4699 = vmatprep.subr.mxu0 0.0
    %4700 = vmatpush2.xpose.msra.mxu0 %v4611
    %4701 = vmatprep.subr.mxu0 0.0
    %4702 = vmatpush2.xpose.msra.mxu0 %v4610
    %4703 = vmatprep.mubr.f32.mxu0 0.0
    %4704 = vmatmul.mubr.f32.gmra.mxu0 %v4590
    %v4705 = vpop.f32.mrf.mxu0
    %v4706 = vadd.f32 %v4632, %v4705
    %v4707 = vpop.f32.mrf.mxu0
    %v4708 = vadd.f32 %v4636, %v4707
    %4709 = vmatprep.mubr.f32.mxu0 0.0
    %4710 = vmatmul.mubr.f32.gmra.mxu0 %v4591
    %v4711 = vpop.f32.mrf.mxu0
    %v4712 = vadd.f32 %v4632, %v4711
    %v4713 = vpop.f32.mrf.mxu0
    %v4714 = vadd.f32 %v4636, %v4713
    %4715 = vmatprep.mubr.f32.mxu0 0.0
    %4716 = vmatmul.mubr.f32.gmra.mxu0 %v4592
    %v4717 = vpop.f32.mrf.mxu0
    %v4718 = vadd.f32 %v4632, %v4717
    %v4719 = vpop.f32.mrf.mxu0
    %v4720 = vadd.f32 %v4636, %v4719
    %4721 = vmatprep.mubr.f32.mxu0 0.0
    %4722 = vmatmul.mubr.f32.gmra.mxu0 %v4593
    %v4723 = vpop.f32.mrf.mxu0
    %v4724 = vadd.f32 %v4632, %v4723
    %v4725 = vpop.f32.mrf.mxu0
    %v4726 = vadd.f32 %v4636, %v4725
    %4727 = vdwg.mxu0
    %4728 = vmatprep.subr.mxu0 0.0
    %4729 = vmatpush1.msra.mxu0 0.0
    %4730 = vmatprep.subr.mxu0 0.0
    %4731 = vmatpush1.msra.mxu0 0.0
    %4732 = vmatprep.subr.mxu0 0.0
    %4733 = vmatpush1.msra.mxu0 0.0
    %4734 = vmatprep.subr.mxu0 0.0
    %4735 = vmatpush1.msra.mxu0 0.0
    %4736 = vmatprep.subr.mxu0 0.0
    %4737 = vmatpush1.msra.mxu0 0.0
    %4738 = vmatprep.subr.mxu0 0.0
    %4739 = vmatpush1.msra.mxu0 0.0
    %4740 = vmatprep.subr.mxu0 0.0
    %4741 = vmatpush1.msra.mxu0 0.0
    %4742 = vmatprep.subr.mxu0 0.0
    %4743 = vmatpush1.msra.mxu0 0.0
    %4744 = vmatprep.subr.mxu0 0.0
    %4745 = vmatpush1.msra.mxu0 0.0
    %4746 = vmatprep.subr.mxu0 0.0
    %4747 = vmatpush1.msra.mxu0 0.0
    %4748 = vmatprep.subr.mxu0 0.0
    %4749 = vmatpush1.msra.mxu0 0.0
    %4750 = vmatprep.subr.mxu0 0.0
    %4751 = vmatpush1.msra.mxu0 0.0
    %4752 = vmatprep.subr.mxu0 0.0
    %4753 = vmatpush1.msra.mxu0 0.0
    %4754 = vmatprep.subr.mxu0 0.0
    %4755 = vmatpush1.msra.mxu0 0.0
    %4756 = vmatprep.subr.mxu0 %v4714
    %4757 = vmatpush1.msra.mxu0 %v4712
    %4758 = vmatprep.subr.mxu0 %v4708
    %4759 = vmatpush1.msra.mxu0 %v4706
    %4760 = vmatprep.subr.mxu0 0.0
    %4761 = vmatpush2.msra.mxu0 0.0
    %4762 = vmatprep.subr.mxu0 0.0
    %4763 = vmatpush2.msra.mxu0 0.0
    %4764 = vmatprep.subr.mxu0 0.0
    %4765 = vmatpush2.msra.mxu0 0.0
    %4766 = vmatprep.subr.mxu0 0.0
    %4767 = vmatpush2.msra.mxu0 0.0
    %4768 = vmatprep.subr.mxu0 0.0
    %4769 = vmatpush2.msra.mxu0 0.0
    %4770 = vmatprep.subr.mxu0 0.0
    %4771 = vmatpush2.msra.mxu0 0.0
    %4772 = vmatprep.subr.mxu0 0.0
    %4773 = vmatpush2.msra.mxu0 0.0
    %4774 = vmatprep.subr.mxu0 0.0
    %4775 = vmatpush2.msra.mxu0 0.0
    %4776 = vmatprep.subr.mxu0 0.0
    %4777 = vmatpush2.msra.mxu0 0.0
    %4778 = vmatprep.subr.mxu0 0.0
    %4779 = vmatpush2.msra.mxu0 0.0
    %4780 = vmatprep.subr.mxu0 0.0
    %4781 = vmatpush2.msra.mxu0 0.0
    %4782 = vmatprep.subr.mxu0 0.0
    %4783 = vmatpush2.msra.mxu0 0.0
    %4784 = vmatprep.subr.mxu0 0.0
    %4785 = vmatpush2.msra.mxu0 0.0
    %4786 = vmatprep.subr.mxu0 0.0
    %4787 = vmatpush2.msra.mxu0 0.0
    %4788 = vmatprep.subr.mxu0 0.0
    %4789 = vmatpush2.msra.mxu0 0.0
    %4790 = vmatprep.subr.mxu0 0.0
    %4791 = vmatpush2.msra.mxu0 0.0
    %4792 = vmatprep.mubr.f32.mxu0 0.0
    %4793 = vmatmul.mubr.f32.gmra.mxu0 %v766
    %v4794 = vpop.f32.mrf.mxu0
    %v4795 = vadd.f32 0.0, %v4794
    %v4796 = vpop.f32.mrf.mxu0
    %v4797 = vadd.f32 0.0, %v4796
    %4798 = vdwg.mxu0
    %4799 = vmatprep.subr.mxu0 0.0
    %4800 = vmatpush1.msra.mxu0 0.0
    %4801 = vmatprep.subr.mxu0 0.0
    %4802 = vmatpush1.msra.mxu0 0.0
    %4803 = vmatprep.subr.mxu0 0.0
    %4804 = vmatpush1.msra.mxu0 0.0
    %4805 = vmatprep.subr.mxu0 0.0
    %4806 = vmatpush1.msra.mxu0 0.0
    %4807 = vmatprep.subr.mxu0 0.0
    %4808 = vmatpush1.msra.mxu0 0.0
    %4809 = vmatprep.subr.mxu0 0.0
    %4810 = vmatpush1.msra.mxu0 0.0
    %4811 = vmatprep.subr.mxu0 0.0
    %4812 = vmatpush1.msra.mxu0 0.0
    %4813 = vmatprep.subr.mxu0 0.0
    %4814 = vmatpush1.msra.mxu0 0.0
    %4815 = vmatprep.subr.mxu0 0.0
    %4816 = vmatpush1.msra.mxu0 0.0
    %4817 = vmatprep.subr.mxu0 0.0
    %4818 = vmatpush1.msra.mxu0 0.0
    %4819 = vmatprep.subr.mxu0 0.0
    %4820 = vmatpush1.msra.mxu0 0.0
    %4821 = vmatprep.subr.mxu0 0.0
    %4822 = vmatpush1.msra.mxu0 0.0
    %4823 = vmatprep.subr.mxu0 0.0
    %4824 = vmatpush1.msra.mxu0 0.0
    %4825 = vmatprep.subr.mxu0 0.0
    %4826 = vmatpush1.msra.mxu0 0.0
    %4827 = vmatprep.subr.mxu0 %v4726
    %4828 = vmatpush1.msra.mxu0 %v4724
    %4829 = vmatprep.subr.mxu0 %v4720
    %4830 = vmatpush1.msra.mxu0 %v4718
    %4831 = vmatprep.subr.mxu0 0.0
    %4832 = vmatpush2.msra.mxu0 0.0
    %4833 = vmatprep.subr.mxu0 0.0
    %4834 = vmatpush2.msra.mxu0 0.0
    %4835 = vmatprep.subr.mxu0 0.0
    %4836 = vmatpush2.msra.mxu0 0.0
    %4837 = vmatprep.subr.mxu0 0.0
    %4838 = vmatpush2.msra.mxu0 0.0
    %4839 = vmatprep.subr.mxu0 0.0
    %4840 = vmatpush2.msra.mxu0 0.0
    %4841 = vmatprep.subr.mxu0 0.0
    %4842 = vmatpush2.msra.mxu0 0.0
    %4843 = vmatprep.subr.mxu0 0.0
    %4844 = vmatpush2.msra.mxu0 0.0
    %4845 = vmatprep.subr.mxu0 0.0
    %4846 = vmatpush2.msra.mxu0 0.0
    %4847 = vmatprep.subr.mxu0 0.0
    %4848 = vmatpush2.msra.mxu0 0.0
    %4849 = vmatprep.subr.mxu0 0.0
    %4850 = vmatpush2.msra.mxu0 0.0
    %4851 = vmatprep.subr.mxu0 0.0
    %4852 = vmatpush2.msra.mxu0 0.0
    %4853 = vmatprep.subr.mxu0 0.0
    %4854 = vmatpush2.msra.mxu0 0.0
    %4855 = vmatprep.subr.mxu0 0.0
    %4856 = vmatpush2.msra.mxu0 0.0
    %4857 = vmatprep.subr.mxu0 0.0
    %4858 = vmatpush2.msra.mxu0 0.0
    %4859 = vmatprep.subr.mxu0 0.0
    %4860 = vmatpush2.msra.mxu0 0.0
    %4861 = vmatprep.subr.mxu0 0.0
    %4862 = vmatpush2.msra.mxu0 0.0
    %4863 = vmatprep.mubr.f32.mxu0 0.0
    %4864 = vmatmul.mubr.f32.gmra.mxu0 %v839
    %v4865 = vpop.f32.mrf.mxu0
    %v4866 = vadd.f32 0.0, %v4865
    %v4867 = vpop.f32.mrf.mxu0
    %v4868 = vadd.f32 0.0, %v4867
    %4869 = vdwg.mxu0
    %v4870 = vld [vmem:[#allocation11 + $0xe] sm:$0x1]
    %v4871 = vld [vmem:[#allocation8 + $0xa00] sm:$0xff]
    %v4872 = vld [vmem:[#allocation8 + $0xa08] sm:$0xff]
    %v4873 = vld [vmem:[#allocation8 + $0xa10] sm:$0xff]
    %v4874 = vld [vmem:[#allocation8 + $0xa18] sm:$0xff]
    %v4875 = vld [vmem:[#allocation8 + $0xa20] sm:$0xff]
    %v4876 = vld [vmem:[#allocation8 + $0xa28] sm:$0xff]
    %v4877 = vld [vmem:[#allocation8 + $0xa30] sm:$0xff]
    %v4878 = vld [vmem:[#allocation8 + $0xa38] sm:$0xff]
    %v4879 = vld [vmem:[#allocation8 + $0xa40] sm:$0xff]
    %v4880 = vld [vmem:[#allocation8 + $0xa48] sm:$0xff]
    %v4881 = vld [vmem:[#allocation8 + $0xa50] sm:$0xff]
    %v4882 = vld [vmem:[#allocation8 + $0xa58] sm:$0xff]
    %v4883 = vld [vmem:[#allocation8 + $0xa60] sm:$0xff]
    %v4884 = vld [vmem:[#allocation8 + $0xa68] sm:$0xff]
    %v4885 = vld [vmem:[#allocation8 + $0xa70] sm:$0xff]
    %v4886 = vld [vmem:[#allocation8 + $0xa78] sm:$0xff]
    %4887 = vmatprep.subr.mxu0 0.0
    %4888 = vmatpush1.msra.mxu0 %v4886
    %4889 = vmatprep.subr.mxu0 0.0
    %4890 = vmatpush1.msra.mxu0 %v4885
    %4891 = vmatprep.subr.mxu0 0.0
    %4892 = vmatpush1.msra.mxu0 %v4884
    %4893 = vmatprep.subr.mxu0 0.0
    %4894 = vmatpush1.msra.mxu0 %v4883
    %4895 = vmatprep.subr.mxu0 0.0
    %4896 = vmatpush1.msra.mxu0 %v4882
    %4897 = vmatprep.subr.mxu0 0.0
    %4898 = vmatpush1.msra.mxu0 %v4881
    %4899 = vmatprep.subr.mxu0 0.0
    %4900 = vmatpush1.msra.mxu0 %v4880
    %4901 = vmatprep.subr.mxu0 0.0
    %4902 = vmatpush1.msra.mxu0 %v4879
    %4903 = vmatprep.subr.mxu0 0.0
    %4904 = vmatpush1.msra.mxu0 %v4878
    %4905 = vmatprep.subr.mxu0 0.0
    %4906 = vmatpush1.msra.mxu0 %v4877
    %4907 = vmatprep.subr.mxu0 0.0
    %4908 = vmatpush1.msra.mxu0 %v4876
    %4909 = vmatprep.subr.mxu0 0.0
    %4910 = vmatpush1.msra.mxu0 %v4875
    %4911 = vmatprep.subr.mxu0 0.0
    %4912 = vmatpush1.msra.mxu0 %v4874
    %4913 = vmatprep.subr.mxu0 0.0
    %4914 = vmatpush1.msra.mxu0 %v4873
    %4915 = vmatprep.subr.mxu0 0.0
    %4916 = vmatpush1.msra.mxu0 %v4872
    %4917 = vmatprep.subr.mxu0 0.0
    %4918 = vmatpush1.msra.mxu0 %v4871
    %4919 = vmatprep.subr.mxu0 0.0
    %4920 = vmatpush2.msra.mxu0 0.0
    %4921 = vmatprep.subr.mxu0 0.0
    %4922 = vmatpush2.msra.mxu0 0.0
    %4923 = vmatprep.subr.mxu0 0.0
    %4924 = vmatpush2.msra.mxu0 0.0
    %4925 = vmatprep.subr.mxu0 0.0
    %4926 = vmatpush2.msra.mxu0 0.0
    %4927 = vmatprep.subr.mxu0 0.0
    %4928 = vmatpush2.msra.mxu0 0.0
    %4929 = vmatprep.subr.mxu0 0.0
    %4930 = vmatpush2.msra.mxu0 0.0
    %4931 = vmatprep.subr.mxu0 0.0
    %4932 = vmatpush2.msra.mxu0 0.0
    %4933 = vmatprep.subr.mxu0 0.0
    %4934 = vmatpush2.msra.mxu0 0.0
    %4935 = vmatprep.subr.mxu0 0.0
    %4936 = vmatpush2.msra.mxu0 0.0
    %4937 = vmatprep.subr.mxu0 0.0
    %4938 = vmatpush2.msra.mxu0 0.0
    %4939 = vmatprep.subr.mxu0 0.0
    %4940 = vmatpush2.msra.mxu0 0.0
    %4941 = vmatprep.subr.mxu0 0.0
    %4942 = vmatpush2.msra.mxu0 0.0
    %4943 = vmatprep.subr.mxu0 0.0
    %4944 = vmatpush2.msra.mxu0 0.0
    %4945 = vmatprep.subr.mxu0 0.0
    %4946 = vmatpush2.msra.mxu0 0.0
    %4947 = vmatprep.subr.mxu0 0.0
    %4948 = vmatpush2.msra.mxu0 0.0
    %4949 = vmatprep.subr.mxu0 0.0
    %4950 = vmatpush2.msra.mxu0 0.0
    %4951 = vmatprep.mubr.f32.mxu0 0.0
    %4952 = vmatmul.mubr.f32.gmra.mxu0 %v4151
    %v4953 = vpop.f32.mrf.mxu0
    %v4954 = vadd.f32 0.0, %v4953
    %v4955 = vpop.f32.mrf.mxu0
    %4956 = vmatprep.mubr.f32.mxu0 0.0
    %4957 = vmatmul.mubr.f32.gmra.mxu0 %v4156
    %v4958 = vpop.f32.mrf.mxu0
    %v4959 = vadd.f32 0.0, %v4958
    %v4960 = vpop.f32.mrf.mxu0
    %4961 = vdwg.mxu0
    %v4962 = vlaneseq
    %v4963 = vshrl.u32 %v4962, 7
    %v4964 = vsub.s32 0, %v4963
    %v4965 = vrot.slane %v4870, %v4964
    %v4966 = vadd.f32 %v4965, %v4954
    %v4967 = vadd.f32 %v4965, %v4959
    %v4968 = vmax.f32 %v4966, 0.0
    %v4969 = vmax.f32 %v4967, 0.0
    %v4970 = vld [vmem:[#allocation10 + $0x700] sm:$0xff]
    %v4971 = vld [vmem:[#allocation10 + $0x708] sm:$0xff]
    %v4972 = vld [vmem:[#allocation10 + $0x710] sm:$0xff]
    %v4973 = vld [vmem:[#allocation10 + $0x718] sm:$0xff]
    %v4974 = vld [vmem:[#allocation10 + $0x720] sm:$0xff]
    %v4975 = vld [vmem:[#allocation10 + $0x728] sm:$0xff]
    %v4976 = vld [vmem:[#allocation10 + $0x730] sm:$0xff]
    %v4977 = vld [vmem:[#allocation10 + $0x738] sm:$0xff]
    %v4978 = vld [vmem:[#allocation10 + $0x740] sm:$0xff]
    %v4979 = vld [vmem:[#allocation10 + $0x748] sm:$0xff]
    %v4980 = vld [vmem:[#allocation10 + $0x750] sm:$0xff]
    %v4981 = vld [vmem:[#allocation10 + $0x758] sm:$0xff]
    %v4982 = vld [vmem:[#allocation10 + $0x760] sm:$0xff]
    %v4983 = vld [vmem:[#allocation10 + $0x768] sm:$0xff]
    %v4984 = vld [vmem:[#allocation10 + $0x770] sm:$0xff]
    %v4985 = vld [vmem:[#allocation10 + $0x778] sm:$0xff]
    %v4986 = vld [vmem:[#allocation10 + $0x780] sm:$0xff]
    %v4987 = vld [vmem:[#allocation10 + $0x788] sm:$0xff]
    %v4988 = vld [vmem:[#allocation10 + $0x790] sm:$0xff]
    %v4989 = vld [vmem:[#allocation10 + $0x798] sm:$0xff]
    %v4990 = vld [vmem:[#allocation10 + $0x7a0] sm:$0xff]
    %v4991 = vld [vmem:[#allocation10 + $0x7a8] sm:$0xff]
    %v4992 = vld [vmem:[#allocation10 + $0x7b0] sm:$0xff]
    %v4993 = vld [vmem:[#allocation10 + $0x7b8] sm:$0xff]
    %v4994 = vld [vmem:[#allocation10 + $0x7c0] sm:$0xff]
    %v4995 = vld [vmem:[#allocation10 + $0x7c8] sm:$0xff]
    %v4996 = vld [vmem:[#allocation10 + $0x7d0] sm:$0xff]
    %v4997 = vld [vmem:[#allocation10 + $0x7d8] sm:$0xff]
    %v4998 = vld [vmem:[#allocation10 + $0x7e0] sm:$0xff]
    %v4999 = vld [vmem:[#allocation10 + $0x7e8] sm:$0xff]
    %v5000 = vld [vmem:[#allocation10 + $0x7f0] sm:$0xff]
    %v5001 = vld [vmem:[#allocation10 + $0x7f8] sm:$0xff]
    %s5002 = scalar_lea.vmem [#allocation13], 22
    %v5003 = vld [vmem:[%s5002] ss:$8 sm:$0x3]
    %v5005 = vlaneseq
    %v5006 = vshrl.u32 %v5005, 7
    %v5007 = vsub.s32 0, %v5006
    %v5008 = vrot.slane %v5003, %v5007
    %v5009 = vlaneseq
    %v5010 = vshrl.u32 %v5009, 7
    %v5011 = vsub.s32 1, %v5010
    %v5012 = vrot.slane %v5003, %v5011
    %5015 = vmatprep.subr.mxu0 0.0
    %5016 = vmatpush1.xpose.msra.mxu0 %v4985
    %5017 = vmatprep.subr.mxu0 0.0
    %5018 = vmatpush1.xpose.msra.mxu0 %v4984
    %5019 = vmatprep.subr.mxu0 0.0
    %5020 = vmatpush1.xpose.msra.mxu0 %v4983
    %5021 = vmatprep.subr.mxu0 0.0
    %5022 = vmatpush1.xpose.msra.mxu0 %v4982
    %5023 = vmatprep.subr.mxu0 0.0
    %5024 = vmatpush1.xpose.msra.mxu0 %v4981
    %5025 = vmatprep.subr.mxu0 0.0
    %5026 = vmatpush1.xpose.msra.mxu0 %v4980
    %5027 = vmatprep.subr.mxu0 0.0
    %5028 = vmatpush1.xpose.msra.mxu0 %v4979
    %5029 = vmatprep.subr.mxu0 0.0
    %5030 = vmatpush1.xpose.msra.mxu0 %v4978
    %5031 = vmatprep.subr.mxu0 0.0
    %5032 = vmatpush1.xpose.msra.mxu0 %v4977
    %5033 = vmatprep.subr.mxu0 0.0
    %5034 = vmatpush1.xpose.msra.mxu0 %v4976
    %5035 = vmatprep.subr.mxu0 0.0
    %5036 = vmatpush1.xpose.msra.mxu0 %v4975
    %5037 = vmatprep.subr.mxu0 0.0
    %5038 = vmatpush1.xpose.msra.mxu0 %v4974
    %5039 = vmatprep.subr.mxu0 0.0
    %5040 = vmatpush1.xpose.msra.mxu0 %v4973
    %5041 = vmatprep.subr.mxu0 0.0
    %5042 = vmatpush1.xpose.msra.mxu0 %v4972
    %5043 = vmatprep.subr.mxu0 0.0
    %5044 = vmatpush1.xpose.msra.mxu0 %v4971
    %5045 = vmatprep.subr.mxu0 0.0
    %5046 = vmatpush1.xpose.msra.mxu0 %v4970
    %5047 = vmatprep.subr.mxu0 0.0
    %5048 = vmatpush2.xpose.msra.mxu0 %v5001
    %5049 = vmatprep.subr.mxu0 0.0
    %5050 = vmatpush2.xpose.msra.mxu0 %v5000
    %5051 = vmatprep.subr.mxu0 0.0
    %5052 = vmatpush2.xpose.msra.mxu0 %v4999
    %5053 = vmatprep.subr.mxu0 0.0
    %5054 = vmatpush2.xpose.msra.mxu0 %v4998
    %5055 = vmatprep.subr.mxu0 0.0
    %5056 = vmatpush2.xpose.msra.mxu0 %v4997
    %5057 = vmatprep.subr.mxu0 0.0
    %5058 = vmatpush2.xpose.msra.mxu0 %v4996
    %5059 = vmatprep.subr.mxu0 0.0
    %5060 = vmatpush2.xpose.msra.mxu0 %v4995
    %5061 = vmatprep.subr.mxu0 0.0
    %5062 = vmatpush2.xpose.msra.mxu0 %v4994
    %5063 = vmatprep.subr.mxu0 0.0
    %5064 = vmatpush2.xpose.msra.mxu0 %v4993
    %5065 = vmatprep.subr.mxu0 0.0
    %5066 = vmatpush2.xpose.msra.mxu0 %v4992
    %5067 = vmatprep.subr.mxu0 0.0
    %5068 = vmatpush2.xpose.msra.mxu0 %v4991
    %5069 = vmatprep.subr.mxu0 0.0
    %5070 = vmatpush2.xpose.msra.mxu0 %v4990
    %5071 = vmatprep.subr.mxu0 0.0
    %5072 = vmatpush2.xpose.msra.mxu0 %v4989
    %5073 = vmatprep.subr.mxu0 0.0
    %5074 = vmatpush2.xpose.msra.mxu0 %v4988
    %5075 = vmatprep.subr.mxu0 0.0
    %5076 = vmatpush2.xpose.msra.mxu0 %v4987
    %5077 = vmatprep.subr.mxu0 0.0
    %5078 = vmatpush2.xpose.msra.mxu0 %v4986
    %5079 = vmatprep.mubr.f32.mxu0 0.0
    %5080 = vmatmul.mubr.f32.gmra.mxu0 %v4968
    %v5081 = vpop.f32.mrf.mxu0
    %v5082 = vadd.f32 %v5008, %v5081
    %v5083 = vpop.f32.mrf.mxu0
    %v5084 = vadd.f32 %v5012, %v5083
    %5085 = vmatprep.mubr.f32.mxu0 0.0
    %5086 = vmatmul.mubr.f32.gmra.mxu0 %v4969
    %v5087 = vpop.f32.mrf.mxu0
    %v5088 = vadd.f32 %v5008, %v5087
    %v5089 = vpop.f32.mrf.mxu0
    %v5090 = vadd.f32 %v5012, %v5089
    %5091 = vdwg.mxu0
    %5092 = vmatprep.subr.mxu0 0.0
    %5093 = vmatpush1.msra.mxu0 0.0
    %5094 = vmatprep.subr.mxu0 0.0
    %5095 = vmatpush1.msra.mxu0 0.0
    %5096 = vmatprep.subr.mxu0 0.0
    %5097 = vmatpush1.msra.mxu0 0.0
    %5098 = vmatprep.subr.mxu0 0.0
    %5099 = vmatpush1.msra.mxu0 0.0
    %5100 = vmatprep.subr.mxu0 0.0
    %5101 = vmatpush1.msra.mxu0 0.0
    %5102 = vmatprep.subr.mxu0 0.0
    %5103 = vmatpush1.msra.mxu0 0.0
    %5104 = vmatprep.subr.mxu0 0.0
    %5105 = vmatpush1.msra.mxu0 0.0
    %5106 = vmatprep.subr.mxu0 0.0
    %5107 = vmatpush1.msra.mxu0 0.0
    %5108 = vmatprep.subr.mxu0 0.0
    %5109 = vmatpush1.msra.mxu0 0.0
    %5110 = vmatprep.subr.mxu0 0.0
    %5111 = vmatpush1.msra.mxu0 0.0
    %5112 = vmatprep.subr.mxu0 0.0
    %5113 = vmatpush1.msra.mxu0 0.0
    %5114 = vmatprep.subr.mxu0 0.0
    %5115 = vmatpush1.msra.mxu0 0.0
    %5116 = vmatprep.subr.mxu0 0.0
    %5117 = vmatpush1.msra.mxu0 0.0
    %5118 = vmatprep.subr.mxu0 0.0
    %5119 = vmatpush1.msra.mxu0 0.0
    %5120 = vmatprep.subr.mxu0 0.0
    %5121 = vmatpush1.msra.mxu0 0.0
    %5122 = vmatprep.subr.mxu0 %v5084
    %5123 = vmatpush1.msra.mxu0 %v5082
    %5124 = vmatprep.subr.mxu0 0.0
    %5125 = vmatpush2.msra.mxu0 0.0
    %5126 = vmatprep.subr.mxu0 0.0
    %5127 = vmatpush2.msra.mxu0 0.0
    %5128 = vmatprep.subr.mxu0 0.0
    %5129 = vmatpush2.msra.mxu0 0.0
    %5130 = vmatprep.subr.mxu0 0.0
    %5131 = vmatpush2.msra.mxu0 0.0
    %5132 = vmatprep.subr.mxu0 0.0
    %5133 = vmatpush2.msra.mxu0 0.0
    %5134 = vmatprep.subr.mxu0 0.0
    %5135 = vmatpush2.msra.mxu0 0.0
    %5136 = vmatprep.subr.mxu0 0.0
    %5137 = vmatpush2.msra.mxu0 0.0
    %5138 = vmatprep.subr.mxu0 0.0
    %5139 = vmatpush2.msra.mxu0 0.0
    %5140 = vmatprep.subr.mxu0 0.0
    %5141 = vmatpush2.msra.mxu0 0.0
    %5142 = vmatprep.subr.mxu0 0.0
    %5143 = vmatpush2.msra.mxu0 0.0
    %5144 = vmatprep.subr.mxu0 0.0
    %5145 = vmatpush2.msra.mxu0 0.0
    %5146 = vmatprep.subr.mxu0 0.0
    %5147 = vmatpush2.msra.mxu0 0.0
    %5148 = vmatprep.subr.mxu0 0.0
    %5149 = vmatpush2.msra.mxu0 0.0
    %5150 = vmatprep.subr.mxu0 0.0
    %5151 = vmatpush2.msra.mxu0 0.0
    %5152 = vmatprep.subr.mxu0 0.0
    %5153 = vmatpush2.msra.mxu0 0.0
    %5154 = vmatprep.subr.mxu0 0.0
    %5155 = vmatpush2.msra.mxu0 0.0
    %5156 = vmatprep.mubr.f32.mxu0 0.0
    %5157 = vmatmul.mubr.f32.gmra.mxu0 %v1105
    %v5158 = vpop.f32.mrf.mxu0
    %v5159 = vadd.f32 0.0, %v5158
    %v5160 = vpop.f32.mrf.mxu0
    %v5161 = vadd.f32 0.0, %v5160
    %5162 = vmatprep.mubr.f32.mxu0 0.0
    %5163 = vmatmul.mubr.f32.gmra.mxu0 %v1108
    %v5164 = vpop.f32.mrf.mxu0
    %v5165 = vadd.f32 0.0, %v5164
    %v5166 = vpop.f32.mrf.mxu0
    %v5167 = vadd.f32 0.0, %v5166
    %5168 = vdwg.mxu0
    %5169 = vmatprep.subr.mxu0 0.0
    %5170 = vmatpush1.msra.mxu0 0.0
    %5171 = vmatprep.subr.mxu0 0.0
    %5172 = vmatpush1.msra.mxu0 0.0
    %5173 = vmatprep.subr.mxu0 0.0
    %5174 = vmatpush1.msra.mxu0 0.0
    %5175 = vmatprep.subr.mxu0 0.0
    %5176 = vmatpush1.msra.mxu0 0.0
    %5177 = vmatprep.subr.mxu0 0.0
    %5178 = vmatpush1.msra.mxu0 0.0
    %5179 = vmatprep.subr.mxu0 0.0
    %5180 = vmatpush1.msra.mxu0 0.0
    %5181 = vmatprep.subr.mxu0 0.0
    %5182 = vmatpush1.msra.mxu0 0.0
    %5183 = vmatprep.subr.mxu0 0.0
    %5184 = vmatpush1.msra.mxu0 0.0
    %5185 = vmatprep.subr.mxu0 0.0
    %5186 = vmatpush1.msra.mxu0 0.0
    %5187 = vmatprep.subr.mxu0 0.0
    %5188 = vmatpush1.msra.mxu0 0.0
    %5189 = vmatprep.subr.mxu0 0.0
    %5190 = vmatpush1.msra.mxu0 0.0
    %5191 = vmatprep.subr.mxu0 0.0
    %5192 = vmatpush1.msra.mxu0 0.0
    %5193 = vmatprep.subr.mxu0 0.0
    %5194 = vmatpush1.msra.mxu0 0.0
    %5195 = vmatprep.subr.mxu0 0.0
    %5196 = vmatpush1.msra.mxu0 0.0
    %5197 = vmatprep.subr.mxu0 0.0
    %5198 = vmatpush1.msra.mxu0 0.0
    %5199 = vmatprep.subr.mxu0 %v5090
    %5200 = vmatpush1.msra.mxu0 %v5088
    %5201 = vmatprep.subr.mxu0 0.0
    %5202 = vmatpush2.msra.mxu0 0.0
    %5203 = vmatprep.subr.mxu0 0.0
    %5204 = vmatpush2.msra.mxu0 0.0
    %5205 = vmatprep.subr.mxu0 0.0
    %5206 = vmatpush2.msra.mxu0 0.0
    %5207 = vmatprep.subr.mxu0 0.0
    %5208 = vmatpush2.msra.mxu0 0.0
    %5209 = vmatprep.subr.mxu0 0.0
    %5210 = vmatpush2.msra.mxu0 0.0
    %5211 = vmatprep.subr.mxu0 0.0
    %5212 = vmatpush2.msra.mxu0 0.0
    %5213 = vmatprep.subr.mxu0 0.0
    %5214 = vmatpush2.msra.mxu0 0.0
    %5215 = vmatprep.subr.mxu0 0.0
    %5216 = vmatpush2.msra.mxu0 0.0
    %5217 = vmatprep.subr.mxu0 0.0
    %5218 = vmatpush2.msra.mxu0 0.0
    %5219 = vmatprep.subr.mxu0 0.0
    %5220 = vmatpush2.msra.mxu0 0.0
    %5221 = vmatprep.subr.mxu0 0.0
    %5222 = vmatpush2.msra.mxu0 0.0
    %5223 = vmatprep.subr.mxu0 0.0
    %5224 = vmatpush2.msra.mxu0 0.0
    %5225 = vmatprep.subr.mxu0 0.0
    %5226 = vmatpush2.msra.mxu0 0.0
    %5227 = vmatprep.subr.mxu0 0.0
    %5228 = vmatpush2.msra.mxu0 0.0
    %5229 = vmatprep.subr.mxu0 0.0
    %5230 = vmatpush2.msra.mxu0 0.0
    %5231 = vmatprep.subr.mxu0 0.0
    %5232 = vmatpush2.msra.mxu0 0.0
    %5233 = vmatprep.mubr.f32.mxu0 0.0
    %5234 = vmatmul.mubr.f32.gmra.mxu0 %v1186
    %v5235 = vpop.f32.mrf.mxu0
    %v5236 = vadd.f32 0.0, %v5235
    %v5237 = vpop.f32.mrf.mxu0
    %v5238 = vadd.f32 0.0, %v5237
    %5239 = vmatprep.mubr.f32.mxu0 0.0
    %5240 = vmatmul.mubr.f32.gmra.mxu0 %v1189
    %v5241 = vpop.f32.mrf.mxu0
    %v5242 = vadd.f32 0.0, %v5241
    %v5243 = vpop.f32.mrf.mxu0
    %v5244 = vadd.f32 0.0, %v5243
    %5245 = vdwg.mxu0
    %v5246 = vld [vmem:[#allocation11 + $0xf] sm:$0x1]
    %v5247 = vld [vmem:[#allocation8 + $0xa80] sm:$0xff]
    %v5248 = vld [vmem:[#allocation8 + $0xa88] sm:$0xff]
    %v5249 = vld [vmem:[#allocation8 + $0xa90] sm:$0xff]
    %v5250 = vld [vmem:[#allocation8 + $0xa98] sm:$0xff]
    %v5251 = vld [vmem:[#allocation8 + $0xaa0] sm:$0xff]
    %v5252 = vld [vmem:[#allocation8 + $0xaa8] sm:$0xff]
    %v5253 = vld [vmem:[#allocation8 + $0xab0] sm:$0xff]
    %v5254 = vld [vmem:[#allocation8 + $0xab8] sm:$0xff]
    %v5255 = vld [vmem:[#allocation8 + $0xac0] sm:$0xff]
    %v5256 = vld [vmem:[#allocation8 + $0xac8] sm:$0xff]
    %v5257 = vld [vmem:[#allocation8 + $0xad0] sm:$0xff]
    %v5258 = vld [vmem:[#allocation8 + $0xad8] sm:$0xff]
    %v5259 = vld [vmem:[#allocation8 + $0xae0] sm:$0xff]
    %v5260 = vld [vmem:[#allocation8 + $0xae8] sm:$0xff]
    %v5261 = vld [vmem:[#allocation8 + $0xaf0] sm:$0xff]
    %v5262 = vld [vmem:[#allocation8 + $0xaf8] sm:$0xff]
    %5263 = vmatprep.subr.mxu0 0.0
    %5264 = vmatpush1.msra.mxu0 %v5262
    %5265 = vmatprep.subr.mxu0 0.0
    %5266 = vmatpush1.msra.mxu0 %v5261
    %5267 = vmatprep.subr.mxu0 0.0
    %5268 = vmatpush1.msra.mxu0 %v5260
    %5269 = vmatprep.subr.mxu0 0.0
    %5270 = vmatpush1.msra.mxu0 %v5259
    %5271 = vmatprep.subr.mxu0 0.0
    %5272 = vmatpush1.msra.mxu0 %v5258
    %5273 = vmatprep.subr.mxu0 0.0
    %5274 = vmatpush1.msra.mxu0 %v5257
    %5275 = vmatprep.subr.mxu0 0.0
    %5276 = vmatpush1.msra.mxu0 %v5256
    %5277 = vmatprep.subr.mxu0 0.0
    %5278 = vmatpush1.msra.mxu0 %v5255
    %5279 = vmatprep.subr.mxu0 0.0
    %5280 = vmatpush1.msra.mxu0 %v5254
    %5281 = vmatprep.subr.mxu0 0.0
    %5282 = vmatpush1.msra.mxu0 %v5253
    %5283 = vmatprep.subr.mxu0 0.0
    %5284 = vmatpush1.msra.mxu0 %v5252
    %5285 = vmatprep.subr.mxu0 0.0
    %5286 = vmatpush1.msra.mxu0 %v5251
    %5287 = vmatprep.subr.mxu0 0.0
    %5288 = vmatpush1.msra.mxu0 %v5250
    %5289 = vmatprep.subr.mxu0 0.0
    %5290 = vmatpush1.msra.mxu0 %v5249
    %5291 = vmatprep.subr.mxu0 0.0
    %5292 = vmatpush1.msra.mxu0 %v5248
    %5293 = vmatprep.subr.mxu0 0.0
    %5294 = vmatpush1.msra.mxu0 %v5247
    %5295 = vmatprep.subr.mxu0 0.0
    %5296 = vmatpush2.msra.mxu0 0.0
    %5297 = vmatprep.subr.mxu0 0.0
    %5298 = vmatpush2.msra.mxu0 0.0
    %5299 = vmatprep.subr.mxu0 0.0
    %5300 = vmatpush2.msra.mxu0 0.0
    %5301 = vmatprep.subr.mxu0 0.0
    %5302 = vmatpush2.msra.mxu0 0.0
    %5303 = vmatprep.subr.mxu0 0.0
    %5304 = vmatpush2.msra.mxu0 0.0
    %5305 = vmatprep.subr.mxu0 0.0
    %5306 = vmatpush2.msra.mxu0 0.0
    %5307 = vmatprep.subr.mxu0 0.0
    %5308 = vmatpush2.msra.mxu0 0.0
    %5309 = vmatprep.subr.mxu0 0.0
    %5310 = vmatpush2.msra.mxu0 0.0
    %5311 = vmatprep.subr.mxu0 0.0
    %5312 = vmatpush2.msra.mxu0 0.0
    %5313 = vmatprep.subr.mxu0 0.0
    %5314 = vmatpush2.msra.mxu0 0.0
    %5315 = vmatprep.subr.mxu0 0.0
    %5316 = vmatpush2.msra.mxu0 0.0
    %5317 = vmatprep.subr.mxu0 0.0
    %5318 = vmatpush2.msra.mxu0 0.0
    %5319 = vmatprep.subr.mxu0 0.0
    %5320 = vmatpush2.msra.mxu0 0.0
    %5321 = vmatprep.subr.mxu0 0.0
    %5322 = vmatpush2.msra.mxu0 0.0
    %5323 = vmatprep.subr.mxu0 0.0
    %5324 = vmatpush2.msra.mxu0 0.0
    %5325 = vmatprep.subr.mxu0 0.0
    %5326 = vmatpush2.msra.mxu0 0.0
    %5327 = vmatprep.mubr.f32.mxu0 0.0
    %5328 = vmatmul.mubr.f32.gmra.mxu0 %v4151
    %v5329 = vpop.f32.mrf.mxu0
    %v5330 = vadd.f32 0.0, %v5329
    %v5331 = vpop.f32.mrf.mxu0
    %5332 = vmatprep.mubr.f32.mxu0 0.0
    %5333 = vmatmul.mubr.f32.gmra.mxu0 %v4156
    %v5334 = vpop.f32.mrf.mxu0
    %v5335 = vadd.f32 0.0, %v5334
    %v5336 = vpop.f32.mrf.mxu0
    %5337 = vdwg.mxu0
    %v5338 = vlaneseq
    %v5339 = vshrl.u32 %v5338, 7
    %v5340 = vsub.s32 0, %v5339
    %v5341 = vrot.slane %v5246, %v5340
    %v5342 = vadd.f32 %v5341, %v5330
    %v5343 = vadd.f32 %v5341, %v5335
    %v5344 = vld [vmem:[#allocation8 + $0xb00] sm:$0xff]
    %v5345 = vld [vmem:[#allocation8 + $0xb08] sm:$0xff]
    %v5346 = vld [vmem:[#allocation8 + $0xb10] sm:$0xff]
    %v5347 = vld [vmem:[#allocation8 + $0xb18] sm:$0xff]
    %v5348 = vld [vmem:[#allocation8 + $0xb20] sm:$0xff]
    %v5349 = vld [vmem:[#allocation8 + $0xb28] sm:$0xff]
    %v5350 = vld [vmem:[#allocation8 + $0xb30] sm:$0xff]
    %v5351 = vld [vmem:[#allocation8 + $0xb38] sm:$0xff]
    %v5352 = vld [vmem:[#allocation8 + $0xb40] sm:$0xff]
    %v5353 = vld [vmem:[#allocation8 + $0xb48] sm:$0xff]
    %v5354 = vld [vmem:[#allocation8 + $0xb50] sm:$0xff]
    %v5355 = vld [vmem:[#allocation8 + $0xb58] sm:$0xff]
    %v5356 = vld [vmem:[#allocation8 + $0xb60] sm:$0xff]
    %v5357 = vld [vmem:[#allocation8 + $0xb68] sm:$0xff]
    %v5358 = vld [vmem:[#allocation8 + $0xb70] sm:$0xff]
    %v5359 = vld [vmem:[#allocation8 + $0xb78] sm:$0xff]
    %v5360 = vld [vmem:[#allocation8 + $0xb80] sm:$0xff]
    %v5361 = vld [vmem:[#allocation8 + $0xb88] sm:$0xff]
    %v5362 = vld [vmem:[#allocation8 + $0xb90] sm:$0xff]
    %v5363 = vld [vmem:[#allocation8 + $0xb98] sm:$0xff]
    %v5364 = vld [vmem:[#allocation8 + $0xba0] sm:$0xff]
    %v5365 = vld [vmem:[#allocation8 + $0xba8] sm:$0xff]
    %v5366 = vld [vmem:[#allocation8 + $0xbb0] sm:$0xff]
    %v5367 = vld [vmem:[#allocation8 + $0xbb8] sm:$0xff]
    %v5368 = vld [vmem:[#allocation8 + $0xbc0] sm:$0xff]
    %v5369 = vld [vmem:[#allocation8 + $0xbc8] sm:$0xff]
    %v5370 = vld [vmem:[#allocation8 + $0xbd0] sm:$0xff]
    %v5371 = vld [vmem:[#allocation8 + $0xbd8] sm:$0xff]
    %v5372 = vld [vmem:[#allocation8 + $0xbe0] sm:$0xff]
    %v5373 = vld [vmem:[#allocation8 + $0xbe8] sm:$0xff]
    %v5374 = vld [vmem:[#allocation8 + $0xbf0] sm:$0xff]
    %v5375 = vld [vmem:[#allocation8 + $0xbf8] sm:$0xff]
    %5376 = vmatprep.subr.mxu0 0.0
    %5377 = vmatpush1.msra.mxu0 %v5359
    %5378 = vmatprep.subr.mxu0 0.0
    %5379 = vmatpush1.msra.mxu0 %v5358
    %5380 = vmatprep.subr.mxu0 0.0
    %5381 = vmatpush1.msra.mxu0 %v5357
    %5382 = vmatprep.subr.mxu0 0.0
    %5383 = vmatpush1.msra.mxu0 %v5356
    %5384 = vmatprep.subr.mxu0 0.0
    %5385 = vmatpush1.msra.mxu0 %v5355
    %5386 = vmatprep.subr.mxu0 0.0
    %5387 = vmatpush1.msra.mxu0 %v5354
    %5388 = vmatprep.subr.mxu0 0.0
    %5389 = vmatpush1.msra.mxu0 %v5353
    %5390 = vmatprep.subr.mxu0 0.0
    %5391 = vmatpush1.msra.mxu0 %v5352
    %5392 = vmatprep.subr.mxu0 0.0
    %5393 = vmatpush1.msra.mxu0 %v5351
    %5394 = vmatprep.subr.mxu0 0.0
    %5395 = vmatpush1.msra.mxu0 %v5350
    %5396 = vmatprep.subr.mxu0 0.0
    %5397 = vmatpush1.msra.mxu0 %v5349
    %5398 = vmatprep.subr.mxu0 0.0
    %5399 = vmatpush1.msra.mxu0 %v5348
    %5400 = vmatprep.subr.mxu0 0.0
    %5401 = vmatpush1.msra.mxu0 %v5347
    %5402 = vmatprep.subr.mxu0 0.0
    %5403 = vmatpush1.msra.mxu0 %v5346
    %5404 = vmatprep.subr.mxu0 0.0
    %5405 = vmatpush1.msra.mxu0 %v5345
    %5406 = vmatprep.subr.mxu0 0.0
    %5407 = vmatpush1.msra.mxu0 %v5344
    %5408 = vmatprep.subr.mxu0 0.0
    %5409 = vmatpush2.msra.mxu0 %v5375
    %5410 = vmatprep.subr.mxu0 0.0
    %5411 = vmatpush2.msra.mxu0 %v5374
    %5412 = vmatprep.subr.mxu0 0.0
    %5413 = vmatpush2.msra.mxu0 %v5373
    %5414 = vmatprep.subr.mxu0 0.0
    %5415 = vmatpush2.msra.mxu0 %v5372
    %5416 = vmatprep.subr.mxu0 0.0
    %5417 = vmatpush2.msra.mxu0 %v5371
    %5418 = vmatprep.subr.mxu0 0.0
    %5419 = vmatpush2.msra.mxu0 %v5370
    %5420 = vmatprep.subr.mxu0 0.0
    %5421 = vmatpush2.msra.mxu0 %v5369
    %5422 = vmatprep.subr.mxu0 0.0
    %5423 = vmatpush2.msra.mxu0 %v5368
    %5424 = vmatprep.subr.mxu0 0.0
    %5425 = vmatpush2.msra.mxu0 %v5367
    %5426 = vmatprep.subr.mxu0 0.0
    %5427 = vmatpush2.msra.mxu0 %v5366
    %5428 = vmatprep.subr.mxu0 0.0
    %5429 = vmatpush2.msra.mxu0 %v5365
    %5430 = vmatprep.subr.mxu0 0.0
    %5431 = vmatpush2.msra.mxu0 %v5364
    %5432 = vmatprep.subr.mxu0 0.0
    %5433 = vmatpush2.msra.mxu0 %v5363
    %5434 = vmatprep.subr.mxu0 0.0
    %5435 = vmatpush2.msra.mxu0 %v5362
    %5436 = vmatprep.subr.mxu0 0.0
    %5437 = vmatpush2.msra.mxu0 %v5361
    %5438 = vmatprep.subr.mxu0 0.0
    %5439 = vmatpush2.msra.mxu0 %v5360
    %5440 = vmatprep.mubr.f32.mxu0 %v4797
    %5441 = vmatmul.mubr.f32.gmra.mxu0 %v4795
    %v5442 = vpop.f32.mrf.mxu0
    %v5443 = vadd.f32 0.0, %v5442
    %v5444 = vpop.f32.mrf.mxu0
    %5445 = vmatprep.mubr.f32.mxu0 %v4868
    %5446 = vmatmul.mubr.f32.gmra.mxu0 %v4866
    %v5447 = vpop.f32.mrf.mxu0
    %v5448 = vadd.f32 0.0, %v5447
    %v5449 = vpop.f32.mrf.mxu0
    %5450 = vdwg.mxu0
    %v5451 = vadd.f32 %v5342, %v5443
    %v5452 = vadd.f32 %v5343, %v5448
    %v5453 = vmax.f32 %v5451, 0.0
    %v5454 = vmax.f32 %v5452, 0.0
    %v5455 = vld [vmem:[#allocation10 + $0x800] sm:$0xff]
    %v5456 = vld [vmem:[#allocation10 + $0x808] sm:$0xff]
    %v5457 = vld [vmem:[#allocation10 + $0x810] sm:$0xff]
    %v5458 = vld [vmem:[#allocation10 + $0x818] sm:$0xff]
    %v5459 = vld [vmem:[#allocation10 + $0x820] sm:$0xff]
    %v5460 = vld [vmem:[#allocation10 + $0x828] sm:$0xff]
    %v5461 = vld [vmem:[#allocation10 + $0x830] sm:$0xff]
    %v5462 = vld [vmem:[#allocation10 + $0x838] sm:$0xff]
    %v5463 = vld [vmem:[#allocation10 + $0x840] sm:$0xff]
    %v5464 = vld [vmem:[#allocation10 + $0x848] sm:$0xff]
    %v5465 = vld [vmem:[#allocation10 + $0x850] sm:$0xff]
    %v5466 = vld [vmem:[#allocation10 + $0x858] sm:$0xff]
    %v5467 = vld [vmem:[#allocation10 + $0x860] sm:$0xff]
    %v5468 = vld [vmem:[#allocation10 + $0x868] sm:$0xff]
    %v5469 = vld [vmem:[#allocation10 + $0x870] sm:$0xff]
    %v5470 = vld [vmem:[#allocation10 + $0x878] sm:$0xff]
    %v5471 = vld [vmem:[#allocation10 + $0x880] sm:$0xff]
    %v5472 = vld [vmem:[#allocation10 + $0x888] sm:$0xff]
    %v5473 = vld [vmem:[#allocation10 + $0x890] sm:$0xff]
    %v5474 = vld [vmem:[#allocation10 + $0x898] sm:$0xff]
    %v5475 = vld [vmem:[#allocation10 + $0x8a0] sm:$0xff]
    %v5476 = vld [vmem:[#allocation10 + $0x8a8] sm:$0xff]
    %v5477 = vld [vmem:[#allocation10 + $0x8b0] sm:$0xff]
    %v5478 = vld [vmem:[#allocation10 + $0x8b8] sm:$0xff]
    %v5479 = vld [vmem:[#allocation10 + $0x8c0] sm:$0xff]
    %v5480 = vld [vmem:[#allocation10 + $0x8c8] sm:$0xff]
    %v5481 = vld [vmem:[#allocation10 + $0x8d0] sm:$0xff]
    %v5482 = vld [vmem:[#allocation10 + $0x8d8] sm:$0xff]
    %v5483 = vld [vmem:[#allocation10 + $0x8e0] sm:$0xff]
    %v5484 = vld [vmem:[#allocation10 + $0x8e8] sm:$0xff]
    %v5485 = vld [vmem:[#allocation10 + $0x8f0] sm:$0xff]
    %v5486 = vld [vmem:[#allocation10 + $0x8f8] sm:$0xff]
    %s5487 = scalar_lea.vmem [#allocation13], 23
    %v5488 = vld [vmem:[%s5487] ss:$8 sm:$0x3]
    %v5490 = vlaneseq
    %v5491 = vshrl.u32 %v5490, 7
    %v5492 = vsub.s32 0, %v5491
    %v5493 = vrot.slane %v5488, %v5492
    %v5494 = vlaneseq
    %v5495 = vshrl.u32 %v5494, 7
    %v5496 = vsub.s32 1, %v5495
    %v5497 = vrot.slane %v5488, %v5496
    %5500 = vmatprep.subr.mxu0 0.0
    %5501 = vmatpush1.xpose.msra.mxu0 %v5470
    %5502 = vmatprep.subr.mxu0 0.0
    %5503 = vmatpush1.xpose.msra.mxu0 %v5469
    %5504 = vmatprep.subr.mxu0 0.0
    %5505 = vmatpush1.xpose.msra.mxu0 %v5468
    %5506 = vmatprep.subr.mxu0 0.0
    %5507 = vmatpush1.xpose.msra.mxu0 %v5467
    %5508 = vmatprep.subr.mxu0 0.0
    %5509 = vmatpush1.xpose.msra.mxu0 %v5466
    %5510 = vmatprep.subr.mxu0 0.0
    %5511 = vmatpush1.xpose.msra.mxu0 %v5465
    %5512 = vmatprep.subr.mxu0 0.0
    %5513 = vmatpush1.xpose.msra.mxu0 %v5464
    %5514 = vmatprep.subr.mxu0 0.0
    %5515 = vmatpush1.xpose.msra.mxu0 %v5463
    %5516 = vmatprep.subr.mxu0 0.0
    %5517 = vmatpush1.xpose.msra.mxu0 %v5462
    %5518 = vmatprep.subr.mxu0 0.0
    %5519 = vmatpush1.xpose.msra.mxu0 %v5461
    %5520 = vmatprep.subr.mxu0 0.0
    %5521 = vmatpush1.xpose.msra.mxu0 %v5460
    %5522 = vmatprep.subr.mxu0 0.0
    %5523 = vmatpush1.xpose.msra.mxu0 %v5459
    %5524 = vmatprep.subr.mxu0 0.0
    %5525 = vmatpush1.xpose.msra.mxu0 %v5458
    %5526 = vmatprep.subr.mxu0 0.0
    %5527 = vmatpush1.xpose.msra.mxu0 %v5457
    %5528 = vmatprep.subr.mxu0 0.0
    %5529 = vmatpush1.xpose.msra.mxu0 %v5456
    %5530 = vmatprep.subr.mxu0 0.0
    %5531 = vmatpush1.xpose.msra.mxu0 %v5455
    %5532 = vmatprep.subr.mxu0 0.0
    %5533 = vmatpush2.xpose.msra.mxu0 %v5486
    %5534 = vmatprep.subr.mxu0 0.0
    %5535 = vmatpush2.xpose.msra.mxu0 %v5485
    %5536 = vmatprep.subr.mxu0 0.0
    %5537 = vmatpush2.xpose.msra.mxu0 %v5484
    %5538 = vmatprep.subr.mxu0 0.0
    %5539 = vmatpush2.xpose.msra.mxu0 %v5483
    %5540 = vmatprep.subr.mxu0 0.0
    %5541 = vmatpush2.xpose.msra.mxu0 %v5482
    %5542 = vmatprep.subr.mxu0 0.0
    %5543 = vmatpush2.xpose.msra.mxu0 %v5481
    %5544 = vmatprep.subr.mxu0 0.0
    %5545 = vmatpush2.xpose.msra.mxu0 %v5480
    %5546 = vmatprep.subr.mxu0 0.0
    %5547 = vmatpush2.xpose.msra.mxu0 %v5479
    %5548 = vmatprep.subr.mxu0 0.0
    %5549 = vmatpush2.xpose.msra.mxu0 %v5478
    %5550 = vmatprep.subr.mxu0 0.0
    %5551 = vmatpush2.xpose.msra.mxu0 %v5477
    %5552 = vmatprep.subr.mxu0 0.0
    %5553 = vmatpush2.xpose.msra.mxu0 %v5476
    %5554 = vmatprep.subr.mxu0 0.0
    %5555 = vmatpush2.xpose.msra.mxu0 %v5475
    %5556 = vmatprep.subr.mxu0 0.0
    %5557 = vmatpush2.xpose.msra.mxu0 %v5474
    %5558 = vmatprep.subr.mxu0 0.0
    %5559 = vmatpush2.xpose.msra.mxu0 %v5473
    %5560 = vmatprep.subr.mxu0 0.0
    %5561 = vmatpush2.xpose.msra.mxu0 %v5472
    %5562 = vmatprep.subr.mxu0 0.0
    %5563 = vmatpush2.xpose.msra.mxu0 %v5471
    %5564 = vmatprep.mubr.f32.mxu0 0.0
    %5565 = vmatmul.mubr.f32.gmra.mxu0 %v5453
    %v5566 = vpop.f32.mrf.mxu0
    %v5567 = vadd.f32 %v5493, %v5566
    %v5568 = vpop.f32.mrf.mxu0
    %v5569 = vadd.f32 %v5497, %v5568
    %5570 = vmatprep.mubr.f32.mxu0 0.0
    %5571 = vmatmul.mubr.f32.gmra.mxu0 %v5454
    %v5572 = vpop.f32.mrf.mxu0
    %v5573 = vadd.f32 %v5493, %v5572
    %v5574 = vpop.f32.mrf.mxu0
    %v5575 = vadd.f32 %v5497, %v5574
    %5576 = vdwg.mxu0
    %v5577 = vld [vmem:[#allocation11 + $0x11] sm:$0x1]
    %v5578 = vld [vmem:[#allocation8 + $0xc80] sm:$0xff]
    %v5579 = vld [vmem:[#allocation8 + $0xc88] sm:$0xff]
    %v5580 = vld [vmem:[#allocation8 + $0xc90] sm:$0xff]
    %v5581 = vld [vmem:[#allocation8 + $0xc98] sm:$0xff]
    %v5582 = vld [vmem:[#allocation8 + $0xca0] sm:$0xff]
    %v5583 = vld [vmem:[#allocation8 + $0xca8] sm:$0xff]
    %v5584 = vld [vmem:[#allocation8 + $0xcb0] sm:$0xff]
    %v5585 = vld [vmem:[#allocation8 + $0xcb8] sm:$0xff]
    %v5586 = vld [vmem:[#allocation8 + $0xcc0] sm:$0xff]
    %v5587 = vld [vmem:[#allocation8 + $0xcc8] sm:$0xff]
    %v5588 = vld [vmem:[#allocation8 + $0xcd0] sm:$0xff]
    %v5589 = vld [vmem:[#allocation8 + $0xcd8] sm:$0xff]
    %v5590 = vld [vmem:[#allocation8 + $0xce0] sm:$0xff]
    %v5591 = vld [vmem:[#allocation8 + $0xce8] sm:$0xff]
    %v5592 = vld [vmem:[#allocation8 + $0xcf0] sm:$0xff]
    %v5593 = vld [vmem:[#allocation8 + $0xcf8] sm:$0xff]
    %5594 = vmatprep.subr.mxu0 0.0
    %5595 = vmatpush1.msra.mxu0 %v5593
    %5596 = vmatprep.subr.mxu0 0.0
    %5597 = vmatpush1.msra.mxu0 %v5592
    %5598 = vmatprep.subr.mxu0 0.0
    %5599 = vmatpush1.msra.mxu0 %v5591
    %5600 = vmatprep.subr.mxu0 0.0
    %5601 = vmatpush1.msra.mxu0 %v5590
    %5602 = vmatprep.subr.mxu0 0.0
    %5603 = vmatpush1.msra.mxu0 %v5589
    %5604 = vmatprep.subr.mxu0 0.0
    %5605 = vmatpush1.msra.mxu0 %v5588
    %5606 = vmatprep.subr.mxu0 0.0
    %5607 = vmatpush1.msra.mxu0 %v5587
    %5608 = vmatprep.subr.mxu0 0.0
    %5609 = vmatpush1.msra.mxu0 %v5586
    %5610 = vmatprep.subr.mxu0 0.0
    %5611 = vmatpush1.msra.mxu0 %v5585
    %5612 = vmatprep.subr.mxu0 0.0
    %5613 = vmatpush1.msra.mxu0 %v5584
    %5614 = vmatprep.subr.mxu0 0.0
    %5615 = vmatpush1.msra.mxu0 %v5583
    %5616 = vmatprep.subr.mxu0 0.0
    %5617 = vmatpush1.msra.mxu0 %v5582
    %5618 = vmatprep.subr.mxu0 0.0
    %5619 = vmatpush1.msra.mxu0 %v5581
    %5620 = vmatprep.subr.mxu0 0.0
    %5621 = vmatpush1.msra.mxu0 %v5580
    %5622 = vmatprep.subr.mxu0 0.0
    %5623 = vmatpush1.msra.mxu0 %v5579
    %5624 = vmatprep.subr.mxu0 0.0
    %5625 = vmatpush1.msra.mxu0 %v5578
    %5626 = vmatprep.subr.mxu0 0.0
    %5627 = vmatpush2.msra.mxu0 0.0
    %5628 = vmatprep.subr.mxu0 0.0
    %5629 = vmatpush2.msra.mxu0 0.0
    %5630 = vmatprep.subr.mxu0 0.0
    %5631 = vmatpush2.msra.mxu0 0.0
    %5632 = vmatprep.subr.mxu0 0.0
    %5633 = vmatpush2.msra.mxu0 0.0
    %5634 = vmatprep.subr.mxu0 0.0
    %5635 = vmatpush2.msra.mxu0 0.0
    %5636 = vmatprep.subr.mxu0 0.0
    %5637 = vmatpush2.msra.mxu0 0.0
    %5638 = vmatprep.subr.mxu0 0.0
    %5639 = vmatpush2.msra.mxu0 0.0
    %5640 = vmatprep.subr.mxu0 0.0
    %5641 = vmatpush2.msra.mxu0 0.0
    %5642 = vmatprep.subr.mxu0 0.0
    %5643 = vmatpush2.msra.mxu0 0.0
    %5644 = vmatprep.subr.mxu0 0.0
    %5645 = vmatpush2.msra.mxu0 0.0
    %5646 = vmatprep.subr.mxu0 0.0
    %5647 = vmatpush2.msra.mxu0 0.0
    %5648 = vmatprep.subr.mxu0 0.0
    %5649 = vmatpush2.msra.mxu0 0.0
    %5650 = vmatprep.subr.mxu0 0.0
    %5651 = vmatpush2.msra.mxu0 0.0
    %5652 = vmatprep.subr.mxu0 0.0
    %5653 = vmatpush2.msra.mxu0 0.0
    %5654 = vmatprep.subr.mxu0 0.0
    %5655 = vmatpush2.msra.mxu0 0.0
    %5656 = vmatprep.subr.mxu0 0.0
    %5657 = vmatpush2.msra.mxu0 0.0
    %5658 = vmatprep.mubr.f32.mxu0 0.0
    %5659 = vmatmul.mubr.f32.gmra.mxu0 %v4462
    %v5660 = vpop.f32.mrf.mxu0
    %v5661 = vadd.f32 0.0, %v5660
    %v5662 = vpop.f32.mrf.mxu0
    %5663 = vmatprep.mubr.f32.mxu0 0.0
    %5664 = vmatmul.mubr.f32.gmra.mxu0 %v4467
    %v5665 = vpop.f32.mrf.mxu0
    %v5666 = vadd.f32 0.0, %v5665
    %v5667 = vpop.f32.mrf.mxu0
    %5668 = vmatprep.mubr.f32.mxu0 0.0
    %5669 = vmatmul.mubr.f32.gmra.mxu0 %v4472
    %v5670 = vpop.f32.mrf.mxu0
    %v5671 = vadd.f32 0.0, %v5670
    %v5672 = vpop.f32.mrf.mxu0
    %5673 = vmatprep.mubr.f32.mxu0 0.0
    %5674 = vmatmul.mubr.f32.gmra.mxu0 %v4477
    %v5675 = vpop.f32.mrf.mxu0
    %v5676 = vadd.f32 0.0, %v5675
    %v5677 = vpop.f32.mrf.mxu0
    %5678 = vdwg.mxu0
    %v5679 = vlaneseq
    %v5680 = vshrl.u32 %v5679, 7
    %v5681 = vsub.s32 0, %v5680
    %v5682 = vrot.slane %v5577, %v5681
    %v5683 = vadd.f32 %v5682, %v5661
    %v5684 = vadd.f32 %v5682, %v5666
    %v5685 = vadd.f32 %v5682, %v5671
    %v5686 = vadd.f32 %v5682, %v5676
    %v5687 = vld [vmem:[#allocation8 + $0xd00] sm:$0xff]
    %v5688 = vld [vmem:[#allocation8 + $0xd08] sm:$0xff]
    %v5689 = vld [vmem:[#allocation8 + $0xd10] sm:$0xff]
    %v5690 = vld [vmem:[#allocation8 + $0xd18] sm:$0xff]
    %v5691 = vld [vmem:[#allocation8 + $0xd20] sm:$0xff]
    %v5692 = vld [vmem:[#allocation8 + $0xd28] sm:$0xff]
    %v5693 = vld [vmem:[#allocation8 + $0xd30] sm:$0xff]
    %v5694 = vld [vmem:[#allocation8 + $0xd38] sm:$0xff]
    %v5695 = vld [vmem:[#allocation8 + $0xd40] sm:$0xff]
    %v5696 = vld [vmem:[#allocation8 + $0xd48] sm:$0xff]
    %v5697 = vld [vmem:[#allocation8 + $0xd50] sm:$0xff]
    %v5698 = vld [vmem:[#allocation8 + $0xd58] sm:$0xff]
    %v5699 = vld [vmem:[#allocation8 + $0xd60] sm:$0xff]
    %v5700 = vld [vmem:[#allocation8 + $0xd68] sm:$0xff]
    %v5701 = vld [vmem:[#allocation8 + $0xd70] sm:$0xff]
    %v5702 = vld [vmem:[#allocation8 + $0xd78] sm:$0xff]
    %v5703 = vld [vmem:[#allocation8 + $0xd80] sm:$0xff]
    %v5704 = vld [vmem:[#allocation8 + $0xd88] sm:$0xff]
    %v5705 = vld [vmem:[#allocation8 + $0xd90] sm:$0xff]
    %v5706 = vld [vmem:[#allocation8 + $0xd98] sm:$0xff]
    %v5707 = vld [vmem:[#allocation8 + $0xda0] sm:$0xff]
    %v5708 = vld [vmem:[#allocation8 + $0xda8] sm:$0xff]
    %v5709 = vld [vmem:[#allocation8 + $0xdb0] sm:$0xff]
    %v5710 = vld [vmem:[#allocation8 + $0xdb8] sm:$0xff]
    %v5711 = vld [vmem:[#allocation8 + $0xdc0] sm:$0xff]
    %v5712 = vld [vmem:[#allocation8 + $0xdc8] sm:$0xff]
    %v5713 = vld [vmem:[#allocation8 + $0xdd0] sm:$0xff]
    %v5714 = vld [vmem:[#allocation8 + $0xdd8] sm:$0xff]
    %v5715 = vld [vmem:[#allocation8 + $0xde0] sm:$0xff]
    %v5716 = vld [vmem:[#allocation8 + $0xde8] sm:$0xff]
    %v5717 = vld [vmem:[#allocation8 + $0xdf0] sm:$0xff]
    %v5718 = vld [vmem:[#allocation8 + $0xdf8] sm:$0xff]
    %5719 = vmatprep.subr.mxu0 0.0
    %5720 = vmatpush1.msra.mxu0 %v5702
    %5721 = vmatprep.subr.mxu0 0.0
    %5722 = vmatpush1.msra.mxu0 %v5701
    %5723 = vmatprep.subr.mxu0 0.0
    %5724 = vmatpush1.msra.mxu0 %v5700
    %5725 = vmatprep.subr.mxu0 0.0
    %5726 = vmatpush1.msra.mxu0 %v5699
    %5727 = vmatprep.subr.mxu0 0.0
    %5728 = vmatpush1.msra.mxu0 %v5698
    %5729 = vmatprep.subr.mxu0 0.0
    %5730 = vmatpush1.msra.mxu0 %v5697
    %5731 = vmatprep.subr.mxu0 0.0
    %5732 = vmatpush1.msra.mxu0 %v5696
    %5733 = vmatprep.subr.mxu0 0.0
    %5734 = vmatpush1.msra.mxu0 %v5695
    %5735 = vmatprep.subr.mxu0 0.0
    %5736 = vmatpush1.msra.mxu0 %v5694
    %5737 = vmatprep.subr.mxu0 0.0
    %5738 = vmatpush1.msra.mxu0 %v5693
    %5739 = vmatprep.subr.mxu0 0.0
    %5740 = vmatpush1.msra.mxu0 %v5692
    %5741 = vmatprep.subr.mxu0 0.0
    %5742 = vmatpush1.msra.mxu0 %v5691
    %5743 = vmatprep.subr.mxu0 0.0
    %5744 = vmatpush1.msra.mxu0 %v5690
    %5745 = vmatprep.subr.mxu0 0.0
    %5746 = vmatpush1.msra.mxu0 %v5689
    %5747 = vmatprep.subr.mxu0 0.0
    %5748 = vmatpush1.msra.mxu0 %v5688
    %5749 = vmatprep.subr.mxu0 0.0
    %5750 = vmatpush1.msra.mxu0 %v5687
    %5751 = vmatprep.subr.mxu0 0.0
    %5752 = vmatpush2.msra.mxu0 %v5718
    %5753 = vmatprep.subr.mxu0 0.0
    %5754 = vmatpush2.msra.mxu0 %v5717
    %5755 = vmatprep.subr.mxu0 0.0
    %5756 = vmatpush2.msra.mxu0 %v5716
    %5757 = vmatprep.subr.mxu0 0.0
    %5758 = vmatpush2.msra.mxu0 %v5715
    %5759 = vmatprep.subr.mxu0 0.0
    %5760 = vmatpush2.msra.mxu0 %v5714
    %5761 = vmatprep.subr.mxu0 0.0
    %5762 = vmatpush2.msra.mxu0 %v5713
    %5763 = vmatprep.subr.mxu0 0.0
    %5764 = vmatpush2.msra.mxu0 %v5712
    %5765 = vmatprep.subr.mxu0 0.0
    %5766 = vmatpush2.msra.mxu0 %v5711
    %5767 = vmatprep.subr.mxu0 0.0
    %5768 = vmatpush2.msra.mxu0 %v5710
    %5769 = vmatprep.subr.mxu0 0.0
    %5770 = vmatpush2.msra.mxu0 %v5709
    %5771 = vmatprep.subr.mxu0 0.0
    %5772 = vmatpush2.msra.mxu0 %v5708
    %5773 = vmatprep.subr.mxu0 0.0
    %5774 = vmatpush2.msra.mxu0 %v5707
    %5775 = vmatprep.subr.mxu0 0.0
    %5776 = vmatpush2.msra.mxu0 %v5706
    %5777 = vmatprep.subr.mxu0 0.0
    %5778 = vmatpush2.msra.mxu0 %v5705
    %5779 = vmatprep.subr.mxu0 0.0
    %5780 = vmatpush2.msra.mxu0 %v5704
    %5781 = vmatprep.subr.mxu0 0.0
    %5782 = vmatpush2.msra.mxu0 %v5703
    %5783 = vmatprep.mubr.f32.mxu0 %v5161
    %5784 = vmatmul.mubr.f32.gmra.mxu0 %v5159
    %v5785 = vpop.f32.mrf.mxu0
    %v5786 = vadd.f32 0.0, %v5785
    %v5787 = vpop.f32.mrf.mxu0
    %5788 = vmatprep.mubr.f32.mxu0 %v5167
    %5789 = vmatmul.mubr.f32.gmra.mxu0 %v5165
    %v5790 = vpop.f32.mrf.mxu0
    %v5791 = vadd.f32 0.0, %v5790
    %v5792 = vpop.f32.mrf.mxu0
    %5793 = vmatprep.mubr.f32.mxu0 %v5238
    %5794 = vmatmul.mubr.f32.gmra.mxu0 %v5236
    %v5795 = vpop.f32.mrf.mxu0
    %v5796 = vadd.f32 0.0, %v5795
    %v5797 = vpop.f32.mrf.mxu0
    %5798 = vmatprep.mubr.f32.mxu0 %v5244
    %5799 = vmatmul.mubr.f32.gmra.mxu0 %v5242
    %v5800 = vpop.f32.mrf.mxu0
    %v5801 = vadd.f32 0.0, %v5800
    %v5802 = vpop.f32.mrf.mxu0
    %5803 = vdwg.mxu0
    %v5804 = vadd.f32 %v5683, %v5786
    %v5805 = vadd.f32 %v5684, %v5791
    %v5806 = vadd.f32 %v5685, %v5796
    %v5807 = vadd.f32 %v5686, %v5801
    %v5808 = vmax.f32 %v5804, 0.0
    %v5809 = vmax.f32 %v5805, 0.0
    %v5810 = vmax.f32 %v5806, 0.0
    %v5811 = vmax.f32 %v5807, 0.0
    %v5812 = vld [vmem:[#allocation10 + $0xa00] sm:$0xff]
    %v5813 = vld [vmem:[#allocation10 + $0xa08] sm:$0xff]
    %v5814 = vld [vmem:[#allocation10 + $0xa10] sm:$0xff]
    %v5815 = vld [vmem:[#allocation10 + $0xa18] sm:$0xff]
    %v5816 = vld [vmem:[#allocation10 + $0xa20] sm:$0xff]
    %v5817 = vld [vmem:[#allocation10 + $0xa28] sm:$0xff]
    %v5818 = vld [vmem:[#allocation10 + $0xa30] sm:$0xff]
    %v5819 = vld [vmem:[#allocation10 + $0xa38] sm:$0xff]
    %v5820 = vld [vmem:[#allocation10 + $0xa40] sm:$0xff]
    %v5821 = vld [vmem:[#allocation10 + $0xa48] sm:$0xff]
    %v5822 = vld [vmem:[#allocation10 + $0xa50] sm:$0xff]
    %v5823 = vld [vmem:[#allocation10 + $0xa58] sm:$0xff]
    %v5824 = vld [vmem:[#allocation10 + $0xa60] sm:$0xff]
    %v5825 = vld [vmem:[#allocation10 + $0xa68] sm:$0xff]
    %v5826 = vld [vmem:[#allocation10 + $0xa70] sm:$0xff]
    %v5827 = vld [vmem:[#allocation10 + $0xa78] sm:$0xff]
    %v5828 = vld [vmem:[#allocation10 + $0xa80] sm:$0xff]
    %v5829 = vld [vmem:[#allocation10 + $0xa88] sm:$0xff]
    %v5830 = vld [vmem:[#allocation10 + $0xa90] sm:$0xff]
    %v5831 = vld [vmem:[#allocation10 + $0xa98] sm:$0xff]
    %v5832 = vld [vmem:[#allocation10 + $0xaa0] sm:$0xff]
    %v5833 = vld [vmem:[#allocation10 + $0xaa8] sm:$0xff]
    %v5834 = vld [vmem:[#allocation10 + $0xab0] sm:$0xff]
    %v5835 = vld [vmem:[#allocation10 + $0xab8] sm:$0xff]
    %v5836 = vld [vmem:[#allocation10 + $0xac0] sm:$0xff]
    %v5837 = vld [vmem:[#allocation10 + $0xac8] sm:$0xff]
    %v5838 = vld [vmem:[#allocation10 + $0xad0] sm:$0xff]
    %v5839 = vld [vmem:[#allocation10 + $0xad8] sm:$0xff]
    %v5840 = vld [vmem:[#allocation10 + $0xae0] sm:$0xff]
    %v5841 = vld [vmem:[#allocation10 + $0xae8] sm:$0xff]
    %v5842 = vld [vmem:[#allocation10 + $0xaf0] sm:$0xff]
    %v5843 = vld [vmem:[#allocation10 + $0xaf8] sm:$0xff]
    %s5844 = scalar_lea.vmem [#allocation13], 33
    %v5845 = vld [vmem:[%s5844] ss:$8 sm:$0x3]
    %v5847 = vlaneseq
    %v5848 = vshrl.u32 %v5847, 7
    %v5849 = vsub.s32 0, %v5848
    %v5850 = vrot.slane %v5845, %v5849
    %v5851 = vlaneseq
    %v5852 = vshrl.u32 %v5851, 7
    %v5853 = vsub.s32 1, %v5852
    %v5854 = vrot.slane %v5845, %v5853
    %5857 = vmatprep.subr.mxu0 0.0
    %5858 = vmatpush1.xpose.msra.mxu0 %v5827
    %5859 = vmatprep.subr.mxu0 0.0
    %5860 = vmatpush1.xpose.msra.mxu0 %v5826
    %5861 = vmatprep.subr.mxu0 0.0
    %5862 = vmatpush1.xpose.msra.mxu0 %v5825
    %5863 = vmatprep.subr.mxu0 0.0
    %5864 = vmatpush1.xpose.msra.mxu0 %v5824
    %5865 = vmatprep.subr.mxu0 0.0
    %5866 = vmatpush1.xpose.msra.mxu0 %v5823
    %5867 = vmatprep.subr.mxu0 0.0
    %5868 = vmatpush1.xpose.msra.mxu0 %v5822
    %5869 = vmatprep.subr.mxu0 0.0
    %5870 = vmatpush1.xpose.msra.mxu0 %v5821
    %5871 = vmatprep.subr.mxu0 0.0
    %5872 = vmatpush1.xpose.msra.mxu0 %v5820
    %5873 = vmatprep.subr.mxu0 0.0
    %5874 = vmatpush1.xpose.msra.mxu0 %v5819
    %5875 = vmatprep.subr.mxu0 0.0
    %5876 = vmatpush1.xpose.msra.mxu0 %v5818
    %5877 = vmatprep.subr.mxu0 0.0
    %5878 = vmatpush1.xpose.msra.mxu0 %v5817
    %5879 = vmatprep.subr.mxu0 0.0
    %5880 = vmatpush1.xpose.msra.mxu0 %v5816
    %5881 = vmatprep.subr.mxu0 0.0
    %5882 = vmatpush1.xpose.msra.mxu0 %v5815
    %5883 = vmatprep.subr.mxu0 0.0
    %5884 = vmatpush1.xpose.msra.mxu0 %v5814
    %5885 = vmatprep.subr.mxu0 0.0
    %5886 = vmatpush1.xpose.msra.mxu0 %v5813
    %5887 = vmatprep.subr.mxu0 0.0
    %5888 = vmatpush1.xpose.msra.mxu0 %v5812
    %5889 = vmatprep.subr.mxu0 0.0
    %5890 = vmatpush2.xpose.msra.mxu0 %v5843
    %5891 = vmatprep.subr.mxu0 0.0
    %5892 = vmatpush2.xpose.msra.mxu0 %v5842
    %5893 = vmatprep.subr.mxu0 0.0
    %5894 = vmatpush2.xpose.msra.mxu0 %v5841
    %5895 = vmatprep.subr.mxu0 0.0
    %5896 = vmatpush2.xpose.msra.mxu0 %v5840
    %5897 = vmatprep.subr.mxu0 0.0
    %5898 = vmatpush2.xpose.msra.mxu0 %v5839
    %5899 = vmatprep.subr.mxu0 0.0
    %5900 = vmatpush2.xpose.msra.mxu0 %v5838
    %5901 = vmatprep.subr.mxu0 0.0
    %5902 = vmatpush2.xpose.msra.mxu0 %v5837
    %5903 = vmatprep.subr.mxu0 0.0
    %5904 = vmatpush2.xpose.msra.mxu0 %v5836
    %5905 = vmatprep.subr.mxu0 0.0
    %5906 = vmatpush2.xpose.msra.mxu0 %v5835
    %5907 = vmatprep.subr.mxu0 0.0
    %5908 = vmatpush2.xpose.msra.mxu0 %v5834
    %5909 = vmatprep.subr.mxu0 0.0
    %5910 = vmatpush2.xpose.msra.mxu0 %v5833
    %5911 = vmatprep.subr.mxu0 0.0
    %5912 = vmatpush2.xpose.msra.mxu0 %v5832
    %5913 = vmatprep.subr.mxu0 0.0
    %5914 = vmatpush2.xpose.msra.mxu0 %v5831
    %5915 = vmatprep.subr.mxu0 0.0
    %5916 = vmatpush2.xpose.msra.mxu0 %v5830
    %5917 = vmatprep.subr.mxu0 0.0
    %5918 = vmatpush2.xpose.msra.mxu0 %v5829
    %5919 = vmatprep.subr.mxu0 0.0
    %5920 = vmatpush2.xpose.msra.mxu0 %v5828
    %5921 = vmatprep.mubr.f32.mxu0 0.0
    %5922 = vmatmul.mubr.f32.gmra.mxu0 %v5808
    %v5923 = vpop.f32.mrf.mxu0
    %v5924 = vadd.f32 %v5850, %v5923
    %v5925 = vpop.f32.mrf.mxu0
    %v5926 = vadd.f32 %v5854, %v5925
    %5927 = vmatprep.mubr.f32.mxu0 0.0
    %5928 = vmatmul.mubr.f32.gmra.mxu0 %v5809
    %v5929 = vpop.f32.mrf.mxu0
    %v5930 = vadd.f32 %v5850, %v5929
    %v5931 = vpop.f32.mrf.mxu0
    %v5932 = vadd.f32 %v5854, %v5931
    %5933 = vmatprep.mubr.f32.mxu0 0.0
    %5934 = vmatmul.mubr.f32.gmra.mxu0 %v5810
    %v5935 = vpop.f32.mrf.mxu0
    %v5936 = vadd.f32 %v5850, %v5935
    %v5937 = vpop.f32.mrf.mxu0
    %v5938 = vadd.f32 %v5854, %v5937
    %5939 = vmatprep.mubr.f32.mxu0 0.0
    %5940 = vmatmul.mubr.f32.gmra.mxu0 %v5811
    %v5941 = vpop.f32.mrf.mxu0
    %v5942 = vadd.f32 %v5850, %v5941
    %v5943 = vpop.f32.mrf.mxu0
    %v5944 = vadd.f32 %v5854, %v5943
    %5945 = vdwg.mxu0
    %v5946 = vlaneseq
    %v5947 = vshrl.u32 %v5946, 7
    %v5948 = vadd.s32 %v5947, 8
    %vm5949 = vcmp.lt.s32.totalorder %v5947, 12
    %vm5950 = vcmp.lt.s32.totalorder %v5948, 12
    %v5951 = vsel %vm5949, %v5924, 0.0
    %v5952 = vsel %vm5949, %v5926, 0.0
    %v5953 = vsel %vm5950, %v5930, 0.0
    %v5954 = vsel %vm5950, %v5932, 0.0
    %v5955 = vsel %vm5949, %v5936, 0.0
    %v5956 = vsel %vm5949, %v5938, 0.0
    %v5957 = vsel %vm5950, %v5942, 0.0
    %v5958 = vsel %vm5950, %v5944, 0.0
    %v5959 = vrot.slane %v5567, 4
    %v5960 = vadd.f32 %v5567, %v5959
    %v5961 = vrot.slane %v5960, 2
    %v5962 = vadd.f32 %v5960, %v5961
    %v5963 = vrot.slane %v5962, 1
    %v5964 = vadd.f32 %v5962, %v5963
    %v5965 = vrot.slane %v5569, 4
    %v5966 = vadd.f32 %v5569, %v5965
    %v5967 = vrot.slane %v5966, 2
    %v5968 = vadd.f32 %v5966, %v5967
    %v5969 = vrot.slane %v5968, 1
    %v5970 = vadd.f32 %v5968, %v5969
    %v5971 = vrot.slane %v5573, 4
    %v5972 = vadd.f32 %v5573, %v5971
    %v5973 = vrot.slane %v5972, 2
    %v5974 = vadd.f32 %v5972, %v5973
    %v5975 = vrot.slane %v5974, 1
    %v5976 = vadd.f32 %v5974, %v5975
    %v5977 = vrot.slane %v5575, 4
    %v5978 = vadd.f32 %v5575, %v5977
    %v5979 = vrot.slane %v5978, 2
    %v5980 = vadd.f32 %v5978, %v5979
    %v5981 = vrot.slane %v5980, 1
    %v5982 = vadd.f32 %v5980, %v5981
    %v5983 = vadd.f32 %v5951, %v5953
    %v5984 = vrot.slane %v5983, 4
    %v5985 = vadd.f32 %v5983, %v5984
    %v5986 = vrot.slane %v5985, 2
    %v5987 = vadd.f32 %v5985, %v5986
    %v5988 = vrot.slane %v5987, 1
    %v5989 = vadd.f32 %v5987, %v5988
    %v5990 = vadd.f32 %v5952, %v5954
    %v5991 = vrot.slane %v5990, 4
    %v5992 = vadd.f32 %v5990, %v5991
    %v5993 = vrot.slane %v5992, 2
    %v5994 = vadd.f32 %v5992, %v5993
    %v5995 = vrot.slane %v5994, 1
    %v5996 = vadd.f32 %v5994, %v5995
    %v5997 = vadd.f32 %v5955, %v5957
    %v5998 = vrot.slane %v5997, 4
    %v5999 = vadd.f32 %v5997, %v5998
    %v6000 = vrot.slane %v5999, 2
    %v6001 = vadd.f32 %v5999, %v6000
    %v6002 = vrot.slane %v6001, 1
    %v6003 = vadd.f32 %v6001, %v6002
    %v6004 = vadd.f32 %v5956, %v5958
    %v6005 = vrot.slane %v6004, 4
    %v6006 = vadd.f32 %v6004, %v6005
    %v6007 = vrot.slane %v6006, 2
    %v6008 = vadd.f32 %v6006, %v6007
    %v6009 = vrot.slane %v6008, 1
    %v6010 = vadd.f32 %v6008, %v6009
    %v6011 = vld [vmem:[#allocation11 + $0x12] sm:$0x1]
    %v6012 = vld [vmem:[#allocation8 + $0xe00] sm:$0xff]
    %v6013 = vld [vmem:[#allocation8 + $0xe08] sm:$0xff]
    %v6014 = vld [vmem:[#allocation8 + $0xe10] sm:$0xff]
    %v6015 = vld [vmem:[#allocation8 + $0xe18] sm:$0xff]
    %v6016 = vld [vmem:[#allocation8 + $0xe20] sm:$0xff]
    %v6017 = vld [vmem:[#allocation8 + $0xe28] sm:$0xff]
    %v6018 = vld [vmem:[#allocation8 + $0xe30] sm:$0xff]
    %v6019 = vld [vmem:[#allocation8 + $0xe38] sm:$0xff]
    %v6020 = vld [vmem:[#allocation8 + $0xe40] sm:$0xff]
    %v6021 = vld [vmem:[#allocation8 + $0xe48] sm:$0xff]
    %v6022 = vld [vmem:[#allocation8 + $0xe50] sm:$0xff]
    %v6023 = vld [vmem:[#allocation8 + $0xe58] sm:$0xff]
    %v6024 = vld [vmem:[#allocation8 + $0xe60] sm:$0xff]
    %v6025 = vld [vmem:[#allocation8 + $0xe68] sm:$0xff]
    %v6026 = vld [vmem:[#allocation8 + $0xe70] sm:$0xff]
    %v6027 = vld [vmem:[#allocation8 + $0xe78] sm:$0xff]
    %v6028 = vld [vmem:[#allocation8 + $0xe80] sm:$0xff]
    %v6029 = vld [vmem:[#allocation8 + $0xe88] sm:$0xff]
    %v6030 = vld [vmem:[#allocation8 + $0xe90] sm:$0xff]
    %v6031 = vld [vmem:[#allocation8 + $0xe98] sm:$0xff]
    %v6032 = vld [vmem:[#allocation8 + $0xea0] sm:$0xff]
    %v6033 = vld [vmem:[#allocation8 + $0xea8] sm:$0xff]
    %v6034 = vld [vmem:[#allocation8 + $0xeb0] sm:$0xff]
    %v6035 = vld [vmem:[#allocation8 + $0xeb8] sm:$0xff]
    %v6036 = vld [vmem:[#allocation8 + $0xec0] sm:$0xff]
    %v6037 = vld [vmem:[#allocation8 + $0xec8] sm:$0xff]
    %v6038 = vld [vmem:[#allocation8 + $0xed0] sm:$0xff]
    %v6039 = vld [vmem:[#allocation8 + $0xed8] sm:$0xff]
    %v6040 = vld [vmem:[#allocation8 + $0xee0] sm:$0xff]
    %v6041 = vld [vmem:[#allocation8 + $0xee8] sm:$0xff]
    %v6042 = vld [vmem:[#allocation8 + $0xef0] sm:$0xff]
    %v6043 = vld [vmem:[#allocation8 + $0xef8] sm:$0xff]
    %vm6048 = vcmask 1041409
    %v6049 = vsel %vm6048, %v5976, %v5964
    %v6050 = vsel %vm6048, %v5982, %v5970
    %6053 = vmatprep.subr.mxu0 0.0
    %6054 = vmatpush1.msra.mxu0 %v6027
    %6055 = vmatprep.subr.mxu0 0.0
    %6056 = vmatpush1.msra.mxu0 %v6026
    %6057 = vmatprep.subr.mxu0 0.0
    %6058 = vmatpush1.msra.mxu0 %v6025
    %6059 = vmatprep.subr.mxu0 0.0
    %6060 = vmatpush1.msra.mxu0 %v6024
    %6061 = vmatprep.subr.mxu0 0.0
    %6062 = vmatpush1.msra.mxu0 %v6023
    %6063 = vmatprep.subr.mxu0 0.0
    %6064 = vmatpush1.msra.mxu0 %v6022
    %6065 = vmatprep.subr.mxu0 0.0
    %6066 = vmatpush1.msra.mxu0 %v6021
    %6067 = vmatprep.subr.mxu0 0.0
    %6068 = vmatpush1.msra.mxu0 %v6020
    %6069 = vmatprep.subr.mxu0 0.0
    %6070 = vmatpush1.msra.mxu0 %v6019
    %6071 = vmatprep.subr.mxu0 0.0
    %6072 = vmatpush1.msra.mxu0 %v6018
    %6073 = vmatprep.subr.mxu0 0.0
    %6074 = vmatpush1.msra.mxu0 %v6017
    %6075 = vmatprep.subr.mxu0 0.0
    %6076 = vmatpush1.msra.mxu0 %v6016
    %6077 = vmatprep.subr.mxu0 0.0
    %6078 = vmatpush1.msra.mxu0 %v6015
    %6079 = vmatprep.subr.mxu0 0.0
    %6080 = vmatpush1.msra.mxu0 %v6014
    %6081 = vmatprep.subr.mxu0 0.0
    %6082 = vmatpush1.msra.mxu0 %v6013
    %6083 = vmatprep.subr.mxu0 0.0
    %6084 = vmatpush1.msra.mxu0 %v6012
    %6085 = vmatprep.subr.mxu0 0.0
    %6086 = vmatpush2.msra.mxu0 %v6043
    %6087 = vmatprep.subr.mxu0 0.0
    %6088 = vmatpush2.msra.mxu0 %v6042
    %6089 = vmatprep.subr.mxu0 0.0
    %6090 = vmatpush2.msra.mxu0 %v6041
    %6091 = vmatprep.subr.mxu0 0.0
    %6092 = vmatpush2.msra.mxu0 %v6040
    %6093 = vmatprep.subr.mxu0 0.0
    %6094 = vmatpush2.msra.mxu0 %v6039
    %6095 = vmatprep.subr.mxu0 0.0
    %6096 = vmatpush2.msra.mxu0 %v6038
    %6097 = vmatprep.subr.mxu0 0.0
    %6098 = vmatpush2.msra.mxu0 %v6037
    %6099 = vmatprep.subr.mxu0 0.0
    %6100 = vmatpush2.msra.mxu0 %v6036
    %6101 = vmatprep.subr.mxu0 0.0
    %6102 = vmatpush2.msra.mxu0 %v6035
    %6103 = vmatprep.subr.mxu0 0.0
    %6104 = vmatpush2.msra.mxu0 %v6034
    %6105 = vmatprep.subr.mxu0 0.0
    %6106 = vmatpush2.msra.mxu0 %v6033
    %6107 = vmatprep.subr.mxu0 0.0
    %6108 = vmatpush2.msra.mxu0 %v6032
    %6109 = vmatprep.subr.mxu0 0.0
    %6110 = vmatpush2.msra.mxu0 %v6031
    %6111 = vmatprep.subr.mxu0 0.0
    %6112 = vmatpush2.msra.mxu0 %v6030
    %6113 = vmatprep.subr.mxu0 0.0
    %6114 = vmatpush2.msra.mxu0 %v6029
    %6115 = vmatprep.subr.mxu0 0.0
    %6116 = vmatpush2.msra.mxu0 %v6028
    %6117 = vmatprep.mubr.f32.mxu0 %v6050
    %6118 = vmatmul.mubr.f32.gmra.mxu0 %v6049
    %v6119 = vpop.f32.mrf.mxu0
    %v6120 = vadd.f32 0.0, %v6119
    %v6121 = vpop.f32.mrf.mxu0
    %6122 = vdwg.mxu0
    %v6123 = vlaneseq
    %v6124 = vshrl.u32 %v6123, 7
    %v6125 = vsub.s32 0, %v6124
    %v6126 = vrot.slane %v6011, %v6125
    %v6127 = vadd.f32 %v6126, %v6120
    %v6128 = vld [vmem:[#allocation8 + $0xf00] sm:$0xff]
    %v6129 = vld [vmem:[#allocation8 + $0xf08] sm:$0xff]
    %v6130 = vld [vmem:[#allocation8 + $0xf10] sm:$0xff]
    %v6131 = vld [vmem:[#allocation8 + $0xf18] sm:$0xff]
    %v6132 = vld [vmem:[#allocation8 + $0xf20] sm:$0xff]
    %v6133 = vld [vmem:[#allocation8 + $0xf28] sm:$0xff]
    %v6134 = vld [vmem:[#allocation8 + $0xf30] sm:$0xff]
    %v6135 = vld [vmem:[#allocation8 + $0xf38] sm:$0xff]
    %v6136 = vld [vmem:[#allocation8 + $0xf40] sm:$0xff]
    %v6137 = vld [vmem:[#allocation8 + $0xf48] sm:$0xff]
    %v6138 = vld [vmem:[#allocation8 + $0xf50] sm:$0xff]
    %v6139 = vld [vmem:[#allocation8 + $0xf58] sm:$0xff]
    %v6140 = vld [vmem:[#allocation8 + $0xf60] sm:$0xff]
    %v6141 = vld [vmem:[#allocation8 + $0xf68] sm:$0xff]
    %v6142 = vld [vmem:[#allocation8 + $0xf70] sm:$0xff]
    %v6143 = vld [vmem:[#allocation8 + $0xf78] sm:$0xff]
    %v6144 = vld [vmem:[#allocation8 + $0xf80] sm:$0xff]
    %v6145 = vld [vmem:[#allocation8 + $0xf88] sm:$0xff]
    %v6146 = vld [vmem:[#allocation8 + $0xf90] sm:$0xff]
    %v6147 = vld [vmem:[#allocation8 + $0xf98] sm:$0xff]
    %v6148 = vld [vmem:[#allocation8 + $0xfa0] sm:$0xff]
    %v6149 = vld [vmem:[#allocation8 + $0xfa8] sm:$0xff]
    %v6150 = vld [vmem:[#allocation8 + $0xfb0] sm:$0xff]
    %v6151 = vld [vmem:[#allocation8 + $0xfb8] sm:$0xff]
    %v6152 = vld [vmem:[#allocation8 + $0xfc0] sm:$0xff]
    %v6153 = vld [vmem:[#allocation8 + $0xfc8] sm:$0xff]
    %v6154 = vld [vmem:[#allocation8 + $0xfd0] sm:$0xff]
    %v6155 = vld [vmem:[#allocation8 + $0xfd8] sm:$0xff]
    %v6156 = vld [vmem:[#allocation8 + $0xfe0] sm:$0xff]
    %v6157 = vld [vmem:[#allocation8 + $0xfe8] sm:$0xff]
    %v6158 = vld [vmem:[#allocation8 + $0xff0] sm:$0xff]
    %v6159 = vld [vmem:[#allocation8 + $0xff8] sm:$0xff]
    %v6164 = vsel %vm6048, %v6003, %v5989
    %v6165 = vsel %vm6048, %v6010, %v5996
    %6168 = vmatprep.subr.mxu0 0.0
    %6169 = vmatpush1.msra.mxu0 %v6143
    %6170 = vmatprep.subr.mxu0 0.0
    %6171 = vmatpush1.msra.mxu0 %v6142
    %6172 = vmatprep.subr.mxu0 0.0
    %6173 = vmatpush1.msra.mxu0 %v6141
    %6174 = vmatprep.subr.mxu0 0.0
    %6175 = vmatpush1.msra.mxu0 %v6140
    %6176 = vmatprep.subr.mxu0 0.0
    %6177 = vmatpush1.msra.mxu0 %v6139
    %6178 = vmatprep.subr.mxu0 0.0
    %6179 = vmatpush1.msra.mxu0 %v6138
    %6180 = vmatprep.subr.mxu0 0.0
    %6181 = vmatpush1.msra.mxu0 %v6137
    %6182 = vmatprep.subr.mxu0 0.0
    %6183 = vmatpush1.msra.mxu0 %v6136
    %6184 = vmatprep.subr.mxu0 0.0
    %6185 = vmatpush1.msra.mxu0 %v6135
    %6186 = vmatprep.subr.mxu0 0.0
    %6187 = vmatpush1.msra.mxu0 %v6134
    %6188 = vmatprep.subr.mxu0 0.0
    %6189 = vmatpush1.msra.mxu0 %v6133
    %6190 = vmatprep.subr.mxu0 0.0
    %6191 = vmatpush1.msra.mxu0 %v6132
    %6192 = vmatprep.subr.mxu0 0.0
    %6193 = vmatpush1.msra.mxu0 %v6131
    %6194 = vmatprep.subr.mxu0 0.0
    %6195 = vmatpush1.msra.mxu0 %v6130
    %6196 = vmatprep.subr.mxu0 0.0
    %6197 = vmatpush1.msra.mxu0 %v6129
    %6198 = vmatprep.subr.mxu0 0.0
    %6199 = vmatpush1.msra.mxu0 %v6128
    %6200 = vmatprep.subr.mxu0 0.0
    %6201 = vmatpush2.msra.mxu0 %v6159
    %6202 = vmatprep.subr.mxu0 0.0
    %6203 = vmatpush2.msra.mxu0 %v6158
    %6204 = vmatprep.subr.mxu0 0.0
    %6205 = vmatpush2.msra.mxu0 %v6157
    %6206 = vmatprep.subr.mxu0 0.0
    %6207 = vmatpush2.msra.mxu0 %v6156
    %6208 = vmatprep.subr.mxu0 0.0
    %6209 = vmatpush2.msra.mxu0 %v6155
    %6210 = vmatprep.subr.mxu0 0.0
    %6211 = vmatpush2.msra.mxu0 %v6154
    %6212 = vmatprep.subr.mxu0 0.0
    %6213 = vmatpush2.msra.mxu0 %v6153
    %6214 = vmatprep.subr.mxu0 0.0
    %6215 = vmatpush2.msra.mxu0 %v6152
    %6216 = vmatprep.subr.mxu0 0.0
    %6217 = vmatpush2.msra.mxu0 %v6151
    %6218 = vmatprep.subr.mxu0 0.0
    %6219 = vmatpush2.msra.mxu0 %v6150
    %6220 = vmatprep.subr.mxu0 0.0
    %6221 = vmatpush2.msra.mxu0 %v6149
    %6222 = vmatprep.subr.mxu0 0.0
    %6223 = vmatpush2.msra.mxu0 %v6148
    %6224 = vmatprep.subr.mxu0 0.0
    %6225 = vmatpush2.msra.mxu0 %v6147
    %6226 = vmatprep.subr.mxu0 0.0
    %6227 = vmatpush2.msra.mxu0 %v6146
    %6228 = vmatprep.subr.mxu0 0.0
    %6229 = vmatpush2.msra.mxu0 %v6145
    %6230 = vmatprep.subr.mxu0 0.0
    %6231 = vmatpush2.msra.mxu0 %v6144
    %6232 = vmatprep.mubr.f32.mxu0 %v6165
    %6233 = vmatmul.mubr.f32.gmra.mxu0 %v6164
    %v6234 = vpop.f32.mrf.mxu0
    %v6235 = vadd.f32 0.0, %v6234
    %v6236 = vpop.f32.mrf.mxu0
    %6237 = vdwg.mxu0
    %v6238 = vadd.f32 %v6127, %v6235
    %v6239 = vmax.f32 %v6238, 0.0
    %v6240 = vld [vmem:[#allocation10 + $0xb00] sm:$0xff]
    %v6241 = vld [vmem:[#allocation10 + $0xb08] sm:$0xff]
    %v6242 = vld [vmem:[#allocation10 + $0xb10] sm:$0xff]
    %v6243 = vld [vmem:[#allocation10 + $0xb18] sm:$0xff]
    %v6244 = vld [vmem:[#allocation10 + $0xb20] sm:$0xff]
    %v6245 = vld [vmem:[#allocation10 + $0xb28] sm:$0xff]
    %v6246 = vld [vmem:[#allocation10 + $0xb30] sm:$0xff]
    %v6247 = vld [vmem:[#allocation10 + $0xb38] sm:$0xff]
    %v6248 = vld [vmem:[#allocation10 + $0xb40] sm:$0xff]
    %v6249 = vld [vmem:[#allocation10 + $0xb48] sm:$0xff]
    %v6250 = vld [vmem:[#allocation10 + $0xb50] sm:$0xff]
    %v6251 = vld [vmem:[#allocation10 + $0xb58] sm:$0xff]
    %v6252 = vld [vmem:[#allocation10 + $0xb60] sm:$0xff]
    %v6253 = vld [vmem:[#allocation10 + $0xb68] sm:$0xff]
    %v6254 = vld [vmem:[#allocation10 + $0xb70] sm:$0xff]
    %v6255 = vld [vmem:[#allocation10 + $0xb78] sm:$0xff]
    %v6256 = vld [vmem:[#allocation13 + $0x22] ss:$0 sm:$0xff]
    %6257 = vmatprep.subr.mxu0 0.0
    %6258 = vmatpush1.xpose.msra.mxu0 %v6255
    %6259 = vmatprep.subr.mxu0 0.0
    %6260 = vmatpush1.xpose.msra.mxu0 %v6254
    %6261 = vmatprep.subr.mxu0 0.0
    %6262 = vmatpush1.xpose.msra.mxu0 %v6253
    %6263 = vmatprep.subr.mxu0 0.0
    %6264 = vmatpush1.xpose.msra.mxu0 %v6252
    %6265 = vmatprep.subr.mxu0 0.0
    %6266 = vmatpush1.xpose.msra.mxu0 %v6251
    %6267 = vmatprep.subr.mxu0 0.0
    %6268 = vmatpush1.xpose.msra.mxu0 %v6250
    %6269 = vmatprep.subr.mxu0 0.0
    %6270 = vmatpush1.xpose.msra.mxu0 %v6249
    %6271 = vmatprep.subr.mxu0 0.0
    %6272 = vmatpush1.xpose.msra.mxu0 %v6248
    %6273 = vmatprep.subr.mxu0 0.0
    %6274 = vmatpush1.xpose.msra.mxu0 %v6247
    %6275 = vmatprep.subr.mxu0 0.0
    %6276 = vmatpush1.xpose.msra.mxu0 %v6246
    %6277 = vmatprep.subr.mxu0 0.0
    %6278 = vmatpush1.xpose.msra.mxu0 %v6245
    %6279 = vmatprep.subr.mxu0 0.0
    %6280 = vmatpush1.xpose.msra.mxu0 %v6244
    %6281 = vmatprep.subr.mxu0 0.0
    %6282 = vmatpush1.xpose.msra.mxu0 %v6243
    %6283 = vmatprep.subr.mxu0 0.0
    %6284 = vmatpush1.xpose.msra.mxu0 %v6242
    %6285 = vmatprep.subr.mxu0 0.0
    %6286 = vmatpush1.xpose.msra.mxu0 %v6241
    %6287 = vmatprep.subr.mxu0 0.0
    %6288 = vmatpush1.xpose.msra.mxu0 %v6240
    %6289 = vmatprep.subr.mxu0 0.0
    %6290 = vmatpush2.xpose.msra.mxu0 0.0
    %6291 = vmatprep.subr.mxu0 0.0
    %6292 = vmatpush2.xpose.msra.mxu0 0.0
    %6293 = vmatprep.subr.mxu0 0.0
    %6294 = vmatpush2.xpose.msra.mxu0 0.0
    %6295 = vmatprep.subr.mxu0 0.0
    %6296 = vmatpush2.xpose.msra.mxu0 0.0
    %6297 = vmatprep.subr.mxu0 0.0
    %6298 = vmatpush2.xpose.msra.mxu0 0.0
    %6299 = vmatprep.subr.mxu0 0.0
    %6300 = vmatpush2.xpose.msra.mxu0 0.0
    %6301 = vmatprep.subr.mxu0 0.0
    %6302 = vmatpush2.xpose.msra.mxu0 0.0
    %6303 = vmatprep.subr.mxu0 0.0
    %6304 = vmatpush2.xpose.msra.mxu0 0.0
    %6305 = vmatprep.subr.mxu0 0.0
    %6306 = vmatpush2.xpose.msra.mxu0 0.0
    %6307 = vmatprep.subr.mxu0 0.0
    %6308 = vmatpush2.xpose.msra.mxu0 0.0
    %6309 = vmatprep.subr.mxu0 0.0
    %6310 = vmatpush2.xpose.msra.mxu0 0.0
    %6311 = vmatprep.subr.mxu0 0.0
    %6312 = vmatpush2.xpose.msra.mxu0 0.0
    %6313 = vmatprep.subr.mxu0 0.0
    %6314 = vmatpush2.xpose.msra.mxu0 0.0
    %6315 = vmatprep.subr.mxu0 0.0
    %6316 = vmatpush2.xpose.msra.mxu0 0.0
    %6317 = vmatprep.subr.mxu0 0.0
    %6318 = vmatpush2.xpose.msra.mxu0 0.0
    %6319 = vmatprep.subr.mxu0 0.0
    %6320 = vmatpush2.xpose.msra.mxu0 0.0
    %6321 = vmatprep.mubr.f32.mxu0 0.0
    %6322 = vmatmul.mubr.f32.gmra.mxu0 %v6239
    %v6323 = vpop.f32.mrf.mxu0
    %v6324 = vadd.f32 %v6256, %v6323
    %v6325 = vpop.f32.mrf.mxu0
    %6326 = vdwg.mxu0
    %v6329 = vunpack.c.l.s4 1966171168
    %v6330 = vunpack.c.0.s8 %v6329
    %v6331 = vlaneseq
    %v6332 = vshrl.u32 %v6331, 7
    %v6333 = vsub.s32 %v6330, %v6332
    %v6334 = vrot.slane %v6324, %v6333
    %v6335 = vcombine.high %v6334, %v6334
    %v6337 = vunpack.c.l.s4 1966171168
    %v6338 = vunpack.c.0.s8 %v6337
    %v6339 = vlaneseq
    %v6340 = vshrl.u32 %v6339, 7
    %v6341 = vsub.s32 %v6338, %v6340
    %v6342 = vrot.slane %v6334, %v6341
    %v6344 = vunpack.c.l.s4 1966171168
    %v6345 = vunpack.c.0.s8 %v6344
    %v6346 = vlaneseq
    %v6347 = vshrl.u32 %v6346, 7
    %v6348 = vsub.s32 %v6345, %v6347
    %v6349 = vrot.slane %v6335, %v6348
    %6352 = vst [vmem:[#allocation14] sm:$0x1] %v6342
    %6353 = vst [vmem:[#allocation14 + $0x1] sm:$0x1] %v6349
    %v6354 = vld [vmem:[#allocation11 + $0x13] sm:$0x1]
    %v6355 = vld [vmem:[#allocation8 + $0x1000] sm:$0xff]
    %v6356 = vld [vmem:[#allocation8 + $0x1008] sm:$0xff]
    %v6357 = vld [vmem:[#allocation8 + $0x1010] sm:$0xff]
    %v6358 = vld [vmem:[#allocation8 + $0x1018] sm:$0xff]
    %v6359 = vld [vmem:[#allocation8 + $0x1020] sm:$0xff]
    %v6360 = vld [vmem:[#allocation8 + $0x1028] sm:$0xff]
    %v6361 = vld [vmem:[#allocation8 + $0x1030] sm:$0xff]
    %v6362 = vld [vmem:[#allocation8 + $0x1038] sm:$0xff]
    %v6363 = vld [vmem:[#allocation8 + $0x1040] sm:$0xff]
    %v6364 = vld [vmem:[#allocation8 + $0x1048] sm:$0xff]
    %v6365 = vld [vmem:[#allocation8 + $0x1050] sm:$0xff]
    %v6366 = vld [vmem:[#allocation8 + $0x1058] sm:$0xff]
    %v6367 = vld [vmem:[#allocation8 + $0x1060] sm:$0xff]
    %v6368 = vld [vmem:[#allocation8 + $0x1068] sm:$0xff]
    %v6369 = vld [vmem:[#allocation8 + $0x1070] sm:$0xff]
    %v6370 = vld [vmem:[#allocation8 + $0x1078] sm:$0xff]
    %v6371 = vld [vmem:[#allocation8 + $0x1080] sm:$0xff]
    %v6372 = vld [vmem:[#allocation8 + $0x1088] sm:$0xff]
    %v6373 = vld [vmem:[#allocation8 + $0x1090] sm:$0xff]
    %v6374 = vld [vmem:[#allocation8 + $0x1098] sm:$0xff]
    %v6375 = vld [vmem:[#allocation8 + $0x10a0] sm:$0xff]
    %v6376 = vld [vmem:[#allocation8 + $0x10a8] sm:$0xff]
    %v6377 = vld [vmem:[#allocation8 + $0x10b0] sm:$0xff]
    %v6378 = vld [vmem:[#allocation8 + $0x10b8] sm:$0xff]
    %v6379 = vld [vmem:[#allocation8 + $0x10c0] sm:$0xff]
    %v6380 = vld [vmem:[#allocation8 + $0x10c8] sm:$0xff]
    %v6381 = vld [vmem:[#allocation8 + $0x10d0] sm:$0xff]
    %v6382 = vld [vmem:[#allocation8 + $0x10d8] sm:$0xff]
    %v6383 = vld [vmem:[#allocation8 + $0x10e0] sm:$0xff]
    %v6384 = vld [vmem:[#allocation8 + $0x10e8] sm:$0xff]
    %v6385 = vld [vmem:[#allocation8 + $0x10f0] sm:$0xff]
    %v6386 = vld [vmem:[#allocation8 + $0x10f8] sm:$0xff]
    %6387 = vmatprep.subr.mxu0 0.0
    %6388 = vmatpush1.msra.mxu0 %v6370
    %6389 = vmatprep.subr.mxu0 0.0
    %6390 = vmatpush1.msra.mxu0 %v6369
    %6391 = vmatprep.subr.mxu0 0.0
    %6392 = vmatpush1.msra.mxu0 %v6368
    %6393 = vmatprep.subr.mxu0 0.0
    %6394 = vmatpush1.msra.mxu0 %v6367
    %6395 = vmatprep.subr.mxu0 0.0
    %6396 = vmatpush1.msra.mxu0 %v6366
    %6397 = vmatprep.subr.mxu0 0.0
    %6398 = vmatpush1.msra.mxu0 %v6365
    %6399 = vmatprep.subr.mxu0 0.0
    %6400 = vmatpush1.msra.mxu0 %v6364
    %6401 = vmatprep.subr.mxu0 0.0
    %6402 = vmatpush1.msra.mxu0 %v6363
    %6403 = vmatprep.subr.mxu0 0.0
    %6404 = vmatpush1.msra.mxu0 %v6362
    %6405 = vmatprep.subr.mxu0 0.0
    %6406 = vmatpush1.msra.mxu0 %v6361
    %6407 = vmatprep.subr.mxu0 0.0
    %6408 = vmatpush1.msra.mxu0 %v6360
    %6409 = vmatprep.subr.mxu0 0.0
    %6410 = vmatpush1.msra.mxu0 %v6359
    %6411 = vmatprep.subr.mxu0 0.0
    %6412 = vmatpush1.msra.mxu0 %v6358
    %6413 = vmatprep.subr.mxu0 0.0
    %6414 = vmatpush1.msra.mxu0 %v6357
    %6415 = vmatprep.subr.mxu0 0.0
    %6416 = vmatpush1.msra.mxu0 %v6356
    %6417 = vmatprep.subr.mxu0 0.0
    %6418 = vmatpush1.msra.mxu0 %v6355
    %6419 = vmatprep.subr.mxu0 0.0
    %6420 = vmatpush2.msra.mxu0 %v6386
    %6421 = vmatprep.subr.mxu0 0.0
    %6422 = vmatpush2.msra.mxu0 %v6385
    %6423 = vmatprep.subr.mxu0 0.0
    %6424 = vmatpush2.msra.mxu0 %v6384
    %6425 = vmatprep.subr.mxu0 0.0
    %6426 = vmatpush2.msra.mxu0 %v6383
    %6427 = vmatprep.subr.mxu0 0.0
    %6428 = vmatpush2.msra.mxu0 %v6382
    %6429 = vmatprep.subr.mxu0 0.0
    %6430 = vmatpush2.msra.mxu0 %v6381
    %6431 = vmatprep.subr.mxu0 0.0
    %6432 = vmatpush2.msra.mxu0 %v6380
    %6433 = vmatprep.subr.mxu0 0.0
    %6434 = vmatpush2.msra.mxu0 %v6379
    %6435 = vmatprep.subr.mxu0 0.0
    %6436 = vmatpush2.msra.mxu0 %v6378
    %6437 = vmatprep.subr.mxu0 0.0
    %6438 = vmatpush2.msra.mxu0 %v6377
    %6439 = vmatprep.subr.mxu0 0.0
    %6440 = vmatpush2.msra.mxu0 %v6376
    %6441 = vmatprep.subr.mxu0 0.0
    %6442 = vmatpush2.msra.mxu0 %v6375
    %6443 = vmatprep.subr.mxu0 0.0
    %6444 = vmatpush2.msra.mxu0 %v6374
    %6445 = vmatprep.subr.mxu0 0.0
    %6446 = vmatpush2.msra.mxu0 %v6373
    %6447 = vmatprep.subr.mxu0 0.0
    %6448 = vmatpush2.msra.mxu0 %v6372
    %6449 = vmatprep.subr.mxu0 0.0
    %6450 = vmatpush2.msra.mxu0 %v6371
    %6451 = vmatprep.mubr.f32.mxu0 %v6050
    %6452 = vmatmul.mubr.f32.gmra.mxu0 %v6049
    %v6453 = vpop.f32.mrf.mxu0
    %v6454 = vadd.f32 0.0, %v6453
    %v6455 = vpop.f32.mrf.mxu0
    %6456 = vdwg.mxu0
    %v6457 = vlaneseq
    %v6458 = vshrl.u32 %v6457, 7
    %v6459 = vsub.s32 0, %v6458
    %v6460 = vrot.slane %v6354, %v6459
    %v6461 = vadd.f32 %v6460, %v6454
    %v6462 = vld [vmem:[#allocation8 + $0x1100] sm:$0xff]
    %v6463 = vld [vmem:[#allocation8 + $0x1108] sm:$0xff]
    %v6464 = vld [vmem:[#allocation8 + $0x1110] sm:$0xff]
    %v6465 = vld [vmem:[#allocation8 + $0x1118] sm:$0xff]
    %v6466 = vld [vmem:[#allocation8 + $0x1120] sm:$0xff]
    %v6467 = vld [vmem:[#allocation8 + $0x1128] sm:$0xff]
    %v6468 = vld [vmem:[#allocation8 + $0x1130] sm:$0xff]
    %v6469 = vld [vmem:[#allocation8 + $0x1138] sm:$0xff]
    %v6470 = vld [vmem:[#allocation8 + $0x1140] sm:$0xff]
    %v6471 = vld [vmem:[#allocation8 + $0x1148] sm:$0xff]
    %v6472 = vld [vmem:[#allocation8 + $0x1150] sm:$0xff]
    %v6473 = vld [vmem:[#allocation8 + $0x1158] sm:$0xff]
    %v6474 = vld [vmem:[#allocation8 + $0x1160] sm:$0xff]
    %v6475 = vld [vmem:[#allocation8 + $0x1168] sm:$0xff]
    %v6476 = vld [vmem:[#allocation8 + $0x1170] sm:$0xff]
    %v6477 = vld [vmem:[#allocation8 + $0x1178] sm:$0xff]
    %v6478 = vld [vmem:[#allocation8 + $0x1180] sm:$0xff]
    %v6479 = vld [vmem:[#allocation8 + $0x1188] sm:$0xff]
    %v6480 = vld [vmem:[#allocation8 + $0x1190] sm:$0xff]
    %v6481 = vld [vmem:[#allocation8 + $0x1198] sm:$0xff]
    %v6482 = vld [vmem:[#allocation8 + $0x11a0] sm:$0xff]
    %v6483 = vld [vmem:[#allocation8 + $0x11a8] sm:$0xff]
    %v6484 = vld [vmem:[#allocation8 + $0x11b0] sm:$0xff]
    %v6485 = vld [vmem:[#allocation8 + $0x11b8] sm:$0xff]
    %v6486 = vld [vmem:[#allocation8 + $0x11c0] sm:$0xff]
    %v6487 = vld [vmem:[#allocation8 + $0x11c8] sm:$0xff]
    %v6488 = vld [vmem:[#allocation8 + $0x11d0] sm:$0xff]
    %v6489 = vld [vmem:[#allocation8 + $0x11d8] sm:$0xff]
    %v6490 = vld [vmem:[#allocation8 + $0x11e0] sm:$0xff]
    %v6491 = vld [vmem:[#allocation8 + $0x11e8] sm:$0xff]
    %v6492 = vld [vmem:[#allocation8 + $0x11f0] sm:$0xff]
    %v6493 = vld [vmem:[#allocation8 + $0x11f8] sm:$0xff]
    %6494 = vmatprep.subr.mxu0 0.0
    %6495 = vmatpush1.msra.mxu0 %v6477
    %6496 = vmatprep.subr.mxu0 0.0
    %6497 = vmatpush1.msra.mxu0 %v6476
    %6498 = vmatprep.subr.mxu0 0.0
    %6499 = vmatpush1.msra.mxu0 %v6475
    %6500 = vmatprep.subr.mxu0 0.0
    %6501 = vmatpush1.msra.mxu0 %v6474
    %6502 = vmatprep.subr.mxu0 0.0
    %6503 = vmatpush1.msra.mxu0 %v6473
    %6504 = vmatprep.subr.mxu0 0.0
    %6505 = vmatpush1.msra.mxu0 %v6472
    %6506 = vmatprep.subr.mxu0 0.0
    %6507 = vmatpush1.msra.mxu0 %v6471
    %6508 = vmatprep.subr.mxu0 0.0
    %6509 = vmatpush1.msra.mxu0 %v6470
    %6510 = vmatprep.subr.mxu0 0.0
    %6511 = vmatpush1.msra.mxu0 %v6469
    %6512 = vmatprep.subr.mxu0 0.0
    %6513 = vmatpush1.msra.mxu0 %v6468
    %6514 = vmatprep.subr.mxu0 0.0
    %6515 = vmatpush1.msra.mxu0 %v6467
    %6516 = vmatprep.subr.mxu0 0.0
    %6517 = vmatpush1.msra.mxu0 %v6466
    %6518 = vmatprep.subr.mxu0 0.0
    %6519 = vmatpush1.msra.mxu0 %v6465
    %6520 = vmatprep.subr.mxu0 0.0
    %6521 = vmatpush1.msra.mxu0 %v6464
    %6522 = vmatprep.subr.mxu0 0.0
    %6523 = vmatpush1.msra.mxu0 %v6463
    %6524 = vmatprep.subr.mxu0 0.0
    %6525 = vmatpush1.msra.mxu0 %v6462
    %6526 = vmatprep.subr.mxu0 0.0
    %6527 = vmatpush2.msra.mxu0 %v6493
    %6528 = vmatprep.subr.mxu0 0.0
    %6529 = vmatpush2.msra.mxu0 %v6492
    %6530 = vmatprep.subr.mxu0 0.0
    %6531 = vmatpush2.msra.mxu0 %v6491
    %6532 = vmatprep.subr.mxu0 0.0
    %6533 = vmatpush2.msra.mxu0 %v6490
    %6534 = vmatprep.subr.mxu0 0.0
    %6535 = vmatpush2.msra.mxu0 %v6489
    %6536 = vmatprep.subr.mxu0 0.0
    %6537 = vmatpush2.msra.mxu0 %v6488
    %6538 = vmatprep.subr.mxu0 0.0
    %6539 = vmatpush2.msra.mxu0 %v6487
    %6540 = vmatprep.subr.mxu0 0.0
    %6541 = vmatpush2.msra.mxu0 %v6486
    %6542 = vmatprep.subr.mxu0 0.0
    %6543 = vmatpush2.msra.mxu0 %v6485
    %6544 = vmatprep.subr.mxu0 0.0
    %6545 = vmatpush2.msra.mxu0 %v6484
    %6546 = vmatprep.subr.mxu0 0.0
    %6547 = vmatpush2.msra.mxu0 %v6483
    %6548 = vmatprep.subr.mxu0 0.0
    %6549 = vmatpush2.msra.mxu0 %v6482
    %6550 = vmatprep.subr.mxu0 0.0
    %6551 = vmatpush2.msra.mxu0 %v6481
    %6552 = vmatprep.subr.mxu0 0.0
    %6553 = vmatpush2.msra.mxu0 %v6480
    %6554 = vmatprep.subr.mxu0 0.0
    %6555 = vmatpush2.msra.mxu0 %v6479
    %6556 = vmatprep.subr.mxu0 0.0
    %6557 = vmatpush2.msra.mxu0 %v6478
    %6558 = vmatprep.mubr.f32.mxu0 %v6165
    %6559 = vmatmul.mubr.f32.gmra.mxu0 %v6164
    %v6560 = vpop.f32.mrf.mxu0
    %v6561 = vadd.f32 0.0, %v6560
    %v6562 = vpop.f32.mrf.mxu0
    %6563 = vdwg.mxu0
    %v6564 = vadd.f32 %v6461, %v6561
    %v6565 = vld [vmem:[#allocation8 + $0x1200] sm:$0xff]
    %v6566 = vld [vmem:[#allocation8 + $0x1208] sm:$0xff]
    %v6567 = vld [vmem:[#allocation8 + $0x1210] sm:$0xff]
    %v6568 = vld [vmem:[#allocation8 + $0x1218] sm:$0xff]
    %v6569 = vld [vmem:[#allocation8 + $0x1220] sm:$0xff]
    %v6570 = vld [vmem:[#allocation8 + $0x1228] sm:$0xff]
    %v6571 = vld [vmem:[#allocation8 + $0x1230] sm:$0xff]
    %v6572 = vld [vmem:[#allocation8 + $0x1238] sm:$0xff]
    %v6573 = vld [vmem:[#allocation8 + $0x1240] sm:$0xff]
    %v6574 = vld [vmem:[#allocation8 + $0x1248] sm:$0xff]
    %v6575 = vld [vmem:[#allocation8 + $0x1250] sm:$0xff]
    %v6576 = vld [vmem:[#allocation8 + $0x1258] sm:$0xff]
    %v6577 = vld [vmem:[#allocation8 + $0x1260] sm:$0xff]
    %v6578 = vld [vmem:[#allocation8 + $0x1268] sm:$0xff]
    %v6579 = vld [vmem:[#allocation8 + $0x1270] sm:$0xff]
    %v6580 = vld [vmem:[#allocation8 + $0x1278] sm:$0xff]
    %v6581 = vld [vmem:[#allocation8 + $0x1280] sm:$0xff]
    %v6582 = vld [vmem:[#allocation8 + $0x1288] sm:$0xff]
    %v6583 = vld [vmem:[#allocation8 + $0x1290] sm:$0xff]
    %v6584 = vld [vmem:[#allocation8 + $0x1298] sm:$0xff]
    %v6585 = vld [vmem:[#allocation8 + $0x12a0] sm:$0xff]
    %v6586 = vld [vmem:[#allocation8 + $0x12a8] sm:$0xff]
    %v6587 = vld [vmem:[#allocation8 + $0x12b0] sm:$0xff]
    %v6588 = vld [vmem:[#allocation8 + $0x12b8] sm:$0xff]
    %v6589 = vld [vmem:[#allocation8 + $0x12c0] sm:$0xff]
    %v6590 = vld [vmem:[#allocation8 + $0x12c8] sm:$0xff]
    %v6591 = vld [vmem:[#allocation8 + $0x12d0] sm:$0xff]
    %v6592 = vld [vmem:[#allocation8 + $0x12d8] sm:$0xff]
    %v6593 = vld [vmem:[#allocation8 + $0x12e0] sm:$0xff]
    %v6594 = vld [vmem:[#allocation8 + $0x12e8] sm:$0xff]
    %v6595 = vld [vmem:[#allocation8 + $0x12f0] sm:$0xff]
    %v6596 = vld [vmem:[#allocation8 + $0x12f8] sm:$0xff]
    %6597 = vmatprep.subr.mxu0 0.0
    %6598 = vmatpush1.msra.mxu0 %v6580
    %6599 = vmatprep.subr.mxu0 0.0
    %6600 = vmatpush1.msra.mxu0 %v6579
    %6601 = vmatprep.subr.mxu0 0.0
    %6602 = vmatpush1.msra.mxu0 %v6578
    %6603 = vmatprep.subr.mxu0 0.0
    %6604 = vmatpush1.msra.mxu0 %v6577
    %6605 = vmatprep.subr.mxu0 0.0
    %6606 = vmatpush1.msra.mxu0 %v6576
    %6607 = vmatprep.subr.mxu0 0.0
    %6608 = vmatpush1.msra.mxu0 %v6575
    %6609 = vmatprep.subr.mxu0 0.0
    %6610 = vmatpush1.msra.mxu0 %v6574
    %6611 = vmatprep.subr.mxu0 0.0
    %6612 = vmatpush1.msra.mxu0 %v6573
    %6613 = vmatprep.subr.mxu0 0.0
    %6614 = vmatpush1.msra.mxu0 %v6572
    %6615 = vmatprep.subr.mxu0 0.0
    %6616 = vmatpush1.msra.mxu0 %v6571
    %6617 = vmatprep.subr.mxu0 0.0
    %6618 = vmatpush1.msra.mxu0 %v6570
    %6619 = vmatprep.subr.mxu0 0.0
    %6620 = vmatpush1.msra.mxu0 %v6569
    %6621 = vmatprep.subr.mxu0 0.0
    %6622 = vmatpush1.msra.mxu0 %v6568
    %6623 = vmatprep.subr.mxu0 0.0
    %6624 = vmatpush1.msra.mxu0 %v6567
    %6625 = vmatprep.subr.mxu0 0.0
    %6626 = vmatpush1.msra.mxu0 %v6566
    %6627 = vmatprep.subr.mxu0 0.0
    %6628 = vmatpush1.msra.mxu0 %v6565
    %6629 = vmatprep.subr.mxu0 0.0
    %6630 = vmatpush2.msra.mxu0 %v6596
    %6631 = vmatprep.subr.mxu0 0.0
    %6632 = vmatpush2.msra.mxu0 %v6595
    %6633 = vmatprep.subr.mxu0 0.0
    %6634 = vmatpush2.msra.mxu0 %v6594
    %6635 = vmatprep.subr.mxu0 0.0
    %6636 = vmatpush2.msra.mxu0 %v6593
    %6637 = vmatprep.subr.mxu0 0.0
    %6638 = vmatpush2.msra.mxu0 %v6592
    %6639 = vmatprep.subr.mxu0 0.0
    %6640 = vmatpush2.msra.mxu0 %v6591
    %6641 = vmatprep.subr.mxu0 0.0
    %6642 = vmatpush2.msra.mxu0 %v6590
    %6643 = vmatprep.subr.mxu0 0.0
    %6644 = vmatpush2.msra.mxu0 %v6589
    %6645 = vmatprep.subr.mxu0 0.0
    %6646 = vmatpush2.msra.mxu0 %v6588
    %6647 = vmatprep.subr.mxu0 0.0
    %6648 = vmatpush2.msra.mxu0 %v6587
    %6649 = vmatprep.subr.mxu0 0.0
    %6650 = vmatpush2.msra.mxu0 %v6586
    %6651 = vmatprep.subr.mxu0 0.0
    %6652 = vmatpush2.msra.mxu0 %v6585
    %6653 = vmatprep.subr.mxu0 0.0
    %6654 = vmatpush2.msra.mxu0 %v6584
    %6655 = vmatprep.subr.mxu0 0.0
    %6656 = vmatpush2.msra.mxu0 %v6583
    %6657 = vmatprep.subr.mxu0 0.0
    %6658 = vmatpush2.msra.mxu0 %v6582
    %6659 = vmatprep.subr.mxu0 0.0
    %6660 = vmatpush2.msra.mxu0 %v6581
    %6661 = vmatprep.mubr.f32.mxu0 %v5926
    %6662 = vmatmul.mubr.f32.gmra.mxu0 %v5924
    %v6663 = vpop.f32.mrf.mxu0
    %v6664 = vadd.f32 0.0, %v6663
    %v6665 = vpop.f32.mrf.mxu0
    %6666 = vmatprep.mubr.f32.mxu0 %v5932
    %6667 = vmatmul.mubr.f32.gmra.mxu0 %v5930
    %v6668 = vpop.f32.mrf.mxu0
    %v6669 = vadd.f32 0.0, %v6668
    %v6670 = vpop.f32.mrf.mxu0
    %6671 = vmatprep.mubr.f32.mxu0 %v5938
    %6672 = vmatmul.mubr.f32.gmra.mxu0 %v5936
    %v6673 = vpop.f32.mrf.mxu0
    %v6674 = vadd.f32 0.0, %v6673
    %v6675 = vpop.f32.mrf.mxu0
    %6676 = vmatprep.mubr.f32.mxu0 %v5944
    %6677 = vmatmul.mubr.f32.gmra.mxu0 %v5942
    %v6678 = vpop.f32.mrf.mxu0
    %v6679 = vadd.f32 0.0, %v6678
    %v6680 = vpop.f32.mrf.mxu0
    %6681 = vdwg.mxu0
    %v6684 = vunpack.c.l.s4 1966171168
    %v6685 = vunpack.c.0.s8 %v6684
    %v6686 = vlaneseq
    %v6687 = vshrl.u32 %v6686, 7
    %v6688 = vsub.s32 %v6685, %v6687
    %v6689 = vrot.slane %v6564, %v6688
    %v6690 = vcombine.high %v6689, %v6689
    %v6692 = vunpack.c.l.s4 1966171168
    %v6693 = vunpack.c.0.s8 %v6692
    %v6694 = vlaneseq
    %v6695 = vshrl.u32 %v6694, 7
    %v6696 = vsub.s32 %v6693, %v6695
    %v6697 = vrot.slane %v6689, %v6696
    %v6699 = vunpack.c.l.s4 1966171168
    %v6700 = vunpack.c.0.s8 %v6699
    %v6701 = vlaneseq
    %v6702 = vshrl.u32 %v6701, 7
    %v6703 = vsub.s32 %v6700, %v6702
    %v6704 = vrot.slane %v6690, %v6703
    %v6705 = vlaneseq
    %v6706 = vshrl.u32 %v6705, 7
    %v6707 = vsub.s32 0, %v6706
    %v6708 = vrot.slane %v6697, %v6707
    %v6709 = vlaneseq
    %v6710 = vshrl.u32 %v6709, 7
    %v6711 = vsub.s32 0, %v6710
    %v6712 = vrot.slane %v6704, %v6711
    %v6715 = vadd.f32 %v6664, %v6708
    %v6716 = vadd.f32 %v6669, %v6708
    %v6717 = vadd.f32 %v6674, %v6712
    %v6718 = vadd.f32 %v6679, %v6712
    %v6719 = vmax.f32 %v6715, 0.0
    %v6720 = vmax.f32 %v6716, 0.0
    %v6721 = vmax.f32 %v6717, 0.0
    %v6722 = vmax.f32 %v6718, 0.0
    %v6723 = vld [vmem:[#allocation10 + $0xb80] sm:$0xff]
    %v6724 = vld [vmem:[#allocation10 + $0xb88] sm:$0xff]
    %v6725 = vld [vmem:[#allocation10 + $0xb90] sm:$0xff]
    %v6726 = vld [vmem:[#allocation10 + $0xb98] sm:$0xff]
    %v6727 = vld [vmem:[#allocation10 + $0xba0] sm:$0xff]
    %v6728 = vld [vmem:[#allocation10 + $0xba8] sm:$0xff]
    %v6729 = vld [vmem:[#allocation10 + $0xbb0] sm:$0xff]
    %v6730 = vld [vmem:[#allocation10 + $0xbb8] sm:$0xff]
    %v6731 = vld [vmem:[#allocation10 + $0xbc0] sm:$0xff]
    %v6732 = vld [vmem:[#allocation10 + $0xbc8] sm:$0xff]
    %v6733 = vld [vmem:[#allocation10 + $0xbd0] sm:$0xff]
    %v6734 = vld [vmem:[#allocation10 + $0xbd8] sm:$0xff]
    %v6735 = vld [vmem:[#allocation10 + $0xbe0] sm:$0xff]
    %v6736 = vld [vmem:[#allocation10 + $0xbe8] sm:$0xff]
    %v6737 = vld [vmem:[#allocation10 + $0xbf0] sm:$0xff]
    %v6738 = vld [vmem:[#allocation10 + $0xbf8] sm:$0xff]
    %v6739 = vld [vmem:[#allocation13 + $0x23] ss:$0 sm:$0xff]
    %6740 = vmatprep.subr.mxu0 0.0
    %6741 = vmatpush1.xpose.msra.mxu0 %v6738
    %6742 = vmatprep.subr.mxu0 0.0
    %6743 = vmatpush1.xpose.msra.mxu0 %v6737
    %6744 = vmatprep.subr.mxu0 0.0
    %6745 = vmatpush1.xpose.msra.mxu0 %v6736
    %6746 = vmatprep.subr.mxu0 0.0
    %6747 = vmatpush1.xpose.msra.mxu0 %v6735
    %6748 = vmatprep.subr.mxu0 0.0
    %6749 = vmatpush1.xpose.msra.mxu0 %v6734
    %6750 = vmatprep.subr.mxu0 0.0
    %6751 = vmatpush1.xpose.msra.mxu0 %v6733
    %6752 = vmatprep.subr.mxu0 0.0
    %6753 = vmatpush1.xpose.msra.mxu0 %v6732
    %6754 = vmatprep.subr.mxu0 0.0
    %6755 = vmatpush1.xpose.msra.mxu0 %v6731
    %6756 = vmatprep.subr.mxu0 0.0
    %6757 = vmatpush1.xpose.msra.mxu0 %v6730
    %6758 = vmatprep.subr.mxu0 0.0
    %6759 = vmatpush1.xpose.msra.mxu0 %v6729
    %6760 = vmatprep.subr.mxu0 0.0
    %6761 = vmatpush1.xpose.msra.mxu0 %v6728
    %6762 = vmatprep.subr.mxu0 0.0
    %6763 = vmatpush1.xpose.msra.mxu0 %v6727
    %6764 = vmatprep.subr.mxu0 0.0
    %6765 = vmatpush1.xpose.msra.mxu0 %v6726
    %6766 = vmatprep.subr.mxu0 0.0
    %6767 = vmatpush1.xpose.msra.mxu0 %v6725
    %6768 = vmatprep.subr.mxu0 0.0
    %6769 = vmatpush1.xpose.msra.mxu0 %v6724
    %6770 = vmatprep.subr.mxu0 0.0
    %6771 = vmatpush1.xpose.msra.mxu0 %v6723
    %6772 = vmatprep.subr.mxu0 0.0
    %6773 = vmatpush2.xpose.msra.mxu0 0.0
    %6774 = vmatprep.subr.mxu0 0.0
    %6775 = vmatpush2.xpose.msra.mxu0 0.0
    %6776 = vmatprep.subr.mxu0 0.0
    %6777 = vmatpush2.xpose.msra.mxu0 0.0
    %6778 = vmatprep.subr.mxu0 0.0
    %6779 = vmatpush2.xpose.msra.mxu0 0.0
    %6780 = vmatprep.subr.mxu0 0.0
    %6781 = vmatpush2.xpose.msra.mxu0 0.0
    %6782 = vmatprep.subr.mxu0 0.0
    %6783 = vmatpush2.xpose.msra.mxu0 0.0
    %6784 = vmatprep.subr.mxu0 0.0
    %6785 = vmatpush2.xpose.msra.mxu0 0.0
    %6786 = vmatprep.subr.mxu0 0.0
    %6787 = vmatpush2.xpose.msra.mxu0 0.0
    %6788 = vmatprep.subr.mxu0 0.0
    %6789 = vmatpush2.xpose.msra.mxu0 0.0
    %6790 = vmatprep.subr.mxu0 0.0
    %6791 = vmatpush2.xpose.msra.mxu0 0.0
    %6792 = vmatprep.subr.mxu0 0.0
    %6793 = vmatpush2.xpose.msra.mxu0 0.0
    %6794 = vmatprep.subr.mxu0 0.0
    %6795 = vmatpush2.xpose.msra.mxu0 0.0
    %6796 = vmatprep.subr.mxu0 0.0
    %6797 = vmatpush2.xpose.msra.mxu0 0.0
    %6798 = vmatprep.subr.mxu0 0.0
    %6799 = vmatpush2.xpose.msra.mxu0 0.0
    %6800 = vmatprep.subr.mxu0 0.0
    %6801 = vmatpush2.xpose.msra.mxu0 0.0
    %6802 = vmatprep.subr.mxu0 0.0
    %6803 = vmatpush2.xpose.msra.mxu0 0.0
    %6804 = vmatprep.mubr.f32.mxu0 0.0
    %6805 = vmatmul.mubr.f32.gmra.mxu0 %v6719
    %v6806 = vpop.f32.mrf.mxu0
    %v6807 = vadd.f32 %v6739, %v6806
    %v6808 = vpop.f32.mrf.mxu0
    %6809 = vmatprep.mubr.f32.mxu0 0.0
    %6810 = vmatmul.mubr.f32.gmra.mxu0 %v6720
    %v6811 = vpop.f32.mrf.mxu0
    %v6812 = vadd.f32 %v6739, %v6811
    %v6813 = vpop.f32.mrf.mxu0
    %6814 = vmatprep.mubr.f32.mxu0 0.0
    %6815 = vmatmul.mubr.f32.gmra.mxu0 %v6721
    %v6816 = vpop.f32.mrf.mxu0
    %v6817 = vadd.f32 %v6739, %v6816
    %v6818 = vpop.f32.mrf.mxu0
    %6819 = vmatprep.mubr.f32.mxu0 0.0
    %6820 = vmatmul.mubr.f32.gmra.mxu0 %v6722
    %v6821 = vpop.f32.mrf.mxu0
    %v6822 = vadd.f32 %v6739, %v6821
    %v6823 = vpop.f32.mrf.mxu0
    %6824 = vdwg.mxu0
    %6825 = vst [vmem:[#allocation15] sm:$0xff] %v6807
    %6826 = vst [vmem:[#allocation15 + $0x8] sm:$0xff] %v6812
    %6827 = vst [vmem:[#allocation15 + $0x10] sm:$0xff] %v6817
    %6828 = vst [vmem:[#allocation15 + $0x18] sm:$0xff] %v6822
    // Predicated region
    $region62: #{tpu_custom_call.1} parent=1 // pred_check
      _
    $region63: #{tpu_custom_call.1} parent=1 // pred_check_branch
      %6830 = sbr.rel (0) target = $region65
    $region64: #{tpu_custom_call.1} parent=1 // pred_region
      %s6832 = ssub.s32 32, 32
      %6833 = vsyncadd [#allocation4], %s6832
      %s6834 = sshll.u32 [#allocation14], 4
      %s6835 = int_to_ptr.vmem [resolvable:$true] %s6834
      %6840 = dma.vmem_to_hbm [thread:$0]  %s6835, 32, %s8, [#allocation4], 16, 16, 1
    $region65: #{tpu_custom_call.1} parent=1 // pred_fallthru
      _
    // Predicated region
    $region66: #{tpu_custom_call.1} parent=1 // pred_check
      _
    $region67: #{tpu_custom_call.1} parent=1 // pred_check_branch
      %6842 = sbr.rel (0) target = $region69
    $region68: #{tpu_custom_call.1} parent=1 // pred_region
      %s6844 = ssub.s32 512, 512
      %6845 = vsyncadd [#allocation16], %s6844
      %s6846 = sshll.u32 [#allocation15], 4
      %s6847 = int_to_ptr.vmem [resolvable:$true] %s6846
      %6852 = dma.vmem_to_hbm [thread:$0]  %s6847, 512, %s9, [#allocation16], 128, 128, 8
    $region69: #{tpu_custom_call.1} parent=1 // pred_fallthru
      _
    // Predicated region
    $region70: #{tpu_custom_call.1} parent=1 // pred_check
      _
    $region71: #{tpu_custom_call.1} parent=1 // pred_check_branch
      %6854 = sbr.rel (0) target = $region73
    $region72: #{tpu_custom_call.1} parent=1 // pred_region
      %6855 = dma.done [#allocation4], 32
    $region73: #{tpu_custom_call.1} parent=1 // pred_fallthru
      _
    // Predicated region
    $region74: #{tpu_custom_call.1} parent=1 // pred_check
      _
    $region75: #{tpu_custom_call.1} parent=1 // pred_check_branch
      %6857 = sbr.rel (0) target = $region77
    $region76: #{tpu_custom_call.1} parent=1 // pred_region
      %6858 = dma.done [#allocation16], 512
    $region77: #{tpu_custom_call.1} parent=1 // pred_fallthru
      _
    %6859 = vsyncpa [#allocation3], 1
    %6860 = vsyncpa [#allocation6], 1
    %6861 = vsyncpa [#allocation9], 1
    %6862 = vsyncpa [#allocation12], 1
    %6863 = vsyncpa [#allocation4], 1
    %6864 = vsyncpa [#allocation16], 1

</llo_original>
